<compile_context>
chip_gen: v5e
topology: v5e:2x2
jax: 0.10.0
libtpu: 0.0.40
codegen_flags: <defaults>
</compile_context>

<pallas_src>
import numpy as np

import jax
import jax.numpy as jnp
from jax.experimental import pallas as pl
from jax.experimental.pallas import tpu as pltpu


# ---------------------------------------------------------------------------
# Model geometry (fixed by the PyTorch module: CIFAR 32x32x3 input).
# ---------------------------------------------------------------------------
H0 = W0 = 32             # input spatial
C0 = 3                   # input channels
K = 5                    # conv kernel size (both convs)
C1 = 6                   # conv1 out channels
C2 = 16                  # conv2 out channels
OH1 = OW1 = H0 - K + 1   # 28
PH1 = PW1 = OH1 // 2     # 14
OH2 = OW2 = PH1 - K + 1  # 10
PH2 = PW2 = OH2 // 2     # 5
NFC1 = 128
NFC2 = 100
N2PAD = 128              # lane-dense padded logits width

TB = 8                   # images per grid step (stacked along M)


# ---------------------------------------------------------------------------
# Fused forward kernel: one grid step == TB images, everything stays in VMEM.
# Row layouts (per grid step):
#   x_ref    : (TB*32 + 4, 96)   image g occupies rows [g*32, g*32+32), 4 pad rows
#   conv1 acc: (TB*32, 168)      rows g*32+oh, oh<28 useful, 28..31 garbage
#   pool1    : (TB*14 + 4, 84)   rows g*14+p,  p<14 useful, 4 zero pad rows
#   conv2 acc: (TB*14, 160)      rows g*14+oh, oh<10 useful, 10..13 garbage
#   pool2    : (TB*5 + 4, 80)    rows g*5+p,   p<5 useful, 4 zero pad rows
#   fc1 acc  : (TB*5, 128)       row g*5 useful, rows g*5+1..4 garbage
#   out      : (TB, 128)         lane-dense logits (first 100 valid)
# ---------------------------------------------------------------------------
def _net_kernel(x_ref,
                w1_ref, b1_ref, t1e_ref, t1o_ref, s1_ref,
                w2_ref, b2_ref, t2e_ref, t2o_ref, s2_ref,
                wfc1_ref, bfc1_ref, sfc_ref, wfc2_ref, bfc2_ref,
                out_ref,
                acc1_ref):
    f32, bf16 = jnp.float32, jnp.bfloat16
    R1, R2, R3 = TB * H0, TB * PH1, TB * PH2

    # ---- conv1 (+ bias + tanh): 5 M-stacked MXU matmuls, M = TB*32 ----------
    acc1_ref[...] = jnp.dot(x_ref[0:R1, :].astype(bf16), w1_ref[0],
                            preferred_element_type=f32)
    for dy in range(1, K):
        acc1_ref[...] += jnp.dot(x_ref[dy:dy + R1, :].astype(bf16), w1_ref[dy],
                                 preferred_element_type=f32)
    a1 = jnp.tanh(acc1_ref[...] + b1_ref[...]).astype(bf16)        # (R1, 168)

    # ---- maxpool1: column selection (MXU, bf16), row-pair max, row selection
    c1 = jnp.maximum(jnp.dot(a1, t1e_ref[...], preferred_element_type=f32),
                     jnp.dot(a1, t1o_ref[...], preferred_element_type=f32))   # (R1, 84)
    y1 = jnp.maximum(c1[:-1, :], c1[1:, :]).astype(bf16)            # (R1-1, 84)
    pool1 = jnp.dot(s1_ref[...], y1, preferred_element_type=f32)    # (R2+4, 84)

    # ---- conv2 (+ bias + tanh), M = TB*14 -----------------------------------
    acc2 = jnp.dot(pool1[0:R2, :].astype(bf16), w2_ref[0],
                   preferred_element_type=f32)
    for dy in range(1, K):
        acc2 = acc2 + jnp.dot(pool1[dy:dy + R2, :].astype(bf16), w2_ref[dy],
                              preferred_element_type=f32)
    a2 = jnp.tanh(acc2 + b2_ref[...]).astype(bf16)                  # (R2, 160)

    # ---- maxpool2 ------------------------------------------------------------
    c2 = jnp.maximum(jnp.dot(a2, t2e_ref[...], preferred_element_type=f32),
                     jnp.dot(a2, t2o_ref[...], preferred_element_type=f32))   # (R2, 80)
    y2 = jnp.maximum(c2[:-1, :], c2[1:, :]).astype(bf16)            # (R2-1, 80)
    pool2 = jnp.dot(s2_ref[...], y2, preferred_element_type=f32)    # (R3+4, 80)

    # ---- fc1 (+ bias + tanh), M = TB*5 ---------------------------------------
    acc3 = jnp.dot(pool2[0:R3, :].astype(bf16), wfc1_ref[0],
                   preferred_element_type=f32)
    for h in range(1, PH2):
        acc3 = acc3 + jnp.dot(pool2[h:h + R3, :].astype(bf16), wfc1_ref[h],
                              preferred_element_type=f32)
    h1 = jnp.tanh(acc3 + bfc1_ref[...]).astype(bf16)                # (R3, 128)

    # ---- select one row per image (r = g*5), then fc2 (lane-dense output) ----
    h1_sel = jnp.dot(sfc_ref[...], h1,
                     preferred_element_type=f32).astype(bf16)       # (TB, 128)
    logits = jnp.dot(h1_sel, wfc2_ref[...],
                     preferred_element_type=f32) + bfc2_ref[...]    # (TB, 128)
    out_ref[...] = logits.astype(out_ref.dtype)


# ---------------------------------------------------------------------------
# One-time parameter preprocessing (band matrices, pooling/selection matrices).
# ---------------------------------------------------------------------------
def _band_matrices(w, w_in, dtype):
    """w: conv weight (Cout, Cin, KH, KW).  Returns (KH, w_in*Cin, OW*Cout)
    banded block-Toeplitz matrices so that
    conv(x)[oh, ow*Cout+co] = sum_dy (X[oh+dy, :] @ W[dy])[ow*Cout+co],
    with X the image in (H, W*Cin) layout."""
    c_out, c_in, kh, kw = w.shape
    ow = w_in - kw + 1
    mats = []
    for dy in range(kh):
        m = jnp.zeros((w_in * c_in, ow * c_out), jnp.float32)
        for dx in range(kw):
            band = np.eye(w_in, ow, k=-dx, dtype=np.float32)
            m = m + jnp.kron(jnp.asarray(band), w[:, :, dy, dx].T.astype(jnp.float32))
        mats.append(m)
    return jnp.stack(mats).astype(dtype)


def _col_pool_matrices(ow, c):
    """0/1 matrices (OW*C, PW*C) selecting even / odd column groups."""
    pw = ow // 2
    ee = np.zeros((ow, pw), np.float32)
    ee[2 * np.arange(pw), np.arange(pw)] = 1.0
    eo = np.zeros((ow, pw), np.float32)
    eo[2 * np.arange(pw) + 1, np.arange(pw)] = 1.0
    eye_c = np.eye(c, dtype=np.float32)
    return np.kron(ee, eye_c), np.kron(eo, eye_c)


def _row_select_matrix(tb, stride_in, n_out, pad_rows):
    """0/1 matrix (tb*n_out + pad_rows, tb*stride_in - 1) picking row 2p of each
    stride_in-row image group; trailing pad_rows rows are all zero."""
    s = np.zeros((tb * n_out + pad_rows, tb * stride_in - 1), np.float32)
    for g in range(tb):
        for p in range(n_out):
            s[g * n_out + p, g * stride_in + 2 * p] = 1.0
    return s


def prepare_params(params, tb=TB, mxu_dtype=jnp.bfloat16):
    """Bake all layout transforms once so the kernel only does matmuls/max/tanh."""
    t1e, t1o = _col_pool_matrices(OW1, C1)                    # (168, 84)
    t2e, t2o = _col_pool_matrices(OW2, C2)                    # (160, 80)
    s1 = _row_select_matrix(tb, H0, PH1, K - 1)               # (tb*14+4, tb*32-1)
    s2 = _row_select_matrix(tb, PH1, PH2, K - 1)              # (tb*5+4,  tb*14-1)
    sfc = np.zeros((tb, tb * PH2), np.float32)
    sfc[np.arange(tb), np.arange(tb) * PH2] = 1.0             # (tb, tb*5)

    # fc1 weight permuted to the in-kernel (h, w*C2+c) layout while preserving
    # torch's view(-1, 16*5*5) == (c, h, w) flatten order.
    wfc1 = params["w_fc1"].reshape(NFC1, C2, PH2, PW2)        # (n, c, h, w)
    wfc1 = jnp.transpose(wfc1, (2, 3, 1, 0)).reshape(PH2, PW2 * C2, NFC1)

    wfc2 = jnp.zeros((NFC1, N2PAD), jnp.float32).at[:, :NFC2].set(params["w_fc2"].T)
    bfc2 = jnp.zeros((1, N2PAD), jnp.float32).at[:, :NFC2].set(params["b_fc2"])

    return {
        "w1": _band_matrices(params["w_conv1"], W0, mxu_dtype),               # (5, 96, 168)
        "b1": jnp.tile(params["b_conv1"], OW1).reshape(1, OW1 * C1).astype(jnp.float32),
        "t1e": jnp.asarray(t1e, mxu_dtype), "t1o": jnp.asarray(t1o, mxu_dtype),
        "s1": jnp.asarray(s1, mxu_dtype),
        "w2": _band_matrices(params["w_conv2"], PW1, mxu_dtype),              # (5, 84, 160)
        "b2": jnp.tile(params["b_conv2"], OW2).reshape(1, OW2 * C2).astype(jnp.float32),
        "t2e": jnp.asarray(t2e, mxu_dtype), "t2o": jnp.asarray(t2o, mxu_dtype),
        "s2": jnp.asarray(s2, mxu_dtype),
        "wfc1": wfc1.astype(mxu_dtype),                                       # (5, 80, 128)
        "bfc1": params["b_fc1"].reshape(1, NFC1).astype(jnp.float32),
        "sfc": jnp.asarray(sfc, mxu_dtype),
        "wfc2": wfc2.astype(mxu_dtype),                                       # (128, 128)
        "bfc2": bfc2,                                                         # (1, 128)
    }


# ---------------------------------------------------------------------------
# Wrapper: single fused pallas_call, grid over batch blocks of TB images.
# ---------------------------------------------------------------------------
def net_cifar100_forward(x_nchw, prep):
    B = x_nchw.shape[0]
    nb = -(-B // TB)            # number of grid steps
    bp = nb * TB                # padded batch

    # NCHW -> NHWC -> (B, H, W*Cin); pad batch to a multiple of TB; stack each
    # TB-image block along rows and append K-1 zero rows (band-matmul tail).
    x2 = jnp.transpose(x_nchw, (0, 2, 3, 1)).reshape(B, H0, W0 * C0).astype(jnp.float32)
    if bp != B:
        x2 = jnp.pad(x2, ((0, bp - B), (0, 0), (0, 0)))
    xb = x2.reshape(nb, TB * H0, W0 * C0)
    xb = jnp.pad(xb, ((0, 0), (0, K - 1), (0, 0)))              # (nb, TB*32+4, 96)

    names = ("w1", "b1", "t1e", "t1o", "s1",
             "w2", "b2", "t2e", "t2o", "s2",
             "wfc1", "bfc1", "sfc", "wfc2", "bfc2")
    operands = [prep[n] for n in names]

    def full_spec(a):
        nd = a.ndim
        return pl.BlockSpec(a.shape, lambda b, _nd=nd: (0,) * _nd)

    out = pl.pallas_call(
        _net_kernel,
        grid=(nb,),
        out_shape=jax.ShapeDtypeStruct((bp, N2PAD), jnp.float32),
        in_specs=[pl.BlockSpec((None, TB * H0 + K - 1, W0 * C0), lambda b: (b, 0, 0))]
                 + [full_spec(a) for a in operands],
        out_specs=pl.BlockSpec((TB, N2PAD), lambda b: (b, 0)),
        scratch_shapes=[pltpu.VMEM((TB * H0, OW1 * C1), jnp.float32)],
        compiler_params=pltpu.CompilerParams(dimension_semantics=("parallel",)),
    )(xb, *operands)
    return out[:B, :NFC2]


# ---------------------------------------------------------------------------
# Pure-JAX reference (mirrors the PyTorch module) and synthetic params.
# ---------------------------------------------------------------------------
def reference_forward(x_nchw, params):
    x = jnp.transpose(x_nchw, (0, 2, 3, 1))  # NHWC

    def conv(x, w, b):
        out = jax.lax.conv_general_dilated(
            x, jnp.transpose(w, (2, 3, 1, 0)), window_strides=(1, 1),
            padding="VALID", dimension_numbers=("NHWC", "HWIO", "NHWC"))
        return jnp.tanh(out + b)

    def pool(x):
        B, H, W, C = x.shape
        return x.reshape(B, H // 2, 2, W // 2, 2, C).max(axis=(2, 4))

    x = pool(conv(x, params["w_conv1"], params["b_conv1"]))
    x = pool(conv(x, params["w_conv2"], params["b_conv2"]))
    B = x.shape[0]
    x = jnp.transpose(x, (0, 3, 1, 2)).reshape(B, C2 * PH2 * PW2)  # torch view order
    x = jnp.tanh(x @ params["w_fc1"].T + params["b_fc1"])
    return x @ params["w_fc2"].T + params["b_fc2"]


def init_params(key):
    ks = jax.random.split(key, 8)
    return {
        "w_conv1": jax.random.normal(ks[0], (6, 3, 5, 5), jnp.float32) * 0.1,
        "b_conv1": jax.random.normal(ks[1], (6,), jnp.float32) * 0.1,
        "w_conv2": jax.random.normal(ks[2], (16, 6, 5, 5), jnp.float32) * 0.1,
        "b_conv2": jax.random.normal(ks[3], (16,), jnp.float32) * 0.1,
        "w_fc1": jax.random.normal(ks[4], (128, 400), jnp.float32) * 0.05,
        "b_fc1": jax.random.normal(ks[5], (128,), jnp.float32) * 0.05,
        "w_fc2": jax.random.normal(ks[6], (100, 128), jnp.float32) * 0.05,
        "b_fc2": jax.random.normal(ks[7], (100,), jnp.float32) * 0.05,
    }


if __name__ == "__main__":
    key = jax.random.PRNGKey(0)
    k_x, k_p = jax.random.split(key)

    B = 16                                       # 2 grid steps of TB=8 images
    x = jax.random.normal(k_x, (B, 3, 32, 32), jnp.float32)   # NCHW like torch
    params = init_params(k_p)
    prep = prepare_params(params)                # one-time layout transforms

    out = jax.block_until_ready(jax.jit(net_cifar100_forward)(x, prep))

    assert out.shape == (B, NFC2), out.shape
    assert out.dtype == jnp.float32
    assert bool(jnp.all(jnp.isfinite(out)))

    # Correctness vs. pure-JAX reference (loose tolerance for bf16 MXU operands).
    ref = jax.block_until_ready(jax.jit(reference_forward)(x, params))
    np.testing.assert_allclose(np.asarray(out), np.asarray(ref), atol=5e-2, rtol=5e-2)

    print("KERNEL_OK")
</pallas_src>

<mosaic_0001>
module attributes {stable_mosaic.version = 11 : i64} {
  func.func @_net_kernel(%arg0: i32, %arg1: memref<1x260x96xf32, #tpu.memory_space<vmem>>, %arg2: memref<5x96x168xbf16, #tpu.memory_space<vmem>>, %arg3: memref<1x168xf32, #tpu.memory_space<vmem>>, %arg4: memref<168x84xbf16, #tpu.memory_space<vmem>>, %arg5: memref<168x84xbf16, #tpu.memory_space<vmem>>, %arg6: memref<116x255xbf16, #tpu.memory_space<vmem>>, %arg7: memref<5x84x160xbf16, #tpu.memory_space<vmem>>, %arg8: memref<1x160xf32, #tpu.memory_space<vmem>>, %arg9: memref<160x80xbf16, #tpu.memory_space<vmem>>, %arg10: memref<160x80xbf16, #tpu.memory_space<vmem>>, %arg11: memref<44x111xbf16, #tpu.memory_space<vmem>>, %arg12: memref<5x80x128xbf16, #tpu.memory_space<vmem>>, %arg13: memref<1x128xf32, #tpu.memory_space<vmem>>, %arg14: memref<8x40xbf16, #tpu.memory_space<vmem>>, %arg15: memref<128x128xbf16, #tpu.memory_space<vmem>>, %arg16: memref<1x128xf32, #tpu.memory_space<vmem>>, %arg17: memref<8x128xf32, #tpu.memory_space<vmem>>, %arg18: memref<256x168xf32, #tpu.memory_space<vmem>>) attributes {dimension_semantics = [#tpu.dimension_semantics<parallel>], iteration_bounds = array<i64: 2>, scalar_prefetch = 0 : i64, scratch_operands = 1 : i64, tpu.core_type = #tpu.core_type<tc>, window_params = [{transform_indices = @transform_0, window_bounds = array<i64: 1, 260, 96>}, {pipeline_mode = #tpu.pipeline_mode<synchronous>, transform_indices = @transform_1, window_bounds = array<i64: 5, 96, 168>}, {pipeline_mode = #tpu.pipeline_mode<synchronous>, transform_indices = @transform_2, window_bounds = array<i64: 1, 168>}, {pipeline_mode = #tpu.pipeline_mode<synchronous>, transform_indices = @transform_3, window_bounds = array<i64: 168, 84>}, {pipeline_mode = #tpu.pipeline_mode<synchronous>, transform_indices = @transform_4, window_bounds = array<i64: 168, 84>}, {pipeline_mode = #tpu.pipeline_mode<synchronous>, transform_indices = @transform_5, window_bounds = array<i64: 116, 255>}, {pipeline_mode = #tpu.pipeline_mode<synchronous>, transform_indices = @transform_6, window_bounds = array<i64: 5, 84, 160>}, {pipeline_mode = #tpu.pipeline_mode<synchronous>, transform_indices = @transform_7, window_bounds = array<i64: 1, 160>}, {pipeline_mode = #tpu.pipeline_mode<synchronous>, transform_indices = @transform_8, window_bounds = array<i64: 160, 80>}, {pipeline_mode = #tpu.pipeline_mode<synchronous>, transform_indices = @transform_9, window_bounds = array<i64: 160, 80>}, {pipeline_mode = #tpu.pipeline_mode<synchronous>, transform_indices = @transform_10, window_bounds = array<i64: 44, 111>}, {pipeline_mode = #tpu.pipeline_mode<synchronous>, transform_indices = @transform_11, window_bounds = array<i64: 5, 80, 128>}, {pipeline_mode = #tpu.pipeline_mode<synchronous>, transform_indices = @transform_12, window_bounds = array<i64: 1, 128>}, {pipeline_mode = #tpu.pipeline_mode<synchronous>, transform_indices = @transform_13, window_bounds = array<i64: 8, 40>}, {pipeline_mode = #tpu.pipeline_mode<synchronous>, transform_indices = @transform_14, window_bounds = array<i64: 128, 128>}, {pipeline_mode = #tpu.pipeline_mode<synchronous>, transform_indices = @transform_15, window_bounds = array<i64: 1, 128>}, {transform_indices = @transform_16, window_bounds = array<i64: 8, 128>}]} {
    %c0 = arith.constant 0 : index
    %c0_0 = arith.constant 0 : index
    %c0_1 = arith.constant 0 : index
    %0 = vector.load %arg1[%c0, %c0_0, %c0_1] : memref<1x260x96xf32, #tpu.memory_space<vmem>>, vector<1x256x96xf32>
    %1 = vector.shape_cast %0 : vector<1x256x96xf32> to vector<256x96xf32>
    %2 = arith.truncf %1 : vector<256x96xf32> to vector<256x96xbf16>
    %c0_2 = arith.constant 0 : index
    %c0_3 = arith.constant 0 : index
    %c0_4 = arith.constant 0 : index
    %3 = vector.load %arg2[%c0_2, %c0_3, %c0_4] : memref<5x96x168xbf16, #tpu.memory_space<vmem>>, vector<1x96x168xbf16>
    %4 = vector.shape_cast %3 : vector<1x96x168xbf16> to vector<96x168xbf16>
    %cst = arith.constant dense<0.000000e+00> : vector<256x168xf32>
    %5 = tpu.matmul %2, %4, %cst {dimension_numbers = #tpu.dot_dimension_numbers<[1], [0], [0], [1], [0, 0, 1, 1], [], []>} : vector<256x96xbf16>, vector<96x168xbf16>, vector<256x168xf32> -> vector<256x168xf32>
    %c0_5 = arith.constant 0 : index
    %c0_6 = arith.constant 0 : index
    %6 = vector.load %arg18[%c0_5, %c0_6] : memref<256x168xf32, #tpu.memory_space<vmem>>, vector<256x168xf32>
    tpu.vector_store %arg18[%c0_5, %c0_6], %5 {strides = array<i32>} : memref<256x168xf32, #tpu.memory_space<vmem>>, vector<256x168xf32>,
    %c0_7 = arith.constant 0 : index
    %c0_8 = arith.constant 0 : index
    %7 = vector.load %arg18[%c0_7, %c0_8] : memref<256x168xf32, #tpu.memory_space<vmem>>, vector<256x168xf32>
    %c0_9 = arith.constant 0 : index
    %c1 = arith.constant 1 : index
    %c0_10 = arith.constant 0 : index
    %8 = vector.load %arg1[%c0_9, %c1, %c0_10] : memref<1x260x96xf32, #tpu.memory_space<vmem>>, vector<1x256x96xf32>
    %9 = vector.shape_cast %8 : vector<1x256x96xf32> to vector<256x96xf32>
    %10 = arith.truncf %9 : vector<256x96xf32> to vector<256x96xbf16>
    %c1_11 = arith.constant 1 : index
    %c0_12 = arith.constant 0 : index
    %c0_13 = arith.constant 0 : index
    %11 = vector.load %arg2[%c1_11, %c0_12, %c0_13] : memref<5x96x168xbf16, #tpu.memory_space<vmem>>, vector<1x96x168xbf16>
    %12 = vector.shape_cast %11 : vector<1x96x168xbf16> to vector<96x168xbf16>
    %cst_14 = arith.constant dense<0.000000e+00> : vector<256x168xf32>
    %13 = tpu.matmul %10, %12, %cst_14 {dimension_numbers = #tpu.dot_dimension_numbers<[1], [0], [0], [1], [0, 0, 1, 1], [], []>} : vector<256x96xbf16>, vector<96x168xbf16>, vector<256x168xf32> -> vector<256x168xf32>
    %14 = arith.addf %7, %13 : vector<256x168xf32>
    %c0_15 = arith.constant 0 : index
    %c0_16 = arith.constant 0 : index
    %15 = vector.load %arg18[%c0_15, %c0_16] : memref<256x168xf32, #tpu.memory_space<vmem>>, vector<256x168xf32>
    tpu.vector_store %arg18[%c0_15, %c0_16], %14 {strides = array<i32>} : memref<256x168xf32, #tpu.memory_space<vmem>>, vector<256x168xf32>,
    %c0_17 = arith.constant 0 : index
    %c0_18 = arith.constant 0 : index
    %16 = vector.load %arg18[%c0_17, %c0_18] : memref<256x168xf32, #tpu.memory_space<vmem>>, vector<256x168xf32>
    %c0_19 = arith.constant 0 : index
    %c2 = arith.constant 2 : index
    %c0_20 = arith.constant 0 : index
    %17 = vector.load %arg1[%c0_19, %c2, %c0_20] : memref<1x260x96xf32, #tpu.memory_space<vmem>>, vector<1x256x96xf32>
    %18 = vector.shape_cast %17 : vector<1x256x96xf32> to vector<256x96xf32>
    %19 = arith.truncf %18 : vector<256x96xf32> to vector<256x96xbf16>
    %c2_21 = arith.constant 2 : index
    %c0_22 = arith.constant 0 : index
    %c0_23 = arith.constant 0 : index
    %20 = vector.load %arg2[%c2_21, %c0_22, %c0_23] : memref<5x96x168xbf16, #tpu.memory_space<vmem>>, vector<1x96x168xbf16>
    %21 = vector.shape_cast %20 : vector<1x96x168xbf16> to vector<96x168xbf16>
    %cst_24 = arith.constant dense<0.000000e+00> : vector<256x168xf32>
    %22 = tpu.matmul %19, %21, %cst_24 {dimension_numbers = #tpu.dot_dimension_numbers<[1], [0], [0], [1], [0, 0, 1, 1], [], []>} : vector<256x96xbf16>, vector<96x168xbf16>, vector<256x168xf32> -> vector<256x168xf32>
    %23 = arith.addf %16, %22 : vector<256x168xf32>
    %c0_25 = arith.constant 0 : index
    %c0_26 = arith.constant 0 : index
    %24 = vector.load %arg18[%c0_25, %c0_26] : memref<256x168xf32, #tpu.memory_space<vmem>>, vector<256x168xf32>
    tpu.vector_store %arg18[%c0_25, %c0_26], %23 {strides = array<i32>} : memref<256x168xf32, #tpu.memory_space<vmem>>, vector<256x168xf32>,
    %c0_27 = arith.constant 0 : index
    %c0_28 = arith.constant 0 : index
    %25 = vector.load %arg18[%c0_27, %c0_28] : memref<256x168xf32, #tpu.memory_space<vmem>>, vector<256x168xf32>
    %c0_29 = arith.constant 0 : index
    %c3 = arith.constant 3 : index
    %c0_30 = arith.constant 0 : index
    %26 = vector.load %arg1[%c0_29, %c3, %c0_30] : memref<1x260x96xf32, #tpu.memory_space<vmem>>, vector<1x256x96xf32>
    %27 = vector.shape_cast %26 : vector<1x256x96xf32> to vector<256x96xf32>
    %28 = arith.truncf %27 : vector<256x96xf32> to vector<256x96xbf16>
    %c3_31 = arith.constant 3 : index
    %c0_32 = arith.constant 0 : index
    %c0_33 = arith.constant 0 : index
    %29 = vector.load %arg2[%c3_31, %c0_32, %c0_33] : memref<5x96x168xbf16, #tpu.memory_space<vmem>>, vector<1x96x168xbf16>
    %30 = vector.shape_cast %29 : vector<1x96x168xbf16> to vector<96x168xbf16>
    %cst_34 = arith.constant dense<0.000000e+00> : vector<256x168xf32>
    %31 = tpu.matmul %28, %30, %cst_34 {dimension_numbers = #tpu.dot_dimension_numbers<[1], [0], [0], [1], [0, 0, 1, 1], [], []>} : vector<256x96xbf16>, vector<96x168xbf16>, vector<256x168xf32> -> vector<256x168xf32>
    %32 = arith.addf %25, %31 : vector<256x168xf32>
    %c0_35 = arith.constant 0 : index
    %c0_36 = arith.constant 0 : index
    %33 = vector.load %arg18[%c0_35, %c0_36] : memref<256x168xf32, #tpu.memory_space<vmem>>, vector<256x168xf32>
    tpu.vector_store %arg18[%c0_35, %c0_36], %32 {strides = array<i32>} : memref<256x168xf32, #tpu.memory_space<vmem>>, vector<256x168xf32>,
    %c0_37 = arith.constant 0 : index
    %c0_38 = arith.constant 0 : index
    %34 = vector.load %arg18[%c0_37, %c0_38] : memref<256x168xf32, #tpu.memory_space<vmem>>, vector<256x168xf32>
    %c0_39 = arith.constant 0 : index
    %c4 = arith.constant 4 : index
    %c0_40 = arith.constant 0 : index
    %35 = vector.load %arg1[%c0_39, %c4, %c0_40] : memref<1x260x96xf32, #tpu.memory_space<vmem>>, vector<1x256x96xf32>
    %36 = vector.shape_cast %35 : vector<1x256x96xf32> to vector<256x96xf32>
    %37 = arith.truncf %36 : vector<256x96xf32> to vector<256x96xbf16>
    %c4_41 = arith.constant 4 : index
    %c0_42 = arith.constant 0 : index
    %c0_43 = arith.constant 0 : index
    %38 = vector.load %arg2[%c4_41, %c0_42, %c0_43] : memref<5x96x168xbf16, #tpu.memory_space<vmem>>, vector<1x96x168xbf16>
    %39 = vector.shape_cast %38 : vector<1x96x168xbf16> to vector<96x168xbf16>
    %cst_44 = arith.constant dense<0.000000e+00> : vector<256x168xf32>
    %40 = tpu.matmul %37, %39, %cst_44 {dimension_numbers = #tpu.dot_dimension_numbers<[1], [0], [0], [1], [0, 0, 1, 1], [], []>} : vector<256x96xbf16>, vector<96x168xbf16>, vector<256x168xf32> -> vector<256x168xf32>
    %41 = arith.addf %34, %40 : vector<256x168xf32>
    %c0_45 = arith.constant 0 : index
    %c0_46 = arith.constant 0 : index
    %42 = vector.load %arg18[%c0_45, %c0_46] : memref<256x168xf32, #tpu.memory_space<vmem>>, vector<256x168xf32>
    tpu.vector_store %arg18[%c0_45, %c0_46], %41 {strides = array<i32>} : memref<256x168xf32, #tpu.memory_space<vmem>>, vector<256x168xf32>,
    %c0_47 = arith.constant 0 : index
    %c0_48 = arith.constant 0 : index
    %43 = vector.load %arg18[%c0_47, %c0_48] : memref<256x168xf32, #tpu.memory_space<vmem>>, vector<256x168xf32>
    %c0_49 = arith.constant 0 : index
    %c0_50 = arith.constant 0 : index
    %44 = vector.load %arg3[%c0_49, %c0_50] : memref<1x168xf32, #tpu.memory_space<vmem>>, vector<1x168xf32>
    %45 = vector.broadcast %44 : vector<1x168xf32> to vector<256x168xf32>
    %46 = arith.addf %43, %45 : vector<256x168xf32>
    %47 = math.tanh %46 : vector<256x168xf32>
    %48 = arith.truncf %47 : vector<256x168xf32> to vector<256x168xbf16>
    %c0_51 = arith.constant 0 : index
    %c0_52 = arith.constant 0 : index
    %49 = vector.load %arg4[%c0_51, %c0_52] : memref<168x84xbf16, #tpu.memory_space<vmem>>, vector<168x84xbf16>
    %cst_53 = arith.constant dense<0.000000e+00> : vector<256x84xf32>
    %50 = tpu.matmul %48, %49, %cst_53 {dimension_numbers = #tpu.dot_dimension_numbers<[1], [0], [0], [1], [0, 0, 1, 1], [], []>} : vector<256x168xbf16>, vector<168x84xbf16>, vector<256x84xf32> -> vector<256x84xf32>
    %c0_54 = arith.constant 0 : index
    %c0_55 = arith.constant 0 : index
    %51 = vector.load %arg5[%c0_54, %c0_55] : memref<168x84xbf16, #tpu.memory_space<vmem>>, vector<168x84xbf16>
    %cst_56 = arith.constant dense<0.000000e+00> : vector<256x84xf32>
    %52 = tpu.matmul %48, %51, %cst_56 {dimension_numbers = #tpu.dot_dimension_numbers<[1], [0], [0], [1], [0, 0, 1, 1], [], []>} : vector<256x168xbf16>, vector<168x84xbf16>, vector<256x84xf32> -> vector<256x84xf32>
    %53 = arith.maximumf %50, %52 : vector<256x84xf32>
    %54 = vector.extract_strided_slice %53 {offsets = [0, 0], sizes = [255, 84], strides = [1, 1]} : vector<256x84xf32> to vector<255x84xf32>
    %55 = vector.extract_strided_slice %53 {offsets = [1, 0], sizes = [255, 84], strides = [1, 1]} : vector<256x84xf32> to vector<255x84xf32>
    %56 = arith.maximumf %54, %55 : vector<255x84xf32>
    %57 = arith.truncf %56 : vector<255x84xf32> to vector<255x84xbf16>
    %c0_57 = arith.constant 0 : index
    %c0_58 = arith.constant 0 : index
    %58 = vector.load %arg6[%c0_57, %c0_58] : memref<116x255xbf16, #tpu.memory_space<vmem>>, vector<116x255xbf16>
    %cst_59 = arith.constant dense<0.000000e+00> : vector<116x84xf32>
    %59 = tpu.matmul %58, %57, %cst_59 {dimension_numbers = #tpu.dot_dimension_numbers<[1], [0], [0], [1], [0, 0, 1, 1], [], []>} : vector<116x255xbf16>, vector<255x84xbf16>, vector<116x84xf32> -> vector<116x84xf32>
    %60 = vector.extract_strided_slice %59 {offsets = [0, 0], sizes = [112, 84], strides = [1, 1]} : vector<116x84xf32> to vector<112x84xf32>
    %61 = arith.truncf %60 : vector<112x84xf32> to vector<112x84xbf16>
    %c0_60 = arith.constant 0 : index
    %c0_61 = arith.constant 0 : index
    %c0_62 = arith.constant 0 : index
    %62 = vector.load %arg7[%c0_60, %c0_61, %c0_62] : memref<5x84x160xbf16, #tpu.memory_space<vmem>>, vector<1x84x160xbf16>
    %63 = vector.shape_cast %62 : vector<1x84x160xbf16> to vector<84x160xbf16>
    %cst_63 = arith.constant dense<0.000000e+00> : vector<112x160xf32>
    %64 = tpu.matmul %61, %63, %cst_63 {dimension_numbers = #tpu.dot_dimension_numbers<[1], [0], [0], [1], [0, 0, 1, 1], [], []>} : vector<112x84xbf16>, vector<84x160xbf16>, vector<112x160xf32> -> vector<112x160xf32>
    %65 = vector.extract_strided_slice %59 {offsets = [1, 0], sizes = [112, 84], strides = [1, 1]} : vector<116x84xf32> to vector<112x84xf32>
    %66 = arith.truncf %65 : vector<112x84xf32> to vector<112x84xbf16>
    %c1_64 = arith.constant 1 : index
    %c0_65 = arith.constant 0 : index
    %c0_66 = arith.constant 0 : index
    %67 = vector.load %arg7[%c1_64, %c0_65, %c0_66] : memref<5x84x160xbf16, #tpu.memory_space<vmem>>, vector<1x84x160xbf16>
    %68 = vector.shape_cast %67 : vector<1x84x160xbf16> to vector<84x160xbf16>
    %cst_67 = arith.constant dense<0.000000e+00> : vector<112x160xf32>
    %69 = tpu.matmul %66, %68, %cst_67 {dimension_numbers = #tpu.dot_dimension_numbers<[1], [0], [0], [1], [0, 0, 1, 1], [], []>} : vector<112x84xbf16>, vector<84x160xbf16>, vector<112x160xf32> -> vector<112x160xf32>
    %70 = arith.addf %64, %69 : vector<112x160xf32>
    %71 = vector.extract_strided_slice %59 {offsets = [2, 0], sizes = [112, 84], strides = [1, 1]} : vector<116x84xf32> to vector<112x84xf32>
    %72 = arith.truncf %71 : vector<112x84xf32> to vector<112x84xbf16>
    %c2_68 = arith.constant 2 : index
    %c0_69 = arith.constant 0 : index
    %c0_70 = arith.constant 0 : index
    %73 = vector.load %arg7[%c2_68, %c0_69, %c0_70] : memref<5x84x160xbf16, #tpu.memory_space<vmem>>, vector<1x84x160xbf16>
    %74 = vector.shape_cast %73 : vector<1x84x160xbf16> to vector<84x160xbf16>
    %cst_71 = arith.constant dense<0.000000e+00> : vector<112x160xf32>
    %75 = tpu.matmul %72, %74, %cst_71 {dimension_numbers = #tpu.dot_dimension_numbers<[1], [0], [0], [1], [0, 0, 1, 1], [], []>} : vector<112x84xbf16>, vector<84x160xbf16>, vector<112x160xf32> -> vector<112x160xf32>
    %76 = arith.addf %70, %75 : vector<112x160xf32>
    %77 = vector.extract_strided_slice %59 {offsets = [3, 0], sizes = [112, 84], strides = [1, 1]} : vector<116x84xf32> to vector<112x84xf32>
    %78 = arith.truncf %77 : vector<112x84xf32> to vector<112x84xbf16>
    %c3_72 = arith.constant 3 : index
    %c0_73 = arith.constant 0 : index
    %c0_74 = arith.constant 0 : index
    %79 = vector.load %arg7[%c3_72, %c0_73, %c0_74] : memref<5x84x160xbf16, #tpu.memory_space<vmem>>, vector<1x84x160xbf16>
    %80 = vector.shape_cast %79 : vector<1x84x160xbf16> to vector<84x160xbf16>
    %cst_75 = arith.constant dense<0.000000e+00> : vector<112x160xf32>
    %81 = tpu.matmul %78, %80, %cst_75 {dimension_numbers = #tpu.dot_dimension_numbers<[1], [0], [0], [1], [0, 0, 1, 1], [], []>} : vector<112x84xbf16>, vector<84x160xbf16>, vector<112x160xf32> -> vector<112x160xf32>
    %82 = arith.addf %76, %81 : vector<112x160xf32>
    %83 = vector.extract_strided_slice %59 {offsets = [4, 0], sizes = [112, 84], strides = [1, 1]} : vector<116x84xf32> to vector<112x84xf32>
    %84 = arith.truncf %83 : vector<112x84xf32> to vector<112x84xbf16>
    %c4_76 = arith.constant 4 : index
    %c0_77 = arith.constant 0 : index
    %c0_78 = arith.constant 0 : index
    %85 = vector.load %arg7[%c4_76, %c0_77, %c0_78] : memref<5x84x160xbf16, #tpu.memory_space<vmem>>, vector<1x84x160xbf16>
    %86 = vector.shape_cast %85 : vector<1x84x160xbf16> to vector<84x160xbf16>
    %cst_79 = arith.constant dense<0.000000e+00> : vector<112x160xf32>
    %87 = tpu.matmul %84, %86, %cst_79 {dimension_numbers = #tpu.dot_dimension_numbers<[1], [0], [0], [1], [0, 0, 1, 1], [], []>} : vector<112x84xbf16>, vector<84x160xbf16>, vector<112x160xf32> -> vector<112x160xf32>
    %88 = arith.addf %82, %87 : vector<112x160xf32>
    %c0_80 = arith.constant 0 : index
    %c0_81 = arith.constant 0 : index
    %89 = vector.load %arg8[%c0_80, %c0_81] : memref<1x160xf32, #tpu.memory_space<vmem>>, vector<1x160xf32>
    %90 = vector.broadcast %89 : vector<1x160xf32> to vector<112x160xf32>
    %91 = arith.addf %88, %90 : vector<112x160xf32>
    %92 = math.tanh %91 : vector<112x160xf32>
    %93 = arith.truncf %92 : vector<112x160xf32> to vector<112x160xbf16>
    %c0_82 = arith.constant 0 : index
    %c0_83 = arith.constant 0 : index
    %94 = vector.load %arg9[%c0_82, %c0_83] : memref<160x80xbf16, #tpu.memory_space<vmem>>, vector<160x80xbf16>
    %cst_84 = arith.constant dense<0.000000e+00> : vector<112x80xf32>
    %95 = tpu.matmul %93, %94, %cst_84 {dimension_numbers = #tpu.dot_dimension_numbers<[1], [0], [0], [1], [0, 0, 1, 1], [], []>} : vector<112x160xbf16>, vector<160x80xbf16>, vector<112x80xf32> -> vector<112x80xf32>
    %c0_85 = arith.constant 0 : index
    %c0_86 = arith.constant 0 : index
    %96 = vector.load %arg10[%c0_85, %c0_86] : memref<160x80xbf16, #tpu.memory_space<vmem>>, vector<160x80xbf16>
    %cst_87 = arith.constant dense<0.000000e+00> : vector<112x80xf32>
    %97 = tpu.matmul %93, %96, %cst_87 {dimension_numbers = #tpu.dot_dimension_numbers<[1], [0], [0], [1], [0, 0, 1, 1], [], []>} : vector<112x160xbf16>, vector<160x80xbf16>, vector<112x80xf32> -> vector<112x80xf32>
    %98 = arith.maximumf %95, %97 : vector<112x80xf32>
    %99 = vector.extract_strided_slice %98 {offsets = [0, 0], sizes = [111, 80], strides = [1, 1]} : vector<112x80xf32> to vector<111x80xf32>
    %100 = vector.extract_strided_slice %98 {offsets = [1, 0], sizes = [111, 80], strides = [1, 1]} : vector<112x80xf32> to vector<111x80xf32>
    %101 = arith.maximumf %99, %100 : vector<111x80xf32>
    %102 = arith.truncf %101 : vector<111x80xf32> to vector<111x80xbf16>
    %c0_88 = arith.constant 0 : index
    %c0_89 = arith.constant 0 : index
    %103 = vector.load %arg11[%c0_88, %c0_89] : memref<44x111xbf16, #tpu.memory_space<vmem>>, vector<44x111xbf16>
    %cst_90 = arith.constant dense<0.000000e+00> : vector<44x80xf32>
    %104 = tpu.matmul %103, %102, %cst_90 {dimension_numbers = #tpu.dot_dimension_numbers<[1], [0], [0], [1], [0, 0, 1, 1], [], []>} : vector<44x111xbf16>, vector<111x80xbf16>, vector<44x80xf32> -> vector<44x80xf32>
    %105 = vector.extract_strided_slice %104 {offsets = [0, 0], sizes = [40, 80], strides = [1, 1]} : vector<44x80xf32> to vector<40x80xf32>
    %106 = arith.truncf %105 : vector<40x80xf32> to vector<40x80xbf16>
    %c0_91 = arith.constant 0 : index
    %c0_92 = arith.constant 0 : index
    %c0_93 = arith.constant 0 : index
    %107 = vector.load %arg12[%c0_91, %c0_92, %c0_93] : memref<5x80x128xbf16, #tpu.memory_space<vmem>>, vector<1x80x128xbf16>
    %108 = vector.shape_cast %107 : vector<1x80x128xbf16> to vector<80x128xbf16>
    %cst_94 = arith.constant dense<0.000000e+00> : vector<40x128xf32>
    %109 = tpu.matmul %106, %108, %cst_94 {dimension_numbers = #tpu.dot_dimension_numbers<[1], [0], [0], [1], [0, 0, 1, 1], [], []>} : vector<40x80xbf16>, vector<80x128xbf16>, vector<40x128xf32> -> vector<40x128xf32>
    %110 = vector.extract_strided_slice %104 {offsets = [1, 0], sizes = [40, 80], strides = [1, 1]} : vector<44x80xf32> to vector<40x80xf32>
    %111 = arith.truncf %110 : vector<40x80xf32> to vector<40x80xbf16>
    %c1_95 = arith.constant 1 : index
    %c0_96 = arith.constant 0 : index
    %c0_97 = arith.constant 0 : index
    %112 = vector.load %arg12[%c1_95, %c0_96, %c0_97] : memref<5x80x128xbf16, #tpu.memory_space<vmem>>, vector<1x80x128xbf16>
    %113 = vector.shape_cast %112 : vector<1x80x128xbf16> to vector<80x128xbf16>
    %cst_98 = arith.constant dense<0.000000e+00> : vector<40x128xf32>
    %114 = tpu.matmul %111, %113, %cst_98 {dimension_numbers = #tpu.dot_dimension_numbers<[1], [0], [0], [1], [0, 0, 1, 1], [], []>} : vector<40x80xbf16>, vector<80x128xbf16>, vector<40x128xf32> -> vector<40x128xf32>
    %115 = arith.addf %109, %114 : vector<40x128xf32>
    %116 = vector.extract_strided_slice %104 {offsets = [2, 0], sizes = [40, 80], strides = [1, 1]} : vector<44x80xf32> to vector<40x80xf32>
    %117 = arith.truncf %116 : vector<40x80xf32> to vector<40x80xbf16>
    %c2_99 = arith.constant 2 : index
    %c0_100 = arith.constant 0 : index
    %c0_101 = arith.constant 0 : index
    %118 = vector.load %arg12[%c2_99, %c0_100, %c0_101] : memref<5x80x128xbf16, #tpu.memory_space<vmem>>, vector<1x80x128xbf16>
    %119 = vector.shape_cast %118 : vector<1x80x128xbf16> to vector<80x128xbf16>
    %cst_102 = arith.constant dense<0.000000e+00> : vector<40x128xf32>
    %120 = tpu.matmul %117, %119, %cst_102 {dimension_numbers = #tpu.dot_dimension_numbers<[1], [0], [0], [1], [0, 0, 1, 1], [], []>} : vector<40x80xbf16>, vector<80x128xbf16>, vector<40x128xf32> -> vector<40x128xf32>
    %121 = arith.addf %115, %120 : vector<40x128xf32>
    %122 = vector.extract_strided_slice %104 {offsets = [3, 0], sizes = [40, 80], strides = [1, 1]} : vector<44x80xf32> to vector<40x80xf32>
    %123 = arith.truncf %122 : vector<40x80xf32> to vector<40x80xbf16>
    %c3_103 = arith.constant 3 : index
    %c0_104 = arith.constant 0 : index
    %c0_105 = arith.constant 0 : index
    %124 = vector.load %arg12[%c3_103, %c0_104, %c0_105] : memref<5x80x128xbf16, #tpu.memory_space<vmem>>, vector<1x80x128xbf16>
    %125 = vector.shape_cast %124 : vector<1x80x128xbf16> to vector<80x128xbf16>
    %cst_106 = arith.constant dense<0.000000e+00> : vector<40x128xf32>
    %126 = tpu.matmul %123, %125, %cst_106 {dimension_numbers = #tpu.dot_dimension_numbers<[1], [0], [0], [1], [0, 0, 1, 1], [], []>} : vector<40x80xbf16>, vector<80x128xbf16>, vector<40x128xf32> -> vector<40x128xf32>
    %127 = arith.addf %121, %126 : vector<40x128xf32>
    %128 = vector.extract_strided_slice %104 {offsets = [4, 0], sizes = [40, 80], strides = [1, 1]} : vector<44x80xf32> to vector<40x80xf32>
    %129 = arith.truncf %128 : vector<40x80xf32> to vector<40x80xbf16>
    %c4_107 = arith.constant 4 : index
    %c0_108 = arith.constant 0 : index
    %c0_109 = arith.constant 0 : index
    %130 = vector.load %arg12[%c4_107, %c0_108, %c0_109] : memref<5x80x128xbf16, #tpu.memory_space<vmem>>, vector<1x80x128xbf16>
    %131 = vector.shape_cast %130 : vector<1x80x128xbf16> to vector<80x128xbf16>
    %cst_110 = arith.constant dense<0.000000e+00> : vector<40x128xf32>
    %132 = tpu.matmul %129, %131, %cst_110 {dimension_numbers = #tpu.dot_dimension_numbers<[1], [0], [0], [1], [0, 0, 1, 1], [], []>} : vector<40x80xbf16>, vector<80x128xbf16>, vector<40x128xf32> -> vector<40x128xf32>
    %133 = arith.addf %127, %132 : vector<40x128xf32>
    %c0_111 = arith.constant 0 : index
    %c0_112 = arith.constant 0 : index
    %134 = vector.load %arg13[%c0_111, %c0_112] : memref<1x128xf32, #tpu.memory_space<vmem>>, vector<1x128xf32>
    %135 = vector.broadcast %134 : vector<1x128xf32> to vector<40x128xf32>
    %136 = arith.addf %133, %135 : vector<40x128xf32>
    %137 = math.tanh %136 : vector<40x128xf32>
    %138 = arith.truncf %137 : vector<40x128xf32> to vector<40x128xbf16>
    %c0_113 = arith.constant 0 : index
    %c0_114 = arith.constant 0 : index
    %139 = vector.load %arg14[%c0_113, %c0_114] : memref<8x40xbf16, #tpu.memory_space<vmem>>, vector<8x40xbf16>
    %cst_115 = arith.constant dense<0.000000e+00> : vector<8x128xf32>
    %140 = tpu.matmul %139, %138, %cst_115 {dimension_numbers = #tpu.dot_dimension_numbers<[1], [0], [0], [1], [0, 0, 1, 1], [], []>} : vector<8x40xbf16>, vector<40x128xbf16>, vector<8x128xf32> -> vector<8x128xf32>
    %141 = arith.truncf %140 : vector<8x128xf32> to vector<8x128xbf16>
    %c0_116 = arith.constant 0 : index
    %c0_117 = arith.constant 0 : index
    %142 = vector.load %arg15[%c0_116, %c0_117] : memref<128x128xbf16, #tpu.memory_space<vmem>>, vector<128x128xbf16>
    %cst_118 = arith.constant dense<0.000000e+00> : vector<8x128xf32>
    %143 = tpu.matmul %141, %142, %cst_118 {dimension_numbers = #tpu.dot_dimension_numbers<[1], [0], [0], [1], [0, 0, 1, 1], [], []>} : vector<8x128xbf16>, vector<128x128xbf16>, vector<8x128xf32> -> vector<8x128xf32>
    %c0_119 = arith.constant 0 : index
    %c0_120 = arith.constant 0 : index
    %144 = vector.load %arg16[%c0_119, %c0_120] : memref<1x128xf32, #tpu.memory_space<vmem>>, vector<1x128xf32>
    %145 = vector.broadcast %144 : vector<1x128xf32> to vector<8x128xf32>
    %146 = arith.addf %143, %145 : vector<8x128xf32>
    %c0_121 = arith.constant 0 : index
    %c0_122 = arith.constant 0 : index
    %147 = vector.load %arg17[%c0_121, %c0_122] : memref<8x128xf32, #tpu.memory_space<vmem>>, vector<8x128xf32>
    tpu.vector_store %arg17[%c0_121, %c0_122], %146 {strides = array<i32>} : memref<8x128xf32, #tpu.memory_space<vmem>>, vector<8x128xf32>,
    return
  }
  func.func @transform_0(%arg0: i32) -> (i32, i32, i32) {
    %c0_i32 = arith.constant 0 : i32
    %c0_i32_0 = arith.constant 0 : i32
    %c0_i32_1 = arith.constant 0 : i32
    return %arg0, %c0_i32, %c0_i32_0 : i32, i32, i32
  }
  func.func @transform_1(%arg0: i32) -> (i32, i32, i32) {
    %c0_i32 = arith.constant 0 : i32
    %c0_i32_0 = arith.constant 0 : i32
    %c0_i32_1 = arith.constant 0 : i32
    %c0_i32_2 = arith.constant 0 : i32
    return %c0_i32, %c0_i32_0, %c0_i32_1 : i32, i32, i32
  }
  func.func @transform_2(%arg0: i32) -> (i32, i32) {
    %c0_i32 = arith.constant 0 : i32
    %c0_i32_0 = arith.constant 0 : i32
    %c0_i32_1 = arith.constant 0 : i32
    return %c0_i32, %c0_i32_0 : i32, i32
  }
  func.func @transform_3(%arg0: i32) -> (i32, i32) {
    %c0_i32 = arith.constant 0 : i32
    %c0_i32_0 = arith.constant 0 : i32
    %c0_i32_1 = arith.constant 0 : i32
    return %c0_i32, %c0_i32_0 : i32, i32
  }
  func.func @transform_4(%arg0: i32) -> (i32, i32) {
    %c0_i32 = arith.constant 0 : i32
    %c0_i32_0 = arith.constant 0 : i32
    %c0_i32_1 = arith.constant 0 : i32
    return %c0_i32, %c0_i32_0 : i32, i32
  }
  func.func @transform_5(%arg0: i32) -> (i32, i32) {
    %c0_i32 = arith.constant 0 : i32
    %c0_i32_0 = arith.constant 0 : i32
    %c0_i32_1 = arith.constant 0 : i32
    return %c0_i32, %c0_i32_0 : i32, i32
  }
  func.func @transform_6(%arg0: i32) -> (i32, i32, i32) {
    %c0_i32 = arith.constant 0 : i32
    %c0_i32_0 = arith.constant 0 : i32
    %c0_i32_1 = arith.constant 0 : i32
    %c0_i32_2 = arith.constant 0 : i32
    return %c0_i32, %c0_i32_0, %c0_i32_1 : i32, i32, i32
  }
  func.func @transform_7(%arg0: i32) -> (i32, i32) {
    %c0_i32 = arith.constant 0 : i32
    %c0_i32_0 = arith.constant 0 : i32
    %c0_i32_1 = arith.constant 0 : i32
    return %c0_i32, %c0_i32_0 : i32, i32
  }
  func.func @transform_8(%arg0: i32) -> (i32, i32) {
    %c0_i32 = arith.constant 0 : i32
    %c0_i32_0 = arith.constant 0 : i32
    %c0_i32_1 = arith.constant 0 : i32
    return %c0_i32, %c0_i32_0 : i32, i32
  }
  func.func @transform_9(%arg0: i32) -> (i32, i32) {
    %c0_i32 = arith.constant 0 : i32
    %c0_i32_0 = arith.constant 0 : i32
    %c0_i32_1 = arith.constant 0 : i32
    return %c0_i32, %c0_i32_0 : i32, i32
  }
  func.func @transform_10(%arg0: i32) -> (i32, i32) {
    %c0_i32 = arith.constant 0 : i32
    %c0_i32_0 = arith.constant 0 : i32
    %c0_i32_1 = arith.constant 0 : i32
    return %c0_i32, %c0_i32_0 : i32, i32
  }
  func.func @transform_11(%arg0: i32) -> (i32, i32, i32) {
    %c0_i32 = arith.constant 0 : i32
    %c0_i32_0 = arith.constant 0 : i32
    %c0_i32_1 = arith.constant 0 : i32
    %c0_i32_2 = arith.constant 0 : i32
    return %c0_i32, %c0_i32_0, %c0_i32_1 : i32, i32, i32
  }
  func.func @transform_12(%arg0: i32) -> (i32, i32) {
    %c0_i32 = arith.constant 0 : i32
    %c0_i32_0 = arith.constant 0 : i32
    %c0_i32_1 = arith.constant 0 : i32
    return %c0_i32, %c0_i32_0 : i32, i32
  }
  func.func @transform_13(%arg0: i32) -> (i32, i32) {
    %c0_i32 = arith.constant 0 : i32
    %c0_i32_0 = arith.constant 0 : i32
    %c0_i32_1 = arith.constant 0 : i32
    return %c0_i32, %c0_i32_0 : i32, i32
  }
  func.func @transform_14(%arg0: i32) -> (i32, i32) {
    %c0_i32 = arith.constant 0 : i32
    %c0_i32_0 = arith.constant 0 : i32
    %c0_i32_1 = arith.constant 0 : i32
    return %c0_i32, %c0_i32_0 : i32, i32
  }
  func.func @transform_15(%arg0: i32) -> (i32, i32) {
    %c0_i32 = arith.constant 0 : i32
    %c0_i32_0 = arith.constant 0 : i32
    %c0_i32_1 = arith.constant 0 : i32
    return %c0_i32, %c0_i32_0 : i32, i32
  }
  func.func @transform_16(%arg0: i32) -> (i32, i32) {
    %c0_i32 = arith.constant 0 : i32
    %c0_i32_0 = arith.constant 0 : i32
    return %arg0, %c0_i32 : i32, i32
  }
}

</mosaic_0001>

<llo_original>
// kernel: net_cifar100_forward.1
$region0: #{net_cifar100_forward.1}
  #allocation0 [shape = 'u32[]', space=smem, size = 0x4, offset = 0x4, fixed_abs, tag = 'smem constant byte address 0x4 - core index']
  #allocation1 [shape = 'u32[72,128]{1,0:T(1,128)}', space=vmem, size = 0x9000, scoped, tag = 'internal scratch']
  #allocation2 [shape = 'f32[256,168]{1,0:T(8,128)}', space=vmem, size = 0x40000, scoped, tag = 'scratch operand']
  %s0 = inlined_call_operand.vmem [shape: f32[2,260,96], index: 0, kind: input, shape index: {}]
  %s1 = inlined_call_operand.vmem [shape: bf16[5,96,168], index: 1, kind: input, shape index: {}]
  %s2 = inlined_call_operand.vmem [shape: f32[1,168], index: 2, kind: input, shape index: {}]
  %s3 = inlined_call_operand.vmem [shape: bf16[168,84], index: 3, kind: input, shape index: {}]
  %s4 = inlined_call_operand.vmem [shape: bf16[168,84], index: 4, kind: input, shape index: {}]
  %s5 = inlined_call_operand.vmem [shape: bf16[116,255], index: 5, kind: input, shape index: {}]
  %s6 = inlined_call_operand.vmem [shape: bf16[5,84,160], index: 6, kind: input, shape index: {}]
  %s7 = inlined_call_operand.vmem [shape: f32[1,160], index: 7, kind: input, shape index: {}]
  %s8 = inlined_call_operand.vmem [shape: bf16[160,80], index: 8, kind: input, shape index: {}]
  %s9 = inlined_call_operand.vmem [shape: bf16[160,80], index: 9, kind: input, shape index: {}]
  %s10 = inlined_call_operand.vmem [shape: bf16[44,111], index: 10, kind: input, shape index: {}]
  %s11 = inlined_call_operand.vmem [shape: bf16[5,80,128], index: 11, kind: input, shape index: {}]
  %s12 = inlined_call_operand.vmem [shape: f32[1,128], index: 12, kind: input, shape index: {}]
  %s13 = inlined_call_operand.vmem [shape: bf16[8,40], index: 13, kind: input, shape index: {}]
  %s14 = inlined_call_operand.vmem [shape: bf16[128,128], index: 14, kind: input, shape index: {}]
  %s15 = inlined_call_operand.vmem [shape: f32[1,128], index: 15, kind: input, shape index: {}]
  %s16 = inlined_call_operand.hbm [shape: f32[16,128], index: 16, kind: output, shape index: {}]
  %s17 = sld [smem:[#allocation0]]
  $region97: #{net_cifar100_forward.1} parent=0
    _
  %s19 = ssub.s32 1, %s17
  %s20 = scalar_select 0, %s19, %s17
  $region1: #{net_cifar100_forward.1} parent=0
    #allocation3 [shape = 'u8[8192]{0}', space=vmem, size = 0x2000, scoped, tag = 'output window, operand 0']
    #allocation4 [shape = 's32[2]{0}', space=sflag, size = 0x8, scoped, tag = 'scoped memory for net_cifar100_forward.1']
    %21 = vsyncpa [#allocation4], 0
    %s22 = scalar_lea.sflag [#allocation4], 1
    %23 = vsyncpa %s22, 0
    loop: start=0, step=1, limit=4
    $region2: #{net_cifar100_forward.1} parent=1 // loop_pre_header
      _
    $region3: #{net_cifar100_forward.1} parent=1 // loop_header
      %s25 = sphi 0, %s29
      %p26 = scmp.ge.s32.totalorder %s25, 4
      %s35 = sphi 0, %s37
      %s38 = sphi 0, %s35
      %s39 = sphi 0, %s38
      %s55 = sphi 0, %s39
      %s59 = sphi 0, %s59
      %s61 = sphi 0, %s59
      %s62 = sphi 0, %s61
      %s76 = sphi 0, %s62
      %s80 = sphi 0, %s80
      %s82 = sphi 0, %s80
      %s83 = sphi 0, %s82
      %s97 = sphi 0, %s83
      %s101 = sphi 0, %s101
      %s103 = sphi 0, %s101
      %s104 = sphi 0, %s103
      %s118 = sphi 0, %s104
      %s122 = sphi 0, %s122
      %s124 = sphi 0, %s122
      %s125 = sphi 0, %s124
      %s139 = sphi 0, %s125
      %s143 = sphi 0, %s143
      %s145 = sphi 0, %s143
      %s146 = sphi 0, %s145
      %s160 = sphi 0, %s146
      %s164 = sphi 0, %s164
      %s166 = sphi 0, %s164
      %s167 = sphi 0, %s166
      %s181 = sphi 0, %s167
      %s185 = sphi 0, %s185
      %s187 = sphi 0, %s185
      %s188 = sphi 0, %s187
      %s202 = sphi 0, %s188
      %s206 = sphi 0, %s206
      %s208 = sphi 0, %s206
      %s209 = sphi 0, %s208
      %s223 = sphi 0, %s209
      %s227 = sphi 0, %s227
      %s229 = sphi 0, %s227
      %s230 = sphi 0, %s229
      %s244 = sphi 0, %s230
      %s248 = sphi 0, %s248
      %s250 = sphi 0, %s248
      %s251 = sphi 0, %s250
      %s265 = sphi 0, %s251
      %s269 = sphi 0, %s269
      %s271 = sphi 0, %s269
      %s272 = sphi 0, %s271
      %s286 = sphi 0, %s272
      %s290 = sphi 0, %s290
      %s292 = sphi 0, %s290
      %s293 = sphi 0, %s292
      %s307 = sphi 0, %s293
      %s311 = sphi 0, %s311
      %s313 = sphi 0, %s311
      %s314 = sphi 0, %s313
      %s328 = sphi 0, %s314
      %s332 = sphi 0, %s332
      %s334 = sphi 0, %s332
      %s335 = sphi 0, %s334
      %s349 = sphi 0, %s335
      %s353 = sphi 0, %s353
      %s355 = sphi 0, %s353
      %s356 = sphi 0, %s355
      %s370 = sphi 0, %s356
      %s376 = sphi 0, %s378
      %s379 = sphi 0, %s376
      %s380 = sphi 0, %s379
      %s396 = sphi 0, %s380
    $region4: #{net_cifar100_forward.1} parent=1 // loop_header_branch
      %28 = sbr.rel (%p26) target = $region8
    $region5: #{net_cifar100_forward.1} parent=1 // loop_body
      %s30 = ssub.s32 %s25, 1
      %s31 = ssub.s32 %s25, 2
      %s32 = sadd.s32 %s25, 1
      %s33 = ssub.s32 %s25, %s32
      %p34 = scmp.eq.s32.totalorder %s33, 0
      %s36 = sadd.s32 %s35, 1
      %s37 = scalar_select %p34, %s35, %s36
      %p40 = pneg %p34
      %p41 = scmp.eq.s32.totalorder %s25, 1
      %p42 = por %p40, %p41
      %p43 = scmp.ne.s32.totalorder %s35, %s38
      %p44 = scmp.eq.s32.totalorder %s25, 0
      %p45 = por %p43, %p44
      %p46 = scmp.ne.s32.totalorder %s35, %s38
      %p47 = scmp.eq.s32.totalorder %s30, 1
      %p48 = por %p46, %p47
      %p49 = scmp.ne.s32.totalorder %s38, %s39
      %p50 = scmp.eq.s32.totalorder %s30, 0
      %p51 = por %p49, %p50
      %p52 = scmp.ne.s32.totalorder %s38, %s39
      %p53 = scmp.eq.s32.totalorder %s31, 1
      %p54 = por %p52, %p53
      %p56 = scmp.ne.s32.totalorder %s39, %s55
      %p57 = scmp.eq.s32.totalorder %s31, 0
      %p58 = por %p56, %p57
      %s60 = sadd.s32 %s59, 1
      %p63 = scmp.eq.s32.totalorder %s25, 1
      %p64 = scmp.ne.s32.totalorder %s59, %s61
      %p65 = scmp.eq.s32.totalorder %s25, 0
      %p66 = por %p64, %p65
      %p67 = scmp.ne.s32.totalorder %s59, %s61
      %p68 = scmp.eq.s32.totalorder %s30, 1
      %p69 = por %p67, %p68
      %p70 = scmp.ne.s32.totalorder %s61, %s62
      %p71 = scmp.eq.s32.totalorder %s30, 0
      %p72 = por %p70, %p71
      %p73 = scmp.ne.s32.totalorder %s61, %s62
      %p74 = scmp.eq.s32.totalorder %s31, 1
      %p75 = por %p73, %p74
      %p77 = scmp.ne.s32.totalorder %s62, %s76
      %p78 = scmp.eq.s32.totalorder %s31, 0
      %p79 = por %p77, %p78
      %s81 = sadd.s32 %s80, 1
      %p84 = scmp.eq.s32.totalorder %s25, 1
      %p85 = scmp.ne.s32.totalorder %s80, %s82
      %p86 = scmp.eq.s32.totalorder %s25, 0
      %p87 = por %p85, %p86
      %p88 = scmp.ne.s32.totalorder %s80, %s82
      %p89 = scmp.eq.s32.totalorder %s30, 1
      %p90 = por %p88, %p89
      %p91 = scmp.ne.s32.totalorder %s82, %s83
      %p92 = scmp.eq.s32.totalorder %s30, 0
      %p93 = por %p91, %p92
      %p94 = scmp.ne.s32.totalorder %s82, %s83
      %p95 = scmp.eq.s32.totalorder %s31, 1
      %p96 = por %p94, %p95
      %p98 = scmp.ne.s32.totalorder %s83, %s97
      %p99 = scmp.eq.s32.totalorder %s31, 0
      %p100 = por %p98, %p99
      %s102 = sadd.s32 %s101, 1
      %p105 = scmp.eq.s32.totalorder %s25, 1
      %p106 = scmp.ne.s32.totalorder %s101, %s103
      %p107 = scmp.eq.s32.totalorder %s25, 0
      %p108 = por %p106, %p107
      %p109 = scmp.ne.s32.totalorder %s101, %s103
      %p110 = scmp.eq.s32.totalorder %s30, 1
      %p111 = por %p109, %p110
      %p112 = scmp.ne.s32.totalorder %s103, %s104
      %p113 = scmp.eq.s32.totalorder %s30, 0
      %p114 = por %p112, %p113
      %p115 = scmp.ne.s32.totalorder %s103, %s104
      %p116 = scmp.eq.s32.totalorder %s31, 1
      %p117 = por %p115, %p116
      %p119 = scmp.ne.s32.totalorder %s104, %s118
      %p120 = scmp.eq.s32.totalorder %s31, 0
      %p121 = por %p119, %p120
      %s123 = sadd.s32 %s122, 1
      %p126 = scmp.eq.s32.totalorder %s25, 1
      %p127 = scmp.ne.s32.totalorder %s122, %s124
      %p128 = scmp.eq.s32.totalorder %s25, 0
      %p129 = por %p127, %p128
      %p130 = scmp.ne.s32.totalorder %s122, %s124
      %p131 = scmp.eq.s32.totalorder %s30, 1
      %p132 = por %p130, %p131
      %p133 = scmp.ne.s32.totalorder %s124, %s125
      %p134 = scmp.eq.s32.totalorder %s30, 0
      %p135 = por %p133, %p134
      %p136 = scmp.ne.s32.totalorder %s124, %s125
      %p137 = scmp.eq.s32.totalorder %s31, 1
      %p138 = por %p136, %p137
      %p140 = scmp.ne.s32.totalorder %s125, %s139
      %p141 = scmp.eq.s32.totalorder %s31, 0
      %p142 = por %p140, %p141
      %s144 = sadd.s32 %s143, 1
      %p147 = scmp.eq.s32.totalorder %s25, 1
      %p148 = scmp.ne.s32.totalorder %s143, %s145
      %p149 = scmp.eq.s32.totalorder %s25, 0
      %p150 = por %p148, %p149
      %p151 = scmp.ne.s32.totalorder %s143, %s145
      %p152 = scmp.eq.s32.totalorder %s30, 1
      %p153 = por %p151, %p152
      %p154 = scmp.ne.s32.totalorder %s145, %s146
      %p155 = scmp.eq.s32.totalorder %s30, 0
      %p156 = por %p154, %p155
      %p157 = scmp.ne.s32.totalorder %s145, %s146
      %p158 = scmp.eq.s32.totalorder %s31, 1
      %p159 = por %p157, %p158
      %p161 = scmp.ne.s32.totalorder %s146, %s160
      %p162 = scmp.eq.s32.totalorder %s31, 0
      %p163 = por %p161, %p162
      %s165 = sadd.s32 %s164, 1
      %p168 = scmp.eq.s32.totalorder %s25, 1
      %p169 = scmp.ne.s32.totalorder %s164, %s166
      %p170 = scmp.eq.s32.totalorder %s25, 0
      %p171 = por %p169, %p170
      %p172 = scmp.ne.s32.totalorder %s164, %s166
      %p173 = scmp.eq.s32.totalorder %s30, 1
      %p174 = por %p172, %p173
      %p175 = scmp.ne.s32.totalorder %s166, %s167
      %p176 = scmp.eq.s32.totalorder %s30, 0
      %p177 = por %p175, %p176
      %p178 = scmp.ne.s32.totalorder %s166, %s167
      %p179 = scmp.eq.s32.totalorder %s31, 1
      %p180 = por %p178, %p179
      %p182 = scmp.ne.s32.totalorder %s167, %s181
      %p183 = scmp.eq.s32.totalorder %s31, 0
      %p184 = por %p182, %p183
      %s186 = sadd.s32 %s185, 1
      %p189 = scmp.eq.s32.totalorder %s25, 1
      %p190 = scmp.ne.s32.totalorder %s185, %s187
      %p191 = scmp.eq.s32.totalorder %s25, 0
      %p192 = por %p190, %p191
      %p193 = scmp.ne.s32.totalorder %s185, %s187
      %p194 = scmp.eq.s32.totalorder %s30, 1
      %p195 = por %p193, %p194
      %p196 = scmp.ne.s32.totalorder %s187, %s188
      %p197 = scmp.eq.s32.totalorder %s30, 0
      %p198 = por %p196, %p197
      %p199 = scmp.ne.s32.totalorder %s187, %s188
      %p200 = scmp.eq.s32.totalorder %s31, 1
      %p201 = por %p199, %p200
      %p203 = scmp.ne.s32.totalorder %s188, %s202
      %p204 = scmp.eq.s32.totalorder %s31, 0
      %p205 = por %p203, %p204
      %s207 = sadd.s32 %s206, 1
      %p210 = scmp.eq.s32.totalorder %s25, 1
      %p211 = scmp.ne.s32.totalorder %s206, %s208
      %p212 = scmp.eq.s32.totalorder %s25, 0
      %p213 = por %p211, %p212
      %p214 = scmp.ne.s32.totalorder %s206, %s208
      %p215 = scmp.eq.s32.totalorder %s30, 1
      %p216 = por %p214, %p215
      %p217 = scmp.ne.s32.totalorder %s208, %s209
      %p218 = scmp.eq.s32.totalorder %s30, 0
      %p219 = por %p217, %p218
      %p220 = scmp.ne.s32.totalorder %s208, %s209
      %p221 = scmp.eq.s32.totalorder %s31, 1
      %p222 = por %p220, %p221
      %p224 = scmp.ne.s32.totalorder %s209, %s223
      %p225 = scmp.eq.s32.totalorder %s31, 0
      %p226 = por %p224, %p225
      %s228 = sadd.s32 %s227, 1
      %p231 = scmp.eq.s32.totalorder %s25, 1
      %p232 = scmp.ne.s32.totalorder %s227, %s229
      %p233 = scmp.eq.s32.totalorder %s25, 0
      %p234 = por %p232, %p233
      %p235 = scmp.ne.s32.totalorder %s227, %s229
      %p236 = scmp.eq.s32.totalorder %s30, 1
      %p237 = por %p235, %p236
      %p238 = scmp.ne.s32.totalorder %s229, %s230
      %p239 = scmp.eq.s32.totalorder %s30, 0
      %p240 = por %p238, %p239
      %p241 = scmp.ne.s32.totalorder %s229, %s230
      %p242 = scmp.eq.s32.totalorder %s31, 1
      %p243 = por %p241, %p242
      %p245 = scmp.ne.s32.totalorder %s230, %s244
      %p246 = scmp.eq.s32.totalorder %s31, 0
      %p247 = por %p245, %p246
      %s249 = sadd.s32 %s248, 1
      %p252 = scmp.eq.s32.totalorder %s25, 1
      %p253 = scmp.ne.s32.totalorder %s248, %s250
      %p254 = scmp.eq.s32.totalorder %s25, 0
      %p255 = por %p253, %p254
      %p256 = scmp.ne.s32.totalorder %s248, %s250
      %p257 = scmp.eq.s32.totalorder %s30, 1
      %p258 = por %p256, %p257
      %p259 = scmp.ne.s32.totalorder %s250, %s251
      %p260 = scmp.eq.s32.totalorder %s30, 0
      %p261 = por %p259, %p260
      %p262 = scmp.ne.s32.totalorder %s250, %s251
      %p263 = scmp.eq.s32.totalorder %s31, 1
      %p264 = por %p262, %p263
      %p266 = scmp.ne.s32.totalorder %s251, %s265
      %p267 = scmp.eq.s32.totalorder %s31, 0
      %p268 = por %p266, %p267
      %s270 = sadd.s32 %s269, 1
      %p273 = scmp.eq.s32.totalorder %s25, 1
      %p274 = scmp.ne.s32.totalorder %s269, %s271
      %p275 = scmp.eq.s32.totalorder %s25, 0
      %p276 = por %p274, %p275
      %p277 = scmp.ne.s32.totalorder %s269, %s271
      %p278 = scmp.eq.s32.totalorder %s30, 1
      %p279 = por %p277, %p278
      %p280 = scmp.ne.s32.totalorder %s271, %s272
      %p281 = scmp.eq.s32.totalorder %s30, 0
      %p282 = por %p280, %p281
      %p283 = scmp.ne.s32.totalorder %s271, %s272
      %p284 = scmp.eq.s32.totalorder %s31, 1
      %p285 = por %p283, %p284
      %p287 = scmp.ne.s32.totalorder %s272, %s286
      %p288 = scmp.eq.s32.totalorder %s31, 0
      %p289 = por %p287, %p288
      %s291 = sadd.s32 %s290, 1
      %p294 = scmp.eq.s32.totalorder %s25, 1
      %p295 = scmp.ne.s32.totalorder %s290, %s292
      %p296 = scmp.eq.s32.totalorder %s25, 0
      %p297 = por %p295, %p296
      %p298 = scmp.ne.s32.totalorder %s290, %s292
      %p299 = scmp.eq.s32.totalorder %s30, 1
      %p300 = por %p298, %p299
      %p301 = scmp.ne.s32.totalorder %s292, %s293
      %p302 = scmp.eq.s32.totalorder %s30, 0
      %p303 = por %p301, %p302
      %p304 = scmp.ne.s32.totalorder %s292, %s293
      %p305 = scmp.eq.s32.totalorder %s31, 1
      %p306 = por %p304, %p305
      %p308 = scmp.ne.s32.totalorder %s293, %s307
      %p309 = scmp.eq.s32.totalorder %s31, 0
      %p310 = por %p308, %p309
      %s312 = sadd.s32 %s311, 1
      %p315 = scmp.eq.s32.totalorder %s25, 1
      %p316 = scmp.ne.s32.totalorder %s311, %s313
      %p317 = scmp.eq.s32.totalorder %s25, 0
      %p318 = por %p316, %p317
      %p319 = scmp.ne.s32.totalorder %s311, %s313
      %p320 = scmp.eq.s32.totalorder %s30, 1
      %p321 = por %p319, %p320
      %p322 = scmp.ne.s32.totalorder %s313, %s314
      %p323 = scmp.eq.s32.totalorder %s30, 0
      %p324 = por %p322, %p323
      %p325 = scmp.ne.s32.totalorder %s313, %s314
      %p326 = scmp.eq.s32.totalorder %s31, 1
      %p327 = por %p325, %p326
      %p329 = scmp.ne.s32.totalorder %s314, %s328
      %p330 = scmp.eq.s32.totalorder %s31, 0
      %p331 = por %p329, %p330
      %s333 = sadd.s32 %s332, 1
      %p336 = scmp.eq.s32.totalorder %s25, 1
      %p337 = scmp.ne.s32.totalorder %s332, %s334
      %p338 = scmp.eq.s32.totalorder %s25, 0
      %p339 = por %p337, %p338
      %p340 = scmp.ne.s32.totalorder %s332, %s334
      %p341 = scmp.eq.s32.totalorder %s30, 1
      %p342 = por %p340, %p341
      %p343 = scmp.ne.s32.totalorder %s334, %s335
      %p344 = scmp.eq.s32.totalorder %s30, 0
      %p345 = por %p343, %p344
      %p346 = scmp.ne.s32.totalorder %s334, %s335
      %p347 = scmp.eq.s32.totalorder %s31, 1
      %p348 = por %p346, %p347
      %p350 = scmp.ne.s32.totalorder %s335, %s349
      %p351 = scmp.eq.s32.totalorder %s31, 0
      %p352 = por %p350, %p351
      %s354 = sadd.s32 %s353, 1
      %p357 = scmp.eq.s32.totalorder %s25, 1
      %p358 = scmp.ne.s32.totalorder %s353, %s355
      %p359 = scmp.eq.s32.totalorder %s25, 0
      %p360 = por %p358, %p359
      %p361 = scmp.ne.s32.totalorder %s353, %s355
      %p362 = scmp.eq.s32.totalorder %s30, 1
      %p363 = por %p361, %p362
      %p364 = scmp.ne.s32.totalorder %s355, %s356
      %p365 = scmp.eq.s32.totalorder %s30, 0
      %p366 = por %p364, %p365
      %p367 = scmp.ne.s32.totalorder %s355, %s356
      %p368 = scmp.eq.s32.totalorder %s31, 1
      %p369 = por %p367, %p368
      %p371 = scmp.ne.s32.totalorder %s356, %s370
      %p372 = scmp.eq.s32.totalorder %s31, 0
      %p373 = por %p371, %p372
      %s374 = ssub.s32 %s25, %s32
      %p375 = scmp.eq.s32.totalorder %s374, 0
      %s377 = sadd.s32 %s376, 1
      %s378 = scalar_select %p375, %s376, %s377
      %p381 = pneg %p375
      %p382 = scmp.eq.s32.totalorder %s25, 1
      %p383 = por %p381, %p382
      %p384 = scmp.ne.s32.totalorder %s376, %s379
      %p385 = scmp.eq.s32.totalorder %s25, 0
      %p386 = por %p384, %p385
      %p387 = scmp.ne.s32.totalorder %s376, %s379
      %p388 = scmp.eq.s32.totalorder %s30, 1
      %p389 = por %p387, %p388
      %p390 = scmp.ne.s32.totalorder %s379, %s380
      %p391 = scmp.eq.s32.totalorder %s30, 0
      %p392 = por %p390, %p391
      %p393 = scmp.ne.s32.totalorder %s379, %s380
      %p394 = scmp.eq.s32.totalorder %s31, 1
      %p395 = por %p393, %p394
      %p397 = scmp.ne.s32.totalorder %s380, %s396
      %p398 = scmp.eq.s32.totalorder %s31, 0
      %p399 = por %p397, %p398
      %p400 = scmp.le.s32.totalorder 1, %s25
      %p401 = scmp.lt.s32.totalorder %s25, 3
      %p402 = pnand %p400, %p401
      %p403 = pneg %p402
      // Predicated region
      $region9: #{net_cifar100_forward.1} parent=5 // pred_check
        _
      $region10: #{net_cifar100_forward.1} parent=5 // pred_check_branch
        %405 = sbr.rel (%p402) target = $region12
      $region11: #{net_cifar100_forward.1} parent=5 // pred_region
        %s406 = ssub.s32 %s25, 1
        // Predicated region
        $region13: #{net_cifar100_forward.1} parent=11 // pred_check
          %p407 = pneg %p72
        $region14: #{net_cifar100_forward.1} parent=11 // pred_check_branch
          %409 = sbr.rel (%p407) target = $region16
        $region15: #{net_cifar100_forward.1} parent=11 // pred_region
          _
        $region16: #{net_cifar100_forward.1} parent=11 // pred_fallthru
          _
        // Predicated region
        $region17: #{net_cifar100_forward.1} parent=11 // pred_check
          %p410 = pneg %p93
        $region18: #{net_cifar100_forward.1} parent=11 // pred_check_branch
          %412 = sbr.rel (%p410) target = $region20
        $region19: #{net_cifar100_forward.1} parent=11 // pred_region
          _
        $region20: #{net_cifar100_forward.1} parent=11 // pred_fallthru
          _
        // Predicated region
        $region21: #{net_cifar100_forward.1} parent=11 // pred_check
          %p413 = pneg %p114
        $region22: #{net_cifar100_forward.1} parent=11 // pred_check_branch
          %415 = sbr.rel (%p413) target = $region24
        $region23: #{net_cifar100_forward.1} parent=11 // pred_region
          _
        $region24: #{net_cifar100_forward.1} parent=11 // pred_fallthru
          _
        // Predicated region
        $region25: #{net_cifar100_forward.1} parent=11 // pred_check
          %p416 = pneg %p135
        $region26: #{net_cifar100_forward.1} parent=11 // pred_check_branch
          %418 = sbr.rel (%p416) target = $region28
        $region27: #{net_cifar100_forward.1} parent=11 // pred_region
          _
        $region28: #{net_cifar100_forward.1} parent=11 // pred_fallthru
          _
        // Predicated region
        $region29: #{net_cifar100_forward.1} parent=11 // pred_check
          %p419 = pneg %p156
        $region30: #{net_cifar100_forward.1} parent=11 // pred_check_branch
          %421 = sbr.rel (%p419) target = $region32
        $region31: #{net_cifar100_forward.1} parent=11 // pred_region
          _
        $region32: #{net_cifar100_forward.1} parent=11 // pred_fallthru
          _
        // Predicated region
        $region33: #{net_cifar100_forward.1} parent=11 // pred_check
          %p422 = pneg %p177
        $region34: #{net_cifar100_forward.1} parent=11 // pred_check_branch
          %424 = sbr.rel (%p422) target = $region36
        $region35: #{net_cifar100_forward.1} parent=11 // pred_region
          _
        $region36: #{net_cifar100_forward.1} parent=11 // pred_fallthru
          _
        // Predicated region
        $region37: #{net_cifar100_forward.1} parent=11 // pred_check
          %p425 = pneg %p198
        $region38: #{net_cifar100_forward.1} parent=11 // pred_check_branch
          %427 = sbr.rel (%p425) target = $region40
        $region39: #{net_cifar100_forward.1} parent=11 // pred_region
          _
        $region40: #{net_cifar100_forward.1} parent=11 // pred_fallthru
          _
        // Predicated region
        $region41: #{net_cifar100_forward.1} parent=11 // pred_check
          %p428 = pneg %p219
        $region42: #{net_cifar100_forward.1} parent=11 // pred_check_branch
          %430 = sbr.rel (%p428) target = $region44
        $region43: #{net_cifar100_forward.1} parent=11 // pred_region
          _
        $region44: #{net_cifar100_forward.1} parent=11 // pred_fallthru
          _
        // Predicated region
        $region45: #{net_cifar100_forward.1} parent=11 // pred_check
          %p431 = pneg %p240
        $region46: #{net_cifar100_forward.1} parent=11 // pred_check_branch
          %433 = sbr.rel (%p431) target = $region48
        $region47: #{net_cifar100_forward.1} parent=11 // pred_region
          _
        $region48: #{net_cifar100_forward.1} parent=11 // pred_fallthru
          _
        // Predicated region
        $region49: #{net_cifar100_forward.1} parent=11 // pred_check
          %p434 = pneg %p261
        $region50: #{net_cifar100_forward.1} parent=11 // pred_check_branch
          %436 = sbr.rel (%p434) target = $region52
        $region51: #{net_cifar100_forward.1} parent=11 // pred_region
          _
        $region52: #{net_cifar100_forward.1} parent=11 // pred_fallthru
          _
        // Predicated region
        $region53: #{net_cifar100_forward.1} parent=11 // pred_check
          %p437 = pneg %p282
        $region54: #{net_cifar100_forward.1} parent=11 // pred_check_branch
          %439 = sbr.rel (%p437) target = $region56
        $region55: #{net_cifar100_forward.1} parent=11 // pred_region
          _
        $region56: #{net_cifar100_forward.1} parent=11 // pred_fallthru
          _
        // Predicated region
        $region57: #{net_cifar100_forward.1} parent=11 // pred_check
          %p440 = pneg %p303
        $region58: #{net_cifar100_forward.1} parent=11 // pred_check_branch
          %442 = sbr.rel (%p440) target = $region60
        $region59: #{net_cifar100_forward.1} parent=11 // pred_region
          _
        $region60: #{net_cifar100_forward.1} parent=11 // pred_fallthru
          _
        // Predicated region
        $region61: #{net_cifar100_forward.1} parent=11 // pred_check
          %p443 = pneg %p324
        $region62: #{net_cifar100_forward.1} parent=11 // pred_check_branch
          %445 = sbr.rel (%p443) target = $region64
        $region63: #{net_cifar100_forward.1} parent=11 // pred_region
          _
        $region64: #{net_cifar100_forward.1} parent=11 // pred_fallthru
          _
        // Predicated region
        $region65: #{net_cifar100_forward.1} parent=11 // pred_check
          %p446 = pneg %p345
        $region66: #{net_cifar100_forward.1} parent=11 // pred_check_branch
          %448 = sbr.rel (%p446) target = $region68
        $region67: #{net_cifar100_forward.1} parent=11 // pred_region
          _
        $region68: #{net_cifar100_forward.1} parent=11 // pred_fallthru
          _
        // Predicated region
        $region69: #{net_cifar100_forward.1} parent=11 // pred_check
          %p449 = pneg %p366
        $region70: #{net_cifar100_forward.1} parent=11 // pred_check_branch
          %451 = sbr.rel (%p449) target = $region72
        $region71: #{net_cifar100_forward.1} parent=11 // pred_region
          _
        $region72: #{net_cifar100_forward.1} parent=11 // pred_fallthru
          _
      $region12: #{net_cifar100_forward.1} parent=5 // pred_fallthru
        _
      %p452 = scmp.lt.s32.totalorder %s25, 2
      // Predicated region
      $region73: #{net_cifar100_forward.1} parent=5 // pred_check
        %p453 = pneg %p452
      $region74: #{net_cifar100_forward.1} parent=5 // pred_check_branch
        %455 = sbr.rel (%p453) target = $region76
      $region75: #{net_cifar100_forward.1} parent=5 // pred_region
        // Predicated region
        $region77: #{net_cifar100_forward.1} parent=75 // pred_check
          %p456 = pneg %p45
        $region78: #{net_cifar100_forward.1} parent=75 // pred_check_branch
          %458 = sbr.rel (%p456) target = $region80
        $region79: #{net_cifar100_forward.1} parent=75 // pred_region
          %p459 = scmp.lt.s32.totalorder %s25, 1
          %s460 = scalar_select %p459, %s25, 1
          %s461 = smul.addr %s460, 33
          %s462 = smul.addr %s461, 8
          %s463 = scalar_lea.vmem %s0, %s462
        $region80: #{net_cifar100_forward.1} parent=75 // pred_fallthru
          _
      $region76: #{net_cifar100_forward.1} parent=5 // pred_fallthru
        _
      %p464 = scmp.le.s32.totalorder 1, %s25
      %p465 = scmp.lt.s32.totalorder %s25, 3
      %p466 = pnand %p464, %p465
      %p467 = pneg %p466
      // Predicated region
      $region81: #{net_cifar100_forward.1} parent=5 // pred_check
        _
      $region82: #{net_cifar100_forward.1} parent=5 // pred_check_branch
        %469 = sbr.rel (%p466) target = $region84
      $region83: #{net_cifar100_forward.1} parent=5 // pred_region
        %s470 = ssub.s32 %s25, 1
        %p471 = scmp.lt.s32.totalorder %s30, 1
        %s472 = scalar_select %p471, %s30, 1
        %s473 = smul.addr %s472, 33
        %s474 = smul.addr %s473, 8
        %s475 = scalar_lea.vmem %s0, %s474
        %p476 = pneg %p51
        %p477 = pneg %p48
        %p478 = pneg %p72
        %p479 = pneg %p69
        %p480 = pneg %p93
        %p481 = pneg %p90
        %p482 = pneg %p114
        %p483 = pneg %p111
        %p484 = pneg %p135
        %p485 = pneg %p132
        %p486 = pneg %p156
        %p487 = pneg %p153
        %p488 = pneg %p177
        %p489 = pneg %p174
        %p490 = pneg %p198
        %p491 = pneg %p195
        %p492 = pneg %p219
        %p493 = pneg %p216
        %p494 = pneg %p240
        %p495 = pneg %p237
        %p496 = pneg %p261
        %p497 = pneg %p258
        %p498 = pneg %p282
        %p499 = pneg %p279
        %p500 = pneg %p303
        %p501 = pneg %p300
        %p502 = pneg %p324
        %p503 = pneg %p321
        %p504 = pneg %p345
        %p505 = pneg %p342
        %p506 = pneg %p366
        %p507 = pneg %p363
        %p508 = pneg %p392
        %p509 = pneg %p389
        %s510 = sand.u32 %s379, 1
        %s511 = scalar_lea.sflag [#allocation4], %s510
        %s512 = sand.u32 %s379, 1
        %s513 = smul.addr %s512, 8
        %s514 = scalar_lea.vmem [#allocation3], %s513
        %p515 = scmp.lt.s32.totalorder %s30, 1
        %s516 = scalar_select %p515, %s30, 1
        %s517 = smul.addr %s516, 33
        %s518 = smul.addr %s517, 8
        %s519 = scalar_lea.vmem %s0, %s518
        %v521 = vld [vmem:[%s519] sm:$0xff]
        %v522 = vld [vmem:[%s519 + $0x8] sm:$0xff]
        %v523 = vld [vmem:[%s519 + $0x10] sm:$0xff]
        %v524 = vld [vmem:[%s519 + $0x18] sm:$0xff]
        %v525 = vld [vmem:[%s519 + $0x20] sm:$0xff]
        %v526 = vld [vmem:[%s519 + $0x28] sm:$0xff]
        %v527 = vld [vmem:[%s519 + $0x30] sm:$0xff]
        %v528 = vld [vmem:[%s519 + $0x38] sm:$0xff]
        %v529 = vld [vmem:[%s519 + $0x40] sm:$0xff]
        %v530 = vld [vmem:[%s519 + $0x48] sm:$0xff]
        %v531 = vld [vmem:[%s519 + $0x50] sm:$0xff]
        %v532 = vld [vmem:[%s519 + $0x58] sm:$0xff]
        %v533 = vld [vmem:[%s519 + $0x60] sm:$0xff]
        %v534 = vld [vmem:[%s519 + $0x68] sm:$0xff]
        %v535 = vld [vmem:[%s519 + $0x70] sm:$0xff]
        %v536 = vld [vmem:[%s519 + $0x78] sm:$0xff]
        %v537 = vld [vmem:[%s519 + $0x80] sm:$0xff]
        %v538 = vld [vmem:[%s519 + $0x88] sm:$0xff]
        %v539 = vld [vmem:[%s519 + $0x90] sm:$0xff]
        %v540 = vld [vmem:[%s519 + $0x98] sm:$0xff]
        %v541 = vld [vmem:[%s519 + $0xa0] sm:$0xff]
        %v542 = vld [vmem:[%s519 + $0xa8] sm:$0xff]
        %v543 = vld [vmem:[%s519 + $0xb0] sm:$0xff]
        %v544 = vld [vmem:[%s519 + $0xb8] sm:$0xff]
        %v545 = vld [vmem:[%s519 + $0xc0] sm:$0xff]
        %v546 = vld [vmem:[%s519 + $0xc8] sm:$0xff]
        %v547 = vld [vmem:[%s519 + $0xd0] sm:$0xff]
        %v548 = vld [vmem:[%s519 + $0xd8] sm:$0xff]
        %v549 = vld [vmem:[%s519 + $0xe0] sm:$0xff]
        %v550 = vld [vmem:[%s519 + $0xe8] sm:$0xff]
        %v551 = vld [vmem:[%s519 + $0xf0] sm:$0xff]
        %v552 = vld [vmem:[%s519 + $0xf8] sm:$0xff]
        %v553 = vpack.c.bf16 %v522, %v521
        %v554 = vpack.c.bf16 %v524, %v523
        %v555 = vpack.c.bf16 %v526, %v525
        %v556 = vpack.c.bf16 %v528, %v527
        %v557 = vpack.c.bf16 %v530, %v529
        %v558 = vpack.c.bf16 %v532, %v531
        %v559 = vpack.c.bf16 %v534, %v533
        %v560 = vpack.c.bf16 %v536, %v535
        %v561 = vpack.c.bf16 %v538, %v537
        %v562 = vpack.c.bf16 %v540, %v539
        %v563 = vpack.c.bf16 %v542, %v541
        %v564 = vpack.c.bf16 %v544, %v543
        %v565 = vpack.c.bf16 %v546, %v545
        %v566 = vpack.c.bf16 %v548, %v547
        %v567 = vpack.c.bf16 %v550, %v549
        %v568 = vpack.c.bf16 %v552, %v551
        %v569 = vld [vmem:[%s1] sm:$0xff]
        %v570 = vld [vmem:[%s1 + $0x8] sm:$0xff]
        %v571 = vld [vmem:[%s1 + $0x10] sm:$0xff]
        %v572 = vld [vmem:[%s1 + $0x18] sm:$0xff]
        %v573 = vld [vmem:[%s1 + $0x20] sm:$0xff]
        %v574 = vld [vmem:[%s1 + $0x28] sm:$0xff]
        %v575 = vld [vmem:[%s1 + $0x30] sm:$0xff]
        %v576 = vld [vmem:[%s1 + $0x38] sm:$0xff]
        %v577 = vld [vmem:[%s1 + $0x40] sm:$0xff]
        %v578 = vld [vmem:[%s1 + $0x48] sm:$0xff]
        %v579 = vld [vmem:[%s1 + $0x50] sm:$0xff]
        %v580 = vld [vmem:[%s1 + $0x58] sm:$0xff]
        %v593 = vunpack.c.l.b16 %v569
        %v594 = vunpack.c.h.b16 %v569
        %v595 = vunpack.c.l.b16 %v570
        %v596 = vunpack.c.h.b16 %v570
        %v597 = vunpack.c.l.b16 %v571
        %v598 = vunpack.c.h.b16 %v571
        %v599 = vunpack.c.l.b16 %v572
        %v600 = vunpack.c.h.b16 %v572
        %v601 = vunpack.c.l.b16 %v573
        %v602 = vunpack.c.h.b16 %v573
        %v603 = vunpack.c.l.b16 %v574
        %v604 = vunpack.c.h.b16 %v574
        %v605 = vunpack.c.l.b16 %v575
        %v606 = vunpack.c.h.b16 %v575
        %v607 = vunpack.c.l.b16 %v576
        %v608 = vunpack.c.h.b16 %v576
        %v609 = vunpack.c.l.b16 %v577
        %v610 = vunpack.c.h.b16 %v577
        %v611 = vunpack.c.l.b16 %v578
        %v612 = vunpack.c.h.b16 %v578
        %v613 = vunpack.c.l.b16 %v579
        %v614 = vunpack.c.h.b16 %v579
        %v615 = vunpack.c.l.b16 %v580
        %v616 = vunpack.c.h.b16 %v580
        %v617 = vpack.c.b16 %v595, %v593
        %v618 = vpack.c.b16 %v596, %v594
        %v619 = vpack.c.b16 %v599, %v597
        %v620 = vpack.c.b16 %v600, %v598
        %v621 = vpack.c.b16 %v603, %v601
        %v622 = vpack.c.b16 %v604, %v602
        %v623 = vpack.c.b16 %v607, %v605
        %v624 = vpack.c.b16 %v608, %v606
        %v625 = vpack.c.b16 %v611, %v609
        %v626 = vpack.c.b16 %v612, %v610
        %v627 = vpack.c.b16 %v615, %v613
        %v628 = vpack.c.b16 %v616, %v614
        %vm641 = vcmask 785408
        %v643 = vsel %vm641, %v553, 0
        %v646 = vsel %vm641, %v554, 0
        %v649 = vsel %vm641, %v555, 0
        %v652 = vsel %vm641, %v556, 0
        %v655 = vsel %vm641, %v557, 0
        %v658 = vsel %vm641, %v558, 0
        %v661 = vsel %vm641, %v559, 0
        %v664 = vsel %vm641, %v560, 0
        %v667 = vsel %vm641, %v561, 0
        %v670 = vsel %vm641, %v562, 0
        %v673 = vsel %vm641, %v563, 0
        %v676 = vsel %vm641, %v564, 0
        %v679 = vsel %vm641, %v565, 0
        %v682 = vsel %vm641, %v566, 0
        %v685 = vsel %vm641, %v567, 0
        %v688 = vsel %vm641, %v568, 0
        %690 = vmatpush.bf16.msra.mxu0 0
        %691 = vmatpush.bf16.msra.mxu0 0
        %692 = vmatpush.bf16.msra.mxu0 %v627
        %693 = vmatpush.bf16.msra.mxu0 %v625
        %694 = vmatpush.bf16.msra.mxu0 %v623
        %695 = vmatpush.bf16.msra.mxu0 %v621
        %696 = vmatpush.bf16.msra.mxu0 %v619
        %697 = vmatpush.bf16.msra.mxu0 %v617
        %698 = vmatmul.bf16.gmra.mxu0 %v643
        %v699 = vpop.f32.mrf.mxu0
        %v700 = vadd.f32 0.0, %v699
        %v701 = vpop.f32.mrf.mxu0
        %v702 = vadd.f32 0.0, %v701
        %703 = vmatmul.bf16.gmra.mxu0 %v646
        %v704 = vpop.f32.mrf.mxu0
        %v705 = vadd.f32 0.0, %v704
        %v706 = vpop.f32.mrf.mxu0
        %v707 = vadd.f32 0.0, %v706
        %708 = vmatmul.bf16.gmra.mxu0 %v649
        %v709 = vpop.f32.mrf.mxu0
        %v710 = vadd.f32 0.0, %v709
        %v711 = vpop.f32.mrf.mxu0
        %v712 = vadd.f32 0.0, %v711
        %713 = vmatmul.bf16.gmra.mxu0 %v652
        %v714 = vpop.f32.mrf.mxu0
        %v715 = vadd.f32 0.0, %v714
        %v716 = vpop.f32.mrf.mxu0
        %v717 = vadd.f32 0.0, %v716
        %718 = vmatmul.bf16.gmra.mxu0 %v655
        %v719 = vpop.f32.mrf.mxu0
        %v720 = vadd.f32 0.0, %v719
        %v721 = vpop.f32.mrf.mxu0
        %v722 = vadd.f32 0.0, %v721
        %723 = vmatmul.bf16.gmra.mxu0 %v658
        %v724 = vpop.f32.mrf.mxu0
        %v725 = vadd.f32 0.0, %v724
        %v726 = vpop.f32.mrf.mxu0
        %v727 = vadd.f32 0.0, %v726
        %728 = vmatmul.bf16.gmra.mxu0 %v661
        %v729 = vpop.f32.mrf.mxu0
        %v730 = vadd.f32 0.0, %v729
        %v731 = vpop.f32.mrf.mxu0
        %v732 = vadd.f32 0.0, %v731
        %733 = vmatmul.bf16.gmra.mxu0 %v664
        %v734 = vpop.f32.mrf.mxu0
        %v735 = vadd.f32 0.0, %v734
        %v736 = vpop.f32.mrf.mxu0
        %v737 = vadd.f32 0.0, %v736
        %738 = vmatmul.bf16.gmra.mxu0 %v667
        %v739 = vpop.f32.mrf.mxu0
        %v740 = vadd.f32 0.0, %v739
        %v741 = vpop.f32.mrf.mxu0
        %v742 = vadd.f32 0.0, %v741
        %743 = vmatmul.bf16.gmra.mxu0 %v670
        %v744 = vpop.f32.mrf.mxu0
        %v745 = vadd.f32 0.0, %v744
        %v746 = vpop.f32.mrf.mxu0
        %v747 = vadd.f32 0.0, %v746
        %748 = vmatmul.bf16.gmra.mxu0 %v673
        %v749 = vpop.f32.mrf.mxu0
        %v750 = vadd.f32 0.0, %v749
        %v751 = vpop.f32.mrf.mxu0
        %v752 = vadd.f32 0.0, %v751
        %753 = vmatmul.bf16.gmra.mxu0 %v676
        %v754 = vpop.f32.mrf.mxu0
        %v755 = vadd.f32 0.0, %v754
        %v756 = vpop.f32.mrf.mxu0
        %v757 = vadd.f32 0.0, %v756
        %758 = vmatmul.bf16.gmra.mxu0 %v679
        %v759 = vpop.f32.mrf.mxu0
        %v760 = vadd.f32 0.0, %v759
        %v761 = vpop.f32.mrf.mxu0
        %v762 = vadd.f32 0.0, %v761
        %763 = vmatmul.bf16.gmra.mxu0 %v682
        %v764 = vpop.f32.mrf.mxu0
        %v765 = vadd.f32 0.0, %v764
        %v766 = vpop.f32.mrf.mxu0
        %v767 = vadd.f32 0.0, %v766
        %768 = vmatmul.bf16.gmra.mxu0 %v685
        %v769 = vpop.f32.mrf.mxu0
        %v770 = vadd.f32 0.0, %v769
        %v771 = vpop.f32.mrf.mxu0
        %v772 = vadd.f32 0.0, %v771
        %773 = vmatmul.bf16.gmra.mxu0 %v688
        %v774 = vpop.f32.mrf.mxu0
        %v775 = vadd.f32 0.0, %v774
        %v776 = vpop.f32.mrf.mxu0
        %v777 = vadd.f32 0.0, %v776
        %778 = vdwg.mxu0
        %779 = vmatpush.bf16.msra.mxu0 0
        %780 = vmatpush.bf16.msra.mxu0 0
        %781 = vmatpush.bf16.msra.mxu0 %v628
        %782 = vmatpush.bf16.msra.mxu0 %v626
        %783 = vmatpush.bf16.msra.mxu0 %v624
        %784 = vmatpush.bf16.msra.mxu0 %v622
        %785 = vmatpush.bf16.msra.mxu0 %v620
        %786 = vmatpush.bf16.msra.mxu0 %v618
        %787 = vmatmul.bf16.gmra.mxu0 %v643
        %v788 = vpop.f32.mrf.mxu0
        %v789 = vadd.f32 0.0, %v788
        %v790 = vpop.f32.mrf.mxu0
        %v791 = vadd.f32 0.0, %v790
        %792 = vmatmul.bf16.gmra.mxu0 %v646
        %v793 = vpop.f32.mrf.mxu0
        %v794 = vadd.f32 0.0, %v793
        %v795 = vpop.f32.mrf.mxu0
        %v796 = vadd.f32 0.0, %v795
        %797 = vmatmul.bf16.gmra.mxu0 %v649
        %v798 = vpop.f32.mrf.mxu0
        %v799 = vadd.f32 0.0, %v798
        %v800 = vpop.f32.mrf.mxu0
        %v801 = vadd.f32 0.0, %v800
        %802 = vmatmul.bf16.gmra.mxu0 %v652
        %v803 = vpop.f32.mrf.mxu0
        %v804 = vadd.f32 0.0, %v803
        %v805 = vpop.f32.mrf.mxu0
        %v806 = vadd.f32 0.0, %v805
        %807 = vmatmul.bf16.gmra.mxu0 %v655
        %v808 = vpop.f32.mrf.mxu0
        %v809 = vadd.f32 0.0, %v808
        %v810 = vpop.f32.mrf.mxu0
        %v811 = vadd.f32 0.0, %v810
        %812 = vmatmul.bf16.gmra.mxu0 %v658
        %v813 = vpop.f32.mrf.mxu0
        %v814 = vadd.f32 0.0, %v813
        %v815 = vpop.f32.mrf.mxu0
        %v816 = vadd.f32 0.0, %v815
        %817 = vmatmul.bf16.gmra.mxu0 %v661
        %v818 = vpop.f32.mrf.mxu0
        %v819 = vadd.f32 0.0, %v818
        %v820 = vpop.f32.mrf.mxu0
        %v821 = vadd.f32 0.0, %v820
        %822 = vmatmul.bf16.gmra.mxu0 %v664
        %v823 = vpop.f32.mrf.mxu0
        %v824 = vadd.f32 0.0, %v823
        %v825 = vpop.f32.mrf.mxu0
        %v826 = vadd.f32 0.0, %v825
        %827 = vmatmul.bf16.gmra.mxu0 %v667
        %v828 = vpop.f32.mrf.mxu0
        %v829 = vadd.f32 0.0, %v828
        %v830 = vpop.f32.mrf.mxu0
        %v831 = vadd.f32 0.0, %v830
        %832 = vmatmul.bf16.gmra.mxu0 %v670
        %v833 = vpop.f32.mrf.mxu0
        %v834 = vadd.f32 0.0, %v833
        %v835 = vpop.f32.mrf.mxu0
        %v836 = vadd.f32 0.0, %v835
        %837 = vmatmul.bf16.gmra.mxu0 %v673
        %v838 = vpop.f32.mrf.mxu0
        %v839 = vadd.f32 0.0, %v838
        %v840 = vpop.f32.mrf.mxu0
        %v841 = vadd.f32 0.0, %v840
        %842 = vmatmul.bf16.gmra.mxu0 %v676
        %v843 = vpop.f32.mrf.mxu0
        %v844 = vadd.f32 0.0, %v843
        %v845 = vpop.f32.mrf.mxu0
        %v846 = vadd.f32 0.0, %v845
        %847 = vmatmul.bf16.gmra.mxu0 %v679
        %v848 = vpop.f32.mrf.mxu0
        %v849 = vadd.f32 0.0, %v848
        %v850 = vpop.f32.mrf.mxu0
        %v851 = vadd.f32 0.0, %v850
        %852 = vmatmul.bf16.gmra.mxu0 %v682
        %v853 = vpop.f32.mrf.mxu0
        %v854 = vadd.f32 0.0, %v853
        %v855 = vpop.f32.mrf.mxu0
        %v856 = vadd.f32 0.0, %v855
        %857 = vmatmul.bf16.gmra.mxu0 %v685
        %v858 = vpop.f32.mrf.mxu0
        %v859 = vadd.f32 0.0, %v858
        %v860 = vpop.f32.mrf.mxu0
        %v861 = vadd.f32 0.0, %v860
        %862 = vmatmul.bf16.gmra.mxu0 %v688
        %v863 = vpop.f32.mrf.mxu0
        %v864 = vadd.f32 0.0, %v863
        %v865 = vpop.f32.mrf.mxu0
        %v866 = vadd.f32 0.0, %v865
        %867 = vdwg.mxu0
        %868 = vst [vmem:[#allocation2] sm:$0xff] %v700
        %vm869 = vcmask 326656
        %870 = vst.msk [vmem:[#allocation2 + $0x8] sm:$0xff] %vm869, %v789
        %871 = vst [vmem:[#allocation2 + $0x10] sm:$0xff] %v702
        %872 = vst.msk [vmem:[#allocation2 + $0x18] sm:$0xff] %vm869, %v791
        %873 = vst [vmem:[#allocation2 + $0x20] sm:$0xff] %v705
        %874 = vst.msk [vmem:[#allocation2 + $0x28] sm:$0xff] %vm869, %v794
        %875 = vst [vmem:[#allocation2 + $0x30] sm:$0xff] %v707
        %876 = vst.msk [vmem:[#allocation2 + $0x38] sm:$0xff] %vm869, %v796
        %877 = vst [vmem:[#allocation2 + $0x40] sm:$0xff] %v710
        %878 = vst.msk [vmem:[#allocation2 + $0x48] sm:$0xff] %vm869, %v799
        %879 = vst [vmem:[#allocation2 + $0x50] sm:$0xff] %v712
        %880 = vst.msk [vmem:[#allocation2 + $0x58] sm:$0xff] %vm869, %v801
        %881 = vst [vmem:[#allocation2 + $0x60] sm:$0xff] %v715
        %882 = vst.msk [vmem:[#allocation2 + $0x68] sm:$0xff] %vm869, %v804
        %883 = vst [vmem:[#allocation2 + $0x70] sm:$0xff] %v717
        %884 = vst.msk [vmem:[#allocation2 + $0x78] sm:$0xff] %vm869, %v806
        %885 = vst [vmem:[#allocation2 + $0x80] sm:$0xff] %v720
        %886 = vst.msk [vmem:[#allocation2 + $0x88] sm:$0xff] %vm869, %v809
        %887 = vst [vmem:[#allocation2 + $0x90] sm:$0xff] %v722
        %888 = vst.msk [vmem:[#allocation2 + $0x98] sm:$0xff] %vm869, %v811
        %889 = vst [vmem:[#allocation2 + $0xa0] sm:$0xff] %v725
        %890 = vst.msk [vmem:[#allocation2 + $0xa8] sm:$0xff] %vm869, %v814
        %891 = vst [vmem:[#allocation2 + $0xb0] sm:$0xff] %v727
        %892 = vst.msk [vmem:[#allocation2 + $0xb8] sm:$0xff] %vm869, %v816
        %893 = vst [vmem:[#allocation2 + $0xc0] sm:$0xff] %v730
        %894 = vst.msk [vmem:[#allocation2 + $0xc8] sm:$0xff] %vm869, %v819
        %895 = vst [vmem:[#allocation2 + $0xd0] sm:$0xff] %v732
        %896 = vst.msk [vmem:[#allocation2 + $0xd8] sm:$0xff] %vm869, %v821
        %897 = vst [vmem:[#allocation2 + $0xe0] sm:$0xff] %v735
        %898 = vst.msk [vmem:[#allocation2 + $0xe8] sm:$0xff] %vm869, %v824
        %899 = vst [vmem:[#allocation2 + $0xf0] sm:$0xff] %v737
        %900 = vst.msk [vmem:[#allocation2 + $0xf8] sm:$0xff] %vm869, %v826
        %901 = vst [vmem:[#allocation2 + $0x100] sm:$0xff] %v740
        %902 = vst.msk [vmem:[#allocation2 + $0x108] sm:$0xff] %vm869, %v829
        %903 = vst [vmem:[#allocation2 + $0x110] sm:$0xff] %v742
        %904 = vst.msk [vmem:[#allocation2 + $0x118] sm:$0xff] %vm869, %v831
        %905 = vst [vmem:[#allocation2 + $0x120] sm:$0xff] %v745
        %906 = vst.msk [vmem:[#allocation2 + $0x128] sm:$0xff] %vm869, %v834
        %907 = vst [vmem:[#allocation2 + $0x130] sm:$0xff] %v747
        %908 = vst.msk [vmem:[#allocation2 + $0x138] sm:$0xff] %vm869, %v836
        %909 = vst [vmem:[#allocation2 + $0x140] sm:$0xff] %v750
        %910 = vst.msk [vmem:[#allocation2 + $0x148] sm:$0xff] %vm869, %v839
        %911 = vst [vmem:[#allocation2 + $0x150] sm:$0xff] %v752
        %912 = vst.msk [vmem:[#allocation2 + $0x158] sm:$0xff] %vm869, %v841
        %913 = vst [vmem:[#allocation2 + $0x160] sm:$0xff] %v755
        %914 = vst.msk [vmem:[#allocation2 + $0x168] sm:$0xff] %vm869, %v844
        %915 = vst [vmem:[#allocation2 + $0x170] sm:$0xff] %v757
        %916 = vst.msk [vmem:[#allocation2 + $0x178] sm:$0xff] %vm869, %v846
        %917 = vst [vmem:[#allocation2 + $0x180] sm:$0xff] %v760
        %918 = vst.msk [vmem:[#allocation2 + $0x188] sm:$0xff] %vm869, %v849
        %919 = vst [vmem:[#allocation2 + $0x190] sm:$0xff] %v762
        %920 = vst.msk [vmem:[#allocation2 + $0x198] sm:$0xff] %vm869, %v851
        %921 = vst [vmem:[#allocation2 + $0x1a0] sm:$0xff] %v765
        %922 = vst.msk [vmem:[#allocation2 + $0x1a8] sm:$0xff] %vm869, %v854
        %923 = vst [vmem:[#allocation2 + $0x1b0] sm:$0xff] %v767
        %924 = vst.msk [vmem:[#allocation2 + $0x1b8] sm:$0xff] %vm869, %v856
        %925 = vst [vmem:[#allocation2 + $0x1c0] sm:$0xff] %v770
        %926 = vst.msk [vmem:[#allocation2 + $0x1c8] sm:$0xff] %vm869, %v859
        %927 = vst [vmem:[#allocation2 + $0x1d0] sm:$0xff] %v772
        %928 = vst.msk [vmem:[#allocation2 + $0x1d8] sm:$0xff] %vm869, %v861
        %929 = vst [vmem:[#allocation2 + $0x1e0] sm:$0xff] %v775
        %930 = vst.msk [vmem:[#allocation2 + $0x1e8] sm:$0xff] %vm869, %v864
        %931 = vst [vmem:[#allocation2 + $0x1f0] sm:$0xff] %v777
        %932 = vst.msk [vmem:[#allocation2 + $0x1f8] sm:$0xff] %vm869, %v866
        %v933 = vld [vmem:[#allocation2] sm:$0xff]
        %v934 = vld [vmem:[#allocation2 + $0x8] sm:$0xff]
        %v935 = vld [vmem:[#allocation2 + $0x10] sm:$0xff]
        %v936 = vld [vmem:[#allocation2 + $0x18] sm:$0xff]
        %v937 = vld [vmem:[#allocation2 + $0x20] sm:$0xff]
        %v938 = vld [vmem:[#allocation2 + $0x28] sm:$0xff]
        %v939 = vld [vmem:[#allocation2 + $0x30] sm:$0xff]
        %v940 = vld [vmem:[#allocation2 + $0x38] sm:$0xff]
        %v941 = vld [vmem:[#allocation2 + $0x40] sm:$0xff]
        %v942 = vld [vmem:[#allocation2 + $0x48] sm:$0xff]
        %v943 = vld [vmem:[#allocation2 + $0x50] sm:$0xff]
        %v944 = vld [vmem:[#allocation2 + $0x58] sm:$0xff]
        %v945 = vld [vmem:[#allocation2 + $0x60] sm:$0xff]
        %v946 = vld [vmem:[#allocation2 + $0x68] sm:$0xff]
        %v947 = vld [vmem:[#allocation2 + $0x70] sm:$0xff]
        %v948 = vld [vmem:[#allocation2 + $0x78] sm:$0xff]
        %v949 = vld [vmem:[#allocation2 + $0x80] sm:$0xff]
        %v950 = vld [vmem:[#allocation2 + $0x88] sm:$0xff]
        %v951 = vld [vmem:[#allocation2 + $0x90] sm:$0xff]
        %v952 = vld [vmem:[#allocation2 + $0x98] sm:$0xff]
        %v953 = vld [vmem:[#allocation2 + $0xa0] sm:$0xff]
        %v954 = vld [vmem:[#allocation2 + $0xa8] sm:$0xff]
        %v955 = vld [vmem:[#allocation2 + $0xb0] sm:$0xff]
        %v956 = vld [vmem:[#allocation2 + $0xb8] sm:$0xff]
        %v957 = vld [vmem:[#allocation2 + $0xc0] sm:$0xff]
        %v958 = vld [vmem:[#allocation2 + $0xc8] sm:$0xff]
        %v959 = vld [vmem:[#allocation2 + $0xd0] sm:$0xff]
        %v960 = vld [vmem:[#allocation2 + $0xd8] sm:$0xff]
        %v961 = vld [vmem:[#allocation2 + $0xe0] sm:$0xff]
        %v962 = vld [vmem:[#allocation2 + $0xe8] sm:$0xff]
        %v963 = vld [vmem:[#allocation2 + $0xf0] sm:$0xff]
        %v964 = vld [vmem:[#allocation2 + $0xf8] sm:$0xff]
        %v965 = vld [vmem:[#allocation2 + $0x100] sm:$0xff]
        %v966 = vld [vmem:[#allocation2 + $0x108] sm:$0xff]
        %v967 = vld [vmem:[#allocation2 + $0x110] sm:$0xff]
        %v968 = vld [vmem:[#allocation2 + $0x118] sm:$0xff]
        %v969 = vld [vmem:[#allocation2 + $0x120] sm:$0xff]
        %v970 = vld [vmem:[#allocation2 + $0x128] sm:$0xff]
        %v971 = vld [vmem:[#allocation2 + $0x130] sm:$0xff]
        %v972 = vld [vmem:[#allocation2 + $0x138] sm:$0xff]
        %v973 = vld [vmem:[#allocation2 + $0x140] sm:$0xff]
        %v974 = vld [vmem:[#allocation2 + $0x148] sm:$0xff]
        %v975 = vld [vmem:[#allocation2 + $0x150] sm:$0xff]
        %v976 = vld [vmem:[#allocation2 + $0x158] sm:$0xff]
        %v977 = vld [vmem:[#allocation2 + $0x160] sm:$0xff]
        %v978 = vld [vmem:[#allocation2 + $0x168] sm:$0xff]
        %v979 = vld [vmem:[#allocation2 + $0x170] sm:$0xff]
        %v980 = vld [vmem:[#allocation2 + $0x178] sm:$0xff]
        %v981 = vld [vmem:[#allocation2 + $0x180] sm:$0xff]
        %v982 = vld [vmem:[#allocation2 + $0x188] sm:$0xff]
        %v983 = vld [vmem:[#allocation2 + $0x190] sm:$0xff]
        %v984 = vld [vmem:[#allocation2 + $0x198] sm:$0xff]
        %v985 = vld [vmem:[#allocation2 + $0x1a0] sm:$0xff]
        %v986 = vld [vmem:[#allocation2 + $0x1a8] sm:$0xff]
        %v987 = vld [vmem:[#allocation2 + $0x1b0] sm:$0xff]
        %v988 = vld [vmem:[#allocation2 + $0x1b8] sm:$0xff]
        %v989 = vld [vmem:[#allocation2 + $0x1c0] sm:$0xff]
        %v990 = vld [vmem:[#allocation2 + $0x1c8] sm:$0xff]
        %v991 = vld [vmem:[#allocation2 + $0x1d0] sm:$0xff]
        %v992 = vld [vmem:[#allocation2 + $0x1d8] sm:$0xff]
        %v993 = vld [vmem:[#allocation2 + $0x1e0] sm:$0xff]
        %v994 = vld [vmem:[#allocation2 + $0x1e8] sm:$0xff]
        %v995 = vld [vmem:[#allocation2 + $0x1f0] sm:$0xff]
        %v996 = vld [vmem:[#allocation2 + $0x1f8] sm:$0xff]
        %v997 = vld [vmem:[%s519 + $0x1] sm:$0xff]
        %v998 = vld [vmem:[%s519 + $0x9] sm:$0xff]
        %v999 = vld [vmem:[%s519 + $0x11] sm:$0xff]
        %v1000 = vld [vmem:[%s519 + $0x19] sm:$0xff]
        %v1001 = vld [vmem:[%s519 + $0x21] sm:$0xff]
        %v1002 = vld [vmem:[%s519 + $0x29] sm:$0xff]
        %v1003 = vld [vmem:[%s519 + $0x31] sm:$0xff]
        %v1004 = vld [vmem:[%s519 + $0x39] sm:$0xff]
        %v1005 = vld [vmem:[%s519 + $0x41] sm:$0xff]
        %v1006 = vld [vmem:[%s519 + $0x49] sm:$0xff]
        %v1007 = vld [vmem:[%s519 + $0x51] sm:$0xff]
        %v1008 = vld [vmem:[%s519 + $0x59] sm:$0xff]
        %v1009 = vld [vmem:[%s519 + $0x61] sm:$0xff]
        %v1010 = vld [vmem:[%s519 + $0x69] sm:$0xff]
        %v1011 = vld [vmem:[%s519 + $0x71] sm:$0xff]
        %v1012 = vld [vmem:[%s519 + $0x79] sm:$0xff]
        %v1013 = vld [vmem:[%s519 + $0x81] sm:$0xff]
        %v1014 = vld [vmem:[%s519 + $0x89] sm:$0xff]
        %v1015 = vld [vmem:[%s519 + $0x91] sm:$0xff]
        %v1016 = vld [vmem:[%s519 + $0x99] sm:$0xff]
        %v1017 = vld [vmem:[%s519 + $0xa1] sm:$0xff]
        %v1018 = vld [vmem:[%s519 + $0xa9] sm:$0xff]
        %v1019 = vld [vmem:[%s519 + $0xb1] sm:$0xff]
        %v1020 = vld [vmem:[%s519 + $0xb9] sm:$0xff]
        %v1021 = vld [vmem:[%s519 + $0xc1] sm:$0xff]
        %v1022 = vld [vmem:[%s519 + $0xc9] sm:$0xff]
        %v1023 = vld [vmem:[%s519 + $0xd1] sm:$0xff]
        %v1024 = vld [vmem:[%s519 + $0xd9] sm:$0xff]
        %v1025 = vld [vmem:[%s519 + $0xe1] sm:$0xff]
        %v1026 = vld [vmem:[%s519 + $0xe9] sm:$0xff]
        %v1027 = vld [vmem:[%s519 + $0xf1] sm:$0xff]
        %v1028 = vld [vmem:[%s519 + $0xf9] sm:$0xff]
        %v1029 = vpack.c.bf16 %v998, %v997
        %v1030 = vpack.c.bf16 %v1000, %v999
        %v1031 = vpack.c.bf16 %v1002, %v1001
        %v1032 = vpack.c.bf16 %v1004, %v1003
        %v1033 = vpack.c.bf16 %v1006, %v1005
        %v1034 = vpack.c.bf16 %v1008, %v1007
        %v1035 = vpack.c.bf16 %v1010, %v1009
        %v1036 = vpack.c.bf16 %v1012, %v1011
        %v1037 = vpack.c.bf16 %v1014, %v1013
        %v1038 = vpack.c.bf16 %v1016, %v1015
        %v1039 = vpack.c.bf16 %v1018, %v1017
        %v1040 = vpack.c.bf16 %v1020, %v1019
        %v1041 = vpack.c.bf16 %v1022, %v1021
        %v1042 = vpack.c.bf16 %v1024, %v1023
        %v1043 = vpack.c.bf16 %v1026, %v1025
        %v1044 = vpack.c.bf16 %v1028, %v1027
        %s1045 = scalar_lea.vmem %s1, 96
        %v1046 = vld [vmem:[%s1045] sm:$0xff]
        %v1047 = vld [vmem:[%s1045 + $0x8] sm:$0xff]
        %v1048 = vld [vmem:[%s1045 + $0x10] sm:$0xff]
        %v1049 = vld [vmem:[%s1045 + $0x18] sm:$0xff]
        %v1050 = vld [vmem:[%s1045 + $0x20] sm:$0xff]
        %v1051 = vld [vmem:[%s1045 + $0x28] sm:$0xff]
        %v1052 = vld [vmem:[%s1045 + $0x30] sm:$0xff]
        %v1053 = vld [vmem:[%s1045 + $0x38] sm:$0xff]
        %v1054 = vld [vmem:[%s1045 + $0x40] sm:$0xff]
        %v1055 = vld [vmem:[%s1045 + $0x48] sm:$0xff]
        %v1056 = vld [vmem:[%s1045 + $0x50] sm:$0xff]
        %v1057 = vld [vmem:[%s1045 + $0x58] sm:$0xff]
        %v1070 = vunpack.c.l.b16 %v1046
        %v1071 = vunpack.c.h.b16 %v1046
        %v1072 = vunpack.c.l.b16 %v1047
        %v1073 = vunpack.c.h.b16 %v1047
        %v1074 = vunpack.c.l.b16 %v1048
        %v1075 = vunpack.c.h.b16 %v1048
        %v1076 = vunpack.c.l.b16 %v1049
        %v1077 = vunpack.c.h.b16 %v1049
        %v1078 = vunpack.c.l.b16 %v1050
        %v1079 = vunpack.c.h.b16 %v1050
        %v1080 = vunpack.c.l.b16 %v1051
        %v1081 = vunpack.c.h.b16 %v1051
        %v1082 = vunpack.c.l.b16 %v1052
        %v1083 = vunpack.c.h.b16 %v1052
        %v1084 = vunpack.c.l.b16 %v1053
        %v1085 = vunpack.c.h.b16 %v1053
        %v1086 = vunpack.c.l.b16 %v1054
        %v1087 = vunpack.c.h.b16 %v1054
        %v1088 = vunpack.c.l.b16 %v1055
        %v1089 = vunpack.c.h.b16 %v1055
        %v1090 = vunpack.c.l.b16 %v1056
        %v1091 = vunpack.c.h.b16 %v1056
        %v1092 = vunpack.c.l.b16 %v1057
        %v1093 = vunpack.c.h.b16 %v1057
        %v1094 = vpack.c.b16 %v1072, %v1070
        %v1095 = vpack.c.b16 %v1073, %v1071
        %v1096 = vpack.c.b16 %v1076, %v1074
        %v1097 = vpack.c.b16 %v1077, %v1075
        %v1098 = vpack.c.b16 %v1080, %v1078
        %v1099 = vpack.c.b16 %v1081, %v1079
        %v1100 = vpack.c.b16 %v1084, %v1082
        %v1101 = vpack.c.b16 %v1085, %v1083
        %v1102 = vpack.c.b16 %v1088, %v1086
        %v1103 = vpack.c.b16 %v1089, %v1087
        %v1104 = vpack.c.b16 %v1092, %v1090
        %v1105 = vpack.c.b16 %v1093, %v1091
        %v1119 = vsel %vm641, %v1029, 0
        %v1122 = vsel %vm641, %v1030, 0
        %v1125 = vsel %vm641, %v1031, 0
        %v1128 = vsel %vm641, %v1032, 0
        %v1131 = vsel %vm641, %v1033, 0
        %v1134 = vsel %vm641, %v1034, 0
        %v1137 = vsel %vm641, %v1035, 0
        %v1140 = vsel %vm641, %v1036, 0
        %v1143 = vsel %vm641, %v1037, 0
        %v1146 = vsel %vm641, %v1038, 0
        %v1149 = vsel %vm641, %v1039, 0
        %v1152 = vsel %vm641, %v1040, 0
        %v1155 = vsel %vm641, %v1041, 0
        %v1158 = vsel %vm641, %v1042, 0
        %v1161 = vsel %vm641, %v1043, 0
        %v1164 = vsel %vm641, %v1044, 0
        %1166 = vmatpush.bf16.msra.mxu0 0
        %1167 = vmatpush.bf16.msra.mxu0 0
        %1168 = vmatpush.bf16.msra.mxu0 %v1104
        %1169 = vmatpush.bf16.msra.mxu0 %v1102
        %1170 = vmatpush.bf16.msra.mxu0 %v1100
        %1171 = vmatpush.bf16.msra.mxu0 %v1098
        %1172 = vmatpush.bf16.msra.mxu0 %v1096
        %1173 = vmatpush.bf16.msra.mxu0 %v1094
        %1174 = vmatmul.bf16.gmra.mxu0 %v1119
        %v1175 = vpop.f32.mrf.mxu0
        %v1176 = vadd.f32 0.0, %v1175
        %v1177 = vpop.f32.mrf.mxu0
        %v1178 = vadd.f32 0.0, %v1177
        %1179 = vmatmul.bf16.gmra.mxu0 %v1122
        %v1180 = vpop.f32.mrf.mxu0
        %v1181 = vadd.f32 0.0, %v1180
        %v1182 = vpop.f32.mrf.mxu0
        %v1183 = vadd.f32 0.0, %v1182
        %1184 = vmatmul.bf16.gmra.mxu0 %v1125
        %v1185 = vpop.f32.mrf.mxu0
        %v1186 = vadd.f32 0.0, %v1185
        %v1187 = vpop.f32.mrf.mxu0
        %v1188 = vadd.f32 0.0, %v1187
        %1189 = vmatmul.bf16.gmra.mxu0 %v1128
        %v1190 = vpop.f32.mrf.mxu0
        %v1191 = vadd.f32 0.0, %v1190
        %v1192 = vpop.f32.mrf.mxu0
        %v1193 = vadd.f32 0.0, %v1192
        %1194 = vmatmul.bf16.gmra.mxu0 %v1131
        %v1195 = vpop.f32.mrf.mxu0
        %v1196 = vadd.f32 0.0, %v1195
        %v1197 = vpop.f32.mrf.mxu0
        %v1198 = vadd.f32 0.0, %v1197
        %1199 = vmatmul.bf16.gmra.mxu0 %v1134
        %v1200 = vpop.f32.mrf.mxu0
        %v1201 = vadd.f32 0.0, %v1200
        %v1202 = vpop.f32.mrf.mxu0
        %v1203 = vadd.f32 0.0, %v1202
        %1204 = vmatmul.bf16.gmra.mxu0 %v1137
        %v1205 = vpop.f32.mrf.mxu0
        %v1206 = vadd.f32 0.0, %v1205
        %v1207 = vpop.f32.mrf.mxu0
        %v1208 = vadd.f32 0.0, %v1207
        %1209 = vmatmul.bf16.gmra.mxu0 %v1140
        %v1210 = vpop.f32.mrf.mxu0
        %v1211 = vadd.f32 0.0, %v1210
        %v1212 = vpop.f32.mrf.mxu0
        %v1213 = vadd.f32 0.0, %v1212
        %1214 = vmatmul.bf16.gmra.mxu0 %v1143
        %v1215 = vpop.f32.mrf.mxu0
        %v1216 = vadd.f32 0.0, %v1215
        %v1217 = vpop.f32.mrf.mxu0
        %v1218 = vadd.f32 0.0, %v1217
        %1219 = vmatmul.bf16.gmra.mxu0 %v1146
        %v1220 = vpop.f32.mrf.mxu0
        %v1221 = vadd.f32 0.0, %v1220
        %v1222 = vpop.f32.mrf.mxu0
        %v1223 = vadd.f32 0.0, %v1222
        %1224 = vmatmul.bf16.gmra.mxu0 %v1149
        %v1225 = vpop.f32.mrf.mxu0
        %v1226 = vadd.f32 0.0, %v1225
        %v1227 = vpop.f32.mrf.mxu0
        %v1228 = vadd.f32 0.0, %v1227
        %1229 = vmatmul.bf16.gmra.mxu0 %v1152
        %v1230 = vpop.f32.mrf.mxu0
        %v1231 = vadd.f32 0.0, %v1230
        %v1232 = vpop.f32.mrf.mxu0
        %v1233 = vadd.f32 0.0, %v1232
        %1234 = vmatmul.bf16.gmra.mxu0 %v1155
        %v1235 = vpop.f32.mrf.mxu0
        %v1236 = vadd.f32 0.0, %v1235
        %v1237 = vpop.f32.mrf.mxu0
        %v1238 = vadd.f32 0.0, %v1237
        %1239 = vmatmul.bf16.gmra.mxu0 %v1158
        %v1240 = vpop.f32.mrf.mxu0
        %v1241 = vadd.f32 0.0, %v1240
        %v1242 = vpop.f32.mrf.mxu0
        %v1243 = vadd.f32 0.0, %v1242
        %1244 = vmatmul.bf16.gmra.mxu0 %v1161
        %v1245 = vpop.f32.mrf.mxu0
        %v1246 = vadd.f32 0.0, %v1245
        %v1247 = vpop.f32.mrf.mxu0
        %v1248 = vadd.f32 0.0, %v1247
        %1249 = vmatmul.bf16.gmra.mxu0 %v1164
        %v1250 = vpop.f32.mrf.mxu0
        %v1251 = vadd.f32 0.0, %v1250
        %v1252 = vpop.f32.mrf.mxu0
        %v1253 = vadd.f32 0.0, %v1252
        %1254 = vdwg.mxu0
        %1255 = vmatpush.bf16.msra.mxu0 0
        %1256 = vmatpush.bf16.msra.mxu0 0
        %1257 = vmatpush.bf16.msra.mxu0 %v1105
        %1258 = vmatpush.bf16.msra.mxu0 %v1103
        %1259 = vmatpush.bf16.msra.mxu0 %v1101
        %1260 = vmatpush.bf16.msra.mxu0 %v1099
        %1261 = vmatpush.bf16.msra.mxu0 %v1097
        %1262 = vmatpush.bf16.msra.mxu0 %v1095
        %1263 = vmatmul.bf16.gmra.mxu0 %v1119
        %v1264 = vpop.f32.mrf.mxu0
        %v1265 = vadd.f32 0.0, %v1264
        %v1266 = vpop.f32.mrf.mxu0
        %v1267 = vadd.f32 0.0, %v1266
        %1268 = vmatmul.bf16.gmra.mxu0 %v1122
        %v1269 = vpop.f32.mrf.mxu0
        %v1270 = vadd.f32 0.0, %v1269
        %v1271 = vpop.f32.mrf.mxu0
        %v1272 = vadd.f32 0.0, %v1271
        %1273 = vmatmul.bf16.gmra.mxu0 %v1125
        %v1274 = vpop.f32.mrf.mxu0
        %v1275 = vadd.f32 0.0, %v1274
        %v1276 = vpop.f32.mrf.mxu0
        %v1277 = vadd.f32 0.0, %v1276
        %1278 = vmatmul.bf16.gmra.mxu0 %v1128
        %v1279 = vpop.f32.mrf.mxu0
        %v1280 = vadd.f32 0.0, %v1279
        %v1281 = vpop.f32.mrf.mxu0
        %v1282 = vadd.f32 0.0, %v1281
        %1283 = vmatmul.bf16.gmra.mxu0 %v1131
        %v1284 = vpop.f32.mrf.mxu0
        %v1285 = vadd.f32 0.0, %v1284
        %v1286 = vpop.f32.mrf.mxu0
        %v1287 = vadd.f32 0.0, %v1286
        %1288 = vmatmul.bf16.gmra.mxu0 %v1134
        %v1289 = vpop.f32.mrf.mxu0
        %v1290 = vadd.f32 0.0, %v1289
        %v1291 = vpop.f32.mrf.mxu0
        %v1292 = vadd.f32 0.0, %v1291
        %1293 = vmatmul.bf16.gmra.mxu0 %v1137
        %v1294 = vpop.f32.mrf.mxu0
        %v1295 = vadd.f32 0.0, %v1294
        %v1296 = vpop.f32.mrf.mxu0
        %v1297 = vadd.f32 0.0, %v1296
        %1298 = vmatmul.bf16.gmra.mxu0 %v1140
        %v1299 = vpop.f32.mrf.mxu0
        %v1300 = vadd.f32 0.0, %v1299
        %v1301 = vpop.f32.mrf.mxu0
        %v1302 = vadd.f32 0.0, %v1301
        %1303 = vmatmul.bf16.gmra.mxu0 %v1143
        %v1304 = vpop.f32.mrf.mxu0
        %v1305 = vadd.f32 0.0, %v1304
        %v1306 = vpop.f32.mrf.mxu0
        %v1307 = vadd.f32 0.0, %v1306
        %1308 = vmatmul.bf16.gmra.mxu0 %v1146
        %v1309 = vpop.f32.mrf.mxu0
        %v1310 = vadd.f32 0.0, %v1309
        %v1311 = vpop.f32.mrf.mxu0
        %v1312 = vadd.f32 0.0, %v1311
        %1313 = vmatmul.bf16.gmra.mxu0 %v1149
        %v1314 = vpop.f32.mrf.mxu0
        %v1315 = vadd.f32 0.0, %v1314
        %v1316 = vpop.f32.mrf.mxu0
        %v1317 = vadd.f32 0.0, %v1316
        %1318 = vmatmul.bf16.gmra.mxu0 %v1152
        %v1319 = vpop.f32.mrf.mxu0
        %v1320 = vadd.f32 0.0, %v1319
        %v1321 = vpop.f32.mrf.mxu0
        %v1322 = vadd.f32 0.0, %v1321
        %1323 = vmatmul.bf16.gmra.mxu0 %v1155
        %v1324 = vpop.f32.mrf.mxu0
        %v1325 = vadd.f32 0.0, %v1324
        %v1326 = vpop.f32.mrf.mxu0
        %v1327 = vadd.f32 0.0, %v1326
        %1328 = vmatmul.bf16.gmra.mxu0 %v1158
        %v1329 = vpop.f32.mrf.mxu0
        %v1330 = vadd.f32 0.0, %v1329
        %v1331 = vpop.f32.mrf.mxu0
        %v1332 = vadd.f32 0.0, %v1331
        %1333 = vmatmul.bf16.gmra.mxu0 %v1161
        %v1334 = vpop.f32.mrf.mxu0
        %v1335 = vadd.f32 0.0, %v1334
        %v1336 = vpop.f32.mrf.mxu0
        %v1337 = vadd.f32 0.0, %v1336
        %1338 = vmatmul.bf16.gmra.mxu0 %v1164
        %v1339 = vpop.f32.mrf.mxu0
        %v1340 = vadd.f32 0.0, %v1339
        %v1341 = vpop.f32.mrf.mxu0
        %v1342 = vadd.f32 0.0, %v1341
        %1343 = vdwg.mxu0
        %v1344 = vadd.f32 %v933, %v1176
        %v1345 = vadd.f32 %v934, %v1265
        %v1346 = vadd.f32 %v935, %v1178
        %v1347 = vadd.f32 %v936, %v1267
        %v1348 = vadd.f32 %v937, %v1181
        %v1349 = vadd.f32 %v938, %v1270
        %v1350 = vadd.f32 %v939, %v1183
        %v1351 = vadd.f32 %v940, %v1272
        %v1352 = vadd.f32 %v941, %v1186
        %v1353 = vadd.f32 %v942, %v1275
        %v1354 = vadd.f32 %v943, %v1188
        %v1355 = vadd.f32 %v944, %v1277
        %v1356 = vadd.f32 %v945, %v1191
        %v1357 = vadd.f32 %v946, %v1280
        %v1358 = vadd.f32 %v947, %v1193
        %v1359 = vadd.f32 %v948, %v1282
        %v1360 = vadd.f32 %v949, %v1196
        %v1361 = vadd.f32 %v950, %v1285
        %v1362 = vadd.f32 %v951, %v1198
        %v1363 = vadd.f32 %v952, %v1287
        %v1364 = vadd.f32 %v953, %v1201
        %v1365 = vadd.f32 %v954, %v1290
        %v1366 = vadd.f32 %v955, %v1203
        %v1367 = vadd.f32 %v956, %v1292
        %v1368 = vadd.f32 %v957, %v1206
        %v1369 = vadd.f32 %v958, %v1295
        %v1370 = vadd.f32 %v959, %v1208
        %v1371 = vadd.f32 %v960, %v1297
        %v1372 = vadd.f32 %v961, %v1211
        %v1373 = vadd.f32 %v962, %v1300
        %v1374 = vadd.f32 %v963, %v1213
        %v1375 = vadd.f32 %v964, %v1302
        %v1376 = vadd.f32 %v965, %v1216
        %v1377 = vadd.f32 %v966, %v1305
        %v1378 = vadd.f32 %v967, %v1218
        %v1379 = vadd.f32 %v968, %v1307
        %v1380 = vadd.f32 %v969, %v1221
        %v1381 = vadd.f32 %v970, %v1310
        %v1382 = vadd.f32 %v971, %v1223
        %v1383 = vadd.f32 %v972, %v1312
        %v1384 = vadd.f32 %v973, %v1226
        %v1385 = vadd.f32 %v974, %v1315
        %v1386 = vadd.f32 %v975, %v1228
        %v1387 = vadd.f32 %v976, %v1317
        %v1388 = vadd.f32 %v977, %v1231
        %v1389 = vadd.f32 %v978, %v1320
        %v1390 = vadd.f32 %v979, %v1233
        %v1391 = vadd.f32 %v980, %v1322
        %v1392 = vadd.f32 %v981, %v1236
        %v1393 = vadd.f32 %v982, %v1325
        %v1394 = vadd.f32 %v983, %v1238
        %v1395 = vadd.f32 %v984, %v1327
        %v1396 = vadd.f32 %v985, %v1241
        %v1397 = vadd.f32 %v986, %v1330
        %v1398 = vadd.f32 %v987, %v1243
        %v1399 = vadd.f32 %v988, %v1332
        %v1400 = vadd.f32 %v989, %v1246
        %v1401 = vadd.f32 %v990, %v1335
        %v1402 = vadd.f32 %v991, %v1248
        %v1403 = vadd.f32 %v992, %v1337
        %v1404 = vadd.f32 %v993, %v1251
        %v1405 = vadd.f32 %v994, %v1340
        %v1406 = vadd.f32 %v995, %v1253
        %v1407 = vadd.f32 %v996, %v1342
        %1408 = vst [vmem:[#allocation2] sm:$0xff] %v1344
        %1409 = vst.msk [vmem:[#allocation2 + $0x8] sm:$0xff] %vm869, %v1345
        %1410 = vst [vmem:[#allocation2 + $0x10] sm:$0xff] %v1346
        %1411 = vst.msk [vmem:[#allocation2 + $0x18] sm:$0xff] %vm869, %v1347
        %1412 = vst [vmem:[#allocation2 + $0x20] sm:$0xff] %v1348
        %1413 = vst.msk [vmem:[#allocation2 + $0x28] sm:$0xff] %vm869, %v1349
        %1414 = vst [vmem:[#allocation2 + $0x30] sm:$0xff] %v1350
        %1415 = vst.msk [vmem:[#allocation2 + $0x38] sm:$0xff] %vm869, %v1351
        %1416 = vst [vmem:[#allocation2 + $0x40] sm:$0xff] %v1352
        %1417 = vst.msk [vmem:[#allocation2 + $0x48] sm:$0xff] %vm869, %v1353
        %1418 = vst [vmem:[#allocation2 + $0x50] sm:$0xff] %v1354
        %1419 = vst.msk [vmem:[#allocation2 + $0x58] sm:$0xff] %vm869, %v1355
        %1420 = vst [vmem:[#allocation2 + $0x60] sm:$0xff] %v1356
        %1421 = vst.msk [vmem:[#allocation2 + $0x68] sm:$0xff] %vm869, %v1357
        %1422 = vst [vmem:[#allocation2 + $0x70] sm:$0xff] %v1358
        %1423 = vst.msk [vmem:[#allocation2 + $0x78] sm:$0xff] %vm869, %v1359
        %1424 = vst [vmem:[#allocation2 + $0x80] sm:$0xff] %v1360
        %1425 = vst.msk [vmem:[#allocation2 + $0x88] sm:$0xff] %vm869, %v1361
        %1426 = vst [vmem:[#allocation2 + $0x90] sm:$0xff] %v1362
        %1427 = vst.msk [vmem:[#allocation2 + $0x98] sm:$0xff] %vm869, %v1363
        %1428 = vst [vmem:[#allocation2 + $0xa0] sm:$0xff] %v1364
        %1429 = vst.msk [vmem:[#allocation2 + $0xa8] sm:$0xff] %vm869, %v1365
        %1430 = vst [vmem:[#allocation2 + $0xb0] sm:$0xff] %v1366
        %1431 = vst.msk [vmem:[#allocation2 + $0xb8] sm:$0xff] %vm869, %v1367
        %1432 = vst [vmem:[#allocation2 + $0xc0] sm:$0xff] %v1368
        %1433 = vst.msk [vmem:[#allocation2 + $0xc8] sm:$0xff] %vm869, %v1369
        %1434 = vst [vmem:[#allocation2 + $0xd0] sm:$0xff] %v1370
        %1435 = vst.msk [vmem:[#allocation2 + $0xd8] sm:$0xff] %vm869, %v1371
        %1436 = vst [vmem:[#allocation2 + $0xe0] sm:$0xff] %v1372
        %1437 = vst.msk [vmem:[#allocation2 + $0xe8] sm:$0xff] %vm869, %v1373
        %1438 = vst [vmem:[#allocation2 + $0xf0] sm:$0xff] %v1374
        %1439 = vst.msk [vmem:[#allocation2 + $0xf8] sm:$0xff] %vm869, %v1375
        %1440 = vst [vmem:[#allocation2 + $0x100] sm:$0xff] %v1376
        %1441 = vst.msk [vmem:[#allocation2 + $0x108] sm:$0xff] %vm869, %v1377
        %1442 = vst [vmem:[#allocation2 + $0x110] sm:$0xff] %v1378
        %1443 = vst.msk [vmem:[#allocation2 + $0x118] sm:$0xff] %vm869, %v1379
        %1444 = vst [vmem:[#allocation2 + $0x120] sm:$0xff] %v1380
        %1445 = vst.msk [vmem:[#allocation2 + $0x128] sm:$0xff] %vm869, %v1381
        %1446 = vst [vmem:[#allocation2 + $0x130] sm:$0xff] %v1382
        %1447 = vst.msk [vmem:[#allocation2 + $0x138] sm:$0xff] %vm869, %v1383
        %1448 = vst [vmem:[#allocation2 + $0x140] sm:$0xff] %v1384
        %1449 = vst.msk [vmem:[#allocation2 + $0x148] sm:$0xff] %vm869, %v1385
        %1450 = vst [vmem:[#allocation2 + $0x150] sm:$0xff] %v1386
        %1451 = vst.msk [vmem:[#allocation2 + $0x158] sm:$0xff] %vm869, %v1387
        %1452 = vst [vmem:[#allocation2 + $0x160] sm:$0xff] %v1388
        %1453 = vst.msk [vmem:[#allocation2 + $0x168] sm:$0xff] %vm869, %v1389
        %1454 = vst [vmem:[#allocation2 + $0x170] sm:$0xff] %v1390
        %1455 = vst.msk [vmem:[#allocation2 + $0x178] sm:$0xff] %vm869, %v1391
        %1456 = vst [vmem:[#allocation2 + $0x180] sm:$0xff] %v1392
        %1457 = vst.msk [vmem:[#allocation2 + $0x188] sm:$0xff] %vm869, %v1393
        %1458 = vst [vmem:[#allocation2 + $0x190] sm:$0xff] %v1394
        %1459 = vst.msk [vmem:[#allocation2 + $0x198] sm:$0xff] %vm869, %v1395
        %1460 = vst [vmem:[#allocation2 + $0x1a0] sm:$0xff] %v1396
        %1461 = vst.msk [vmem:[#allocation2 + $0x1a8] sm:$0xff] %vm869, %v1397
        %1462 = vst [vmem:[#allocation2 + $0x1b0] sm:$0xff] %v1398
        %1463 = vst.msk [vmem:[#allocation2 + $0x1b8] sm:$0xff] %vm869, %v1399
        %1464 = vst [vmem:[#allocation2 + $0x1c0] sm:$0xff] %v1400
        %1465 = vst.msk [vmem:[#allocation2 + $0x1c8] sm:$0xff] %vm869, %v1401
        %1466 = vst [vmem:[#allocation2 + $0x1d0] sm:$0xff] %v1402
        %1467 = vst.msk [vmem:[#allocation2 + $0x1d8] sm:$0xff] %vm869, %v1403
        %1468 = vst [vmem:[#allocation2 + $0x1e0] sm:$0xff] %v1404
        %1469 = vst.msk [vmem:[#allocation2 + $0x1e8] sm:$0xff] %vm869, %v1405
        %1470 = vst [vmem:[#allocation2 + $0x1f0] sm:$0xff] %v1406
        %1471 = vst.msk [vmem:[#allocation2 + $0x1f8] sm:$0xff] %vm869, %v1407
        %v1472 = vld [vmem:[#allocation2] sm:$0xff]
        %v1473 = vld [vmem:[#allocation2 + $0x8] sm:$0xff]
        %v1474 = vld [vmem:[#allocation2 + $0x10] sm:$0xff]
        %v1475 = vld [vmem:[#allocation2 + $0x18] sm:$0xff]
        %v1476 = vld [vmem:[#allocation2 + $0x20] sm:$0xff]
        %v1477 = vld [vmem:[#allocation2 + $0x28] sm:$0xff]
        %v1478 = vld [vmem:[#allocation2 + $0x30] sm:$0xff]
        %v1479 = vld [vmem:[#allocation2 + $0x38] sm:$0xff]
        %v1480 = vld [vmem:[#allocation2 + $0x40] sm:$0xff]
        %v1481 = vld [vmem:[#allocation2 + $0x48] sm:$0xff]
        %v1482 = vld [vmem:[#allocation2 + $0x50] sm:$0xff]
        %v1483 = vld [vmem:[#allocation2 + $0x58] sm:$0xff]
        %v1484 = vld [vmem:[#allocation2 + $0x60] sm:$0xff]
        %v1485 = vld [vmem:[#allocation2 + $0x68] sm:$0xff]
        %v1486 = vld [vmem:[#allocation2 + $0x70] sm:$0xff]
        %v1487 = vld [vmem:[#allocation2 + $0x78] sm:$0xff]
        %v1488 = vld [vmem:[#allocation2 + $0x80] sm:$0xff]
        %v1489 = vld [vmem:[#allocation2 + $0x88] sm:$0xff]
        %v1490 = vld [vmem:[#allocation2 + $0x90] sm:$0xff]
        %v1491 = vld [vmem:[#allocation2 + $0x98] sm:$0xff]
        %v1492 = vld [vmem:[#allocation2 + $0xa0] sm:$0xff]
        %v1493 = vld [vmem:[#allocation2 + $0xa8] sm:$0xff]
        %v1494 = vld [vmem:[#allocation2 + $0xb0] sm:$0xff]
        %v1495 = vld [vmem:[#allocation2 + $0xb8] sm:$0xff]
        %v1496 = vld [vmem:[#allocation2 + $0xc0] sm:$0xff]
        %v1497 = vld [vmem:[#allocation2 + $0xc8] sm:$0xff]
        %v1498 = vld [vmem:[#allocation2 + $0xd0] sm:$0xff]
        %v1499 = vld [vmem:[#allocation2 + $0xd8] sm:$0xff]
        %v1500 = vld [vmem:[#allocation2 + $0xe0] sm:$0xff]
        %v1501 = vld [vmem:[#allocation2 + $0xe8] sm:$0xff]
        %v1502 = vld [vmem:[#allocation2 + $0xf0] sm:$0xff]
        %v1503 = vld [vmem:[#allocation2 + $0xf8] sm:$0xff]
        %v1504 = vld [vmem:[#allocation2 + $0x100] sm:$0xff]
        %v1505 = vld [vmem:[#allocation2 + $0x108] sm:$0xff]
        %v1506 = vld [vmem:[#allocation2 + $0x110] sm:$0xff]
        %v1507 = vld [vmem:[#allocation2 + $0x118] sm:$0xff]
        %v1508 = vld [vmem:[#allocation2 + $0x120] sm:$0xff]
        %v1509 = vld [vmem:[#allocation2 + $0x128] sm:$0xff]
        %v1510 = vld [vmem:[#allocation2 + $0x130] sm:$0xff]
        %v1511 = vld [vmem:[#allocation2 + $0x138] sm:$0xff]
        %v1512 = vld [vmem:[#allocation2 + $0x140] sm:$0xff]
        %v1513 = vld [vmem:[#allocation2 + $0x148] sm:$0xff]
        %v1514 = vld [vmem:[#allocation2 + $0x150] sm:$0xff]
        %v1515 = vld [vmem:[#allocation2 + $0x158] sm:$0xff]
        %v1516 = vld [vmem:[#allocation2 + $0x160] sm:$0xff]
        %v1517 = vld [vmem:[#allocation2 + $0x168] sm:$0xff]
        %v1518 = vld [vmem:[#allocation2 + $0x170] sm:$0xff]
        %v1519 = vld [vmem:[#allocation2 + $0x178] sm:$0xff]
        %v1520 = vld [vmem:[#allocation2 + $0x180] sm:$0xff]
        %v1521 = vld [vmem:[#allocation2 + $0x188] sm:$0xff]
        %v1522 = vld [vmem:[#allocation2 + $0x190] sm:$0xff]
        %v1523 = vld [vmem:[#allocation2 + $0x198] sm:$0xff]
        %v1524 = vld [vmem:[#allocation2 + $0x1a0] sm:$0xff]
        %v1525 = vld [vmem:[#allocation2 + $0x1a8] sm:$0xff]
        %v1526 = vld [vmem:[#allocation2 + $0x1b0] sm:$0xff]
        %v1527 = vld [vmem:[#allocation2 + $0x1b8] sm:$0xff]
        %v1528 = vld [vmem:[#allocation2 + $0x1c0] sm:$0xff]
        %v1529 = vld [vmem:[#allocation2 + $0x1c8] sm:$0xff]
        %v1530 = vld [vmem:[#allocation2 + $0x1d0] sm:$0xff]
        %v1531 = vld [vmem:[#allocation2 + $0x1d8] sm:$0xff]
        %v1532 = vld [vmem:[#allocation2 + $0x1e0] sm:$0xff]
        %v1533 = vld [vmem:[#allocation2 + $0x1e8] sm:$0xff]
        %v1534 = vld [vmem:[#allocation2 + $0x1f0] sm:$0xff]
        %v1535 = vld [vmem:[#allocation2 + $0x1f8] sm:$0xff]
        %v1536 = vld [vmem:[%s519 + $0x2] sm:$0xff]
        %v1537 = vld [vmem:[%s519 + $0xa] sm:$0xff]
        %v1538 = vld [vmem:[%s519 + $0x12] sm:$0xff]
        %v1539 = vld [vmem:[%s519 + $0x1a] sm:$0xff]
        %v1540 = vld [vmem:[%s519 + $0x22] sm:$0xff]
        %v1541 = vld [vmem:[%s519 + $0x2a] sm:$0xff]
        %v1542 = vld [vmem:[%s519 + $0x32] sm:$0xff]
        %v1543 = vld [vmem:[%s519 + $0x3a] sm:$0xff]
        %v1544 = vld [vmem:[%s519 + $0x42] sm:$0xff]
        %v1545 = vld [vmem:[%s519 + $0x4a] sm:$0xff]
        %v1546 = vld [vmem:[%s519 + $0x52] sm:$0xff]
        %v1547 = vld [vmem:[%s519 + $0x5a] sm:$0xff]
        %v1548 = vld [vmem:[%s519 + $0x62] sm:$0xff]
        %v1549 = vld [vmem:[%s519 + $0x6a] sm:$0xff]
        %v1550 = vld [vmem:[%s519 + $0x72] sm:$0xff]
        %v1551 = vld [vmem:[%s519 + $0x7a] sm:$0xff]
        %v1552 = vld [vmem:[%s519 + $0x82] sm:$0xff]
        %v1553 = vld [vmem:[%s519 + $0x8a] sm:$0xff]
        %v1554 = vld [vmem:[%s519 + $0x92] sm:$0xff]
        %v1555 = vld [vmem:[%s519 + $0x9a] sm:$0xff]
        %v1556 = vld [vmem:[%s519 + $0xa2] sm:$0xff]
        %v1557 = vld [vmem:[%s519 + $0xaa] sm:$0xff]
        %v1558 = vld [vmem:[%s519 + $0xb2] sm:$0xff]
        %v1559 = vld [vmem:[%s519 + $0xba] sm:$0xff]
        %v1560 = vld [vmem:[%s519 + $0xc2] sm:$0xff]
        %v1561 = vld [vmem:[%s519 + $0xca] sm:$0xff]
        %v1562 = vld [vmem:[%s519 + $0xd2] sm:$0xff]
        %v1563 = vld [vmem:[%s519 + $0xda] sm:$0xff]
        %v1564 = vld [vmem:[%s519 + $0xe2] sm:$0xff]
        %v1565 = vld [vmem:[%s519 + $0xea] sm:$0xff]
        %v1566 = vld [vmem:[%s519 + $0xf2] sm:$0xff]
        %v1567 = vld [vmem:[%s519 + $0xfa] sm:$0xff]
        %v1568 = vpack.c.bf16 %v1537, %v1536
        %v1569 = vpack.c.bf16 %v1539, %v1538
        %v1570 = vpack.c.bf16 %v1541, %v1540
        %v1571 = vpack.c.bf16 %v1543, %v1542
        %v1572 = vpack.c.bf16 %v1545, %v1544
        %v1573 = vpack.c.bf16 %v1547, %v1546
        %v1574 = vpack.c.bf16 %v1549, %v1548
        %v1575 = vpack.c.bf16 %v1551, %v1550
        %v1576 = vpack.c.bf16 %v1553, %v1552
        %v1577 = vpack.c.bf16 %v1555, %v1554
        %v1578 = vpack.c.bf16 %v1557, %v1556
        %v1579 = vpack.c.bf16 %v1559, %v1558
        %v1580 = vpack.c.bf16 %v1561, %v1560
        %v1581 = vpack.c.bf16 %v1563, %v1562
        %v1582 = vpack.c.bf16 %v1565, %v1564
        %v1583 = vpack.c.bf16 %v1567, %v1566
        %s1584 = scalar_lea.vmem %s1, 192
        %v1585 = vld [vmem:[%s1584] sm:$0xff]
        %v1586 = vld [vmem:[%s1584 + $0x8] sm:$0xff]
        %v1587 = vld [vmem:[%s1584 + $0x10] sm:$0xff]
        %v1588 = vld [vmem:[%s1584 + $0x18] sm:$0xff]
        %v1589 = vld [vmem:[%s1584 + $0x20] sm:$0xff]
        %v1590 = vld [vmem:[%s1584 + $0x28] sm:$0xff]
        %v1591 = vld [vmem:[%s1584 + $0x30] sm:$0xff]
        %v1592 = vld [vmem:[%s1584 + $0x38] sm:$0xff]
        %v1593 = vld [vmem:[%s1584 + $0x40] sm:$0xff]
        %v1594 = vld [vmem:[%s1584 + $0x48] sm:$0xff]
        %v1595 = vld [vmem:[%s1584 + $0x50] sm:$0xff]
        %v1596 = vld [vmem:[%s1584 + $0x58] sm:$0xff]
        %v1609 = vunpack.c.l.b16 %v1585
        %v1610 = vunpack.c.h.b16 %v1585
        %v1611 = vunpack.c.l.b16 %v1586
        %v1612 = vunpack.c.h.b16 %v1586
        %v1613 = vunpack.c.l.b16 %v1587
        %v1614 = vunpack.c.h.b16 %v1587
        %v1615 = vunpack.c.l.b16 %v1588
        %v1616 = vunpack.c.h.b16 %v1588
        %v1617 = vunpack.c.l.b16 %v1589
        %v1618 = vunpack.c.h.b16 %v1589
        %v1619 = vunpack.c.l.b16 %v1590
        %v1620 = vunpack.c.h.b16 %v1590
        %v1621 = vunpack.c.l.b16 %v1591
        %v1622 = vunpack.c.h.b16 %v1591
        %v1623 = vunpack.c.l.b16 %v1592
        %v1624 = vunpack.c.h.b16 %v1592
        %v1625 = vunpack.c.l.b16 %v1593
        %v1626 = vunpack.c.h.b16 %v1593
        %v1627 = vunpack.c.l.b16 %v1594
        %v1628 = vunpack.c.h.b16 %v1594
        %v1629 = vunpack.c.l.b16 %v1595
        %v1630 = vunpack.c.h.b16 %v1595
        %v1631 = vunpack.c.l.b16 %v1596
        %v1632 = vunpack.c.h.b16 %v1596
        %v1633 = vpack.c.b16 %v1611, %v1609
        %v1634 = vpack.c.b16 %v1612, %v1610
        %v1635 = vpack.c.b16 %v1615, %v1613
        %v1636 = vpack.c.b16 %v1616, %v1614
        %v1637 = vpack.c.b16 %v1619, %v1617
        %v1638 = vpack.c.b16 %v1620, %v1618
        %v1639 = vpack.c.b16 %v1623, %v1621
        %v1640 = vpack.c.b16 %v1624, %v1622
        %v1641 = vpack.c.b16 %v1627, %v1625
        %v1642 = vpack.c.b16 %v1628, %v1626
        %v1643 = vpack.c.b16 %v1631, %v1629
        %v1644 = vpack.c.b16 %v1632, %v1630
        %v1658 = vsel %vm641, %v1568, 0
        %v1661 = vsel %vm641, %v1569, 0
        %v1664 = vsel %vm641, %v1570, 0
        %v1667 = vsel %vm641, %v1571, 0
        %v1670 = vsel %vm641, %v1572, 0
        %v1673 = vsel %vm641, %v1573, 0
        %v1676 = vsel %vm641, %v1574, 0
        %v1679 = vsel %vm641, %v1575, 0
        %v1682 = vsel %vm641, %v1576, 0
        %v1685 = vsel %vm641, %v1577, 0
        %v1688 = vsel %vm641, %v1578, 0
        %v1691 = vsel %vm641, %v1579, 0
        %v1694 = vsel %vm641, %v1580, 0
        %v1697 = vsel %vm641, %v1581, 0
        %v1700 = vsel %vm641, %v1582, 0
        %v1703 = vsel %vm641, %v1583, 0
        %1705 = vmatpush.bf16.msra.mxu0 0
        %1706 = vmatpush.bf16.msra.mxu0 0
        %1707 = vmatpush.bf16.msra.mxu0 %v1643
        %1708 = vmatpush.bf16.msra.mxu0 %v1641
        %1709 = vmatpush.bf16.msra.mxu0 %v1639
        %1710 = vmatpush.bf16.msra.mxu0 %v1637
        %1711 = vmatpush.bf16.msra.mxu0 %v1635
        %1712 = vmatpush.bf16.msra.mxu0 %v1633
        %1713 = vmatmul.bf16.gmra.mxu0 %v1658
        %v1714 = vpop.f32.mrf.mxu0
        %v1715 = vadd.f32 0.0, %v1714
        %v1716 = vpop.f32.mrf.mxu0
        %v1717 = vadd.f32 0.0, %v1716
        %1718 = vmatmul.bf16.gmra.mxu0 %v1661
        %v1719 = vpop.f32.mrf.mxu0
        %v1720 = vadd.f32 0.0, %v1719
        %v1721 = vpop.f32.mrf.mxu0
        %v1722 = vadd.f32 0.0, %v1721
        %1723 = vmatmul.bf16.gmra.mxu0 %v1664
        %v1724 = vpop.f32.mrf.mxu0
        %v1725 = vadd.f32 0.0, %v1724
        %v1726 = vpop.f32.mrf.mxu0
        %v1727 = vadd.f32 0.0, %v1726
        %1728 = vmatmul.bf16.gmra.mxu0 %v1667
        %v1729 = vpop.f32.mrf.mxu0
        %v1730 = vadd.f32 0.0, %v1729
        %v1731 = vpop.f32.mrf.mxu0
        %v1732 = vadd.f32 0.0, %v1731
        %1733 = vmatmul.bf16.gmra.mxu0 %v1670
        %v1734 = vpop.f32.mrf.mxu0
        %v1735 = vadd.f32 0.0, %v1734
        %v1736 = vpop.f32.mrf.mxu0
        %v1737 = vadd.f32 0.0, %v1736
        %1738 = vmatmul.bf16.gmra.mxu0 %v1673
        %v1739 = vpop.f32.mrf.mxu0
        %v1740 = vadd.f32 0.0, %v1739
        %v1741 = vpop.f32.mrf.mxu0
        %v1742 = vadd.f32 0.0, %v1741
        %1743 = vmatmul.bf16.gmra.mxu0 %v1676
        %v1744 = vpop.f32.mrf.mxu0
        %v1745 = vadd.f32 0.0, %v1744
        %v1746 = vpop.f32.mrf.mxu0
        %v1747 = vadd.f32 0.0, %v1746
        %1748 = vmatmul.bf16.gmra.mxu0 %v1679
        %v1749 = vpop.f32.mrf.mxu0
        %v1750 = vadd.f32 0.0, %v1749
        %v1751 = vpop.f32.mrf.mxu0
        %v1752 = vadd.f32 0.0, %v1751
        %1753 = vmatmul.bf16.gmra.mxu0 %v1682
        %v1754 = vpop.f32.mrf.mxu0
        %v1755 = vadd.f32 0.0, %v1754
        %v1756 = vpop.f32.mrf.mxu0
        %v1757 = vadd.f32 0.0, %v1756
        %1758 = vmatmul.bf16.gmra.mxu0 %v1685
        %v1759 = vpop.f32.mrf.mxu0
        %v1760 = vadd.f32 0.0, %v1759
        %v1761 = vpop.f32.mrf.mxu0
        %v1762 = vadd.f32 0.0, %v1761
        %1763 = vmatmul.bf16.gmra.mxu0 %v1688
        %v1764 = vpop.f32.mrf.mxu0
        %v1765 = vadd.f32 0.0, %v1764
        %v1766 = vpop.f32.mrf.mxu0
        %v1767 = vadd.f32 0.0, %v1766
        %1768 = vmatmul.bf16.gmra.mxu0 %v1691
        %v1769 = vpop.f32.mrf.mxu0
        %v1770 = vadd.f32 0.0, %v1769
        %v1771 = vpop.f32.mrf.mxu0
        %v1772 = vadd.f32 0.0, %v1771
        %1773 = vmatmul.bf16.gmra.mxu0 %v1694
        %v1774 = vpop.f32.mrf.mxu0
        %v1775 = vadd.f32 0.0, %v1774
        %v1776 = vpop.f32.mrf.mxu0
        %v1777 = vadd.f32 0.0, %v1776
        %1778 = vmatmul.bf16.gmra.mxu0 %v1697
        %v1779 = vpop.f32.mrf.mxu0
        %v1780 = vadd.f32 0.0, %v1779
        %v1781 = vpop.f32.mrf.mxu0
        %v1782 = vadd.f32 0.0, %v1781
        %1783 = vmatmul.bf16.gmra.mxu0 %v1700
        %v1784 = vpop.f32.mrf.mxu0
        %v1785 = vadd.f32 0.0, %v1784
        %v1786 = vpop.f32.mrf.mxu0
        %v1787 = vadd.f32 0.0, %v1786
        %1788 = vmatmul.bf16.gmra.mxu0 %v1703
        %v1789 = vpop.f32.mrf.mxu0
        %v1790 = vadd.f32 0.0, %v1789
        %v1791 = vpop.f32.mrf.mxu0
        %v1792 = vadd.f32 0.0, %v1791
        %1793 = vdwg.mxu0
        %1794 = vmatpush.bf16.msra.mxu0 0
        %1795 = vmatpush.bf16.msra.mxu0 0
        %1796 = vmatpush.bf16.msra.mxu0 %v1644
        %1797 = vmatpush.bf16.msra.mxu0 %v1642
        %1798 = vmatpush.bf16.msra.mxu0 %v1640
        %1799 = vmatpush.bf16.msra.mxu0 %v1638
        %1800 = vmatpush.bf16.msra.mxu0 %v1636
        %1801 = vmatpush.bf16.msra.mxu0 %v1634
        %1802 = vmatmul.bf16.gmra.mxu0 %v1658
        %v1803 = vpop.f32.mrf.mxu0
        %v1804 = vadd.f32 0.0, %v1803
        %v1805 = vpop.f32.mrf.mxu0
        %v1806 = vadd.f32 0.0, %v1805
        %1807 = vmatmul.bf16.gmra.mxu0 %v1661
        %v1808 = vpop.f32.mrf.mxu0
        %v1809 = vadd.f32 0.0, %v1808
        %v1810 = vpop.f32.mrf.mxu0
        %v1811 = vadd.f32 0.0, %v1810
        %1812 = vmatmul.bf16.gmra.mxu0 %v1664
        %v1813 = vpop.f32.mrf.mxu0
        %v1814 = vadd.f32 0.0, %v1813
        %v1815 = vpop.f32.mrf.mxu0
        %v1816 = vadd.f32 0.0, %v1815
        %1817 = vmatmul.bf16.gmra.mxu0 %v1667
        %v1818 = vpop.f32.mrf.mxu0
        %v1819 = vadd.f32 0.0, %v1818
        %v1820 = vpop.f32.mrf.mxu0
        %v1821 = vadd.f32 0.0, %v1820
        %1822 = vmatmul.bf16.gmra.mxu0 %v1670
        %v1823 = vpop.f32.mrf.mxu0
        %v1824 = vadd.f32 0.0, %v1823
        %v1825 = vpop.f32.mrf.mxu0
        %v1826 = vadd.f32 0.0, %v1825
        %1827 = vmatmul.bf16.gmra.mxu0 %v1673
        %v1828 = vpop.f32.mrf.mxu0
        %v1829 = vadd.f32 0.0, %v1828
        %v1830 = vpop.f32.mrf.mxu0
        %v1831 = vadd.f32 0.0, %v1830
        %1832 = vmatmul.bf16.gmra.mxu0 %v1676
        %v1833 = vpop.f32.mrf.mxu0
        %v1834 = vadd.f32 0.0, %v1833
        %v1835 = vpop.f32.mrf.mxu0
        %v1836 = vadd.f32 0.0, %v1835
        %1837 = vmatmul.bf16.gmra.mxu0 %v1679
        %v1838 = vpop.f32.mrf.mxu0
        %v1839 = vadd.f32 0.0, %v1838
        %v1840 = vpop.f32.mrf.mxu0
        %v1841 = vadd.f32 0.0, %v1840
        %1842 = vmatmul.bf16.gmra.mxu0 %v1682
        %v1843 = vpop.f32.mrf.mxu0
        %v1844 = vadd.f32 0.0, %v1843
        %v1845 = vpop.f32.mrf.mxu0
        %v1846 = vadd.f32 0.0, %v1845
        %1847 = vmatmul.bf16.gmra.mxu0 %v1685
        %v1848 = vpop.f32.mrf.mxu0
        %v1849 = vadd.f32 0.0, %v1848
        %v1850 = vpop.f32.mrf.mxu0
        %v1851 = vadd.f32 0.0, %v1850
        %1852 = vmatmul.bf16.gmra.mxu0 %v1688
        %v1853 = vpop.f32.mrf.mxu0
        %v1854 = vadd.f32 0.0, %v1853
        %v1855 = vpop.f32.mrf.mxu0
        %v1856 = vadd.f32 0.0, %v1855
        %1857 = vmatmul.bf16.gmra.mxu0 %v1691
        %v1858 = vpop.f32.mrf.mxu0
        %v1859 = vadd.f32 0.0, %v1858
        %v1860 = vpop.f32.mrf.mxu0
        %v1861 = vadd.f32 0.0, %v1860
        %1862 = vmatmul.bf16.gmra.mxu0 %v1694
        %v1863 = vpop.f32.mrf.mxu0
        %v1864 = vadd.f32 0.0, %v1863
        %v1865 = vpop.f32.mrf.mxu0
        %v1866 = vadd.f32 0.0, %v1865
        %1867 = vmatmul.bf16.gmra.mxu0 %v1697
        %v1868 = vpop.f32.mrf.mxu0
        %v1869 = vadd.f32 0.0, %v1868
        %v1870 = vpop.f32.mrf.mxu0
        %v1871 = vadd.f32 0.0, %v1870
        %1872 = vmatmul.bf16.gmra.mxu0 %v1700
        %v1873 = vpop.f32.mrf.mxu0
        %v1874 = vadd.f32 0.0, %v1873
        %v1875 = vpop.f32.mrf.mxu0
        %v1876 = vadd.f32 0.0, %v1875
        %1877 = vmatmul.bf16.gmra.mxu0 %v1703
        %v1878 = vpop.f32.mrf.mxu0
        %v1879 = vadd.f32 0.0, %v1878
        %v1880 = vpop.f32.mrf.mxu0
        %v1881 = vadd.f32 0.0, %v1880
        %1882 = vdwg.mxu0
        %v1883 = vadd.f32 %v1472, %v1715
        %v1884 = vadd.f32 %v1473, %v1804
        %v1885 = vadd.f32 %v1474, %v1717
        %v1886 = vadd.f32 %v1475, %v1806
        %v1887 = vadd.f32 %v1476, %v1720
        %v1888 = vadd.f32 %v1477, %v1809
        %v1889 = vadd.f32 %v1478, %v1722
        %v1890 = vadd.f32 %v1479, %v1811
        %v1891 = vadd.f32 %v1480, %v1725
        %v1892 = vadd.f32 %v1481, %v1814
        %v1893 = vadd.f32 %v1482, %v1727
        %v1894 = vadd.f32 %v1483, %v1816
        %v1895 = vadd.f32 %v1484, %v1730
        %v1896 = vadd.f32 %v1485, %v1819
        %v1897 = vadd.f32 %v1486, %v1732
        %v1898 = vadd.f32 %v1487, %v1821
        %v1899 = vadd.f32 %v1488, %v1735
        %v1900 = vadd.f32 %v1489, %v1824
        %v1901 = vadd.f32 %v1490, %v1737
        %v1902 = vadd.f32 %v1491, %v1826
        %v1903 = vadd.f32 %v1492, %v1740
        %v1904 = vadd.f32 %v1493, %v1829
        %v1905 = vadd.f32 %v1494, %v1742
        %v1906 = vadd.f32 %v1495, %v1831
        %v1907 = vadd.f32 %v1496, %v1745
        %v1908 = vadd.f32 %v1497, %v1834
        %v1909 = vadd.f32 %v1498, %v1747
        %v1910 = vadd.f32 %v1499, %v1836
        %v1911 = vadd.f32 %v1500, %v1750
        %v1912 = vadd.f32 %v1501, %v1839
        %v1913 = vadd.f32 %v1502, %v1752
        %v1914 = vadd.f32 %v1503, %v1841
        %v1915 = vadd.f32 %v1504, %v1755
        %v1916 = vadd.f32 %v1505, %v1844
        %v1917 = vadd.f32 %v1506, %v1757
        %v1918 = vadd.f32 %v1507, %v1846
        %v1919 = vadd.f32 %v1508, %v1760
        %v1920 = vadd.f32 %v1509, %v1849
        %v1921 = vadd.f32 %v1510, %v1762
        %v1922 = vadd.f32 %v1511, %v1851
        %v1923 = vadd.f32 %v1512, %v1765
        %v1924 = vadd.f32 %v1513, %v1854
        %v1925 = vadd.f32 %v1514, %v1767
        %v1926 = vadd.f32 %v1515, %v1856
        %v1927 = vadd.f32 %v1516, %v1770
        %v1928 = vadd.f32 %v1517, %v1859
        %v1929 = vadd.f32 %v1518, %v1772
        %v1930 = vadd.f32 %v1519, %v1861
        %v1931 = vadd.f32 %v1520, %v1775
        %v1932 = vadd.f32 %v1521, %v1864
        %v1933 = vadd.f32 %v1522, %v1777
        %v1934 = vadd.f32 %v1523, %v1866
        %v1935 = vadd.f32 %v1524, %v1780
        %v1936 = vadd.f32 %v1525, %v1869
        %v1937 = vadd.f32 %v1526, %v1782
        %v1938 = vadd.f32 %v1527, %v1871
        %v1939 = vadd.f32 %v1528, %v1785
        %v1940 = vadd.f32 %v1529, %v1874
        %v1941 = vadd.f32 %v1530, %v1787
        %v1942 = vadd.f32 %v1531, %v1876
        %v1943 = vadd.f32 %v1532, %v1790
        %v1944 = vadd.f32 %v1533, %v1879
        %v1945 = vadd.f32 %v1534, %v1792
        %v1946 = vadd.f32 %v1535, %v1881
        %1947 = vst [vmem:[#allocation2] sm:$0xff] %v1883
        %1948 = vst.msk [vmem:[#allocation2 + $0x8] sm:$0xff] %vm869, %v1884
        %1949 = vst [vmem:[#allocation2 + $0x10] sm:$0xff] %v1885
        %1950 = vst.msk [vmem:[#allocation2 + $0x18] sm:$0xff] %vm869, %v1886
        %1951 = vst [vmem:[#allocation2 + $0x20] sm:$0xff] %v1887
        %1952 = vst.msk [vmem:[#allocation2 + $0x28] sm:$0xff] %vm869, %v1888
        %1953 = vst [vmem:[#allocation2 + $0x30] sm:$0xff] %v1889
        %1954 = vst.msk [vmem:[#allocation2 + $0x38] sm:$0xff] %vm869, %v1890
        %1955 = vst [vmem:[#allocation2 + $0x40] sm:$0xff] %v1891
        %1956 = vst.msk [vmem:[#allocation2 + $0x48] sm:$0xff] %vm869, %v1892
        %1957 = vst [vmem:[#allocation2 + $0x50] sm:$0xff] %v1893
        %1958 = vst.msk [vmem:[#allocation2 + $0x58] sm:$0xff] %vm869, %v1894
        %1959 = vst [vmem:[#allocation2 + $0x60] sm:$0xff] %v1895
        %1960 = vst.msk [vmem:[#allocation2 + $0x68] sm:$0xff] %vm869, %v1896
        %1961 = vst [vmem:[#allocation2 + $0x70] sm:$0xff] %v1897
        %1962 = vst.msk [vmem:[#allocation2 + $0x78] sm:$0xff] %vm869, %v1898
        %1963 = vst [vmem:[#allocation2 + $0x80] sm:$0xff] %v1899
        %1964 = vst.msk [vmem:[#allocation2 + $0x88] sm:$0xff] %vm869, %v1900
        %1965 = vst [vmem:[#allocation2 + $0x90] sm:$0xff] %v1901
        %1966 = vst.msk [vmem:[#allocation2 + $0x98] sm:$0xff] %vm869, %v1902
        %1967 = vst [vmem:[#allocation2 + $0xa0] sm:$0xff] %v1903
        %1968 = vst.msk [vmem:[#allocation2 + $0xa8] sm:$0xff] %vm869, %v1904
        %1969 = vst [vmem:[#allocation2 + $0xb0] sm:$0xff] %v1905
        %1970 = vst.msk [vmem:[#allocation2 + $0xb8] sm:$0xff] %vm869, %v1906
        %1971 = vst [vmem:[#allocation2 + $0xc0] sm:$0xff] %v1907
        %1972 = vst.msk [vmem:[#allocation2 + $0xc8] sm:$0xff] %vm869, %v1908
        %1973 = vst [vmem:[#allocation2 + $0xd0] sm:$0xff] %v1909
        %1974 = vst.msk [vmem:[#allocation2 + $0xd8] sm:$0xff] %vm869, %v1910
        %1975 = vst [vmem:[#allocation2 + $0xe0] sm:$0xff] %v1911
        %1976 = vst.msk [vmem:[#allocation2 + $0xe8] sm:$0xff] %vm869, %v1912
        %1977 = vst [vmem:[#allocation2 + $0xf0] sm:$0xff] %v1913
        %1978 = vst.msk [vmem:[#allocation2 + $0xf8] sm:$0xff] %vm869, %v1914
        %1979 = vst [vmem:[#allocation2 + $0x100] sm:$0xff] %v1915
        %1980 = vst.msk [vmem:[#allocation2 + $0x108] sm:$0xff] %vm869, %v1916
        %1981 = vst [vmem:[#allocation2 + $0x110] sm:$0xff] %v1917
        %1982 = vst.msk [vmem:[#allocation2 + $0x118] sm:$0xff] %vm869, %v1918
        %1983 = vst [vmem:[#allocation2 + $0x120] sm:$0xff] %v1919
        %1984 = vst.msk [vmem:[#allocation2 + $0x128] sm:$0xff] %vm869, %v1920
        %1985 = vst [vmem:[#allocation2 + $0x130] sm:$0xff] %v1921
        %1986 = vst.msk [vmem:[#allocation2 + $0x138] sm:$0xff] %vm869, %v1922
        %1987 = vst [vmem:[#allocation2 + $0x140] sm:$0xff] %v1923
        %1988 = vst.msk [vmem:[#allocation2 + $0x148] sm:$0xff] %vm869, %v1924
        %1989 = vst [vmem:[#allocation2 + $0x150] sm:$0xff] %v1925
        %1990 = vst.msk [vmem:[#allocation2 + $0x158] sm:$0xff] %vm869, %v1926
        %1991 = vst [vmem:[#allocation2 + $0x160] sm:$0xff] %v1927
        %1992 = vst.msk [vmem:[#allocation2 + $0x168] sm:$0xff] %vm869, %v1928
        %1993 = vst [vmem:[#allocation2 + $0x170] sm:$0xff] %v1929
        %1994 = vst.msk [vmem:[#allocation2 + $0x178] sm:$0xff] %vm869, %v1930
        %1995 = vst [vmem:[#allocation2 + $0x180] sm:$0xff] %v1931
        %1996 = vst.msk [vmem:[#allocation2 + $0x188] sm:$0xff] %vm869, %v1932
        %1997 = vst [vmem:[#allocation2 + $0x190] sm:$0xff] %v1933
        %1998 = vst.msk [vmem:[#allocation2 + $0x198] sm:$0xff] %vm869, %v1934
        %1999 = vst [vmem:[#allocation2 + $0x1a0] sm:$0xff] %v1935
        %2000 = vst.msk [vmem:[#allocation2 + $0x1a8] sm:$0xff] %vm869, %v1936
        %2001 = vst [vmem:[#allocation2 + $0x1b0] sm:$0xff] %v1937
        %2002 = vst.msk [vmem:[#allocation2 + $0x1b8] sm:$0xff] %vm869, %v1938
        %2003 = vst [vmem:[#allocation2 + $0x1c0] sm:$0xff] %v1939
        %2004 = vst.msk [vmem:[#allocation2 + $0x1c8] sm:$0xff] %vm869, %v1940
        %2005 = vst [vmem:[#allocation2 + $0x1d0] sm:$0xff] %v1941
        %2006 = vst.msk [vmem:[#allocation2 + $0x1d8] sm:$0xff] %vm869, %v1942
        %2007 = vst [vmem:[#allocation2 + $0x1e0] sm:$0xff] %v1943
        %2008 = vst.msk [vmem:[#allocation2 + $0x1e8] sm:$0xff] %vm869, %v1944
        %2009 = vst [vmem:[#allocation2 + $0x1f0] sm:$0xff] %v1945
        %2010 = vst.msk [vmem:[#allocation2 + $0x1f8] sm:$0xff] %vm869, %v1946
        %v2011 = vld [vmem:[#allocation2] sm:$0xff]
        %v2012 = vld [vmem:[#allocation2 + $0x8] sm:$0xff]
        %v2013 = vld [vmem:[#allocation2 + $0x10] sm:$0xff]
        %v2014 = vld [vmem:[#allocation2 + $0x18] sm:$0xff]
        %v2015 = vld [vmem:[#allocation2 + $0x20] sm:$0xff]
        %v2016 = vld [vmem:[#allocation2 + $0x28] sm:$0xff]
        %v2017 = vld [vmem:[#allocation2 + $0x30] sm:$0xff]
        %v2018 = vld [vmem:[#allocation2 + $0x38] sm:$0xff]
        %v2019 = vld [vmem:[#allocation2 + $0x40] sm:$0xff]
        %v2020 = vld [vmem:[#allocation2 + $0x48] sm:$0xff]
        %v2021 = vld [vmem:[#allocation2 + $0x50] sm:$0xff]
        %v2022 = vld [vmem:[#allocation2 + $0x58] sm:$0xff]
        %v2023 = vld [vmem:[#allocation2 + $0x60] sm:$0xff]
        %v2024 = vld [vmem:[#allocation2 + $0x68] sm:$0xff]
        %v2025 = vld [vmem:[#allocation2 + $0x70] sm:$0xff]
        %v2026 = vld [vmem:[#allocation2 + $0x78] sm:$0xff]
        %v2027 = vld [vmem:[#allocation2 + $0x80] sm:$0xff]
        %v2028 = vld [vmem:[#allocation2 + $0x88] sm:$0xff]
        %v2029 = vld [vmem:[#allocation2 + $0x90] sm:$0xff]
        %v2030 = vld [vmem:[#allocation2 + $0x98] sm:$0xff]
        %v2031 = vld [vmem:[#allocation2 + $0xa0] sm:$0xff]
        %v2032 = vld [vmem:[#allocation2 + $0xa8] sm:$0xff]
        %v2033 = vld [vmem:[#allocation2 + $0xb0] sm:$0xff]
        %v2034 = vld [vmem:[#allocation2 + $0xb8] sm:$0xff]
        %v2035 = vld [vmem:[#allocation2 + $0xc0] sm:$0xff]
        %v2036 = vld [vmem:[#allocation2 + $0xc8] sm:$0xff]
        %v2037 = vld [vmem:[#allocation2 + $0xd0] sm:$0xff]
        %v2038 = vld [vmem:[#allocation2 + $0xd8] sm:$0xff]
        %v2039 = vld [vmem:[#allocation2 + $0xe0] sm:$0xff]
        %v2040 = vld [vmem:[#allocation2 + $0xe8] sm:$0xff]
        %v2041 = vld [vmem:[#allocation2 + $0xf0] sm:$0xff]
        %v2042 = vld [vmem:[#allocation2 + $0xf8] sm:$0xff]
        %v2043 = vld [vmem:[#allocation2 + $0x100] sm:$0xff]
        %v2044 = vld [vmem:[#allocation2 + $0x108] sm:$0xff]
        %v2045 = vld [vmem:[#allocation2 + $0x110] sm:$0xff]
        %v2046 = vld [vmem:[#allocation2 + $0x118] sm:$0xff]
        %v2047 = vld [vmem:[#allocation2 + $0x120] sm:$0xff]
        %v2048 = vld [vmem:[#allocation2 + $0x128] sm:$0xff]
        %v2049 = vld [vmem:[#allocation2 + $0x130] sm:$0xff]
        %v2050 = vld [vmem:[#allocation2 + $0x138] sm:$0xff]
        %v2051 = vld [vmem:[#allocation2 + $0x140] sm:$0xff]
        %v2052 = vld [vmem:[#allocation2 + $0x148] sm:$0xff]
        %v2053 = vld [vmem:[#allocation2 + $0x150] sm:$0xff]
        %v2054 = vld [vmem:[#allocation2 + $0x158] sm:$0xff]
        %v2055 = vld [vmem:[#allocation2 + $0x160] sm:$0xff]
        %v2056 = vld [vmem:[#allocation2 + $0x168] sm:$0xff]
        %v2057 = vld [vmem:[#allocation2 + $0x170] sm:$0xff]
        %v2058 = vld [vmem:[#allocation2 + $0x178] sm:$0xff]
        %v2059 = vld [vmem:[#allocation2 + $0x180] sm:$0xff]
        %v2060 = vld [vmem:[#allocation2 + $0x188] sm:$0xff]
        %v2061 = vld [vmem:[#allocation2 + $0x190] sm:$0xff]
        %v2062 = vld [vmem:[#allocation2 + $0x198] sm:$0xff]
        %v2063 = vld [vmem:[#allocation2 + $0x1a0] sm:$0xff]
        %v2064 = vld [vmem:[#allocation2 + $0x1a8] sm:$0xff]
        %v2065 = vld [vmem:[#allocation2 + $0x1b0] sm:$0xff]
        %v2066 = vld [vmem:[#allocation2 + $0x1b8] sm:$0xff]
        %v2067 = vld [vmem:[#allocation2 + $0x1c0] sm:$0xff]
        %v2068 = vld [vmem:[#allocation2 + $0x1c8] sm:$0xff]
        %v2069 = vld [vmem:[#allocation2 + $0x1d0] sm:$0xff]
        %v2070 = vld [vmem:[#allocation2 + $0x1d8] sm:$0xff]
        %v2071 = vld [vmem:[#allocation2 + $0x1e0] sm:$0xff]
        %v2072 = vld [vmem:[#allocation2 + $0x1e8] sm:$0xff]
        %v2073 = vld [vmem:[#allocation2 + $0x1f0] sm:$0xff]
        %v2074 = vld [vmem:[#allocation2 + $0x1f8] sm:$0xff]
        %v2075 = vld [vmem:[%s519 + $0x3] sm:$0xff]
        %v2076 = vld [vmem:[%s519 + $0xb] sm:$0xff]
        %v2077 = vld [vmem:[%s519 + $0x13] sm:$0xff]
        %v2078 = vld [vmem:[%s519 + $0x1b] sm:$0xff]
        %v2079 = vld [vmem:[%s519 + $0x23] sm:$0xff]
        %v2080 = vld [vmem:[%s519 + $0x2b] sm:$0xff]
        %v2081 = vld [vmem:[%s519 + $0x33] sm:$0xff]
        %v2082 = vld [vmem:[%s519 + $0x3b] sm:$0xff]
        %v2083 = vld [vmem:[%s519 + $0x43] sm:$0xff]
        %v2084 = vld [vmem:[%s519 + $0x4b] sm:$0xff]
        %v2085 = vld [vmem:[%s519 + $0x53] sm:$0xff]
        %v2086 = vld [vmem:[%s519 + $0x5b] sm:$0xff]
        %v2087 = vld [vmem:[%s519 + $0x63] sm:$0xff]
        %v2088 = vld [vmem:[%s519 + $0x6b] sm:$0xff]
        %v2089 = vld [vmem:[%s519 + $0x73] sm:$0xff]
        %v2090 = vld [vmem:[%s519 + $0x7b] sm:$0xff]
        %v2091 = vld [vmem:[%s519 + $0x83] sm:$0xff]
        %v2092 = vld [vmem:[%s519 + $0x8b] sm:$0xff]
        %v2093 = vld [vmem:[%s519 + $0x93] sm:$0xff]
        %v2094 = vld [vmem:[%s519 + $0x9b] sm:$0xff]
        %v2095 = vld [vmem:[%s519 + $0xa3] sm:$0xff]
        %v2096 = vld [vmem:[%s519 + $0xab] sm:$0xff]
        %v2097 = vld [vmem:[%s519 + $0xb3] sm:$0xff]
        %v2098 = vld [vmem:[%s519 + $0xbb] sm:$0xff]
        %v2099 = vld [vmem:[%s519 + $0xc3] sm:$0xff]
        %v2100 = vld [vmem:[%s519 + $0xcb] sm:$0xff]
        %v2101 = vld [vmem:[%s519 + $0xd3] sm:$0xff]
        %v2102 = vld [vmem:[%s519 + $0xdb] sm:$0xff]
        %v2103 = vld [vmem:[%s519 + $0xe3] sm:$0xff]
        %v2104 = vld [vmem:[%s519 + $0xeb] sm:$0xff]
        %v2105 = vld [vmem:[%s519 + $0xf3] sm:$0xff]
        %v2106 = vld [vmem:[%s519 + $0xfb] sm:$0xff]
        %v2107 = vpack.c.bf16 %v2076, %v2075
        %v2108 = vpack.c.bf16 %v2078, %v2077
        %v2109 = vpack.c.bf16 %v2080, %v2079
        %v2110 = vpack.c.bf16 %v2082, %v2081
        %v2111 = vpack.c.bf16 %v2084, %v2083
        %v2112 = vpack.c.bf16 %v2086, %v2085
        %v2113 = vpack.c.bf16 %v2088, %v2087
        %v2114 = vpack.c.bf16 %v2090, %v2089
        %v2115 = vpack.c.bf16 %v2092, %v2091
        %v2116 = vpack.c.bf16 %v2094, %v2093
        %v2117 = vpack.c.bf16 %v2096, %v2095
        %v2118 = vpack.c.bf16 %v2098, %v2097
        %v2119 = vpack.c.bf16 %v2100, %v2099
        %v2120 = vpack.c.bf16 %v2102, %v2101
        %v2121 = vpack.c.bf16 %v2104, %v2103
        %v2122 = vpack.c.bf16 %v2106, %v2105
        %s2123 = scalar_lea.vmem %s1, 288
        %v2124 = vld [vmem:[%s2123] sm:$0xff]
        %v2125 = vld [vmem:[%s2123 + $0x8] sm:$0xff]
        %v2126 = vld [vmem:[%s2123 + $0x10] sm:$0xff]
        %v2127 = vld [vmem:[%s2123 + $0x18] sm:$0xff]
        %v2128 = vld [vmem:[%s2123 + $0x20] sm:$0xff]
        %v2129 = vld [vmem:[%s2123 + $0x28] sm:$0xff]
        %v2130 = vld [vmem:[%s2123 + $0x30] sm:$0xff]
        %v2131 = vld [vmem:[%s2123 + $0x38] sm:$0xff]
        %v2132 = vld [vmem:[%s2123 + $0x40] sm:$0xff]
        %v2133 = vld [vmem:[%s2123 + $0x48] sm:$0xff]
        %v2134 = vld [vmem:[%s2123 + $0x50] sm:$0xff]
        %v2135 = vld [vmem:[%s2123 + $0x58] sm:$0xff]
        %v2148 = vunpack.c.l.b16 %v2124
        %v2149 = vunpack.c.h.b16 %v2124
        %v2150 = vunpack.c.l.b16 %v2125
        %v2151 = vunpack.c.h.b16 %v2125
        %v2152 = vunpack.c.l.b16 %v2126
        %v2153 = vunpack.c.h.b16 %v2126
        %v2154 = vunpack.c.l.b16 %v2127
        %v2155 = vunpack.c.h.b16 %v2127
        %v2156 = vunpack.c.l.b16 %v2128
        %v2157 = vunpack.c.h.b16 %v2128
        %v2158 = vunpack.c.l.b16 %v2129
        %v2159 = vunpack.c.h.b16 %v2129
        %v2160 = vunpack.c.l.b16 %v2130
        %v2161 = vunpack.c.h.b16 %v2130
        %v2162 = vunpack.c.l.b16 %v2131
        %v2163 = vunpack.c.h.b16 %v2131
        %v2164 = vunpack.c.l.b16 %v2132
        %v2165 = vunpack.c.h.b16 %v2132
        %v2166 = vunpack.c.l.b16 %v2133
        %v2167 = vunpack.c.h.b16 %v2133
        %v2168 = vunpack.c.l.b16 %v2134
        %v2169 = vunpack.c.h.b16 %v2134
        %v2170 = vunpack.c.l.b16 %v2135
        %v2171 = vunpack.c.h.b16 %v2135
        %v2172 = vpack.c.b16 %v2150, %v2148
        %v2173 = vpack.c.b16 %v2151, %v2149
        %v2174 = vpack.c.b16 %v2154, %v2152
        %v2175 = vpack.c.b16 %v2155, %v2153
        %v2176 = vpack.c.b16 %v2158, %v2156
        %v2177 = vpack.c.b16 %v2159, %v2157
        %v2178 = vpack.c.b16 %v2162, %v2160
        %v2179 = vpack.c.b16 %v2163, %v2161
        %v2180 = vpack.c.b16 %v2166, %v2164
        %v2181 = vpack.c.b16 %v2167, %v2165
        %v2182 = vpack.c.b16 %v2170, %v2168
        %v2183 = vpack.c.b16 %v2171, %v2169
        %v2197 = vsel %vm641, %v2107, 0
        %v2200 = vsel %vm641, %v2108, 0
        %v2203 = vsel %vm641, %v2109, 0
        %v2206 = vsel %vm641, %v2110, 0
        %v2209 = vsel %vm641, %v2111, 0
        %v2212 = vsel %vm641, %v2112, 0
        %v2215 = vsel %vm641, %v2113, 0
        %v2218 = vsel %vm641, %v2114, 0
        %v2221 = vsel %vm641, %v2115, 0
        %v2224 = vsel %vm641, %v2116, 0
        %v2227 = vsel %vm641, %v2117, 0
        %v2230 = vsel %vm641, %v2118, 0
        %v2233 = vsel %vm641, %v2119, 0
        %v2236 = vsel %vm641, %v2120, 0
        %v2239 = vsel %vm641, %v2121, 0
        %v2242 = vsel %vm641, %v2122, 0
        %2244 = vmatpush.bf16.msra.mxu0 0
        %2245 = vmatpush.bf16.msra.mxu0 0
        %2246 = vmatpush.bf16.msra.mxu0 %v2182
        %2247 = vmatpush.bf16.msra.mxu0 %v2180
        %2248 = vmatpush.bf16.msra.mxu0 %v2178
        %2249 = vmatpush.bf16.msra.mxu0 %v2176
        %2250 = vmatpush.bf16.msra.mxu0 %v2174
        %2251 = vmatpush.bf16.msra.mxu0 %v2172
        %2252 = vmatmul.bf16.gmra.mxu0 %v2197
        %v2253 = vpop.f32.mrf.mxu0
        %v2254 = vadd.f32 0.0, %v2253
        %v2255 = vpop.f32.mrf.mxu0
        %v2256 = vadd.f32 0.0, %v2255
        %2257 = vmatmul.bf16.gmra.mxu0 %v2200
        %v2258 = vpop.f32.mrf.mxu0
        %v2259 = vadd.f32 0.0, %v2258
        %v2260 = vpop.f32.mrf.mxu0
        %v2261 = vadd.f32 0.0, %v2260
        %2262 = vmatmul.bf16.gmra.mxu0 %v2203
        %v2263 = vpop.f32.mrf.mxu0
        %v2264 = vadd.f32 0.0, %v2263
        %v2265 = vpop.f32.mrf.mxu0
        %v2266 = vadd.f32 0.0, %v2265
        %2267 = vmatmul.bf16.gmra.mxu0 %v2206
        %v2268 = vpop.f32.mrf.mxu0
        %v2269 = vadd.f32 0.0, %v2268
        %v2270 = vpop.f32.mrf.mxu0
        %v2271 = vadd.f32 0.0, %v2270
        %2272 = vmatmul.bf16.gmra.mxu0 %v2209
        %v2273 = vpop.f32.mrf.mxu0
        %v2274 = vadd.f32 0.0, %v2273
        %v2275 = vpop.f32.mrf.mxu0
        %v2276 = vadd.f32 0.0, %v2275
        %2277 = vmatmul.bf16.gmra.mxu0 %v2212
        %v2278 = vpop.f32.mrf.mxu0
        %v2279 = vadd.f32 0.0, %v2278
        %v2280 = vpop.f32.mrf.mxu0
        %v2281 = vadd.f32 0.0, %v2280
        %2282 = vmatmul.bf16.gmra.mxu0 %v2215
        %v2283 = vpop.f32.mrf.mxu0
        %v2284 = vadd.f32 0.0, %v2283
        %v2285 = vpop.f32.mrf.mxu0
        %v2286 = vadd.f32 0.0, %v2285
        %2287 = vmatmul.bf16.gmra.mxu0 %v2218
        %v2288 = vpop.f32.mrf.mxu0
        %v2289 = vadd.f32 0.0, %v2288
        %v2290 = vpop.f32.mrf.mxu0
        %v2291 = vadd.f32 0.0, %v2290
        %2292 = vmatmul.bf16.gmra.mxu0 %v2221
        %v2293 = vpop.f32.mrf.mxu0
        %v2294 = vadd.f32 0.0, %v2293
        %v2295 = vpop.f32.mrf.mxu0
        %v2296 = vadd.f32 0.0, %v2295
        %2297 = vmatmul.bf16.gmra.mxu0 %v2224
        %v2298 = vpop.f32.mrf.mxu0
        %v2299 = vadd.f32 0.0, %v2298
        %v2300 = vpop.f32.mrf.mxu0
        %v2301 = vadd.f32 0.0, %v2300
        %2302 = vmatmul.bf16.gmra.mxu0 %v2227
        %v2303 = vpop.f32.mrf.mxu0
        %v2304 = vadd.f32 0.0, %v2303
        %v2305 = vpop.f32.mrf.mxu0
        %v2306 = vadd.f32 0.0, %v2305
        %2307 = vmatmul.bf16.gmra.mxu0 %v2230
        %v2308 = vpop.f32.mrf.mxu0
        %v2309 = vadd.f32 0.0, %v2308
        %v2310 = vpop.f32.mrf.mxu0
        %v2311 = vadd.f32 0.0, %v2310
        %2312 = vmatmul.bf16.gmra.mxu0 %v2233
        %v2313 = vpop.f32.mrf.mxu0
        %v2314 = vadd.f32 0.0, %v2313
        %v2315 = vpop.f32.mrf.mxu0
        %v2316 = vadd.f32 0.0, %v2315
        %2317 = vmatmul.bf16.gmra.mxu0 %v2236
        %v2318 = vpop.f32.mrf.mxu0
        %v2319 = vadd.f32 0.0, %v2318
        %v2320 = vpop.f32.mrf.mxu0
        %v2321 = vadd.f32 0.0, %v2320
        %2322 = vmatmul.bf16.gmra.mxu0 %v2239
        %v2323 = vpop.f32.mrf.mxu0
        %v2324 = vadd.f32 0.0, %v2323
        %v2325 = vpop.f32.mrf.mxu0
        %v2326 = vadd.f32 0.0, %v2325
        %2327 = vmatmul.bf16.gmra.mxu0 %v2242
        %v2328 = vpop.f32.mrf.mxu0
        %v2329 = vadd.f32 0.0, %v2328
        %v2330 = vpop.f32.mrf.mxu0
        %v2331 = vadd.f32 0.0, %v2330
        %2332 = vdwg.mxu0
        %2333 = vmatpush.bf16.msra.mxu0 0
        %2334 = vmatpush.bf16.msra.mxu0 0
        %2335 = vmatpush.bf16.msra.mxu0 %v2183
        %2336 = vmatpush.bf16.msra.mxu0 %v2181
        %2337 = vmatpush.bf16.msra.mxu0 %v2179
        %2338 = vmatpush.bf16.msra.mxu0 %v2177
        %2339 = vmatpush.bf16.msra.mxu0 %v2175
        %2340 = vmatpush.bf16.msra.mxu0 %v2173
        %2341 = vmatmul.bf16.gmra.mxu0 %v2197
        %v2342 = vpop.f32.mrf.mxu0
        %v2343 = vadd.f32 0.0, %v2342
        %v2344 = vpop.f32.mrf.mxu0
        %v2345 = vadd.f32 0.0, %v2344
        %2346 = vmatmul.bf16.gmra.mxu0 %v2200
        %v2347 = vpop.f32.mrf.mxu0
        %v2348 = vadd.f32 0.0, %v2347
        %v2349 = vpop.f32.mrf.mxu0
        %v2350 = vadd.f32 0.0, %v2349
        %2351 = vmatmul.bf16.gmra.mxu0 %v2203
        %v2352 = vpop.f32.mrf.mxu0
        %v2353 = vadd.f32 0.0, %v2352
        %v2354 = vpop.f32.mrf.mxu0
        %v2355 = vadd.f32 0.0, %v2354
        %2356 = vmatmul.bf16.gmra.mxu0 %v2206
        %v2357 = vpop.f32.mrf.mxu0
        %v2358 = vadd.f32 0.0, %v2357
        %v2359 = vpop.f32.mrf.mxu0
        %v2360 = vadd.f32 0.0, %v2359
        %2361 = vmatmul.bf16.gmra.mxu0 %v2209
        %v2362 = vpop.f32.mrf.mxu0
        %v2363 = vadd.f32 0.0, %v2362
        %v2364 = vpop.f32.mrf.mxu0
        %v2365 = vadd.f32 0.0, %v2364
        %2366 = vmatmul.bf16.gmra.mxu0 %v2212
        %v2367 = vpop.f32.mrf.mxu0
        %v2368 = vadd.f32 0.0, %v2367
        %v2369 = vpop.f32.mrf.mxu0
        %v2370 = vadd.f32 0.0, %v2369
        %2371 = vmatmul.bf16.gmra.mxu0 %v2215
        %v2372 = vpop.f32.mrf.mxu0
        %v2373 = vadd.f32 0.0, %v2372
        %v2374 = vpop.f32.mrf.mxu0
        %v2375 = vadd.f32 0.0, %v2374
        %2376 = vmatmul.bf16.gmra.mxu0 %v2218
        %v2377 = vpop.f32.mrf.mxu0
        %v2378 = vadd.f32 0.0, %v2377
        %v2379 = vpop.f32.mrf.mxu0
        %v2380 = vadd.f32 0.0, %v2379
        %2381 = vmatmul.bf16.gmra.mxu0 %v2221
        %v2382 = vpop.f32.mrf.mxu0
        %v2383 = vadd.f32 0.0, %v2382
        %v2384 = vpop.f32.mrf.mxu0
        %v2385 = vadd.f32 0.0, %v2384
        %2386 = vmatmul.bf16.gmra.mxu0 %v2224
        %v2387 = vpop.f32.mrf.mxu0
        %v2388 = vadd.f32 0.0, %v2387
        %v2389 = vpop.f32.mrf.mxu0
        %v2390 = vadd.f32 0.0, %v2389
        %2391 = vmatmul.bf16.gmra.mxu0 %v2227
        %v2392 = vpop.f32.mrf.mxu0
        %v2393 = vadd.f32 0.0, %v2392
        %v2394 = vpop.f32.mrf.mxu0
        %v2395 = vadd.f32 0.0, %v2394
        %2396 = vmatmul.bf16.gmra.mxu0 %v2230
        %v2397 = vpop.f32.mrf.mxu0
        %v2398 = vadd.f32 0.0, %v2397
        %v2399 = vpop.f32.mrf.mxu0
        %v2400 = vadd.f32 0.0, %v2399
        %2401 = vmatmul.bf16.gmra.mxu0 %v2233
        %v2402 = vpop.f32.mrf.mxu0
        %v2403 = vadd.f32 0.0, %v2402
        %v2404 = vpop.f32.mrf.mxu0
        %v2405 = vadd.f32 0.0, %v2404
        %2406 = vmatmul.bf16.gmra.mxu0 %v2236
        %v2407 = vpop.f32.mrf.mxu0
        %v2408 = vadd.f32 0.0, %v2407
        %v2409 = vpop.f32.mrf.mxu0
        %v2410 = vadd.f32 0.0, %v2409
        %2411 = vmatmul.bf16.gmra.mxu0 %v2239
        %v2412 = vpop.f32.mrf.mxu0
        %v2413 = vadd.f32 0.0, %v2412
        %v2414 = vpop.f32.mrf.mxu0
        %v2415 = vadd.f32 0.0, %v2414
        %2416 = vmatmul.bf16.gmra.mxu0 %v2242
        %v2417 = vpop.f32.mrf.mxu0
        %v2418 = vadd.f32 0.0, %v2417
        %v2419 = vpop.f32.mrf.mxu0
        %v2420 = vadd.f32 0.0, %v2419
        %2421 = vdwg.mxu0
        %v2422 = vadd.f32 %v2011, %v2254
        %v2423 = vadd.f32 %v2012, %v2343
        %v2424 = vadd.f32 %v2013, %v2256
        %v2425 = vadd.f32 %v2014, %v2345
        %v2426 = vadd.f32 %v2015, %v2259
        %v2427 = vadd.f32 %v2016, %v2348
        %v2428 = vadd.f32 %v2017, %v2261
        %v2429 = vadd.f32 %v2018, %v2350
        %v2430 = vadd.f32 %v2019, %v2264
        %v2431 = vadd.f32 %v2020, %v2353
        %v2432 = vadd.f32 %v2021, %v2266
        %v2433 = vadd.f32 %v2022, %v2355
        %v2434 = vadd.f32 %v2023, %v2269
        %v2435 = vadd.f32 %v2024, %v2358
        %v2436 = vadd.f32 %v2025, %v2271
        %v2437 = vadd.f32 %v2026, %v2360
        %v2438 = vadd.f32 %v2027, %v2274
        %v2439 = vadd.f32 %v2028, %v2363
        %v2440 = vadd.f32 %v2029, %v2276
        %v2441 = vadd.f32 %v2030, %v2365
        %v2442 = vadd.f32 %v2031, %v2279
        %v2443 = vadd.f32 %v2032, %v2368
        %v2444 = vadd.f32 %v2033, %v2281
        %v2445 = vadd.f32 %v2034, %v2370
        %v2446 = vadd.f32 %v2035, %v2284
        %v2447 = vadd.f32 %v2036, %v2373
        %v2448 = vadd.f32 %v2037, %v2286
        %v2449 = vadd.f32 %v2038, %v2375
        %v2450 = vadd.f32 %v2039, %v2289
        %v2451 = vadd.f32 %v2040, %v2378
        %v2452 = vadd.f32 %v2041, %v2291
        %v2453 = vadd.f32 %v2042, %v2380
        %v2454 = vadd.f32 %v2043, %v2294
        %v2455 = vadd.f32 %v2044, %v2383
        %v2456 = vadd.f32 %v2045, %v2296
        %v2457 = vadd.f32 %v2046, %v2385
        %v2458 = vadd.f32 %v2047, %v2299
        %v2459 = vadd.f32 %v2048, %v2388
        %v2460 = vadd.f32 %v2049, %v2301
        %v2461 = vadd.f32 %v2050, %v2390
        %v2462 = vadd.f32 %v2051, %v2304
        %v2463 = vadd.f32 %v2052, %v2393
        %v2464 = vadd.f32 %v2053, %v2306
        %v2465 = vadd.f32 %v2054, %v2395
        %v2466 = vadd.f32 %v2055, %v2309
        %v2467 = vadd.f32 %v2056, %v2398
        %v2468 = vadd.f32 %v2057, %v2311
        %v2469 = vadd.f32 %v2058, %v2400
        %v2470 = vadd.f32 %v2059, %v2314
        %v2471 = vadd.f32 %v2060, %v2403
        %v2472 = vadd.f32 %v2061, %v2316
        %v2473 = vadd.f32 %v2062, %v2405
        %v2474 = vadd.f32 %v2063, %v2319
        %v2475 = vadd.f32 %v2064, %v2408
        %v2476 = vadd.f32 %v2065, %v2321
        %v2477 = vadd.f32 %v2066, %v2410
        %v2478 = vadd.f32 %v2067, %v2324
        %v2479 = vadd.f32 %v2068, %v2413
        %v2480 = vadd.f32 %v2069, %v2326
        %v2481 = vadd.f32 %v2070, %v2415
        %v2482 = vadd.f32 %v2071, %v2329
        %v2483 = vadd.f32 %v2072, %v2418
        %v2484 = vadd.f32 %v2073, %v2331
        %v2485 = vadd.f32 %v2074, %v2420
        %2486 = vst [vmem:[#allocation2] sm:$0xff] %v2422
        %2487 = vst.msk [vmem:[#allocation2 + $0x8] sm:$0xff] %vm869, %v2423
        %2488 = vst [vmem:[#allocation2 + $0x10] sm:$0xff] %v2424
        %2489 = vst.msk [vmem:[#allocation2 + $0x18] sm:$0xff] %vm869, %v2425
        %2490 = vst [vmem:[#allocation2 + $0x20] sm:$0xff] %v2426
        %2491 = vst.msk [vmem:[#allocation2 + $0x28] sm:$0xff] %vm869, %v2427
        %2492 = vst [vmem:[#allocation2 + $0x30] sm:$0xff] %v2428
        %2493 = vst.msk [vmem:[#allocation2 + $0x38] sm:$0xff] %vm869, %v2429
        %2494 = vst [vmem:[#allocation2 + $0x40] sm:$0xff] %v2430
        %2495 = vst.msk [vmem:[#allocation2 + $0x48] sm:$0xff] %vm869, %v2431
        %2496 = vst [vmem:[#allocation2 + $0x50] sm:$0xff] %v2432
        %2497 = vst.msk [vmem:[#allocation2 + $0x58] sm:$0xff] %vm869, %v2433
        %2498 = vst [vmem:[#allocation2 + $0x60] sm:$0xff] %v2434
        %2499 = vst.msk [vmem:[#allocation2 + $0x68] sm:$0xff] %vm869, %v2435
        %2500 = vst [vmem:[#allocation2 + $0x70] sm:$0xff] %v2436
        %2501 = vst.msk [vmem:[#allocation2 + $0x78] sm:$0xff] %vm869, %v2437
        %2502 = vst [vmem:[#allocation2 + $0x80] sm:$0xff] %v2438
        %2503 = vst.msk [vmem:[#allocation2 + $0x88] sm:$0xff] %vm869, %v2439
        %2504 = vst [vmem:[#allocation2 + $0x90] sm:$0xff] %v2440
        %2505 = vst.msk [vmem:[#allocation2 + $0x98] sm:$0xff] %vm869, %v2441
        %2506 = vst [vmem:[#allocation2 + $0xa0] sm:$0xff] %v2442
        %2507 = vst.msk [vmem:[#allocation2 + $0xa8] sm:$0xff] %vm869, %v2443
        %2508 = vst [vmem:[#allocation2 + $0xb0] sm:$0xff] %v2444
        %2509 = vst.msk [vmem:[#allocation2 + $0xb8] sm:$0xff] %vm869, %v2445
        %2510 = vst [vmem:[#allocation2 + $0xc0] sm:$0xff] %v2446
        %2511 = vst.msk [vmem:[#allocation2 + $0xc8] sm:$0xff] %vm869, %v2447
        %2512 = vst [vmem:[#allocation2 + $0xd0] sm:$0xff] %v2448
        %2513 = vst.msk [vmem:[#allocation2 + $0xd8] sm:$0xff] %vm869, %v2449
        %2514 = vst [vmem:[#allocation2 + $0xe0] sm:$0xff] %v2450
        %2515 = vst.msk [vmem:[#allocation2 + $0xe8] sm:$0xff] %vm869, %v2451
        %2516 = vst [vmem:[#allocation2 + $0xf0] sm:$0xff] %v2452
        %2517 = vst.msk [vmem:[#allocation2 + $0xf8] sm:$0xff] %vm869, %v2453
        %2518 = vst [vmem:[#allocation2 + $0x100] sm:$0xff] %v2454
        %2519 = vst.msk [vmem:[#allocation2 + $0x108] sm:$0xff] %vm869, %v2455
        %2520 = vst [vmem:[#allocation2 + $0x110] sm:$0xff] %v2456
        %2521 = vst.msk [vmem:[#allocation2 + $0x118] sm:$0xff] %vm869, %v2457
        %2522 = vst [vmem:[#allocation2 + $0x120] sm:$0xff] %v2458
        %2523 = vst.msk [vmem:[#allocation2 + $0x128] sm:$0xff] %vm869, %v2459
        %2524 = vst [vmem:[#allocation2 + $0x130] sm:$0xff] %v2460
        %2525 = vst.msk [vmem:[#allocation2 + $0x138] sm:$0xff] %vm869, %v2461
        %2526 = vst [vmem:[#allocation2 + $0x140] sm:$0xff] %v2462
        %2527 = vst.msk [vmem:[#allocation2 + $0x148] sm:$0xff] %vm869, %v2463
        %2528 = vst [vmem:[#allocation2 + $0x150] sm:$0xff] %v2464
        %2529 = vst.msk [vmem:[#allocation2 + $0x158] sm:$0xff] %vm869, %v2465
        %2530 = vst [vmem:[#allocation2 + $0x160] sm:$0xff] %v2466
        %2531 = vst.msk [vmem:[#allocation2 + $0x168] sm:$0xff] %vm869, %v2467
        %2532 = vst [vmem:[#allocation2 + $0x170] sm:$0xff] %v2468
        %2533 = vst.msk [vmem:[#allocation2 + $0x178] sm:$0xff] %vm869, %v2469
        %2534 = vst [vmem:[#allocation2 + $0x180] sm:$0xff] %v2470
        %2535 = vst.msk [vmem:[#allocation2 + $0x188] sm:$0xff] %vm869, %v2471
        %2536 = vst [vmem:[#allocation2 + $0x190] sm:$0xff] %v2472
        %2537 = vst.msk [vmem:[#allocation2 + $0x198] sm:$0xff] %vm869, %v2473
        %2538 = vst [vmem:[#allocation2 + $0x1a0] sm:$0xff] %v2474
        %2539 = vst.msk [vmem:[#allocation2 + $0x1a8] sm:$0xff] %vm869, %v2475
        %2540 = vst [vmem:[#allocation2 + $0x1b0] sm:$0xff] %v2476
        %2541 = vst.msk [vmem:[#allocation2 + $0x1b8] sm:$0xff] %vm869, %v2477
        %2542 = vst [vmem:[#allocation2 + $0x1c0] sm:$0xff] %v2478
        %2543 = vst.msk [vmem:[#allocation2 + $0x1c8] sm:$0xff] %vm869, %v2479
        %2544 = vst [vmem:[#allocation2 + $0x1d0] sm:$0xff] %v2480
        %2545 = vst.msk [vmem:[#allocation2 + $0x1d8] sm:$0xff] %vm869, %v2481
        %2546 = vst [vmem:[#allocation2 + $0x1e0] sm:$0xff] %v2482
        %2547 = vst.msk [vmem:[#allocation2 + $0x1e8] sm:$0xff] %vm869, %v2483
        %2548 = vst [vmem:[#allocation2 + $0x1f0] sm:$0xff] %v2484
        %2549 = vst.msk [vmem:[#allocation2 + $0x1f8] sm:$0xff] %vm869, %v2485
        %v2550 = vld [vmem:[#allocation2] sm:$0xff]
        %v2551 = vld [vmem:[#allocation2 + $0x8] sm:$0xff]
        %v2552 = vld [vmem:[#allocation2 + $0x10] sm:$0xff]
        %v2553 = vld [vmem:[#allocation2 + $0x18] sm:$0xff]
        %v2554 = vld [vmem:[#allocation2 + $0x20] sm:$0xff]
        %v2555 = vld [vmem:[#allocation2 + $0x28] sm:$0xff]
        %v2556 = vld [vmem:[#allocation2 + $0x30] sm:$0xff]
        %v2557 = vld [vmem:[#allocation2 + $0x38] sm:$0xff]
        %v2558 = vld [vmem:[#allocation2 + $0x40] sm:$0xff]
        %v2559 = vld [vmem:[#allocation2 + $0x48] sm:$0xff]
        %v2560 = vld [vmem:[#allocation2 + $0x50] sm:$0xff]
        %v2561 = vld [vmem:[#allocation2 + $0x58] sm:$0xff]
        %v2562 = vld [vmem:[#allocation2 + $0x60] sm:$0xff]
        %v2563 = vld [vmem:[#allocation2 + $0x68] sm:$0xff]
        %v2564 = vld [vmem:[#allocation2 + $0x70] sm:$0xff]
        %v2565 = vld [vmem:[#allocation2 + $0x78] sm:$0xff]
        %v2566 = vld [vmem:[#allocation2 + $0x80] sm:$0xff]
        %v2567 = vld [vmem:[#allocation2 + $0x88] sm:$0xff]
        %v2568 = vld [vmem:[#allocation2 + $0x90] sm:$0xff]
        %v2569 = vld [vmem:[#allocation2 + $0x98] sm:$0xff]
        %v2570 = vld [vmem:[#allocation2 + $0xa0] sm:$0xff]
        %v2571 = vld [vmem:[#allocation2 + $0xa8] sm:$0xff]
        %v2572 = vld [vmem:[#allocation2 + $0xb0] sm:$0xff]
        %v2573 = vld [vmem:[#allocation2 + $0xb8] sm:$0xff]
        %v2574 = vld [vmem:[#allocation2 + $0xc0] sm:$0xff]
        %v2575 = vld [vmem:[#allocation2 + $0xc8] sm:$0xff]
        %v2576 = vld [vmem:[#allocation2 + $0xd0] sm:$0xff]
        %v2577 = vld [vmem:[#allocation2 + $0xd8] sm:$0xff]
        %v2578 = vld [vmem:[#allocation2 + $0xe0] sm:$0xff]
        %v2579 = vld [vmem:[#allocation2 + $0xe8] sm:$0xff]
        %v2580 = vld [vmem:[#allocation2 + $0xf0] sm:$0xff]
        %v2581 = vld [vmem:[#allocation2 + $0xf8] sm:$0xff]
        %v2582 = vld [vmem:[#allocation2 + $0x100] sm:$0xff]
        %v2583 = vld [vmem:[#allocation2 + $0x108] sm:$0xff]
        %v2584 = vld [vmem:[#allocation2 + $0x110] sm:$0xff]
        %v2585 = vld [vmem:[#allocation2 + $0x118] sm:$0xff]
        %v2586 = vld [vmem:[#allocation2 + $0x120] sm:$0xff]
        %v2587 = vld [vmem:[#allocation2 + $0x128] sm:$0xff]
        %v2588 = vld [vmem:[#allocation2 + $0x130] sm:$0xff]
        %v2589 = vld [vmem:[#allocation2 + $0x138] sm:$0xff]
        %v2590 = vld [vmem:[#allocation2 + $0x140] sm:$0xff]
        %v2591 = vld [vmem:[#allocation2 + $0x148] sm:$0xff]
        %v2592 = vld [vmem:[#allocation2 + $0x150] sm:$0xff]
        %v2593 = vld [vmem:[#allocation2 + $0x158] sm:$0xff]
        %v2594 = vld [vmem:[#allocation2 + $0x160] sm:$0xff]
        %v2595 = vld [vmem:[#allocation2 + $0x168] sm:$0xff]
        %v2596 = vld [vmem:[#allocation2 + $0x170] sm:$0xff]
        %v2597 = vld [vmem:[#allocation2 + $0x178] sm:$0xff]
        %v2598 = vld [vmem:[#allocation2 + $0x180] sm:$0xff]
        %v2599 = vld [vmem:[#allocation2 + $0x188] sm:$0xff]
        %v2600 = vld [vmem:[#allocation2 + $0x190] sm:$0xff]
        %v2601 = vld [vmem:[#allocation2 + $0x198] sm:$0xff]
        %v2602 = vld [vmem:[#allocation2 + $0x1a0] sm:$0xff]
        %v2603 = vld [vmem:[#allocation2 + $0x1a8] sm:$0xff]
        %v2604 = vld [vmem:[#allocation2 + $0x1b0] sm:$0xff]
        %v2605 = vld [vmem:[#allocation2 + $0x1b8] sm:$0xff]
        %v2606 = vld [vmem:[#allocation2 + $0x1c0] sm:$0xff]
        %v2607 = vld [vmem:[#allocation2 + $0x1c8] sm:$0xff]
        %v2608 = vld [vmem:[#allocation2 + $0x1d0] sm:$0xff]
        %v2609 = vld [vmem:[#allocation2 + $0x1d8] sm:$0xff]
        %v2610 = vld [vmem:[#allocation2 + $0x1e0] sm:$0xff]
        %v2611 = vld [vmem:[#allocation2 + $0x1e8] sm:$0xff]
        %v2612 = vld [vmem:[#allocation2 + $0x1f0] sm:$0xff]
        %v2613 = vld [vmem:[#allocation2 + $0x1f8] sm:$0xff]
        %v2614 = vld [vmem:[%s519 + $0x4] sm:$0xff]
        %v2615 = vld [vmem:[%s519 + $0xc] sm:$0xff]
        %v2616 = vld [vmem:[%s519 + $0x14] sm:$0xff]
        %v2617 = vld [vmem:[%s519 + $0x1c] sm:$0xff]
        %v2618 = vld [vmem:[%s519 + $0x24] sm:$0xff]
        %v2619 = vld [vmem:[%s519 + $0x2c] sm:$0xff]
        %v2620 = vld [vmem:[%s519 + $0x34] sm:$0xff]
        %v2621 = vld [vmem:[%s519 + $0x3c] sm:$0xff]
        %v2622 = vld [vmem:[%s519 + $0x44] sm:$0xff]
        %v2623 = vld [vmem:[%s519 + $0x4c] sm:$0xff]
        %v2624 = vld [vmem:[%s519 + $0x54] sm:$0xff]
        %v2625 = vld [vmem:[%s519 + $0x5c] sm:$0xff]
        %v2626 = vld [vmem:[%s519 + $0x64] sm:$0xff]
        %v2627 = vld [vmem:[%s519 + $0x6c] sm:$0xff]
        %v2628 = vld [vmem:[%s519 + $0x74] sm:$0xff]
        %v2629 = vld [vmem:[%s519 + $0x7c] sm:$0xff]
        %v2630 = vld [vmem:[%s519 + $0x84] sm:$0xff]
        %v2631 = vld [vmem:[%s519 + $0x8c] sm:$0xff]
        %v2632 = vld [vmem:[%s519 + $0x94] sm:$0xff]
        %v2633 = vld [vmem:[%s519 + $0x9c] sm:$0xff]
        %v2634 = vld [vmem:[%s519 + $0xa4] sm:$0xff]
        %v2635 = vld [vmem:[%s519 + $0xac] sm:$0xff]
        %v2636 = vld [vmem:[%s519 + $0xb4] sm:$0xff]
        %v2637 = vld [vmem:[%s519 + $0xbc] sm:$0xff]
        %v2638 = vld [vmem:[%s519 + $0xc4] sm:$0xff]
        %v2639 = vld [vmem:[%s519 + $0xcc] sm:$0xff]
        %v2640 = vld [vmem:[%s519 + $0xd4] sm:$0xff]
        %v2641 = vld [vmem:[%s519 + $0xdc] sm:$0xff]
        %v2642 = vld [vmem:[%s519 + $0xe4] sm:$0xff]
        %v2643 = vld [vmem:[%s519 + $0xec] sm:$0xff]
        %v2644 = vld [vmem:[%s519 + $0xf4] sm:$0xff]
        %v2645 = vld [vmem:[%s519 + $0xfc] sm:$0xff]
        %v2646 = vpack.c.bf16 %v2615, %v2614
        %v2647 = vpack.c.bf16 %v2617, %v2616
        %v2648 = vpack.c.bf16 %v2619, %v2618
        %v2649 = vpack.c.bf16 %v2621, %v2620
        %v2650 = vpack.c.bf16 %v2623, %v2622
        %v2651 = vpack.c.bf16 %v2625, %v2624
        %v2652 = vpack.c.bf16 %v2627, %v2626
        %v2653 = vpack.c.bf16 %v2629, %v2628
        %v2654 = vpack.c.bf16 %v2631, %v2630
        %v2655 = vpack.c.bf16 %v2633, %v2632
        %v2656 = vpack.c.bf16 %v2635, %v2634
        %v2657 = vpack.c.bf16 %v2637, %v2636
        %v2658 = vpack.c.bf16 %v2639, %v2638
        %v2659 = vpack.c.bf16 %v2641, %v2640
        %v2660 = vpack.c.bf16 %v2643, %v2642
        %v2661 = vpack.c.bf16 %v2645, %v2644
        %s2662 = scalar_lea.vmem %s1, 384
        %v2663 = vld [vmem:[%s2662] sm:$0xff]
        %v2664 = vld [vmem:[%s2662 + $0x8] sm:$0xff]
        %v2665 = vld [vmem:[%s2662 + $0x10] sm:$0xff]
        %v2666 = vld [vmem:[%s2662 + $0x18] sm:$0xff]
        %v2667 = vld [vmem:[%s2662 + $0x20] sm:$0xff]
        %v2668 = vld [vmem:[%s2662 + $0x28] sm:$0xff]
        %v2669 = vld [vmem:[%s2662 + $0x30] sm:$0xff]
        %v2670 = vld [vmem:[%s2662 + $0x38] sm:$0xff]
        %v2671 = vld [vmem:[%s2662 + $0x40] sm:$0xff]
        %v2672 = vld [vmem:[%s2662 + $0x48] sm:$0xff]
        %v2673 = vld [vmem:[%s2662 + $0x50] sm:$0xff]
        %v2674 = vld [vmem:[%s2662 + $0x58] sm:$0xff]
        %v2687 = vunpack.c.l.b16 %v2663
        %v2688 = vunpack.c.h.b16 %v2663
        %v2689 = vunpack.c.l.b16 %v2664
        %v2690 = vunpack.c.h.b16 %v2664
        %v2691 = vunpack.c.l.b16 %v2665
        %v2692 = vunpack.c.h.b16 %v2665
        %v2693 = vunpack.c.l.b16 %v2666
        %v2694 = vunpack.c.h.b16 %v2666
        %v2695 = vunpack.c.l.b16 %v2667
        %v2696 = vunpack.c.h.b16 %v2667
        %v2697 = vunpack.c.l.b16 %v2668
        %v2698 = vunpack.c.h.b16 %v2668
        %v2699 = vunpack.c.l.b16 %v2669
        %v2700 = vunpack.c.h.b16 %v2669
        %v2701 = vunpack.c.l.b16 %v2670
        %v2702 = vunpack.c.h.b16 %v2670
        %v2703 = vunpack.c.l.b16 %v2671
        %v2704 = vunpack.c.h.b16 %v2671
        %v2705 = vunpack.c.l.b16 %v2672
        %v2706 = vunpack.c.h.b16 %v2672
        %v2707 = vunpack.c.l.b16 %v2673
        %v2708 = vunpack.c.h.b16 %v2673
        %v2709 = vunpack.c.l.b16 %v2674
        %v2710 = vunpack.c.h.b16 %v2674
        %v2711 = vpack.c.b16 %v2689, %v2687
        %v2712 = vpack.c.b16 %v2690, %v2688
        %v2713 = vpack.c.b16 %v2693, %v2691
        %v2714 = vpack.c.b16 %v2694, %v2692
        %v2715 = vpack.c.b16 %v2697, %v2695
        %v2716 = vpack.c.b16 %v2698, %v2696
        %v2717 = vpack.c.b16 %v2701, %v2699
        %v2718 = vpack.c.b16 %v2702, %v2700
        %v2719 = vpack.c.b16 %v2705, %v2703
        %v2720 = vpack.c.b16 %v2706, %v2704
        %v2721 = vpack.c.b16 %v2709, %v2707
        %v2722 = vpack.c.b16 %v2710, %v2708
        %v2736 = vsel %vm641, %v2646, 0
        %v2739 = vsel %vm641, %v2647, 0
        %v2742 = vsel %vm641, %v2648, 0
        %v2745 = vsel %vm641, %v2649, 0
        %v2748 = vsel %vm641, %v2650, 0
        %v2751 = vsel %vm641, %v2651, 0
        %v2754 = vsel %vm641, %v2652, 0
        %v2757 = vsel %vm641, %v2653, 0
        %v2760 = vsel %vm641, %v2654, 0
        %v2763 = vsel %vm641, %v2655, 0
        %v2766 = vsel %vm641, %v2656, 0
        %v2769 = vsel %vm641, %v2657, 0
        %v2772 = vsel %vm641, %v2658, 0
        %v2775 = vsel %vm641, %v2659, 0
        %v2778 = vsel %vm641, %v2660, 0
        %v2781 = vsel %vm641, %v2661, 0
        %2783 = vmatpush.bf16.msra.mxu0 0
        %2784 = vmatpush.bf16.msra.mxu0 0
        %2785 = vmatpush.bf16.msra.mxu0 %v2721
        %2786 = vmatpush.bf16.msra.mxu0 %v2719
        %2787 = vmatpush.bf16.msra.mxu0 %v2717
        %2788 = vmatpush.bf16.msra.mxu0 %v2715
        %2789 = vmatpush.bf16.msra.mxu0 %v2713
        %2790 = vmatpush.bf16.msra.mxu0 %v2711
        %2791 = vmatmul.bf16.gmra.mxu0 %v2736
        %v2792 = vpop.f32.mrf.mxu0
        %v2793 = vadd.f32 0.0, %v2792
        %v2794 = vpop.f32.mrf.mxu0
        %v2795 = vadd.f32 0.0, %v2794
        %2796 = vmatmul.bf16.gmra.mxu0 %v2739
        %v2797 = vpop.f32.mrf.mxu0
        %v2798 = vadd.f32 0.0, %v2797
        %v2799 = vpop.f32.mrf.mxu0
        %v2800 = vadd.f32 0.0, %v2799
        %2801 = vmatmul.bf16.gmra.mxu0 %v2742
        %v2802 = vpop.f32.mrf.mxu0
        %v2803 = vadd.f32 0.0, %v2802
        %v2804 = vpop.f32.mrf.mxu0
        %v2805 = vadd.f32 0.0, %v2804
        %2806 = vmatmul.bf16.gmra.mxu0 %v2745
        %v2807 = vpop.f32.mrf.mxu0
        %v2808 = vadd.f32 0.0, %v2807
        %v2809 = vpop.f32.mrf.mxu0
        %v2810 = vadd.f32 0.0, %v2809
        %2811 = vmatmul.bf16.gmra.mxu0 %v2748
        %v2812 = vpop.f32.mrf.mxu0
        %v2813 = vadd.f32 0.0, %v2812
        %v2814 = vpop.f32.mrf.mxu0
        %v2815 = vadd.f32 0.0, %v2814
        %2816 = vmatmul.bf16.gmra.mxu0 %v2751
        %v2817 = vpop.f32.mrf.mxu0
        %v2818 = vadd.f32 0.0, %v2817
        %v2819 = vpop.f32.mrf.mxu0
        %v2820 = vadd.f32 0.0, %v2819
        %2821 = vmatmul.bf16.gmra.mxu0 %v2754
        %v2822 = vpop.f32.mrf.mxu0
        %v2823 = vadd.f32 0.0, %v2822
        %v2824 = vpop.f32.mrf.mxu0
        %v2825 = vadd.f32 0.0, %v2824
        %2826 = vmatmul.bf16.gmra.mxu0 %v2757
        %v2827 = vpop.f32.mrf.mxu0
        %v2828 = vadd.f32 0.0, %v2827
        %v2829 = vpop.f32.mrf.mxu0
        %v2830 = vadd.f32 0.0, %v2829
        %2831 = vmatmul.bf16.gmra.mxu0 %v2760
        %v2832 = vpop.f32.mrf.mxu0
        %v2833 = vadd.f32 0.0, %v2832
        %v2834 = vpop.f32.mrf.mxu0
        %v2835 = vadd.f32 0.0, %v2834
        %2836 = vmatmul.bf16.gmra.mxu0 %v2763
        %v2837 = vpop.f32.mrf.mxu0
        %v2838 = vadd.f32 0.0, %v2837
        %v2839 = vpop.f32.mrf.mxu0
        %v2840 = vadd.f32 0.0, %v2839
        %2841 = vmatmul.bf16.gmra.mxu0 %v2766
        %v2842 = vpop.f32.mrf.mxu0
        %v2843 = vadd.f32 0.0, %v2842
        %v2844 = vpop.f32.mrf.mxu0
        %v2845 = vadd.f32 0.0, %v2844
        %2846 = vmatmul.bf16.gmra.mxu0 %v2769
        %v2847 = vpop.f32.mrf.mxu0
        %v2848 = vadd.f32 0.0, %v2847
        %v2849 = vpop.f32.mrf.mxu0
        %v2850 = vadd.f32 0.0, %v2849
        %2851 = vmatmul.bf16.gmra.mxu0 %v2772
        %v2852 = vpop.f32.mrf.mxu0
        %v2853 = vadd.f32 0.0, %v2852
        %v2854 = vpop.f32.mrf.mxu0
        %v2855 = vadd.f32 0.0, %v2854
        %2856 = vmatmul.bf16.gmra.mxu0 %v2775
        %v2857 = vpop.f32.mrf.mxu0
        %v2858 = vadd.f32 0.0, %v2857
        %v2859 = vpop.f32.mrf.mxu0
        %v2860 = vadd.f32 0.0, %v2859
        %2861 = vmatmul.bf16.gmra.mxu0 %v2778
        %v2862 = vpop.f32.mrf.mxu0
        %v2863 = vadd.f32 0.0, %v2862
        %v2864 = vpop.f32.mrf.mxu0
        %v2865 = vadd.f32 0.0, %v2864
        %2866 = vmatmul.bf16.gmra.mxu0 %v2781
        %v2867 = vpop.f32.mrf.mxu0
        %v2868 = vadd.f32 0.0, %v2867
        %v2869 = vpop.f32.mrf.mxu0
        %v2870 = vadd.f32 0.0, %v2869
        %2871 = vdwg.mxu0
        %2872 = vmatpush.bf16.msra.mxu0 0
        %2873 = vmatpush.bf16.msra.mxu0 0
        %2874 = vmatpush.bf16.msra.mxu0 %v2722
        %2875 = vmatpush.bf16.msra.mxu0 %v2720
        %2876 = vmatpush.bf16.msra.mxu0 %v2718
        %2877 = vmatpush.bf16.msra.mxu0 %v2716
        %2878 = vmatpush.bf16.msra.mxu0 %v2714
        %2879 = vmatpush.bf16.msra.mxu0 %v2712
        %2880 = vmatmul.bf16.gmra.mxu0 %v2736
        %v2881 = vpop.f32.mrf.mxu0
        %v2882 = vadd.f32 0.0, %v2881
        %v2883 = vpop.f32.mrf.mxu0
        %v2884 = vadd.f32 0.0, %v2883
        %2885 = vmatmul.bf16.gmra.mxu0 %v2739
        %v2886 = vpop.f32.mrf.mxu0
        %v2887 = vadd.f32 0.0, %v2886
        %v2888 = vpop.f32.mrf.mxu0
        %v2889 = vadd.f32 0.0, %v2888
        %2890 = vmatmul.bf16.gmra.mxu0 %v2742
        %v2891 = vpop.f32.mrf.mxu0
        %v2892 = vadd.f32 0.0, %v2891
        %v2893 = vpop.f32.mrf.mxu0
        %v2894 = vadd.f32 0.0, %v2893
        %2895 = vmatmul.bf16.gmra.mxu0 %v2745
        %v2896 = vpop.f32.mrf.mxu0
        %v2897 = vadd.f32 0.0, %v2896
        %v2898 = vpop.f32.mrf.mxu0
        %v2899 = vadd.f32 0.0, %v2898
        %2900 = vmatmul.bf16.gmra.mxu0 %v2748
        %v2901 = vpop.f32.mrf.mxu0
        %v2902 = vadd.f32 0.0, %v2901
        %v2903 = vpop.f32.mrf.mxu0
        %v2904 = vadd.f32 0.0, %v2903
        %2905 = vmatmul.bf16.gmra.mxu0 %v2751
        %v2906 = vpop.f32.mrf.mxu0
        %v2907 = vadd.f32 0.0, %v2906
        %v2908 = vpop.f32.mrf.mxu0
        %v2909 = vadd.f32 0.0, %v2908
        %2910 = vmatmul.bf16.gmra.mxu0 %v2754
        %v2911 = vpop.f32.mrf.mxu0
        %v2912 = vadd.f32 0.0, %v2911
        %v2913 = vpop.f32.mrf.mxu0
        %v2914 = vadd.f32 0.0, %v2913
        %2915 = vmatmul.bf16.gmra.mxu0 %v2757
        %v2916 = vpop.f32.mrf.mxu0
        %v2917 = vadd.f32 0.0, %v2916
        %v2918 = vpop.f32.mrf.mxu0
        %v2919 = vadd.f32 0.0, %v2918
        %2920 = vmatmul.bf16.gmra.mxu0 %v2760
        %v2921 = vpop.f32.mrf.mxu0
        %v2922 = vadd.f32 0.0, %v2921
        %v2923 = vpop.f32.mrf.mxu0
        %v2924 = vadd.f32 0.0, %v2923
        %2925 = vmatmul.bf16.gmra.mxu0 %v2763
        %v2926 = vpop.f32.mrf.mxu0
        %v2927 = vadd.f32 0.0, %v2926
        %v2928 = vpop.f32.mrf.mxu0
        %v2929 = vadd.f32 0.0, %v2928
        %2930 = vmatmul.bf16.gmra.mxu0 %v2766
        %v2931 = vpop.f32.mrf.mxu0
        %v2932 = vadd.f32 0.0, %v2931
        %v2933 = vpop.f32.mrf.mxu0
        %v2934 = vadd.f32 0.0, %v2933
        %2935 = vmatmul.bf16.gmra.mxu0 %v2769
        %v2936 = vpop.f32.mrf.mxu0
        %v2937 = vadd.f32 0.0, %v2936
        %v2938 = vpop.f32.mrf.mxu0
        %v2939 = vadd.f32 0.0, %v2938
        %2940 = vmatmul.bf16.gmra.mxu0 %v2772
        %v2941 = vpop.f32.mrf.mxu0
        %v2942 = vadd.f32 0.0, %v2941
        %v2943 = vpop.f32.mrf.mxu0
        %v2944 = vadd.f32 0.0, %v2943
        %2945 = vmatmul.bf16.gmra.mxu0 %v2775
        %v2946 = vpop.f32.mrf.mxu0
        %v2947 = vadd.f32 0.0, %v2946
        %v2948 = vpop.f32.mrf.mxu0
        %v2949 = vadd.f32 0.0, %v2948
        %2950 = vmatmul.bf16.gmra.mxu0 %v2778
        %v2951 = vpop.f32.mrf.mxu0
        %v2952 = vadd.f32 0.0, %v2951
        %v2953 = vpop.f32.mrf.mxu0
        %v2954 = vadd.f32 0.0, %v2953
        %2955 = vmatmul.bf16.gmra.mxu0 %v2781
        %v2956 = vpop.f32.mrf.mxu0
        %v2957 = vadd.f32 0.0, %v2956
        %v2958 = vpop.f32.mrf.mxu0
        %v2959 = vadd.f32 0.0, %v2958
        %2960 = vdwg.mxu0
        %v2961 = vadd.f32 %v2550, %v2793
        %v2962 = vadd.f32 %v2551, %v2882
        %v2963 = vadd.f32 %v2552, %v2795
        %v2964 = vadd.f32 %v2553, %v2884
        %v2965 = vadd.f32 %v2554, %v2798
        %v2966 = vadd.f32 %v2555, %v2887
        %v2967 = vadd.f32 %v2556, %v2800
        %v2968 = vadd.f32 %v2557, %v2889
        %v2969 = vadd.f32 %v2558, %v2803
        %v2970 = vadd.f32 %v2559, %v2892
        %v2971 = vadd.f32 %v2560, %v2805
        %v2972 = vadd.f32 %v2561, %v2894
        %v2973 = vadd.f32 %v2562, %v2808
        %v2974 = vadd.f32 %v2563, %v2897
        %v2975 = vadd.f32 %v2564, %v2810
        %v2976 = vadd.f32 %v2565, %v2899
        %v2977 = vadd.f32 %v2566, %v2813
        %v2978 = vadd.f32 %v2567, %v2902
        %v2979 = vadd.f32 %v2568, %v2815
        %v2980 = vadd.f32 %v2569, %v2904
        %v2981 = vadd.f32 %v2570, %v2818
        %v2982 = vadd.f32 %v2571, %v2907
        %v2983 = vadd.f32 %v2572, %v2820
        %v2984 = vadd.f32 %v2573, %v2909
        %v2985 = vadd.f32 %v2574, %v2823
        %v2986 = vadd.f32 %v2575, %v2912
        %v2987 = vadd.f32 %v2576, %v2825
        %v2988 = vadd.f32 %v2577, %v2914
        %v2989 = vadd.f32 %v2578, %v2828
        %v2990 = vadd.f32 %v2579, %v2917
        %v2991 = vadd.f32 %v2580, %v2830
        %v2992 = vadd.f32 %v2581, %v2919
        %v2993 = vadd.f32 %v2582, %v2833
        %v2994 = vadd.f32 %v2583, %v2922
        %v2995 = vadd.f32 %v2584, %v2835
        %v2996 = vadd.f32 %v2585, %v2924
        %v2997 = vadd.f32 %v2586, %v2838
        %v2998 = vadd.f32 %v2587, %v2927
        %v2999 = vadd.f32 %v2588, %v2840
        %v3000 = vadd.f32 %v2589, %v2929
        %v3001 = vadd.f32 %v2590, %v2843
        %v3002 = vadd.f32 %v2591, %v2932
        %v3003 = vadd.f32 %v2592, %v2845
        %v3004 = vadd.f32 %v2593, %v2934
        %v3005 = vadd.f32 %v2594, %v2848
        %v3006 = vadd.f32 %v2595, %v2937
        %v3007 = vadd.f32 %v2596, %v2850
        %v3008 = vadd.f32 %v2597, %v2939
        %v3009 = vadd.f32 %v2598, %v2853
        %v3010 = vadd.f32 %v2599, %v2942
        %v3011 = vadd.f32 %v2600, %v2855
        %v3012 = vadd.f32 %v2601, %v2944
        %v3013 = vadd.f32 %v2602, %v2858
        %v3014 = vadd.f32 %v2603, %v2947
        %v3015 = vadd.f32 %v2604, %v2860
        %v3016 = vadd.f32 %v2605, %v2949
        %v3017 = vadd.f32 %v2606, %v2863
        %v3018 = vadd.f32 %v2607, %v2952
        %v3019 = vadd.f32 %v2608, %v2865
        %v3020 = vadd.f32 %v2609, %v2954
        %v3021 = vadd.f32 %v2610, %v2868
        %v3022 = vadd.f32 %v2611, %v2957
        %v3023 = vadd.f32 %v2612, %v2870
        %v3024 = vadd.f32 %v2613, %v2959
        %3025 = vst [vmem:[#allocation2] sm:$0xff] %v2961
        %3026 = vst.msk [vmem:[#allocation2 + $0x8] sm:$0xff] %vm869, %v2962
        %3027 = vst [vmem:[#allocation2 + $0x10] sm:$0xff] %v2963
        %3028 = vst.msk [vmem:[#allocation2 + $0x18] sm:$0xff] %vm869, %v2964
        %3029 = vst [vmem:[#allocation2 + $0x20] sm:$0xff] %v2965
        %3030 = vst.msk [vmem:[#allocation2 + $0x28] sm:$0xff] %vm869, %v2966
        %3031 = vst [vmem:[#allocation2 + $0x30] sm:$0xff] %v2967
        %3032 = vst.msk [vmem:[#allocation2 + $0x38] sm:$0xff] %vm869, %v2968
        %3033 = vst [vmem:[#allocation2 + $0x40] sm:$0xff] %v2969
        %3034 = vst.msk [vmem:[#allocation2 + $0x48] sm:$0xff] %vm869, %v2970
        %3035 = vst [vmem:[#allocation2 + $0x50] sm:$0xff] %v2971
        %3036 = vst.msk [vmem:[#allocation2 + $0x58] sm:$0xff] %vm869, %v2972
        %3037 = vst [vmem:[#allocation2 + $0x60] sm:$0xff] %v2973
        %3038 = vst.msk [vmem:[#allocation2 + $0x68] sm:$0xff] %vm869, %v2974
        %3039 = vst [vmem:[#allocation2 + $0x70] sm:$0xff] %v2975
        %3040 = vst.msk [vmem:[#allocation2 + $0x78] sm:$0xff] %vm869, %v2976
        %3041 = vst [vmem:[#allocation2 + $0x80] sm:$0xff] %v2977
        %3042 = vst.msk [vmem:[#allocation2 + $0x88] sm:$0xff] %vm869, %v2978
        %3043 = vst [vmem:[#allocation2 + $0x90] sm:$0xff] %v2979
        %3044 = vst.msk [vmem:[#allocation2 + $0x98] sm:$0xff] %vm869, %v2980
        %3045 = vst [vmem:[#allocation2 + $0xa0] sm:$0xff] %v2981
        %3046 = vst.msk [vmem:[#allocation2 + $0xa8] sm:$0xff] %vm869, %v2982
        %3047 = vst [vmem:[#allocation2 + $0xb0] sm:$0xff] %v2983
        %3048 = vst.msk [vmem:[#allocation2 + $0xb8] sm:$0xff] %vm869, %v2984
        %3049 = vst [vmem:[#allocation2 + $0xc0] sm:$0xff] %v2985
        %3050 = vst.msk [vmem:[#allocation2 + $0xc8] sm:$0xff] %vm869, %v2986
        %3051 = vst [vmem:[#allocation2 + $0xd0] sm:$0xff] %v2987
        %3052 = vst.msk [vmem:[#allocation2 + $0xd8] sm:$0xff] %vm869, %v2988
        %3053 = vst [vmem:[#allocation2 + $0xe0] sm:$0xff] %v2989
        %3054 = vst.msk [vmem:[#allocation2 + $0xe8] sm:$0xff] %vm869, %v2990
        %3055 = vst [vmem:[#allocation2 + $0xf0] sm:$0xff] %v2991
        %3056 = vst.msk [vmem:[#allocation2 + $0xf8] sm:$0xff] %vm869, %v2992
        %3057 = vst [vmem:[#allocation2 + $0x100] sm:$0xff] %v2993
        %3058 = vst.msk [vmem:[#allocation2 + $0x108] sm:$0xff] %vm869, %v2994
        %3059 = vst [vmem:[#allocation2 + $0x110] sm:$0xff] %v2995
        %3060 = vst.msk [vmem:[#allocation2 + $0x118] sm:$0xff] %vm869, %v2996
        %3061 = vst [vmem:[#allocation2 + $0x120] sm:$0xff] %v2997
        %3062 = vst.msk [vmem:[#allocation2 + $0x128] sm:$0xff] %vm869, %v2998
        %3063 = vst [vmem:[#allocation2 + $0x130] sm:$0xff] %v2999
        %3064 = vst.msk [vmem:[#allocation2 + $0x138] sm:$0xff] %vm869, %v3000
        %3065 = vst [vmem:[#allocation2 + $0x140] sm:$0xff] %v3001
        %3066 = vst.msk [vmem:[#allocation2 + $0x148] sm:$0xff] %vm869, %v3002
        %3067 = vst [vmem:[#allocation2 + $0x150] sm:$0xff] %v3003
        %3068 = vst.msk [vmem:[#allocation2 + $0x158] sm:$0xff] %vm869, %v3004
        %3069 = vst [vmem:[#allocation2 + $0x160] sm:$0xff] %v3005
        %3070 = vst.msk [vmem:[#allocation2 + $0x168] sm:$0xff] %vm869, %v3006
        %3071 = vst [vmem:[#allocation2 + $0x170] sm:$0xff] %v3007
        %3072 = vst.msk [vmem:[#allocation2 + $0x178] sm:$0xff] %vm869, %v3008
        %3073 = vst [vmem:[#allocation2 + $0x180] sm:$0xff] %v3009
        %3074 = vst.msk [vmem:[#allocation2 + $0x188] sm:$0xff] %vm869, %v3010
        %3075 = vst [vmem:[#allocation2 + $0x190] sm:$0xff] %v3011
        %3076 = vst.msk [vmem:[#allocation2 + $0x198] sm:$0xff] %vm869, %v3012
        %3077 = vst [vmem:[#allocation2 + $0x1a0] sm:$0xff] %v3013
        %3078 = vst.msk [vmem:[#allocation2 + $0x1a8] sm:$0xff] %vm869, %v3014
        %3079 = vst [vmem:[#allocation2 + $0x1b0] sm:$0xff] %v3015
        %3080 = vst.msk [vmem:[#allocation2 + $0x1b8] sm:$0xff] %vm869, %v3016
        %3081 = vst [vmem:[#allocation2 + $0x1c0] sm:$0xff] %v3017
        %3082 = vst.msk [vmem:[#allocation2 + $0x1c8] sm:$0xff] %vm869, %v3018
        %3083 = vst [vmem:[#allocation2 + $0x1d0] sm:$0xff] %v3019
        %3084 = vst.msk [vmem:[#allocation2 + $0x1d8] sm:$0xff] %vm869, %v3020
        %3085 = vst [vmem:[#allocation2 + $0x1e0] sm:$0xff] %v3021
        %3086 = vst.msk [vmem:[#allocation2 + $0x1e8] sm:$0xff] %vm869, %v3022
        %3087 = vst [vmem:[#allocation2 + $0x1f0] sm:$0xff] %v3023
        %3088 = vst.msk [vmem:[#allocation2 + $0x1f8] sm:$0xff] %vm869, %v3024
        %v3089 = vld [vmem:[#allocation2] sm:$0xff]
        %v3090 = vld [vmem:[#allocation2 + $0x8] sm:$0xff]
        %v3091 = vld [vmem:[#allocation2 + $0x10] sm:$0xff]
        %v3092 = vld [vmem:[#allocation2 + $0x18] sm:$0xff]
        %v3093 = vld [vmem:[#allocation2 + $0x20] sm:$0xff]
        %v3094 = vld [vmem:[#allocation2 + $0x28] sm:$0xff]
        %v3095 = vld [vmem:[#allocation2 + $0x30] sm:$0xff]
        %v3096 = vld [vmem:[#allocation2 + $0x38] sm:$0xff]
        %v3097 = vld [vmem:[#allocation2 + $0x40] sm:$0xff]
        %v3098 = vld [vmem:[#allocation2 + $0x48] sm:$0xff]
        %v3099 = vld [vmem:[#allocation2 + $0x50] sm:$0xff]
        %v3100 = vld [vmem:[#allocation2 + $0x58] sm:$0xff]
        %v3101 = vld [vmem:[#allocation2 + $0x60] sm:$0xff]
        %v3102 = vld [vmem:[#allocation2 + $0x68] sm:$0xff]
        %v3103 = vld [vmem:[#allocation2 + $0x70] sm:$0xff]
        %v3104 = vld [vmem:[#allocation2 + $0x78] sm:$0xff]
        %v3105 = vld [vmem:[#allocation2 + $0x80] sm:$0xff]
        %v3106 = vld [vmem:[#allocation2 + $0x88] sm:$0xff]
        %v3107 = vld [vmem:[#allocation2 + $0x90] sm:$0xff]
        %v3108 = vld [vmem:[#allocation2 + $0x98] sm:$0xff]
        %v3109 = vld [vmem:[#allocation2 + $0xa0] sm:$0xff]
        %v3110 = vld [vmem:[#allocation2 + $0xa8] sm:$0xff]
        %v3111 = vld [vmem:[#allocation2 + $0xb0] sm:$0xff]
        %v3112 = vld [vmem:[#allocation2 + $0xb8] sm:$0xff]
        %v3113 = vld [vmem:[#allocation2 + $0xc0] sm:$0xff]
        %v3114 = vld [vmem:[#allocation2 + $0xc8] sm:$0xff]
        %v3115 = vld [vmem:[#allocation2 + $0xd0] sm:$0xff]
        %v3116 = vld [vmem:[#allocation2 + $0xd8] sm:$0xff]
        %v3117 = vld [vmem:[#allocation2 + $0xe0] sm:$0xff]
        %v3118 = vld [vmem:[#allocation2 + $0xe8] sm:$0xff]
        %v3119 = vld [vmem:[#allocation2 + $0xf0] sm:$0xff]
        %v3120 = vld [vmem:[#allocation2 + $0xf8] sm:$0xff]
        %v3121 = vld [vmem:[#allocation2 + $0x100] sm:$0xff]
        %v3122 = vld [vmem:[#allocation2 + $0x108] sm:$0xff]
        %v3123 = vld [vmem:[#allocation2 + $0x110] sm:$0xff]
        %v3124 = vld [vmem:[#allocation2 + $0x118] sm:$0xff]
        %v3125 = vld [vmem:[#allocation2 + $0x120] sm:$0xff]
        %v3126 = vld [vmem:[#allocation2 + $0x128] sm:$0xff]
        %v3127 = vld [vmem:[#allocation2 + $0x130] sm:$0xff]
        %v3128 = vld [vmem:[#allocation2 + $0x138] sm:$0xff]
        %v3129 = vld [vmem:[#allocation2 + $0x140] sm:$0xff]
        %v3130 = vld [vmem:[#allocation2 + $0x148] sm:$0xff]
        %v3131 = vld [vmem:[#allocation2 + $0x150] sm:$0xff]
        %v3132 = vld [vmem:[#allocation2 + $0x158] sm:$0xff]
        %v3133 = vld [vmem:[#allocation2 + $0x160] sm:$0xff]
        %v3134 = vld [vmem:[#allocation2 + $0x168] sm:$0xff]
        %v3135 = vld [vmem:[#allocation2 + $0x170] sm:$0xff]
        %v3136 = vld [vmem:[#allocation2 + $0x178] sm:$0xff]
        %v3137 = vld [vmem:[#allocation2 + $0x180] sm:$0xff]
        %v3138 = vld [vmem:[#allocation2 + $0x188] sm:$0xff]
        %v3139 = vld [vmem:[#allocation2 + $0x190] sm:$0xff]
        %v3140 = vld [vmem:[#allocation2 + $0x198] sm:$0xff]
        %v3141 = vld [vmem:[#allocation2 + $0x1a0] sm:$0xff]
        %v3142 = vld [vmem:[#allocation2 + $0x1a8] sm:$0xff]
        %v3143 = vld [vmem:[#allocation2 + $0x1b0] sm:$0xff]
        %v3144 = vld [vmem:[#allocation2 + $0x1b8] sm:$0xff]
        %v3145 = vld [vmem:[#allocation2 + $0x1c0] sm:$0xff]
        %v3146 = vld [vmem:[#allocation2 + $0x1c8] sm:$0xff]
        %v3147 = vld [vmem:[#allocation2 + $0x1d0] sm:$0xff]
        %v3148 = vld [vmem:[#allocation2 + $0x1d8] sm:$0xff]
        %v3149 = vld [vmem:[#allocation2 + $0x1e0] sm:$0xff]
        %v3150 = vld [vmem:[#allocation2 + $0x1e8] sm:$0xff]
        %v3151 = vld [vmem:[#allocation2 + $0x1f0] sm:$0xff]
        %v3152 = vld [vmem:[#allocation2 + $0x1f8] sm:$0xff]
        %v3153 = vld [vmem:[%s2] sm:$0x3]
        %v3155 = vperm.slane %v3153, 0
        %v3156 = vperm.slane %v3153, 1
        %v3159 = vadd.f32 %v3089, %v3155
        %v3160 = vadd.f32 %v3090, %v3156
        %v3161 = vadd.f32 %v3091, %v3155
        %v3162 = vadd.f32 %v3092, %v3156
        %v3163 = vadd.f32 %v3093, %v3155
        %v3164 = vadd.f32 %v3094, %v3156
        %v3165 = vadd.f32 %v3095, %v3155
        %v3166 = vadd.f32 %v3096, %v3156
        %v3167 = vadd.f32 %v3097, %v3155
        %v3168 = vadd.f32 %v3098, %v3156
        %v3169 = vadd.f32 %v3099, %v3155
        %v3170 = vadd.f32 %v3100, %v3156
        %v3171 = vadd.f32 %v3101, %v3155
        %v3172 = vadd.f32 %v3102, %v3156
        %v3173 = vadd.f32 %v3103, %v3155
        %v3174 = vadd.f32 %v3104, %v3156
        %v3175 = vadd.f32 %v3105, %v3155
        %v3176 = vadd.f32 %v3106, %v3156
        %v3177 = vadd.f32 %v3107, %v3155
        %v3178 = vadd.f32 %v3108, %v3156
        %v3179 = vadd.f32 %v3109, %v3155
        %v3180 = vadd.f32 %v3110, %v3156
        %v3181 = vadd.f32 %v3111, %v3155
        %v3182 = vadd.f32 %v3112, %v3156
        %v3183 = vadd.f32 %v3113, %v3155
        %v3184 = vadd.f32 %v3114, %v3156
        %v3185 = vadd.f32 %v3115, %v3155
        %v3186 = vadd.f32 %v3116, %v3156
        %v3187 = vadd.f32 %v3117, %v3155
        %v3188 = vadd.f32 %v3118, %v3156
        %v3189 = vadd.f32 %v3119, %v3155
        %v3190 = vadd.f32 %v3120, %v3156
        %v3191 = vadd.f32 %v3121, %v3155
        %v3192 = vadd.f32 %v3122, %v3156
        %v3193 = vadd.f32 %v3123, %v3155
        %v3194 = vadd.f32 %v3124, %v3156
        %v3195 = vadd.f32 %v3125, %v3155
        %v3196 = vadd.f32 %v3126, %v3156
        %v3197 = vadd.f32 %v3127, %v3155
        %v3198 = vadd.f32 %v3128, %v3156
        %v3199 = vadd.f32 %v3129, %v3155
        %v3200 = vadd.f32 %v3130, %v3156
        %v3201 = vadd.f32 %v3131, %v3155
        %v3202 = vadd.f32 %v3132, %v3156
        %v3203 = vadd.f32 %v3133, %v3155
        %v3204 = vadd.f32 %v3134, %v3156
        %v3205 = vadd.f32 %v3135, %v3155
        %v3206 = vadd.f32 %v3136, %v3156
        %v3207 = vadd.f32 %v3137, %v3155
        %v3208 = vadd.f32 %v3138, %v3156
        %v3209 = vadd.f32 %v3139, %v3155
        %v3210 = vadd.f32 %v3140, %v3156
        %v3211 = vadd.f32 %v3141, %v3155
        %v3212 = vadd.f32 %v3142, %v3156
        %v3213 = vadd.f32 %v3143, %v3155
        %v3214 = vadd.f32 %v3144, %v3156
        %v3215 = vadd.f32 %v3145, %v3155
        %v3216 = vadd.f32 %v3146, %v3156
        %v3217 = vadd.f32 %v3147, %v3155
        %v3218 = vadd.f32 %v3148, %v3156
        %v3219 = vadd.f32 %v3149, %v3155
        %v3220 = vadd.f32 %v3150, %v3156
        %v3221 = vadd.f32 %v3151, %v3155
        %v3222 = vadd.f32 %v3152, %v3156
        %v3223 = vtanh.pop %v3159
        %v3224 = vtanh.pop %v3160
        %v3225 = vtanh.pop %v3161
        %v3226 = vtanh.pop %v3162
        %v3227 = vtanh.pop %v3163
        %v3228 = vtanh.pop %v3164
        %v3229 = vtanh.pop %v3165
        %v3230 = vtanh.pop %v3166
        %v3231 = vtanh.pop %v3167
        %v3232 = vtanh.pop %v3168
        %v3233 = vtanh.pop %v3169
        %v3234 = vtanh.pop %v3170
        %v3235 = vtanh.pop %v3171
        %v3236 = vtanh.pop %v3172
        %v3237 = vtanh.pop %v3173
        %v3238 = vtanh.pop %v3174
        %v3239 = vtanh.pop %v3175
        %v3240 = vtanh.pop %v3176
        %v3241 = vtanh.pop %v3177
        %v3242 = vtanh.pop %v3178
        %v3243 = vtanh.pop %v3179
        %v3244 = vtanh.pop %v3180
        %v3245 = vtanh.pop %v3181
        %v3246 = vtanh.pop %v3182
        %v3247 = vtanh.pop %v3183
        %v3248 = vtanh.pop %v3184
        %v3249 = vtanh.pop %v3185
        %v3250 = vtanh.pop %v3186
        %v3251 = vtanh.pop %v3187
        %v3252 = vtanh.pop %v3188
        %v3253 = vtanh.pop %v3189
        %v3254 = vtanh.pop %v3190
        %v3255 = vtanh.pop %v3191
        %v3256 = vtanh.pop %v3192
        %v3257 = vtanh.pop %v3193
        %v3258 = vtanh.pop %v3194
        %v3259 = vtanh.pop %v3195
        %v3260 = vtanh.pop %v3196
        %v3261 = vtanh.pop %v3197
        %v3262 = vtanh.pop %v3198
        %v3263 = vtanh.pop %v3199
        %v3264 = vtanh.pop %v3200
        %v3265 = vtanh.pop %v3201
        %v3266 = vtanh.pop %v3202
        %v3267 = vtanh.pop %v3203
        %v3268 = vtanh.pop %v3204
        %v3269 = vtanh.pop %v3205
        %v3270 = vtanh.pop %v3206
        %v3271 = vtanh.pop %v3207
        %v3272 = vtanh.pop %v3208
        %v3273 = vtanh.pop %v3209
        %v3274 = vtanh.pop %v3210
        %v3275 = vtanh.pop %v3211
        %v3276 = vtanh.pop %v3212
        %v3277 = vtanh.pop %v3213
        %v3278 = vtanh.pop %v3214
        %v3279 = vtanh.pop %v3215
        %v3280 = vtanh.pop %v3216
        %v3281 = vtanh.pop %v3217
        %v3282 = vtanh.pop %v3218
        %v3283 = vtanh.pop %v3219
        %v3284 = vtanh.pop %v3220
        %v3285 = vtanh.pop %v3221
        %v3286 = vtanh.pop %v3222
        %v3287 = vpack.c.bf16 %v3225, %v3223
        %v3288 = vpack.c.bf16 %v3226, %v3224
        %v3289 = vpack.c.bf16 %v3229, %v3227
        %v3290 = vpack.c.bf16 %v3230, %v3228
        %v3291 = vpack.c.bf16 %v3233, %v3231
        %v3292 = vpack.c.bf16 %v3234, %v3232
        %v3293 = vpack.c.bf16 %v3237, %v3235
        %v3294 = vpack.c.bf16 %v3238, %v3236
        %v3295 = vpack.c.bf16 %v3241, %v3239
        %v3296 = vpack.c.bf16 %v3242, %v3240
        %v3297 = vpack.c.bf16 %v3245, %v3243
        %v3298 = vpack.c.bf16 %v3246, %v3244
        %v3299 = vpack.c.bf16 %v3249, %v3247
        %v3300 = vpack.c.bf16 %v3250, %v3248
        %v3301 = vpack.c.bf16 %v3253, %v3251
        %v3302 = vpack.c.bf16 %v3254, %v3252
        %v3303 = vpack.c.bf16 %v3257, %v3255
        %v3304 = vpack.c.bf16 %v3258, %v3256
        %v3305 = vpack.c.bf16 %v3261, %v3259
        %v3306 = vpack.c.bf16 %v3262, %v3260
        %v3307 = vpack.c.bf16 %v3265, %v3263
        %v3308 = vpack.c.bf16 %v3266, %v3264
        %v3309 = vpack.c.bf16 %v3269, %v3267
        %v3310 = vpack.c.bf16 %v3270, %v3268
        %v3311 = vpack.c.bf16 %v3273, %v3271
        %v3312 = vpack.c.bf16 %v3274, %v3272
        %v3313 = vpack.c.bf16 %v3277, %v3275
        %v3314 = vpack.c.bf16 %v3278, %v3276
        %v3315 = vpack.c.bf16 %v3281, %v3279
        %v3316 = vpack.c.bf16 %v3282, %v3280
        %v3317 = vpack.c.bf16 %v3285, %v3283
        %v3318 = vpack.c.bf16 %v3286, %v3284
        %v3319 = vld [vmem:[%s3] sm:$0xf]
        %v3320 = vld [vmem:[%s3 + $0x4] sm:$0xf]
        %v3321 = vld [vmem:[%s3 + $0x8] sm:$0xf]
        %v3322 = vld [vmem:[%s3 + $0xc] sm:$0xf]
        %v3323 = vld [vmem:[%s3 + $0x10] sm:$0xf]
        %v3324 = vld [vmem:[%s3 + $0x14] sm:$0xf]
        %v3325 = vld [vmem:[%s3 + $0x18] sm:$0xf]
        %v3326 = vld [vmem:[%s3 + $0x1c] sm:$0xf]
        %v3327 = vld [vmem:[%s3 + $0x20] sm:$0xf]
        %v3328 = vld [vmem:[%s3 + $0x24] sm:$0xf]
        %v3329 = vld [vmem:[%s3 + $0x28] sm:$0xf]
        %v3330 = vld [vmem:[%s3 + $0x2c] sm:$0xf]
        %v3331 = vld [vmem:[%s3 + $0x30] sm:$0xf]
        %v3332 = vld [vmem:[%s3 + $0x34] sm:$0xf]
        %v3333 = vld [vmem:[%s3 + $0x38] sm:$0xf]
        %v3334 = vld [vmem:[%s3 + $0x3c] sm:$0xf]
        %v3335 = vld [vmem:[%s3 + $0x40] sm:$0xf]
        %v3336 = vld [vmem:[%s3 + $0x44] sm:$0xf]
        %v3337 = vld [vmem:[%s3 + $0x48] sm:$0xf]
        %v3338 = vld [vmem:[%s3 + $0x4c] sm:$0xf]
        %v3339 = vld [vmem:[%s3 + $0x50] sm:$0xf]
        %v3361 = vunpack.c.l.b16 %v3319
        %v3362 = vunpack.c.l.b16 %v3320
        %v3363 = vunpack.c.l.b16 %v3321
        %v3364 = vunpack.c.l.b16 %v3322
        %v3365 = vunpack.c.l.b16 %v3323
        %v3366 = vunpack.c.l.b16 %v3324
        %v3367 = vunpack.c.l.b16 %v3325
        %v3368 = vunpack.c.l.b16 %v3326
        %v3369 = vunpack.c.l.b16 %v3327
        %v3370 = vunpack.c.l.b16 %v3328
        %v3371 = vunpack.c.l.b16 %v3329
        %v3372 = vunpack.c.l.b16 %v3330
        %v3373 = vunpack.c.l.b16 %v3331
        %v3374 = vunpack.c.l.b16 %v3332
        %v3375 = vunpack.c.l.b16 %v3333
        %v3376 = vunpack.c.l.b16 %v3334
        %v3377 = vunpack.c.l.b16 %v3335
        %v3378 = vunpack.c.l.b16 %v3336
        %v3379 = vunpack.c.l.b16 %v3337
        %v3380 = vunpack.c.l.b16 %v3338
        %v3381 = vunpack.c.l.b16 %v3339
        %v3382 = vpack.c.b16 %v3362, %v3361
        %v3383 = vpack.c.b16 %v3364, %v3363
        %v3384 = vpack.c.b16 %v3366, %v3365
        %v3385 = vpack.c.b16 %v3368, %v3367
        %v3386 = vpack.c.b16 %v3370, %v3369
        %v3387 = vpack.c.b16 %v3372, %v3371
        %v3388 = vpack.c.b16 %v3374, %v3373
        %v3389 = vpack.c.b16 %v3376, %v3375
        %v3390 = vpack.c.b16 %v3378, %v3377
        %v3391 = vpack.c.b16 %v3380, %v3379
        %v3392 = vpack.c.b16 %v3381, %v3381
        %v3404 = vsel %vm869, %v3288, 0
        %v3407 = vsel %vm869, %v3290, 0
        %v3410 = vsel %vm869, %v3292, 0
        %v3413 = vsel %vm869, %v3294, 0
        %v3416 = vsel %vm869, %v3296, 0
        %v3419 = vsel %vm869, %v3298, 0
        %v3422 = vsel %vm869, %v3300, 0
        %v3425 = vsel %vm869, %v3302, 0
        %v3428 = vsel %vm869, %v3304, 0
        %v3431 = vsel %vm869, %v3306, 0
        %v3434 = vsel %vm869, %v3308, 0
        %v3437 = vsel %vm869, %v3310, 0
        %v3440 = vsel %vm869, %v3312, 0
        %v3443 = vsel %vm869, %v3314, 0
        %v3446 = vsel %vm869, %v3316, 0
        %v3449 = vsel %vm869, %v3318, 0
        %vm3451 = vcmask 1043456
        %v3453 = vsel %vm3451, %v3392, 0
        %3455 = vmatpush.bf16.msra.mxu0 %v3389
        %3456 = vmatpush.bf16.msra.mxu0 %v3388
        %3457 = vmatpush.bf16.msra.mxu0 %v3387
        %3458 = vmatpush.bf16.msra.mxu0 %v3386
        %3459 = vmatpush.bf16.msra.mxu0 %v3385
        %3460 = vmatpush.bf16.msra.mxu0 %v3384
        %3461 = vmatpush.bf16.msra.mxu0 %v3383
        %3462 = vmatpush.bf16.msra.mxu0 %v3382
        %3463 = vmatmul.bf16.gmra.mxu0 %v3287
        %v3464 = vpop.f32.mrf.mxu0
        %v3465 = vadd.f32 0.0, %v3464
        %v3466 = vpop.f32.mrf.mxu0
        %v3467 = vadd.f32 0.0, %v3466
        %3468 = vmatmul.bf16.gmra.mxu0 %v3289
        %v3469 = vpop.f32.mrf.mxu0
        %v3470 = vadd.f32 0.0, %v3469
        %v3471 = vpop.f32.mrf.mxu0
        %v3472 = vadd.f32 0.0, %v3471
        %3473 = vmatmul.bf16.gmra.mxu0 %v3291
        %v3474 = vpop.f32.mrf.mxu0
        %v3475 = vadd.f32 0.0, %v3474
        %v3476 = vpop.f32.mrf.mxu0
        %v3477 = vadd.f32 0.0, %v3476
        %3478 = vmatmul.bf16.gmra.mxu0 %v3293
        %v3479 = vpop.f32.mrf.mxu0
        %v3480 = vadd.f32 0.0, %v3479
        %v3481 = vpop.f32.mrf.mxu0
        %v3482 = vadd.f32 0.0, %v3481
        %3483 = vmatmul.bf16.gmra.mxu0 %v3295
        %v3484 = vpop.f32.mrf.mxu0
        %v3485 = vadd.f32 0.0, %v3484
        %v3486 = vpop.f32.mrf.mxu0
        %v3487 = vadd.f32 0.0, %v3486
        %3488 = vmatmul.bf16.gmra.mxu0 %v3297
        %v3489 = vpop.f32.mrf.mxu0
        %v3490 = vadd.f32 0.0, %v3489
        %v3491 = vpop.f32.mrf.mxu0
        %v3492 = vadd.f32 0.0, %v3491
        %3493 = vmatmul.bf16.gmra.mxu0 %v3299
        %v3494 = vpop.f32.mrf.mxu0
        %v3495 = vadd.f32 0.0, %v3494
        %v3496 = vpop.f32.mrf.mxu0
        %v3497 = vadd.f32 0.0, %v3496
        %3498 = vmatmul.bf16.gmra.mxu0 %v3301
        %v3499 = vpop.f32.mrf.mxu0
        %v3500 = vadd.f32 0.0, %v3499
        %v3501 = vpop.f32.mrf.mxu0
        %v3502 = vadd.f32 0.0, %v3501
        %3503 = vmatmul.bf16.gmra.mxu0 %v3303
        %v3504 = vpop.f32.mrf.mxu0
        %v3505 = vadd.f32 0.0, %v3504
        %v3506 = vpop.f32.mrf.mxu0
        %v3507 = vadd.f32 0.0, %v3506
        %3508 = vmatmul.bf16.gmra.mxu0 %v3305
        %v3509 = vpop.f32.mrf.mxu0
        %v3510 = vadd.f32 0.0, %v3509
        %v3511 = vpop.f32.mrf.mxu0
        %v3512 = vadd.f32 0.0, %v3511
        %3513 = vmatmul.bf16.gmra.mxu0 %v3307
        %v3514 = vpop.f32.mrf.mxu0
        %v3515 = vadd.f32 0.0, %v3514
        %v3516 = vpop.f32.mrf.mxu0
        %v3517 = vadd.f32 0.0, %v3516
        %3518 = vmatmul.bf16.gmra.mxu0 %v3309
        %v3519 = vpop.f32.mrf.mxu0
        %v3520 = vadd.f32 0.0, %v3519
        %v3521 = vpop.f32.mrf.mxu0
        %v3522 = vadd.f32 0.0, %v3521
        %3523 = vmatmul.bf16.gmra.mxu0 %v3311
        %v3524 = vpop.f32.mrf.mxu0
        %v3525 = vadd.f32 0.0, %v3524
        %v3526 = vpop.f32.mrf.mxu0
        %v3527 = vadd.f32 0.0, %v3526
        %3528 = vmatmul.bf16.gmra.mxu0 %v3313
        %v3529 = vpop.f32.mrf.mxu0
        %v3530 = vadd.f32 0.0, %v3529
        %v3531 = vpop.f32.mrf.mxu0
        %v3532 = vadd.f32 0.0, %v3531
        %3533 = vmatmul.bf16.gmra.mxu0 %v3315
        %v3534 = vpop.f32.mrf.mxu0
        %v3535 = vadd.f32 0.0, %v3534
        %v3536 = vpop.f32.mrf.mxu0
        %v3537 = vadd.f32 0.0, %v3536
        %3538 = vmatmul.bf16.gmra.mxu0 %v3317
        %v3539 = vpop.f32.mrf.mxu0
        %v3540 = vadd.f32 0.0, %v3539
        %v3541 = vpop.f32.mrf.mxu0
        %v3542 = vadd.f32 0.0, %v3541
        %3543 = vdwg.mxu0
        %3544 = vmatpush.bf16.msra.mxu0 0
        %3545 = vmatpush.bf16.msra.mxu0 0
        %3546 = vmatpush.bf16.msra.mxu0 0
        %3547 = vmatpush.bf16.msra.mxu0 0
        %3548 = vmatpush.bf16.msra.mxu0 0
        %3549 = vmatpush.bf16.msra.mxu0 %v3453
        %3550 = vmatpush.bf16.msra.mxu0 %v3391
        %3551 = vmatpush.bf16.msra.mxu0 %v3390
        %3552 = vmatmul.bf16.gmra.mxu0 %v3404
        %v3553 = vpop.f32.mrf.mxu0
        %v3554 = vadd.f32 %v3465, %v3553
        %v3555 = vpop.f32.mrf.mxu0
        %v3556 = vadd.f32 %v3467, %v3555
        %3557 = vmatmul.bf16.gmra.mxu0 %v3407
        %v3558 = vpop.f32.mrf.mxu0
        %v3559 = vadd.f32 %v3470, %v3558
        %v3560 = vpop.f32.mrf.mxu0
        %v3561 = vadd.f32 %v3472, %v3560
        %3562 = vmatmul.bf16.gmra.mxu0 %v3410
        %v3563 = vpop.f32.mrf.mxu0
        %v3564 = vadd.f32 %v3475, %v3563
        %v3565 = vpop.f32.mrf.mxu0
        %v3566 = vadd.f32 %v3477, %v3565
        %3567 = vmatmul.bf16.gmra.mxu0 %v3413
        %v3568 = vpop.f32.mrf.mxu0
        %v3569 = vadd.f32 %v3480, %v3568
        %v3570 = vpop.f32.mrf.mxu0
        %v3571 = vadd.f32 %v3482, %v3570
        %3572 = vmatmul.bf16.gmra.mxu0 %v3416
        %v3573 = vpop.f32.mrf.mxu0
        %v3574 = vadd.f32 %v3485, %v3573
        %v3575 = vpop.f32.mrf.mxu0
        %v3576 = vadd.f32 %v3487, %v3575
        %3577 = vmatmul.bf16.gmra.mxu0 %v3419
        %v3578 = vpop.f32.mrf.mxu0
        %v3579 = vadd.f32 %v3490, %v3578
        %v3580 = vpop.f32.mrf.mxu0
        %v3581 = vadd.f32 %v3492, %v3580
        %3582 = vmatmul.bf16.gmra.mxu0 %v3422
        %v3583 = vpop.f32.mrf.mxu0
        %v3584 = vadd.f32 %v3495, %v3583
        %v3585 = vpop.f32.mrf.mxu0
        %v3586 = vadd.f32 %v3497, %v3585
        %3587 = vmatmul.bf16.gmra.mxu0 %v3425
        %v3588 = vpop.f32.mrf.mxu0
        %v3589 = vadd.f32 %v3500, %v3588
        %v3590 = vpop.f32.mrf.mxu0
        %v3591 = vadd.f32 %v3502, %v3590
        %3592 = vmatmul.bf16.gmra.mxu0 %v3428
        %v3593 = vpop.f32.mrf.mxu0
        %v3594 = vadd.f32 %v3505, %v3593
        %v3595 = vpop.f32.mrf.mxu0
        %v3596 = vadd.f32 %v3507, %v3595
        %3597 = vmatmul.bf16.gmra.mxu0 %v3431
        %v3598 = vpop.f32.mrf.mxu0
        %v3599 = vadd.f32 %v3510, %v3598
        %v3600 = vpop.f32.mrf.mxu0
        %v3601 = vadd.f32 %v3512, %v3600
        %3602 = vmatmul.bf16.gmra.mxu0 %v3434
        %v3603 = vpop.f32.mrf.mxu0
        %v3604 = vadd.f32 %v3515, %v3603
        %v3605 = vpop.f32.mrf.mxu0
        %v3606 = vadd.f32 %v3517, %v3605
        %3607 = vmatmul.bf16.gmra.mxu0 %v3437
        %v3608 = vpop.f32.mrf.mxu0
        %v3609 = vadd.f32 %v3520, %v3608
        %v3610 = vpop.f32.mrf.mxu0
        %v3611 = vadd.f32 %v3522, %v3610
        %3612 = vmatmul.bf16.gmra.mxu0 %v3440
        %v3613 = vpop.f32.mrf.mxu0
        %v3614 = vadd.f32 %v3525, %v3613
        %v3615 = vpop.f32.mrf.mxu0
        %v3616 = vadd.f32 %v3527, %v3615
        %3617 = vmatmul.bf16.gmra.mxu0 %v3443
        %v3618 = vpop.f32.mrf.mxu0
        %v3619 = vadd.f32 %v3530, %v3618
        %v3620 = vpop.f32.mrf.mxu0
        %v3621 = vadd.f32 %v3532, %v3620
        %3622 = vmatmul.bf16.gmra.mxu0 %v3446
        %v3623 = vpop.f32.mrf.mxu0
        %v3624 = vadd.f32 %v3535, %v3623
        %v3625 = vpop.f32.mrf.mxu0
        %v3626 = vadd.f32 %v3537, %v3625
        %3627 = vmatmul.bf16.gmra.mxu0 %v3449
        %v3628 = vpop.f32.mrf.mxu0
        %v3629 = vadd.f32 %v3540, %v3628
        %v3630 = vpop.f32.mrf.mxu0
        %v3631 = vadd.f32 %v3542, %v3630
        %3632 = vdwg.mxu0
        %v3633 = vld [vmem:[%s4] sm:$0xf]
        %v3634 = vld [vmem:[%s4 + $0x4] sm:$0xf]
        %v3635 = vld [vmem:[%s4 + $0x8] sm:$0xf]
        %v3636 = vld [vmem:[%s4 + $0xc] sm:$0xf]
        %v3637 = vld [vmem:[%s4 + $0x10] sm:$0xf]
        %v3638 = vld [vmem:[%s4 + $0x14] sm:$0xf]
        %v3639 = vld [vmem:[%s4 + $0x18] sm:$0xf]
        %v3640 = vld [vmem:[%s4 + $0x1c] sm:$0xf]
        %v3641 = vld [vmem:[%s4 + $0x20] sm:$0xf]
        %v3642 = vld [vmem:[%s4 + $0x24] sm:$0xf]
        %v3643 = vld [vmem:[%s4 + $0x28] sm:$0xf]
        %v3644 = vld [vmem:[%s4 + $0x2c] sm:$0xf]
        %v3645 = vld [vmem:[%s4 + $0x30] sm:$0xf]
        %v3646 = vld [vmem:[%s4 + $0x34] sm:$0xf]
        %v3647 = vld [vmem:[%s4 + $0x38] sm:$0xf]
        %v3648 = vld [vmem:[%s4 + $0x3c] sm:$0xf]
        %v3649 = vld [vmem:[%s4 + $0x40] sm:$0xf]
        %v3650 = vld [vmem:[%s4 + $0x44] sm:$0xf]
        %v3651 = vld [vmem:[%s4 + $0x48] sm:$0xf]
        %v3652 = vld [vmem:[%s4 + $0x4c] sm:$0xf]
        %v3653 = vld [vmem:[%s4 + $0x50] sm:$0xf]
        %v3675 = vunpack.c.l.b16 %v3633
        %v3676 = vunpack.c.l.b16 %v3634
        %v3677 = vunpack.c.l.b16 %v3635
        %v3678 = vunpack.c.l.b16 %v3636
        %v3679 = vunpack.c.l.b16 %v3637
        %v3680 = vunpack.c.l.b16 %v3638
        %v3681 = vunpack.c.l.b16 %v3639
        %v3682 = vunpack.c.l.b16 %v3640
        %v3683 = vunpack.c.l.b16 %v3641
        %v3684 = vunpack.c.l.b16 %v3642
        %v3685 = vunpack.c.l.b16 %v3643
        %v3686 = vunpack.c.l.b16 %v3644
        %v3687 = vunpack.c.l.b16 %v3645
        %v3688 = vunpack.c.l.b16 %v3646
        %v3689 = vunpack.c.l.b16 %v3647
        %v3690 = vunpack.c.l.b16 %v3648
        %v3691 = vunpack.c.l.b16 %v3649
        %v3692 = vunpack.c.l.b16 %v3650
        %v3693 = vunpack.c.l.b16 %v3651
        %v3694 = vunpack.c.l.b16 %v3652
        %v3695 = vunpack.c.l.b16 %v3653
        %v3696 = vpack.c.b16 %v3676, %v3675
        %v3697 = vpack.c.b16 %v3678, %v3677
        %v3698 = vpack.c.b16 %v3680, %v3679
        %v3699 = vpack.c.b16 %v3682, %v3681
        %v3700 = vpack.c.b16 %v3684, %v3683
        %v3701 = vpack.c.b16 %v3686, %v3685
        %v3702 = vpack.c.b16 %v3688, %v3687
        %v3703 = vpack.c.b16 %v3690, %v3689
        %v3704 = vpack.c.b16 %v3692, %v3691
        %v3705 = vpack.c.b16 %v3694, %v3693
        %v3706 = vpack.c.b16 %v3695, %v3695
        %v3718 = vsel %vm3451, %v3706, 0
        %3720 = vmatpush.bf16.msra.mxu0 %v3703
        %3721 = vmatpush.bf16.msra.mxu0 %v3702
        %3722 = vmatpush.bf16.msra.mxu0 %v3701
        %3723 = vmatpush.bf16.msra.mxu0 %v3700
        %3724 = vmatpush.bf16.msra.mxu0 %v3699
        %3725 = vmatpush.bf16.msra.mxu0 %v3698
        %3726 = vmatpush.bf16.msra.mxu0 %v3697
        %3727 = vmatpush.bf16.msra.mxu0 %v3696
        %3728 = vmatmul.bf16.gmra.mxu0 %v3287
        %v3729 = vpop.f32.mrf.mxu0
        %v3730 = vadd.f32 0.0, %v3729
        %v3731 = vpop.f32.mrf.mxu0
        %v3732 = vadd.f32 0.0, %v3731
        %3733 = vmatmul.bf16.gmra.mxu0 %v3289
        %v3734 = vpop.f32.mrf.mxu0
        %v3735 = vadd.f32 0.0, %v3734
        %v3736 = vpop.f32.mrf.mxu0
        %v3737 = vadd.f32 0.0, %v3736
        %3738 = vmatmul.bf16.gmra.mxu0 %v3291
        %v3739 = vpop.f32.mrf.mxu0
        %v3740 = vadd.f32 0.0, %v3739
        %v3741 = vpop.f32.mrf.mxu0
        %v3742 = vadd.f32 0.0, %v3741
        %3743 = vmatmul.bf16.gmra.mxu0 %v3293
        %v3744 = vpop.f32.mrf.mxu0
        %v3745 = vadd.f32 0.0, %v3744
        %v3746 = vpop.f32.mrf.mxu0
        %v3747 = vadd.f32 0.0, %v3746
        %3748 = vmatmul.bf16.gmra.mxu0 %v3295
        %v3749 = vpop.f32.mrf.mxu0
        %v3750 = vadd.f32 0.0, %v3749
        %v3751 = vpop.f32.mrf.mxu0
        %v3752 = vadd.f32 0.0, %v3751
        %3753 = vmatmul.bf16.gmra.mxu0 %v3297
        %v3754 = vpop.f32.mrf.mxu0
        %v3755 = vadd.f32 0.0, %v3754
        %v3756 = vpop.f32.mrf.mxu0
        %v3757 = vadd.f32 0.0, %v3756
        %3758 = vmatmul.bf16.gmra.mxu0 %v3299
        %v3759 = vpop.f32.mrf.mxu0
        %v3760 = vadd.f32 0.0, %v3759
        %v3761 = vpop.f32.mrf.mxu0
        %v3762 = vadd.f32 0.0, %v3761
        %3763 = vmatmul.bf16.gmra.mxu0 %v3301
        %v3764 = vpop.f32.mrf.mxu0
        %v3765 = vadd.f32 0.0, %v3764
        %v3766 = vpop.f32.mrf.mxu0
        %v3767 = vadd.f32 0.0, %v3766
        %3768 = vmatmul.bf16.gmra.mxu0 %v3303
        %v3769 = vpop.f32.mrf.mxu0
        %v3770 = vadd.f32 0.0, %v3769
        %v3771 = vpop.f32.mrf.mxu0
        %v3772 = vadd.f32 0.0, %v3771
        %3773 = vmatmul.bf16.gmra.mxu0 %v3305
        %v3774 = vpop.f32.mrf.mxu0
        %v3775 = vadd.f32 0.0, %v3774
        %v3776 = vpop.f32.mrf.mxu0
        %v3777 = vadd.f32 0.0, %v3776
        %3778 = vmatmul.bf16.gmra.mxu0 %v3307
        %v3779 = vpop.f32.mrf.mxu0
        %v3780 = vadd.f32 0.0, %v3779
        %v3781 = vpop.f32.mrf.mxu0
        %v3782 = vadd.f32 0.0, %v3781
        %3783 = vmatmul.bf16.gmra.mxu0 %v3309
        %v3784 = vpop.f32.mrf.mxu0
        %v3785 = vadd.f32 0.0, %v3784
        %v3786 = vpop.f32.mrf.mxu0
        %v3787 = vadd.f32 0.0, %v3786
        %3788 = vmatmul.bf16.gmra.mxu0 %v3311
        %v3789 = vpop.f32.mrf.mxu0
        %v3790 = vadd.f32 0.0, %v3789
        %v3791 = vpop.f32.mrf.mxu0
        %v3792 = vadd.f32 0.0, %v3791
        %3793 = vmatmul.bf16.gmra.mxu0 %v3313
        %v3794 = vpop.f32.mrf.mxu0
        %v3795 = vadd.f32 0.0, %v3794
        %v3796 = vpop.f32.mrf.mxu0
        %v3797 = vadd.f32 0.0, %v3796
        %3798 = vmatmul.bf16.gmra.mxu0 %v3315
        %v3799 = vpop.f32.mrf.mxu0
        %v3800 = vadd.f32 0.0, %v3799
        %v3801 = vpop.f32.mrf.mxu0
        %v3802 = vadd.f32 0.0, %v3801
        %3803 = vmatmul.bf16.gmra.mxu0 %v3317
        %v3804 = vpop.f32.mrf.mxu0
        %v3805 = vadd.f32 0.0, %v3804
        %v3806 = vpop.f32.mrf.mxu0
        %v3807 = vadd.f32 0.0, %v3806
        %3808 = vdwg.mxu0
        %3809 = vmatpush.bf16.msra.mxu0 0
        %3810 = vmatpush.bf16.msra.mxu0 0
        %3811 = vmatpush.bf16.msra.mxu0 0
        %3812 = vmatpush.bf16.msra.mxu0 0
        %3813 = vmatpush.bf16.msra.mxu0 0
        %3814 = vmatpush.bf16.msra.mxu0 %v3718
        %3815 = vmatpush.bf16.msra.mxu0 %v3705
        %3816 = vmatpush.bf16.msra.mxu0 %v3704
        %3817 = vmatmul.bf16.gmra.mxu0 %v3404
        %v3818 = vpop.f32.mrf.mxu0
        %v3819 = vadd.f32 %v3730, %v3818
        %v3820 = vpop.f32.mrf.mxu0
        %v3821 = vadd.f32 %v3732, %v3820
        %3822 = vmatmul.bf16.gmra.mxu0 %v3407
        %v3823 = vpop.f32.mrf.mxu0
        %v3824 = vadd.f32 %v3735, %v3823
        %v3825 = vpop.f32.mrf.mxu0
        %v3826 = vadd.f32 %v3737, %v3825
        %3827 = vmatmul.bf16.gmra.mxu0 %v3410
        %v3828 = vpop.f32.mrf.mxu0
        %v3829 = vadd.f32 %v3740, %v3828
        %v3830 = vpop.f32.mrf.mxu0
        %v3831 = vadd.f32 %v3742, %v3830
        %3832 = vmatmul.bf16.gmra.mxu0 %v3413
        %v3833 = vpop.f32.mrf.mxu0
        %v3834 = vadd.f32 %v3745, %v3833
        %v3835 = vpop.f32.mrf.mxu0
        %v3836 = vadd.f32 %v3747, %v3835
        %3837 = vmatmul.bf16.gmra.mxu0 %v3416
        %v3838 = vpop.f32.mrf.mxu0
        %v3839 = vadd.f32 %v3750, %v3838
        %v3840 = vpop.f32.mrf.mxu0
        %v3841 = vadd.f32 %v3752, %v3840
        %3842 = vmatmul.bf16.gmra.mxu0 %v3419
        %v3843 = vpop.f32.mrf.mxu0
        %v3844 = vadd.f32 %v3755, %v3843
        %v3845 = vpop.f32.mrf.mxu0
        %v3846 = vadd.f32 %v3757, %v3845
        %3847 = vmatmul.bf16.gmra.mxu0 %v3422
        %v3848 = vpop.f32.mrf.mxu0
        %v3849 = vadd.f32 %v3760, %v3848
        %v3850 = vpop.f32.mrf.mxu0
        %v3851 = vadd.f32 %v3762, %v3850
        %3852 = vmatmul.bf16.gmra.mxu0 %v3425
        %v3853 = vpop.f32.mrf.mxu0
        %v3854 = vadd.f32 %v3765, %v3853
        %v3855 = vpop.f32.mrf.mxu0
        %v3856 = vadd.f32 %v3767, %v3855
        %3857 = vmatmul.bf16.gmra.mxu0 %v3428
        %v3858 = vpop.f32.mrf.mxu0
        %v3859 = vadd.f32 %v3770, %v3858
        %v3860 = vpop.f32.mrf.mxu0
        %v3861 = vadd.f32 %v3772, %v3860
        %3862 = vmatmul.bf16.gmra.mxu0 %v3431
        %v3863 = vpop.f32.mrf.mxu0
        %v3864 = vadd.f32 %v3775, %v3863
        %v3865 = vpop.f32.mrf.mxu0
        %v3866 = vadd.f32 %v3777, %v3865
        %3867 = vmatmul.bf16.gmra.mxu0 %v3434
        %v3868 = vpop.f32.mrf.mxu0
        %v3869 = vadd.f32 %v3780, %v3868
        %v3870 = vpop.f32.mrf.mxu0
        %v3871 = vadd.f32 %v3782, %v3870
        %3872 = vmatmul.bf16.gmra.mxu0 %v3437
        %v3873 = vpop.f32.mrf.mxu0
        %v3874 = vadd.f32 %v3785, %v3873
        %v3875 = vpop.f32.mrf.mxu0
        %v3876 = vadd.f32 %v3787, %v3875
        %3877 = vmatmul.bf16.gmra.mxu0 %v3440
        %v3878 = vpop.f32.mrf.mxu0
        %v3879 = vadd.f32 %v3790, %v3878
        %v3880 = vpop.f32.mrf.mxu0
        %v3881 = vadd.f32 %v3792, %v3880
        %3882 = vmatmul.bf16.gmra.mxu0 %v3443
        %v3883 = vpop.f32.mrf.mxu0
        %v3884 = vadd.f32 %v3795, %v3883
        %v3885 = vpop.f32.mrf.mxu0
        %v3886 = vadd.f32 %v3797, %v3885
        %3887 = vmatmul.bf16.gmra.mxu0 %v3446
        %v3888 = vpop.f32.mrf.mxu0
        %v3889 = vadd.f32 %v3800, %v3888
        %v3890 = vpop.f32.mrf.mxu0
        %v3891 = vadd.f32 %v3802, %v3890
        %3892 = vmatmul.bf16.gmra.mxu0 %v3449
        %v3893 = vpop.f32.mrf.mxu0
        %v3894 = vadd.f32 %v3805, %v3893
        %v3895 = vpop.f32.mrf.mxu0
        %v3896 = vadd.f32 %v3807, %v3895
        %3897 = vdwg.mxu0
        %v3898 = vmax.f32 %v3554, %v3819
        %v3899 = vmax.f32 %v3556, %v3821
        %v3900 = vmax.f32 %v3559, %v3824
        %v3901 = vmax.f32 %v3561, %v3826
        %v3902 = vmax.f32 %v3564, %v3829
        %v3903 = vmax.f32 %v3566, %v3831
        %v3904 = vmax.f32 %v3569, %v3834
        %v3905 = vmax.f32 %v3571, %v3836
        %v3906 = vmax.f32 %v3574, %v3839
        %v3907 = vmax.f32 %v3576, %v3841
        %v3908 = vmax.f32 %v3579, %v3844
        %v3909 = vmax.f32 %v3581, %v3846
        %v3910 = vmax.f32 %v3584, %v3849
        %v3911 = vmax.f32 %v3586, %v3851
        %v3912 = vmax.f32 %v3589, %v3854
        %v3913 = vmax.f32 %v3591, %v3856
        %v3914 = vmax.f32 %v3594, %v3859
        %v3915 = vmax.f32 %v3596, %v3861
        %v3916 = vmax.f32 %v3599, %v3864
        %v3917 = vmax.f32 %v3601, %v3866
        %v3918 = vmax.f32 %v3604, %v3869
        %v3919 = vmax.f32 %v3606, %v3871
        %v3920 = vmax.f32 %v3609, %v3874
        %v3921 = vmax.f32 %v3611, %v3876
        %v3922 = vmax.f32 %v3614, %v3879
        %v3923 = vmax.f32 %v3616, %v3881
        %v3924 = vmax.f32 %v3619, %v3884
        %v3925 = vmax.f32 %v3621, %v3886
        %v3926 = vmax.f32 %v3624, %v3889
        %v3927 = vmax.f32 %v3626, %v3891
        %v3928 = vmax.f32 %v3629, %v3894
        %v3929 = vmax.f32 %v3631, %v3896
        %vm3962 = vcmask 1046528
        %v3963 = vrot.slane %v3898, 1
        %v3964 = vrot.slane %v3899, 1
        %v3965 = vsel %vm3962, %v3963, %v3964
        %v3966 = vrot.slane %v3900, 1
        %v3967 = vsel %vm3962, %v3964, %v3966
        %v3968 = vrot.slane %v3901, 1
        %v3969 = vsel %vm3962, %v3966, %v3968
        %v3970 = vrot.slane %v3902, 1
        %v3971 = vsel %vm3962, %v3968, %v3970
        %v3972 = vrot.slane %v3903, 1
        %v3973 = vsel %vm3962, %v3970, %v3972
        %v3974 = vrot.slane %v3904, 1
        %v3975 = vsel %vm3962, %v3972, %v3974
        %v3976 = vrot.slane %v3905, 1
        %v3977 = vsel %vm3962, %v3974, %v3976
        %v3978 = vrot.slane %v3906, 1
        %v3979 = vsel %vm3962, %v3976, %v3978
        %v3980 = vrot.slane %v3907, 1
        %v3981 = vsel %vm3962, %v3978, %v3980
        %v3982 = vrot.slane %v3908, 1
        %v3983 = vsel %vm3962, %v3980, %v3982
        %v3984 = vrot.slane %v3909, 1
        %v3985 = vsel %vm3962, %v3982, %v3984
        %v3986 = vrot.slane %v3910, 1
        %v3987 = vsel %vm3962, %v3984, %v3986
        %v3988 = vrot.slane %v3911, 1
        %v3989 = vsel %vm3962, %v3986, %v3988
        %v3990 = vrot.slane %v3912, 1
        %v3991 = vsel %vm3962, %v3988, %v3990
        %v3992 = vrot.slane %v3913, 1
        %v3993 = vsel %vm3962, %v3990, %v3992
        %v3994 = vrot.slane %v3914, 1
        %v3995 = vsel %vm3962, %v3992, %v3994
        %v3996 = vrot.slane %v3915, 1
        %v3997 = vsel %vm3962, %v3994, %v3996
        %v3998 = vrot.slane %v3916, 1
        %v3999 = vsel %vm3962, %v3996, %v3998
        %v4000 = vrot.slane %v3917, 1
        %v4001 = vsel %vm3962, %v3998, %v4000
        %v4002 = vrot.slane %v3918, 1
        %v4003 = vsel %vm3962, %v4000, %v4002
        %v4004 = vrot.slane %v3919, 1
        %v4005 = vsel %vm3962, %v4002, %v4004
        %v4006 = vrot.slane %v3920, 1
        %v4007 = vsel %vm3962, %v4004, %v4006
        %v4008 = vrot.slane %v3921, 1
        %v4009 = vsel %vm3962, %v4006, %v4008
        %v4010 = vrot.slane %v3922, 1
        %v4011 = vsel %vm3962, %v4008, %v4010
        %v4012 = vrot.slane %v3923, 1
        %v4013 = vsel %vm3962, %v4010, %v4012
        %v4014 = vrot.slane %v3924, 1
        %v4015 = vsel %vm3962, %v4012, %v4014
        %v4016 = vrot.slane %v3925, 1
        %v4017 = vsel %vm3962, %v4014, %v4016
        %v4018 = vrot.slane %v3926, 1
        %v4019 = vsel %vm3962, %v4016, %v4018
        %v4020 = vrot.slane %v3927, 1
        %v4021 = vsel %vm3962, %v4018, %v4020
        %v4022 = vrot.slane %v3928, 1
        %v4023 = vsel %vm3962, %v4020, %v4022
        %v4024 = vrot.slane %v3929, 1
        %v4025 = vsel %vm3962, %v4022, %v4024
        %v4058 = vmax.f32 %v3898, %v3965
        %v4059 = vmax.f32 %v3899, %v3967
        %v4060 = vmax.f32 %v3900, %v3969
        %v4061 = vmax.f32 %v3901, %v3971
        %v4062 = vmax.f32 %v3902, %v3973
        %v4063 = vmax.f32 %v3903, %v3975
        %v4064 = vmax.f32 %v3904, %v3977
        %v4065 = vmax.f32 %v3905, %v3979
        %v4066 = vmax.f32 %v3906, %v3981
        %v4067 = vmax.f32 %v3907, %v3983
        %v4068 = vmax.f32 %v3908, %v3985
        %v4069 = vmax.f32 %v3909, %v3987
        %v4070 = vmax.f32 %v3910, %v3989
        %v4071 = vmax.f32 %v3911, %v3991
        %v4072 = vmax.f32 %v3912, %v3993
        %v4073 = vmax.f32 %v3913, %v3995
        %v4074 = vmax.f32 %v3914, %v3997
        %v4075 = vmax.f32 %v3915, %v3999
        %v4076 = vmax.f32 %v3916, %v4001
        %v4077 = vmax.f32 %v3917, %v4003
        %v4078 = vmax.f32 %v3918, %v4005
        %v4079 = vmax.f32 %v3919, %v4007
        %v4080 = vmax.f32 %v3920, %v4009
        %v4081 = vmax.f32 %v3921, %v4011
        %v4082 = vmax.f32 %v3922, %v4013
        %v4083 = vmax.f32 %v3923, %v4015
        %v4084 = vmax.f32 %v3924, %v4017
        %v4085 = vmax.f32 %v3925, %v4019
        %v4086 = vmax.f32 %v3926, %v4021
        %v4087 = vmax.f32 %v3927, %v4023
        %v4088 = vmax.f32 %v3928, %v4025
        %v4089 = vmax.f32 %v3929, %v4024
        %v4090 = vpack.c.bf16 %v4059, %v4058
        %v4091 = vpack.c.bf16 %v4061, %v4060
        %v4092 = vpack.c.bf16 %v4063, %v4062
        %v4093 = vpack.c.bf16 %v4065, %v4064
        %v4094 = vpack.c.bf16 %v4067, %v4066
        %v4095 = vpack.c.bf16 %v4069, %v4068
        %v4096 = vpack.c.bf16 %v4071, %v4070
        %v4097 = vpack.c.bf16 %v4073, %v4072
        %v4098 = vpack.c.bf16 %v4075, %v4074
        %v4099 = vpack.c.bf16 %v4077, %v4076
        %v4100 = vpack.c.bf16 %v4079, %v4078
        %v4101 = vpack.c.bf16 %v4081, %v4080
        %v4102 = vpack.c.bf16 %v4083, %v4082
        %v4103 = vpack.c.bf16 %v4085, %v4084
        %v4104 = vpack.c.bf16 %v4087, %v4086
        %v4105 = vpack.c.bf16 %v4089, %v4088
        %v4106 = vld [vmem:[%s5] sm:$0xff]
        %v4107 = vld [vmem:[%s5 + $0x8] sm:$0xff]
        %v4108 = vld [vmem:[%s5 + $0x10] sm:$0xff]
        %v4109 = vld [vmem:[%s5 + $0x18] sm:$0xff]
        %v4110 = vld [vmem:[%s5 + $0x20] sm:$0xff]
        %v4111 = vld [vmem:[%s5 + $0x28] sm:$0xff]
        %v4112 = vld [vmem:[%s5 + $0x30] sm:$0xff]
        %v4113 = vld [vmem:[%s5 + $0x38] sm:$0xff]
        %v4114 = vld [vmem:[%s5 + $0x40] sm:$0xff]
        %v4115 = vld [vmem:[%s5 + $0x48] sm:$0xff]
        %v4116 = vld [vmem:[%s5 + $0x50] sm:$0xff]
        %v4117 = vld [vmem:[%s5 + $0x58] sm:$0xff]
        %v4118 = vld [vmem:[%s5 + $0x60] sm:$0xff]
        %v4119 = vld [vmem:[%s5 + $0x68] sm:$0xff]
        %v4120 = vld [vmem:[%s5 + $0x70] sm:$0x33]
        %v4136 = vunpack.c.l.b16 %v4106
        %v4137 = vunpack.c.h.b16 %v4106
        %v4138 = vunpack.c.l.b16 %v4107
        %v4139 = vunpack.c.h.b16 %v4107
        %v4140 = vunpack.c.l.b16 %v4108
        %v4141 = vunpack.c.h.b16 %v4108
        %v4142 = vunpack.c.l.b16 %v4109
        %v4143 = vunpack.c.h.b16 %v4109
        %v4144 = vunpack.c.l.b16 %v4110
        %v4145 = vunpack.c.h.b16 %v4110
        %v4146 = vunpack.c.l.b16 %v4111
        %v4147 = vunpack.c.h.b16 %v4111
        %v4148 = vunpack.c.l.b16 %v4112
        %v4149 = vunpack.c.h.b16 %v4112
        %v4150 = vunpack.c.l.b16 %v4113
        %v4151 = vunpack.c.h.b16 %v4113
        %v4152 = vunpack.c.l.b16 %v4114
        %v4153 = vunpack.c.h.b16 %v4114
        %v4154 = vunpack.c.l.b16 %v4115
        %v4155 = vunpack.c.h.b16 %v4115
        %v4156 = vunpack.c.l.b16 %v4116
        %v4157 = vunpack.c.h.b16 %v4116
        %v4158 = vunpack.c.l.b16 %v4117
        %v4159 = vunpack.c.h.b16 %v4117
        %v4160 = vunpack.c.l.b16 %v4118
        %v4161 = vunpack.c.h.b16 %v4118
        %v4162 = vunpack.c.l.b16 %v4119
        %v4163 = vunpack.c.h.b16 %v4119
        %v4164 = vunpack.c.l.b16 %v4120
        %v4165 = vunpack.c.h.b16 %v4120
        %v4166 = vpack.c.b16 %v4138, %v4136
        %v4167 = vpack.c.b16 %v4139, %v4137
        %v4168 = vpack.c.b16 %v4142, %v4140
        %v4169 = vpack.c.b16 %v4143, %v4141
        %v4170 = vpack.c.b16 %v4146, %v4144
        %v4171 = vpack.c.b16 %v4147, %v4145
        %v4172 = vpack.c.b16 %v4150, %v4148
        %v4173 = vpack.c.b16 %v4151, %v4149
        %v4174 = vpack.c.b16 %v4154, %v4152
        %v4175 = vpack.c.b16 %v4155, %v4153
        %v4176 = vpack.c.b16 %v4158, %v4156
        %v4177 = vpack.c.b16 %v4159, %v4157
        %v4178 = vpack.c.b16 %v4162, %v4160
        %v4179 = vpack.c.b16 %v4163, %v4161
        %v4180 = vpack.c.b16 %v4164, %v4164
        %v4181 = vpack.c.b16 %v4165, %v4165
        %vm4190 = vcmask 1039360
        %v4192 = vsel %vm4190, %v4167, 0
        %v4195 = vsel %vm4190, %v4169, 0
        %v4198 = vsel %vm4190, %v4171, 0
        %v4201 = vsel %vm4190, %v4173, 0
        %v4204 = vsel %vm4190, %v4175, 0
        %v4207 = vsel %vm4190, %v4177, 0
        %v4210 = vsel %vm4190, %v4179, 0
        %v4213 = vsel %vm4190, %v4181, 0
        %vm4215 = vcmask 1047552
        %v4216 = vsel %vm3962, 4294967295, 65535
        %v4217 = vsel %vm4215, %v4216, 0
        %v4219 = vand.u32 %v4105, %v4217
        %4221 = vmatpush.bf16.msra.mxu0 %v4097
        %4222 = vmatpush.bf16.msra.mxu0 %v4096
        %4223 = vmatpush.bf16.msra.mxu0 %v4095
        %4224 = vmatpush.bf16.msra.mxu0 %v4094
        %4225 = vmatpush.bf16.msra.mxu0 %v4093
        %4226 = vmatpush.bf16.msra.mxu0 %v4092
        %4227 = vmatpush.bf16.msra.mxu0 %v4091
        %4228 = vmatpush.bf16.msra.mxu0 %v4090
        %4229 = vmatmul.bf16.gmra.mxu0 %v4166
        %v4230 = vpop.f32.mrf.mxu0
        %v4231 = vadd.f32 0.0, %v4230
        %v4232 = vpop.f32.mrf.mxu0
        %v4233 = vadd.f32 0.0, %v4232
        %4234 = vmatmul.bf16.gmra.mxu0 %v4168
        %v4235 = vpop.f32.mrf.mxu0
        %v4236 = vadd.f32 0.0, %v4235
        %v4237 = vpop.f32.mrf.mxu0
        %v4238 = vadd.f32 0.0, %v4237
        %4239 = vmatmul.bf16.gmra.mxu0 %v4170
        %v4240 = vpop.f32.mrf.mxu0
        %v4241 = vadd.f32 0.0, %v4240
        %v4242 = vpop.f32.mrf.mxu0
        %v4243 = vadd.f32 0.0, %v4242
        %4244 = vmatmul.bf16.gmra.mxu0 %v4172
        %v4245 = vpop.f32.mrf.mxu0
        %v4246 = vadd.f32 0.0, %v4245
        %v4247 = vpop.f32.mrf.mxu0
        %v4248 = vadd.f32 0.0, %v4247
        %4249 = vmatmul.bf16.gmra.mxu0 %v4174
        %v4250 = vpop.f32.mrf.mxu0
        %v4251 = vadd.f32 0.0, %v4250
        %v4252 = vpop.f32.mrf.mxu0
        %v4253 = vadd.f32 0.0, %v4252
        %4254 = vmatmul.bf16.gmra.mxu0 %v4176
        %v4255 = vpop.f32.mrf.mxu0
        %v4256 = vadd.f32 0.0, %v4255
        %v4257 = vpop.f32.mrf.mxu0
        %v4258 = vadd.f32 0.0, %v4257
        %4259 = vmatmul.bf16.gmra.mxu0 %v4178
        %v4260 = vpop.f32.mrf.mxu0
        %v4261 = vadd.f32 0.0, %v4260
        %v4262 = vpop.f32.mrf.mxu0
        %v4263 = vadd.f32 0.0, %v4262
        %4264 = vmatmul.bf16.gmra.mxu0 %v4180
        %v4265 = vpop.f32.mrf.mxu0
        %v4266 = vadd.f32 0.0, %v4265
        %v4267 = vpop.f32.mrf.mxu0
        %4268 = vdwg.mxu0
        %4269 = vmatpush.bf16.msra.mxu0 %v4219
        %4270 = vmatpush.bf16.msra.mxu0 %v4104
        %4271 = vmatpush.bf16.msra.mxu0 %v4103
        %4272 = vmatpush.bf16.msra.mxu0 %v4102
        %4273 = vmatpush.bf16.msra.mxu0 %v4101
        %4274 = vmatpush.bf16.msra.mxu0 %v4100
        %4275 = vmatpush.bf16.msra.mxu0 %v4099
        %4276 = vmatpush.bf16.msra.mxu0 %v4098
        %4277 = vmatmul.bf16.gmra.mxu0 %v4192
        %v4278 = vpop.f32.mrf.mxu0
        %v4279 = vadd.f32 %v4231, %v4278
        %v4280 = vpop.f32.mrf.mxu0
        %v4281 = vadd.f32 %v4233, %v4280
        %4282 = vmatmul.bf16.gmra.mxu0 %v4195
        %v4283 = vpop.f32.mrf.mxu0
        %v4284 = vadd.f32 %v4236, %v4283
        %v4285 = vpop.f32.mrf.mxu0
        %v4286 = vadd.f32 %v4238, %v4285
        %4287 = vmatmul.bf16.gmra.mxu0 %v4198
        %v4288 = vpop.f32.mrf.mxu0
        %v4289 = vadd.f32 %v4241, %v4288
        %v4290 = vpop.f32.mrf.mxu0
        %v4291 = vadd.f32 %v4243, %v4290
        %4292 = vmatmul.bf16.gmra.mxu0 %v4201
        %v4293 = vpop.f32.mrf.mxu0
        %v4294 = vadd.f32 %v4246, %v4293
        %v4295 = vpop.f32.mrf.mxu0
        %v4296 = vadd.f32 %v4248, %v4295
        %4297 = vmatmul.bf16.gmra.mxu0 %v4204
        %v4298 = vpop.f32.mrf.mxu0
        %v4299 = vadd.f32 %v4251, %v4298
        %v4300 = vpop.f32.mrf.mxu0
        %v4301 = vadd.f32 %v4253, %v4300
        %4302 = vmatmul.bf16.gmra.mxu0 %v4207
        %v4303 = vpop.f32.mrf.mxu0
        %v4304 = vadd.f32 %v4256, %v4303
        %v4305 = vpop.f32.mrf.mxu0
        %v4306 = vadd.f32 %v4258, %v4305
        %4307 = vmatmul.bf16.gmra.mxu0 %v4210
        %v4308 = vpop.f32.mrf.mxu0
        %v4309 = vadd.f32 %v4261, %v4308
        %v4310 = vpop.f32.mrf.mxu0
        %v4311 = vadd.f32 %v4263, %v4310
        %4312 = vmatmul.bf16.gmra.mxu0 %v4213
        %v4313 = vpop.f32.mrf.mxu0
        %v4314 = vadd.f32 %v4266, %v4313
        %v4315 = vpop.f32.mrf.mxu0
        %4316 = vdwg.mxu0
        %v4317 = vpack.c.bf16 %v4281, %v4279
        %v4318 = vpack.c.bf16 %v4286, %v4284
        %v4319 = vpack.c.bf16 %v4291, %v4289
        %v4320 = vpack.c.bf16 %v4296, %v4294
        %v4321 = vpack.c.bf16 %v4301, %v4299
        %v4322 = vpack.c.bf16 %v4306, %v4304
        %v4323 = vpack.c.bf16 %v4311, %v4309
        %v4324 = vld [vmem:[%s6] sm:$0xff]
        %v4325 = vld [vmem:[%s6 + $0x8] sm:$0xff]
        %v4326 = vld [vmem:[%s6 + $0x10] sm:$0xff]
        %v4327 = vld [vmem:[%s6 + $0x18] sm:$0xff]
        %v4328 = vld [vmem:[%s6 + $0x20] sm:$0xff]
        %v4329 = vld [vmem:[%s6 + $0x28] sm:$0xff]
        %v4330 = vld [vmem:[%s6 + $0x30] sm:$0xff]
        %v4331 = vld [vmem:[%s6 + $0x38] sm:$0xff]
        %v4332 = vld [vmem:[%s6 + $0x40] sm:$0xff]
        %v4333 = vld [vmem:[%s6 + $0x48] sm:$0xff]
        %v4334 = vld [vmem:[%s6 + $0x50] sm:$0x33]
        %v4335 = vpack.c.bf16 %v4314, %v4314
        %s4336 = scalar_lea.vmem %s6, 88
        %v4337 = vld [vmem:[%s4336] sm:$0xff]
        %v4338 = vld [vmem:[%s4336 + $0x8] sm:$0xff]
        %v4339 = vld [vmem:[%s4336 + $0x10] sm:$0xff]
        %v4340 = vld [vmem:[%s4336 + $0x18] sm:$0xff]
        %v4341 = vld [vmem:[%s4336 + $0x20] sm:$0xff]
        %v4342 = vld [vmem:[%s4336 + $0x28] sm:$0xff]
        %v4343 = vld [vmem:[%s4336 + $0x30] sm:$0xff]
        %v4344 = vld [vmem:[%s4336 + $0x38] sm:$0xff]
        %v4345 = vld [vmem:[%s4336 + $0x40] sm:$0xff]
        %v4346 = vld [vmem:[%s4336 + $0x48] sm:$0xff]
        %v4347 = vld [vmem:[%s4336 + $0x50] sm:$0x33]
        %vm4348 = vsmask.f32 7424
        %v4350 = vshrl.u32 %v4317, 16
        %v4352 = vshll.u32 %v4317, 16
        %v4354 = vrot.slane %v4352, 1
        %v4355 = vor.u32 %v4350, %v4354
        %v4357 = vshll.u32 %v4318, 16
        %v4359 = vrot.slane %v4357, 1
        %v4360 = vsel %vm4348, %v4355, %v4359
        %v4361 = vshrl.u32 %v4318, 16
        %v4363 = vor.u32 %v4361, %v4359
        %v4365 = vshll.u32 %v4319, 16
        %v4367 = vrot.slane %v4365, 1
        %v4368 = vsel %vm4348, %v4363, %v4367
        %v4369 = vshrl.u32 %v4319, 16
        %v4371 = vor.u32 %v4369, %v4367
        %v4373 = vshll.u32 %v4320, 16
        %v4375 = vrot.slane %v4373, 1
        %v4376 = vsel %vm4348, %v4371, %v4375
        %v4377 = vshrl.u32 %v4320, 16
        %v4379 = vor.u32 %v4377, %v4375
        %v4381 = vshll.u32 %v4321, 16
        %v4383 = vrot.slane %v4381, 1
        %v4384 = vsel %vm4348, %v4379, %v4383
        %v4385 = vshrl.u32 %v4321, 16
        %v4387 = vor.u32 %v4385, %v4383
        %v4389 = vshll.u32 %v4322, 16
        %v4391 = vrot.slane %v4389, 1
        %v4392 = vsel %vm4348, %v4387, %v4391
        %v4393 = vshrl.u32 %v4322, 16
        %v4395 = vor.u32 %v4393, %v4391
        %v4397 = vshll.u32 %v4323, 16
        %v4399 = vrot.slane %v4397, 1
        %v4400 = vsel %vm4348, %v4395, %v4399
        %v4401 = vshrl.u32 %v4323, 16
        %v4403 = vor.u32 %v4401, %v4399
        %v4405 = vshll.u32 %v4335, 16
        %v4407 = vrot.slane %v4405, 1
        %v4408 = vsel %vm4348, %v4403, %v4407
        %v4420 = vunpack.c.l.b16 %v4337
        %v4421 = vunpack.c.h.b16 %v4337
        %v4422 = vunpack.c.l.b16 %v4338
        %v4423 = vunpack.c.h.b16 %v4338
        %v4424 = vunpack.c.l.b16 %v4339
        %v4425 = vunpack.c.h.b16 %v4339
        %v4426 = vunpack.c.l.b16 %v4340
        %v4427 = vunpack.c.h.b16 %v4340
        %v4428 = vunpack.c.l.b16 %v4341
        %v4429 = vunpack.c.h.b16 %v4341
        %v4430 = vunpack.c.l.b16 %v4342
        %v4431 = vunpack.c.h.b16 %v4342
        %v4432 = vunpack.c.l.b16 %v4343
        %v4433 = vunpack.c.h.b16 %v4343
        %v4434 = vunpack.c.l.b16 %v4344
        %v4435 = vunpack.c.h.b16 %v4344
        %v4436 = vunpack.c.l.b16 %v4345
        %v4437 = vunpack.c.h.b16 %v4345
        %v4438 = vunpack.c.l.b16 %v4346
        %v4439 = vunpack.c.h.b16 %v4346
        %v4440 = vunpack.c.l.b16 %v4347
        %v4441 = vunpack.c.h.b16 %v4347
        %v4442 = vpack.c.b16 %v4422, %v4420
        %v4443 = vpack.c.b16 %v4423, %v4421
        %v4444 = vpack.c.b16 %v4426, %v4424
        %v4445 = vpack.c.b16 %v4427, %v4425
        %v4446 = vpack.c.b16 %v4430, %v4428
        %v4447 = vpack.c.b16 %v4431, %v4429
        %v4448 = vpack.c.b16 %v4434, %v4432
        %v4449 = vpack.c.b16 %v4435, %v4433
        %v4450 = vpack.c.b16 %v4438, %v4436
        %v4451 = vpack.c.b16 %v4439, %v4437
        %v4452 = vpack.c.b16 %v4440, %v4440
        %v4453 = vpack.c.b16 %v4441, %v4441
        %vm4464 = vcmask 687104
        %v4466 = vsel %vm4464, %v4360, 0
        %v4469 = vsel %vm4464, %v4368, 0
        %v4472 = vsel %vm4464, %v4376, 0
        %v4475 = vsel %vm4464, %v4384, 0
        %v4478 = vsel %vm4464, %v4392, 0
        %v4481 = vsel %vm4464, %v4400, 0
        %v4484 = vsel %vm4464, %v4408, 0
        %vm4486 = vcmask 1041408
        %v4488 = vsel %vm4486, %v4452, 0
        %v4491 = vsel %vm4486, %v4453, 0
        %4493 = vmatpush.bf16.msra.mxu0 0
        %4494 = vmatpush.bf16.msra.mxu0 0
        %4495 = vmatpush.bf16.msra.mxu0 %v4488
        %4496 = vmatpush.bf16.msra.mxu0 %v4450
        %4497 = vmatpush.bf16.msra.mxu0 %v4448
        %4498 = vmatpush.bf16.msra.mxu0 %v4446
        %4499 = vmatpush.bf16.msra.mxu0 %v4444
        %4500 = vmatpush.bf16.msra.mxu0 %v4442
        %4501 = vmatmul.bf16.gmra.mxu0 %v4466
        %v4502 = vpop.f32.mrf.mxu0
        %v4503 = vadd.f32 0.0, %v4502
        %v4504 = vpop.f32.mrf.mxu0
        %v4505 = vadd.f32 0.0, %v4504
        %4506 = vmatmul.bf16.gmra.mxu0 %v4469
        %v4507 = vpop.f32.mrf.mxu0
        %v4508 = vadd.f32 0.0, %v4507
        %v4509 = vpop.f32.mrf.mxu0
        %v4510 = vadd.f32 0.0, %v4509
        %4511 = vmatmul.bf16.gmra.mxu0 %v4472
        %v4512 = vpop.f32.mrf.mxu0
        %v4513 = vadd.f32 0.0, %v4512
        %v4514 = vpop.f32.mrf.mxu0
        %v4515 = vadd.f32 0.0, %v4514
        %4516 = vmatmul.bf16.gmra.mxu0 %v4475
        %v4517 = vpop.f32.mrf.mxu0
        %v4518 = vadd.f32 0.0, %v4517
        %v4519 = vpop.f32.mrf.mxu0
        %v4520 = vadd.f32 0.0, %v4519
        %4521 = vmatmul.bf16.gmra.mxu0 %v4478
        %v4522 = vpop.f32.mrf.mxu0
        %v4523 = vadd.f32 0.0, %v4522
        %v4524 = vpop.f32.mrf.mxu0
        %v4525 = vadd.f32 0.0, %v4524
        %4526 = vmatmul.bf16.gmra.mxu0 %v4481
        %v4527 = vpop.f32.mrf.mxu0
        %v4528 = vadd.f32 0.0, %v4527
        %v4529 = vpop.f32.mrf.mxu0
        %v4530 = vadd.f32 0.0, %v4529
        %4531 = vmatmul.bf16.gmra.mxu0 %v4484
        %v4532 = vpop.f32.mrf.mxu0
        %v4533 = vadd.f32 0.0, %v4532
        %v4534 = vpop.f32.mrf.mxu0
        %v4535 = vadd.f32 0.0, %v4534
        %4536 = vdwg.mxu0
        %4537 = vmatpush.bf16.msra.mxu0 0
        %4538 = vmatpush.bf16.msra.mxu0 0
        %4539 = vmatpush.bf16.msra.mxu0 %v4491
        %4540 = vmatpush.bf16.msra.mxu0 %v4451
        %4541 = vmatpush.bf16.msra.mxu0 %v4449
        %4542 = vmatpush.bf16.msra.mxu0 %v4447
        %4543 = vmatpush.bf16.msra.mxu0 %v4445
        %4544 = vmatpush.bf16.msra.mxu0 %v4443
        %4545 = vmatmul.bf16.gmra.mxu0 %v4466
        %v4546 = vpop.f32.mrf.mxu0
        %v4547 = vadd.f32 0.0, %v4546
        %v4548 = vpop.f32.mrf.mxu0
        %v4549 = vadd.f32 0.0, %v4548
        %4550 = vmatmul.bf16.gmra.mxu0 %v4469
        %v4551 = vpop.f32.mrf.mxu0
        %v4552 = vadd.f32 0.0, %v4551
        %v4553 = vpop.f32.mrf.mxu0
        %v4554 = vadd.f32 0.0, %v4553
        %4555 = vmatmul.bf16.gmra.mxu0 %v4472
        %v4556 = vpop.f32.mrf.mxu0
        %v4557 = vadd.f32 0.0, %v4556
        %v4558 = vpop.f32.mrf.mxu0
        %v4559 = vadd.f32 0.0, %v4558
        %4560 = vmatmul.bf16.gmra.mxu0 %v4475
        %v4561 = vpop.f32.mrf.mxu0
        %v4562 = vadd.f32 0.0, %v4561
        %v4563 = vpop.f32.mrf.mxu0
        %v4564 = vadd.f32 0.0, %v4563
        %4565 = vmatmul.bf16.gmra.mxu0 %v4478
        %v4566 = vpop.f32.mrf.mxu0
        %v4567 = vadd.f32 0.0, %v4566
        %v4568 = vpop.f32.mrf.mxu0
        %v4569 = vadd.f32 0.0, %v4568
        %4570 = vmatmul.bf16.gmra.mxu0 %v4481
        %v4571 = vpop.f32.mrf.mxu0
        %v4572 = vadd.f32 0.0, %v4571
        %v4573 = vpop.f32.mrf.mxu0
        %v4574 = vadd.f32 0.0, %v4573
        %4575 = vmatmul.bf16.gmra.mxu0 %v4484
        %v4576 = vpop.f32.mrf.mxu0
        %v4577 = vadd.f32 0.0, %v4576
        %v4578 = vpop.f32.mrf.mxu0
        %v4579 = vadd.f32 0.0, %v4578
        %4580 = vdwg.mxu0
        %v4592 = vunpack.c.l.b16 %v4324
        %v4593 = vunpack.c.h.b16 %v4324
        %v4594 = vunpack.c.l.b16 %v4325
        %v4595 = vunpack.c.h.b16 %v4325
        %v4596 = vunpack.c.l.b16 %v4326
        %v4597 = vunpack.c.h.b16 %v4326
        %v4598 = vunpack.c.l.b16 %v4327
        %v4599 = vunpack.c.h.b16 %v4327
        %v4600 = vunpack.c.l.b16 %v4328
        %v4601 = vunpack.c.h.b16 %v4328
        %v4602 = vunpack.c.l.b16 %v4329
        %v4603 = vunpack.c.h.b16 %v4329
        %v4604 = vunpack.c.l.b16 %v4330
        %v4605 = vunpack.c.h.b16 %v4330
        %v4606 = vunpack.c.l.b16 %v4331
        %v4607 = vunpack.c.h.b16 %v4331
        %v4608 = vunpack.c.l.b16 %v4332
        %v4609 = vunpack.c.h.b16 %v4332
        %v4610 = vunpack.c.l.b16 %v4333
        %v4611 = vunpack.c.h.b16 %v4333
        %v4612 = vunpack.c.l.b16 %v4334
        %v4613 = vunpack.c.h.b16 %v4334
        %v4614 = vpack.c.b16 %v4594, %v4592
        %v4615 = vpack.c.b16 %v4595, %v4593
        %v4616 = vpack.c.b16 %v4598, %v4596
        %v4617 = vpack.c.b16 %v4599, %v4597
        %v4618 = vpack.c.b16 %v4602, %v4600
        %v4619 = vpack.c.b16 %v4603, %v4601
        %v4620 = vpack.c.b16 %v4606, %v4604
        %v4621 = vpack.c.b16 %v4607, %v4605
        %v4622 = vpack.c.b16 %v4610, %v4608
        %v4623 = vpack.c.b16 %v4611, %v4609
        %v4624 = vpack.c.b16 %v4612, %v4612
        %v4625 = vpack.c.b16 %v4613, %v4613
        %v4636 = vsel %vm4464, %v4317, 0
        %v4638 = vsel %vm4464, %v4318, 0
        %v4640 = vsel %vm4464, %v4319, 0
        %v4642 = vsel %vm4464, %v4320, 0
        %v4644 = vsel %vm4464, %v4321, 0
        %v4646 = vsel %vm4464, %v4322, 0
        %v4648 = vsel %vm4464, %v4323, 0
        %v4651 = vsel %vm4486, %v4624, 0
        %v4654 = vsel %vm4486, %v4625, 0
        %4656 = vmatpush.bf16.msra.mxu0 0
        %4657 = vmatpush.bf16.msra.mxu0 0
        %4658 = vmatpush.bf16.msra.mxu0 %v4651
        %4659 = vmatpush.bf16.msra.mxu0 %v4622
        %4660 = vmatpush.bf16.msra.mxu0 %v4620
        %4661 = vmatpush.bf16.msra.mxu0 %v4618
        %4662 = vmatpush.bf16.msra.mxu0 %v4616
        %4663 = vmatpush.bf16.msra.mxu0 %v4614
        %4664 = vmatmul.bf16.gmra.mxu0 %v4636
        %v4665 = vpop.f32.mrf.mxu0
        %v4666 = vadd.f32 %v4503, %v4665
        %v4667 = vpop.f32.mrf.mxu0
        %v4668 = vadd.f32 %v4505, %v4667
        %4669 = vmatmul.bf16.gmra.mxu0 %v4638
        %v4670 = vpop.f32.mrf.mxu0
        %v4671 = vadd.f32 %v4508, %v4670
        %v4672 = vpop.f32.mrf.mxu0
        %v4673 = vadd.f32 %v4510, %v4672
        %4674 = vmatmul.bf16.gmra.mxu0 %v4640
        %v4675 = vpop.f32.mrf.mxu0
        %v4676 = vadd.f32 %v4513, %v4675
        %v4677 = vpop.f32.mrf.mxu0
        %v4678 = vadd.f32 %v4515, %v4677
        %4679 = vmatmul.bf16.gmra.mxu0 %v4642
        %v4680 = vpop.f32.mrf.mxu0
        %v4681 = vadd.f32 %v4518, %v4680
        %v4682 = vpop.f32.mrf.mxu0
        %v4683 = vadd.f32 %v4520, %v4682
        %4684 = vmatmul.bf16.gmra.mxu0 %v4644
        %v4685 = vpop.f32.mrf.mxu0
        %v4686 = vadd.f32 %v4523, %v4685
        %v4687 = vpop.f32.mrf.mxu0
        %v4688 = vadd.f32 %v4525, %v4687
        %4689 = vmatmul.bf16.gmra.mxu0 %v4646
        %v4690 = vpop.f32.mrf.mxu0
        %v4691 = vadd.f32 %v4528, %v4690
        %v4692 = vpop.f32.mrf.mxu0
        %v4693 = vadd.f32 %v4530, %v4692
        %4694 = vmatmul.bf16.gmra.mxu0 %v4648
        %v4695 = vpop.f32.mrf.mxu0
        %v4696 = vadd.f32 %v4533, %v4695
        %v4697 = vpop.f32.mrf.mxu0
        %v4698 = vadd.f32 %v4535, %v4697
        %4699 = vdwg.mxu0
        %4700 = vmatpush.bf16.msra.mxu0 0
        %4701 = vmatpush.bf16.msra.mxu0 0
        %4702 = vmatpush.bf16.msra.mxu0 %v4654
        %4703 = vmatpush.bf16.msra.mxu0 %v4623
        %4704 = vmatpush.bf16.msra.mxu0 %v4621
        %4705 = vmatpush.bf16.msra.mxu0 %v4619
        %4706 = vmatpush.bf16.msra.mxu0 %v4617
        %4707 = vmatpush.bf16.msra.mxu0 %v4615
        %4708 = vmatmul.bf16.gmra.mxu0 %v4636
        %v4709 = vpop.f32.mrf.mxu0
        %v4710 = vadd.f32 %v4547, %v4709
        %v4711 = vpop.f32.mrf.mxu0
        %v4712 = vadd.f32 %v4549, %v4711
        %4713 = vmatmul.bf16.gmra.mxu0 %v4638
        %v4714 = vpop.f32.mrf.mxu0
        %v4715 = vadd.f32 %v4552, %v4714
        %v4716 = vpop.f32.mrf.mxu0
        %v4717 = vadd.f32 %v4554, %v4716
        %4718 = vmatmul.bf16.gmra.mxu0 %v4640
        %v4719 = vpop.f32.mrf.mxu0
        %v4720 = vadd.f32 %v4557, %v4719
        %v4721 = vpop.f32.mrf.mxu0
        %v4722 = vadd.f32 %v4559, %v4721
        %4723 = vmatmul.bf16.gmra.mxu0 %v4642
        %v4724 = vpop.f32.mrf.mxu0
        %v4725 = vadd.f32 %v4562, %v4724
        %v4726 = vpop.f32.mrf.mxu0
        %v4727 = vadd.f32 %v4564, %v4726
        %4728 = vmatmul.bf16.gmra.mxu0 %v4644
        %v4729 = vpop.f32.mrf.mxu0
        %v4730 = vadd.f32 %v4567, %v4729
        %v4731 = vpop.f32.mrf.mxu0
        %v4732 = vadd.f32 %v4569, %v4731
        %4733 = vmatmul.bf16.gmra.mxu0 %v4646
        %v4734 = vpop.f32.mrf.mxu0
        %v4735 = vadd.f32 %v4572, %v4734
        %v4736 = vpop.f32.mrf.mxu0
        %v4737 = vadd.f32 %v4574, %v4736
        %4738 = vmatmul.bf16.gmra.mxu0 %v4648
        %v4739 = vpop.f32.mrf.mxu0
        %v4740 = vadd.f32 %v4577, %v4739
        %v4741 = vpop.f32.mrf.mxu0
        %v4742 = vadd.f32 %v4579, %v4741
        %4743 = vdwg.mxu0
        %s4744 = scalar_lea.vmem %s6, 176
        %v4745 = vld [vmem:[%s4744] sm:$0xff]
        %v4746 = vld [vmem:[%s4744 + $0x8] sm:$0xff]
        %v4747 = vld [vmem:[%s4744 + $0x10] sm:$0xff]
        %v4748 = vld [vmem:[%s4744 + $0x18] sm:$0xff]
        %v4749 = vld [vmem:[%s4744 + $0x20] sm:$0xff]
        %v4750 = vld [vmem:[%s4744 + $0x28] sm:$0xff]
        %v4751 = vld [vmem:[%s4744 + $0x30] sm:$0xff]
        %v4752 = vld [vmem:[%s4744 + $0x38] sm:$0xff]
        %v4753 = vld [vmem:[%s4744 + $0x40] sm:$0xff]
        %v4754 = vld [vmem:[%s4744 + $0x48] sm:$0xff]
        %v4755 = vld [vmem:[%s4744 + $0x50] sm:$0x33]
        %vm4764 = vcmask 1046528
        %v4765 = vrot.slane %v4317, 1
        %v4766 = vrot.slane %v4318, 1
        %v4767 = vsel %vm4764, %v4765, %v4766
        %v4768 = vrot.slane %v4319, 1
        %v4769 = vsel %vm4764, %v4766, %v4768
        %v4770 = vrot.slane %v4320, 1
        %v4771 = vsel %vm4764, %v4768, %v4770
        %v4772 = vrot.slane %v4321, 1
        %v4773 = vsel %vm4764, %v4770, %v4772
        %v4774 = vrot.slane %v4322, 1
        %v4775 = vsel %vm4764, %v4772, %v4774
        %v4776 = vrot.slane %v4323, 1
        %v4777 = vsel %vm4764, %v4774, %v4776
        %v4778 = vrot.slane %v4335, 1
        %v4779 = vsel %vm4764, %v4776, %v4778
        %v4791 = vunpack.c.l.b16 %v4745
        %v4792 = vunpack.c.h.b16 %v4745
        %v4793 = vunpack.c.l.b16 %v4746
        %v4794 = vunpack.c.h.b16 %v4746
        %v4795 = vunpack.c.l.b16 %v4747
        %v4796 = vunpack.c.h.b16 %v4747
        %v4797 = vunpack.c.l.b16 %v4748
        %v4798 = vunpack.c.h.b16 %v4748
        %v4799 = vunpack.c.l.b16 %v4749
        %v4800 = vunpack.c.h.b16 %v4749
        %v4801 = vunpack.c.l.b16 %v4750
        %v4802 = vunpack.c.h.b16 %v4750
        %v4803 = vunpack.c.l.b16 %v4751
        %v4804 = vunpack.c.h.b16 %v4751
        %v4805 = vunpack.c.l.b16 %v4752
        %v4806 = vunpack.c.h.b16 %v4752
        %v4807 = vunpack.c.l.b16 %v4753
        %v4808 = vunpack.c.h.b16 %v4753
        %v4809 = vunpack.c.l.b16 %v4754
        %v4810 = vunpack.c.h.b16 %v4754
        %v4811 = vunpack.c.l.b16 %v4755
        %v4812 = vunpack.c.h.b16 %v4755
        %v4813 = vpack.c.b16 %v4793, %v4791
        %v4814 = vpack.c.b16 %v4794, %v4792
        %v4815 = vpack.c.b16 %v4797, %v4795
        %v4816 = vpack.c.b16 %v4798, %v4796
        %v4817 = vpack.c.b16 %v4801, %v4799
        %v4818 = vpack.c.b16 %v4802, %v4800
        %v4819 = vpack.c.b16 %v4805, %v4803
        %v4820 = vpack.c.b16 %v4806, %v4804
        %v4821 = vpack.c.b16 %v4809, %v4807
        %v4822 = vpack.c.b16 %v4810, %v4808
        %v4823 = vpack.c.b16 %v4811, %v4811
        %v4824 = vpack.c.b16 %v4812, %v4812
        %v4836 = vsel %vm4464, %v4767, 0
        %v4839 = vsel %vm4464, %v4769, 0
        %v4842 = vsel %vm4464, %v4771, 0
        %v4845 = vsel %vm4464, %v4773, 0
        %v4848 = vsel %vm4464, %v4775, 0
        %v4851 = vsel %vm4464, %v4777, 0
        %v4854 = vsel %vm4464, %v4779, 0
        %v4857 = vsel %vm4486, %v4823, 0
        %v4860 = vsel %vm4486, %v4824, 0
        %4862 = vmatpush.bf16.msra.mxu0 0
        %4863 = vmatpush.bf16.msra.mxu0 0
        %4864 = vmatpush.bf16.msra.mxu0 %v4857
        %4865 = vmatpush.bf16.msra.mxu0 %v4821
        %4866 = vmatpush.bf16.msra.mxu0 %v4819
        %4867 = vmatpush.bf16.msra.mxu0 %v4817
        %4868 = vmatpush.bf16.msra.mxu0 %v4815
        %4869 = vmatpush.bf16.msra.mxu0 %v4813
        %4870 = vmatmul.bf16.gmra.mxu0 %v4836
        %v4871 = vpop.f32.mrf.mxu0
        %v4872 = vadd.f32 0.0, %v4871
        %v4873 = vpop.f32.mrf.mxu0
        %v4874 = vadd.f32 0.0, %v4873
        %4875 = vmatmul.bf16.gmra.mxu0 %v4839
        %v4876 = vpop.f32.mrf.mxu0
        %v4877 = vadd.f32 0.0, %v4876
        %v4878 = vpop.f32.mrf.mxu0
        %v4879 = vadd.f32 0.0, %v4878
        %4880 = vmatmul.bf16.gmra.mxu0 %v4842
        %v4881 = vpop.f32.mrf.mxu0
        %v4882 = vadd.f32 0.0, %v4881
        %v4883 = vpop.f32.mrf.mxu0
        %v4884 = vadd.f32 0.0, %v4883
        %4885 = vmatmul.bf16.gmra.mxu0 %v4845
        %v4886 = vpop.f32.mrf.mxu0
        %v4887 = vadd.f32 0.0, %v4886
        %v4888 = vpop.f32.mrf.mxu0
        %v4889 = vadd.f32 0.0, %v4888
        %4890 = vmatmul.bf16.gmra.mxu0 %v4848
        %v4891 = vpop.f32.mrf.mxu0
        %v4892 = vadd.f32 0.0, %v4891
        %v4893 = vpop.f32.mrf.mxu0
        %v4894 = vadd.f32 0.0, %v4893
        %4895 = vmatmul.bf16.gmra.mxu0 %v4851
        %v4896 = vpop.f32.mrf.mxu0
        %v4897 = vadd.f32 0.0, %v4896
        %v4898 = vpop.f32.mrf.mxu0
        %v4899 = vadd.f32 0.0, %v4898
        %4900 = vmatmul.bf16.gmra.mxu0 %v4854
        %v4901 = vpop.f32.mrf.mxu0
        %v4902 = vadd.f32 0.0, %v4901
        %v4903 = vpop.f32.mrf.mxu0
        %v4904 = vadd.f32 0.0, %v4903
        %4905 = vdwg.mxu0
        %4906 = vmatpush.bf16.msra.mxu0 0
        %4907 = vmatpush.bf16.msra.mxu0 0
        %4908 = vmatpush.bf16.msra.mxu0 %v4860
        %4909 = vmatpush.bf16.msra.mxu0 %v4822
        %4910 = vmatpush.bf16.msra.mxu0 %v4820
        %4911 = vmatpush.bf16.msra.mxu0 %v4818
        %4912 = vmatpush.bf16.msra.mxu0 %v4816
        %4913 = vmatpush.bf16.msra.mxu0 %v4814
        %4914 = vmatmul.bf16.gmra.mxu0 %v4836
        %v4915 = vpop.f32.mrf.mxu0
        %v4916 = vadd.f32 0.0, %v4915
        %v4917 = vpop.f32.mrf.mxu0
        %v4918 = vadd.f32 0.0, %v4917
        %4919 = vmatmul.bf16.gmra.mxu0 %v4839
        %v4920 = vpop.f32.mrf.mxu0
        %v4921 = vadd.f32 0.0, %v4920
        %v4922 = vpop.f32.mrf.mxu0
        %v4923 = vadd.f32 0.0, %v4922
        %4924 = vmatmul.bf16.gmra.mxu0 %v4842
        %v4925 = vpop.f32.mrf.mxu0
        %v4926 = vadd.f32 0.0, %v4925
        %v4927 = vpop.f32.mrf.mxu0
        %v4928 = vadd.f32 0.0, %v4927
        %4929 = vmatmul.bf16.gmra.mxu0 %v4845
        %v4930 = vpop.f32.mrf.mxu0
        %v4931 = vadd.f32 0.0, %v4930
        %v4932 = vpop.f32.mrf.mxu0
        %v4933 = vadd.f32 0.0, %v4932
        %4934 = vmatmul.bf16.gmra.mxu0 %v4848
        %v4935 = vpop.f32.mrf.mxu0
        %v4936 = vadd.f32 0.0, %v4935
        %v4937 = vpop.f32.mrf.mxu0
        %v4938 = vadd.f32 0.0, %v4937
        %4939 = vmatmul.bf16.gmra.mxu0 %v4851
        %v4940 = vpop.f32.mrf.mxu0
        %v4941 = vadd.f32 0.0, %v4940
        %v4942 = vpop.f32.mrf.mxu0
        %v4943 = vadd.f32 0.0, %v4942
        %4944 = vmatmul.bf16.gmra.mxu0 %v4854
        %v4945 = vpop.f32.mrf.mxu0
        %v4946 = vadd.f32 0.0, %v4945
        %v4947 = vpop.f32.mrf.mxu0
        %v4948 = vadd.f32 0.0, %v4947
        %4949 = vdwg.mxu0
        %v4950 = vadd.f32 %v4666, %v4872
        %v4951 = vadd.f32 %v4710, %v4916
        %v4952 = vadd.f32 %v4668, %v4874
        %v4953 = vadd.f32 %v4712, %v4918
        %v4954 = vadd.f32 %v4671, %v4877
        %v4955 = vadd.f32 %v4715, %v4921
        %v4956 = vadd.f32 %v4673, %v4879
        %v4957 = vadd.f32 %v4717, %v4923
        %v4958 = vadd.f32 %v4676, %v4882
        %v4959 = vadd.f32 %v4720, %v4926
        %v4960 = vadd.f32 %v4678, %v4884
        %v4961 = vadd.f32 %v4722, %v4928
        %v4962 = vadd.f32 %v4681, %v4887
        %v4963 = vadd.f32 %v4725, %v4931
        %v4964 = vadd.f32 %v4683, %v4889
        %v4965 = vadd.f32 %v4727, %v4933
        %v4966 = vadd.f32 %v4686, %v4892
        %v4967 = vadd.f32 %v4730, %v4936
        %v4968 = vadd.f32 %v4688, %v4894
        %v4969 = vadd.f32 %v4732, %v4938
        %v4970 = vadd.f32 %v4691, %v4897
        %v4971 = vadd.f32 %v4735, %v4941
        %v4972 = vadd.f32 %v4693, %v4899
        %v4973 = vadd.f32 %v4737, %v4943
        %v4974 = vadd.f32 %v4696, %v4902
        %v4975 = vadd.f32 %v4740, %v4946
        %v4976 = vadd.f32 %v4698, %v4904
        %v4977 = vadd.f32 %v4742, %v4948
        %s4978 = scalar_lea.vmem %s6, 264
        %v4979 = vld [vmem:[%s4978] sm:$0xff]
        %v4980 = vld [vmem:[%s4978 + $0x8] sm:$0xff]
        %v4981 = vld [vmem:[%s4978 + $0x10] sm:$0xff]
        %v4982 = vld [vmem:[%s4978 + $0x18] sm:$0xff]
        %v4983 = vld [vmem:[%s4978 + $0x20] sm:$0xff]
        %v4984 = vld [vmem:[%s4978 + $0x28] sm:$0xff]
        %v4985 = vld [vmem:[%s4978 + $0x30] sm:$0xff]
        %v4986 = vld [vmem:[%s4978 + $0x38] sm:$0xff]
        %v4987 = vld [vmem:[%s4978 + $0x40] sm:$0xff]
        %v4988 = vld [vmem:[%s4978 + $0x48] sm:$0xff]
        %v4989 = vld [vmem:[%s4978 + $0x50] sm:$0x33]
        %vm4990 = vsmask.f32 6400
        %v4991 = vrot.slane %v4350, 1
        %v4992 = vrot.slane %v4352, 2
        %v4993 = vor.u32 %v4991, %v4992
        %v4994 = vrot.slane %v4361, 1
        %v4995 = vrot.slane %v4357, 2
        %v4996 = vor.u32 %v4994, %v4995
        %v4997 = vsel %vm4990, %v4993, %v4996
        %v4998 = vrot.slane %v4369, 1
        %v4999 = vrot.slane %v4365, 2
        %v5000 = vor.u32 %v4998, %v4999
        %v5001 = vsel %vm4990, %v4996, %v5000
        %v5002 = vrot.slane %v4377, 1
        %v5003 = vrot.slane %v4373, 2
        %v5004 = vor.u32 %v5002, %v5003
        %v5005 = vsel %vm4990, %v5000, %v5004
        %v5006 = vrot.slane %v4385, 1
        %v5007 = vrot.slane %v4381, 2
        %v5008 = vor.u32 %v5006, %v5007
        %v5009 = vsel %vm4990, %v5004, %v5008
        %v5010 = vrot.slane %v4393, 1
        %v5011 = vrot.slane %v4389, 2
        %v5012 = vor.u32 %v5010, %v5011
        %v5013 = vsel %vm4990, %v5008, %v5012
        %v5014 = vrot.slane %v4401, 1
        %v5015 = vrot.slane %v4397, 2
        %v5016 = vor.u32 %v5014, %v5015
        %v5017 = vsel %vm4990, %v5012, %v5016
        %v5018 = vshrl.u32 %v4335, 16
        %v5020 = vrot.slane %v5018, 1
        %v5021 = vrot.slane %v4405, 2
        %v5022 = vor.u32 %v5020, %v5021
        %v5023 = vsel %vm4990, %v5016, %v5022
        %v5035 = vunpack.c.l.b16 %v4979
        %v5036 = vunpack.c.h.b16 %v4979
        %v5037 = vunpack.c.l.b16 %v4980
        %v5038 = vunpack.c.h.b16 %v4980
        %v5039 = vunpack.c.l.b16 %v4981
        %v5040 = vunpack.c.h.b16 %v4981
        %v5041 = vunpack.c.l.b16 %v4982
        %v5042 = vunpack.c.h.b16 %v4982
        %v5043 = vunpack.c.l.b16 %v4983
        %v5044 = vunpack.c.h.b16 %v4983
        %v5045 = vunpack.c.l.b16 %v4984
        %v5046 = vunpack.c.h.b16 %v4984
        %v5047 = vunpack.c.l.b16 %v4985
        %v5048 = vunpack.c.h.b16 %v4985
        %v5049 = vunpack.c.l.b16 %v4986
        %v5050 = vunpack.c.h.b16 %v4986
        %v5051 = vunpack.c.l.b16 %v4987
        %v5052 = vunpack.c.h.b16 %v4987
        %v5053 = vunpack.c.l.b16 %v4988
        %v5054 = vunpack.c.h.b16 %v4988
        %v5055 = vunpack.c.l.b16 %v4989
        %v5056 = vunpack.c.h.b16 %v4989
        %v5057 = vpack.c.b16 %v5037, %v5035
        %v5058 = vpack.c.b16 %v5038, %v5036
        %v5059 = vpack.c.b16 %v5041, %v5039
        %v5060 = vpack.c.b16 %v5042, %v5040
        %v5061 = vpack.c.b16 %v5045, %v5043
        %v5062 = vpack.c.b16 %v5046, %v5044
        %v5063 = vpack.c.b16 %v5049, %v5047
        %v5064 = vpack.c.b16 %v5050, %v5048
        %v5065 = vpack.c.b16 %v5053, %v5051
        %v5066 = vpack.c.b16 %v5054, %v5052
        %v5067 = vpack.c.b16 %v5055, %v5055
        %v5068 = vpack.c.b16 %v5056, %v5056
        %v5080 = vsel %vm4464, %v4997, 0
        %v5083 = vsel %vm4464, %v5001, 0
        %v5086 = vsel %vm4464, %v5005, 0
        %v5089 = vsel %vm4464, %v5009, 0
        %v5092 = vsel %vm4464, %v5013, 0
        %v5095 = vsel %vm4464, %v5017, 0
        %v5098 = vsel %vm4464, %v5023, 0
        %v5101 = vsel %vm4486, %v5067, 0
        %v5104 = vsel %vm4486, %v5068, 0
        %5106 = vmatpush.bf16.msra.mxu0 0
        %5107 = vmatpush.bf16.msra.mxu0 0
        %5108 = vmatpush.bf16.msra.mxu0 %v5101
        %5109 = vmatpush.bf16.msra.mxu0 %v5065
        %5110 = vmatpush.bf16.msra.mxu0 %v5063
        %5111 = vmatpush.bf16.msra.mxu0 %v5061
        %5112 = vmatpush.bf16.msra.mxu0 %v5059
        %5113 = vmatpush.bf16.msra.mxu0 %v5057
        %5114 = vmatmul.bf16.gmra.mxu0 %v5080
        %v5115 = vpop.f32.mrf.mxu0
        %v5116 = vadd.f32 0.0, %v5115
        %v5117 = vpop.f32.mrf.mxu0
        %v5118 = vadd.f32 0.0, %v5117
        %5119 = vmatmul.bf16.gmra.mxu0 %v5083
        %v5120 = vpop.f32.mrf.mxu0
        %v5121 = vadd.f32 0.0, %v5120
        %v5122 = vpop.f32.mrf.mxu0
        %v5123 = vadd.f32 0.0, %v5122
        %5124 = vmatmul.bf16.gmra.mxu0 %v5086
        %v5125 = vpop.f32.mrf.mxu0
        %v5126 = vadd.f32 0.0, %v5125
        %v5127 = vpop.f32.mrf.mxu0
        %v5128 = vadd.f32 0.0, %v5127
        %5129 = vmatmul.bf16.gmra.mxu0 %v5089
        %v5130 = vpop.f32.mrf.mxu0
        %v5131 = vadd.f32 0.0, %v5130
        %v5132 = vpop.f32.mrf.mxu0
        %v5133 = vadd.f32 0.0, %v5132
        %5134 = vmatmul.bf16.gmra.mxu0 %v5092
        %v5135 = vpop.f32.mrf.mxu0
        %v5136 = vadd.f32 0.0, %v5135
        %v5137 = vpop.f32.mrf.mxu0
        %v5138 = vadd.f32 0.0, %v5137
        %5139 = vmatmul.bf16.gmra.mxu0 %v5095
        %v5140 = vpop.f32.mrf.mxu0
        %v5141 = vadd.f32 0.0, %v5140
        %v5142 = vpop.f32.mrf.mxu0
        %v5143 = vadd.f32 0.0, %v5142
        %5144 = vmatmul.bf16.gmra.mxu0 %v5098
        %v5145 = vpop.f32.mrf.mxu0
        %v5146 = vadd.f32 0.0, %v5145
        %v5147 = vpop.f32.mrf.mxu0
        %v5148 = vadd.f32 0.0, %v5147
        %5149 = vdwg.mxu0
        %5150 = vmatpush.bf16.msra.mxu0 0
        %5151 = vmatpush.bf16.msra.mxu0 0
        %5152 = vmatpush.bf16.msra.mxu0 %v5104
        %5153 = vmatpush.bf16.msra.mxu0 %v5066
        %5154 = vmatpush.bf16.msra.mxu0 %v5064
        %5155 = vmatpush.bf16.msra.mxu0 %v5062
        %5156 = vmatpush.bf16.msra.mxu0 %v5060
        %5157 = vmatpush.bf16.msra.mxu0 %v5058
        %5158 = vmatmul.bf16.gmra.mxu0 %v5080
        %v5159 = vpop.f32.mrf.mxu0
        %v5160 = vadd.f32 0.0, %v5159
        %v5161 = vpop.f32.mrf.mxu0
        %v5162 = vadd.f32 0.0, %v5161
        %5163 = vmatmul.bf16.gmra.mxu0 %v5083
        %v5164 = vpop.f32.mrf.mxu0
        %v5165 = vadd.f32 0.0, %v5164
        %v5166 = vpop.f32.mrf.mxu0
        %v5167 = vadd.f32 0.0, %v5166
        %5168 = vmatmul.bf16.gmra.mxu0 %v5086
        %v5169 = vpop.f32.mrf.mxu0
        %v5170 = vadd.f32 0.0, %v5169
        %v5171 = vpop.f32.mrf.mxu0
        %v5172 = vadd.f32 0.0, %v5171
        %5173 = vmatmul.bf16.gmra.mxu0 %v5089
        %v5174 = vpop.f32.mrf.mxu0
        %v5175 = vadd.f32 0.0, %v5174
        %v5176 = vpop.f32.mrf.mxu0
        %v5177 = vadd.f32 0.0, %v5176
        %5178 = vmatmul.bf16.gmra.mxu0 %v5092
        %v5179 = vpop.f32.mrf.mxu0
        %v5180 = vadd.f32 0.0, %v5179
        %v5181 = vpop.f32.mrf.mxu0
        %v5182 = vadd.f32 0.0, %v5181
        %5183 = vmatmul.bf16.gmra.mxu0 %v5095
        %v5184 = vpop.f32.mrf.mxu0
        %v5185 = vadd.f32 0.0, %v5184
        %v5186 = vpop.f32.mrf.mxu0
        %v5187 = vadd.f32 0.0, %v5186
        %5188 = vmatmul.bf16.gmra.mxu0 %v5098
        %v5189 = vpop.f32.mrf.mxu0
        %v5190 = vadd.f32 0.0, %v5189
        %v5191 = vpop.f32.mrf.mxu0
        %v5192 = vadd.f32 0.0, %v5191
        %5193 = vdwg.mxu0
        %v5194 = vadd.f32 %v4950, %v5116
        %v5195 = vadd.f32 %v4951, %v5160
        %v5196 = vadd.f32 %v4952, %v5118
        %v5197 = vadd.f32 %v4953, %v5162
        %v5198 = vadd.f32 %v4954, %v5121
        %v5199 = vadd.f32 %v4955, %v5165
        %v5200 = vadd.f32 %v4956, %v5123
        %v5201 = vadd.f32 %v4957, %v5167
        %v5202 = vadd.f32 %v4958, %v5126
        %v5203 = vadd.f32 %v4959, %v5170
        %v5204 = vadd.f32 %v4960, %v5128
        %v5205 = vadd.f32 %v4961, %v5172
        %v5206 = vadd.f32 %v4962, %v5131
        %v5207 = vadd.f32 %v4963, %v5175
        %v5208 = vadd.f32 %v4964, %v5133
        %v5209 = vadd.f32 %v4965, %v5177
        %v5210 = vadd.f32 %v4966, %v5136
        %v5211 = vadd.f32 %v4967, %v5180
        %v5212 = vadd.f32 %v4968, %v5138
        %v5213 = vadd.f32 %v4969, %v5182
        %v5214 = vadd.f32 %v4970, %v5141
        %v5215 = vadd.f32 %v4971, %v5185
        %v5216 = vadd.f32 %v4972, %v5143
        %v5217 = vadd.f32 %v4973, %v5187
        %v5218 = vadd.f32 %v4974, %v5146
        %v5219 = vadd.f32 %v4975, %v5190
        %v5220 = vadd.f32 %v4976, %v5148
        %v5221 = vadd.f32 %v4977, %v5192
        %s5222 = scalar_lea.vmem %s6, 352
        %v5223 = vld [vmem:[%s5222] sm:$0xff]
        %v5224 = vld [vmem:[%s5222 + $0x8] sm:$0xff]
        %v5225 = vld [vmem:[%s5222 + $0x10] sm:$0xff]
        %v5226 = vld [vmem:[%s5222 + $0x18] sm:$0xff]
        %v5227 = vld [vmem:[%s5222 + $0x20] sm:$0xff]
        %v5228 = vld [vmem:[%s5222 + $0x28] sm:$0xff]
        %v5229 = vld [vmem:[%s5222 + $0x30] sm:$0xff]
        %v5230 = vld [vmem:[%s5222 + $0x38] sm:$0xff]
        %v5231 = vld [vmem:[%s5222 + $0x40] sm:$0xff]
        %v5232 = vld [vmem:[%s5222 + $0x48] sm:$0xff]
        %v5233 = vld [vmem:[%s5222 + $0x50] sm:$0x33]
        %vm5234 = vcmask 1045504
        %v5235 = vrot.slane %v4317, 2
        %v5236 = vrot.slane %v4318, 2
        %v5237 = vsel %vm5234, %v5235, %v5236
        %v5238 = vrot.slane %v4319, 2
        %v5239 = vsel %vm5234, %v5236, %v5238
        %v5240 = vrot.slane %v4320, 2
        %v5241 = vsel %vm5234, %v5238, %v5240
        %v5242 = vrot.slane %v4321, 2
        %v5243 = vsel %vm5234, %v5240, %v5242
        %v5244 = vrot.slane %v4322, 2
        %v5245 = vsel %vm5234, %v5242, %v5244
        %v5246 = vrot.slane %v4323, 2
        %v5247 = vsel %vm5234, %v5244, %v5246
        %v5248 = vrot.slane %v4335, 2
        %v5249 = vsel %vm5234, %v5246, %v5248
        %v5261 = vunpack.c.l.b16 %v5223
        %v5262 = vunpack.c.h.b16 %v5223
        %v5263 = vunpack.c.l.b16 %v5224
        %v5264 = vunpack.c.h.b16 %v5224
        %v5265 = vunpack.c.l.b16 %v5225
        %v5266 = vunpack.c.h.b16 %v5225
        %v5267 = vunpack.c.l.b16 %v5226
        %v5268 = vunpack.c.h.b16 %v5226
        %v5269 = vunpack.c.l.b16 %v5227
        %v5270 = vunpack.c.h.b16 %v5227
        %v5271 = vunpack.c.l.b16 %v5228
        %v5272 = vunpack.c.h.b16 %v5228
        %v5273 = vunpack.c.l.b16 %v5229
        %v5274 = vunpack.c.h.b16 %v5229
        %v5275 = vunpack.c.l.b16 %v5230
        %v5276 = vunpack.c.h.b16 %v5230
        %v5277 = vunpack.c.l.b16 %v5231
        %v5278 = vunpack.c.h.b16 %v5231
        %v5279 = vunpack.c.l.b16 %v5232
        %v5280 = vunpack.c.h.b16 %v5232
        %v5281 = vunpack.c.l.b16 %v5233
        %v5282 = vunpack.c.h.b16 %v5233
        %v5283 = vpack.c.b16 %v5263, %v5261
        %v5284 = vpack.c.b16 %v5264, %v5262
        %v5285 = vpack.c.b16 %v5267, %v5265
        %v5286 = vpack.c.b16 %v5268, %v5266
        %v5287 = vpack.c.b16 %v5271, %v5269
        %v5288 = vpack.c.b16 %v5272, %v5270
        %v5289 = vpack.c.b16 %v5275, %v5273
        %v5290 = vpack.c.b16 %v5276, %v5274
        %v5291 = vpack.c.b16 %v5279, %v5277
        %v5292 = vpack.c.b16 %v5280, %v5278
        %v5293 = vpack.c.b16 %v5281, %v5281
        %v5294 = vpack.c.b16 %v5282, %v5282
        %v5306 = vsel %vm4464, %v5237, 0
        %v5309 = vsel %vm4464, %v5239, 0
        %v5312 = vsel %vm4464, %v5241, 0
        %v5315 = vsel %vm4464, %v5243, 0
        %v5318 = vsel %vm4464, %v5245, 0
        %v5321 = vsel %vm4464, %v5247, 0
        %v5324 = vsel %vm4464, %v5249, 0
        %v5327 = vsel %vm4486, %v5293, 0
        %v5330 = vsel %vm4486, %v5294, 0
        %5332 = vmatpush.bf16.msra.mxu0 0
        %5333 = vmatpush.bf16.msra.mxu0 0
        %5334 = vmatpush.bf16.msra.mxu0 %v5327
        %5335 = vmatpush.bf16.msra.mxu0 %v5291
        %5336 = vmatpush.bf16.msra.mxu0 %v5289
        %5337 = vmatpush.bf16.msra.mxu0 %v5287
        %5338 = vmatpush.bf16.msra.mxu0 %v5285
        %5339 = vmatpush.bf16.msra.mxu0 %v5283
        %5340 = vmatmul.bf16.gmra.mxu0 %v5306
        %v5341 = vpop.f32.mrf.mxu0
        %v5342 = vadd.f32 0.0, %v5341
        %v5343 = vpop.f32.mrf.mxu0
        %v5344 = vadd.f32 0.0, %v5343
        %5345 = vmatmul.bf16.gmra.mxu0 %v5309
        %v5346 = vpop.f32.mrf.mxu0
        %v5347 = vadd.f32 0.0, %v5346
        %v5348 = vpop.f32.mrf.mxu0
        %v5349 = vadd.f32 0.0, %v5348
        %5350 = vmatmul.bf16.gmra.mxu0 %v5312
        %v5351 = vpop.f32.mrf.mxu0
        %v5352 = vadd.f32 0.0, %v5351
        %v5353 = vpop.f32.mrf.mxu0
        %v5354 = vadd.f32 0.0, %v5353
        %5355 = vmatmul.bf16.gmra.mxu0 %v5315
        %v5356 = vpop.f32.mrf.mxu0
        %v5357 = vadd.f32 0.0, %v5356
        %v5358 = vpop.f32.mrf.mxu0
        %v5359 = vadd.f32 0.0, %v5358
        %5360 = vmatmul.bf16.gmra.mxu0 %v5318
        %v5361 = vpop.f32.mrf.mxu0
        %v5362 = vadd.f32 0.0, %v5361
        %v5363 = vpop.f32.mrf.mxu0
        %v5364 = vadd.f32 0.0, %v5363
        %5365 = vmatmul.bf16.gmra.mxu0 %v5321
        %v5366 = vpop.f32.mrf.mxu0
        %v5367 = vadd.f32 0.0, %v5366
        %v5368 = vpop.f32.mrf.mxu0
        %v5369 = vadd.f32 0.0, %v5368
        %5370 = vmatmul.bf16.gmra.mxu0 %v5324
        %v5371 = vpop.f32.mrf.mxu0
        %v5372 = vadd.f32 0.0, %v5371
        %v5373 = vpop.f32.mrf.mxu0
        %v5374 = vadd.f32 0.0, %v5373
        %5375 = vdwg.mxu0
        %5376 = vmatpush.bf16.msra.mxu0 0
        %5377 = vmatpush.bf16.msra.mxu0 0
        %5378 = vmatpush.bf16.msra.mxu0 %v5330
        %5379 = vmatpush.bf16.msra.mxu0 %v5292
        %5380 = vmatpush.bf16.msra.mxu0 %v5290
        %5381 = vmatpush.bf16.msra.mxu0 %v5288
        %5382 = vmatpush.bf16.msra.mxu0 %v5286
        %5383 = vmatpush.bf16.msra.mxu0 %v5284
        %5384 = vmatmul.bf16.gmra.mxu0 %v5306
        %v5385 = vpop.f32.mrf.mxu0
        %v5386 = vadd.f32 0.0, %v5385
        %v5387 = vpop.f32.mrf.mxu0
        %v5388 = vadd.f32 0.0, %v5387
        %5389 = vmatmul.bf16.gmra.mxu0 %v5309
        %v5390 = vpop.f32.mrf.mxu0
        %v5391 = vadd.f32 0.0, %v5390
        %v5392 = vpop.f32.mrf.mxu0
        %v5393 = vadd.f32 0.0, %v5392
        %5394 = vmatmul.bf16.gmra.mxu0 %v5312
        %v5395 = vpop.f32.mrf.mxu0
        %v5396 = vadd.f32 0.0, %v5395
        %v5397 = vpop.f32.mrf.mxu0
        %v5398 = vadd.f32 0.0, %v5397
        %5399 = vmatmul.bf16.gmra.mxu0 %v5315
        %v5400 = vpop.f32.mrf.mxu0
        %v5401 = vadd.f32 0.0, %v5400
        %v5402 = vpop.f32.mrf.mxu0
        %v5403 = vadd.f32 0.0, %v5402
        %5404 = vmatmul.bf16.gmra.mxu0 %v5318
        %v5405 = vpop.f32.mrf.mxu0
        %v5406 = vadd.f32 0.0, %v5405
        %v5407 = vpop.f32.mrf.mxu0
        %v5408 = vadd.f32 0.0, %v5407
        %5409 = vmatmul.bf16.gmra.mxu0 %v5321
        %v5410 = vpop.f32.mrf.mxu0
        %v5411 = vadd.f32 0.0, %v5410
        %v5412 = vpop.f32.mrf.mxu0
        %v5413 = vadd.f32 0.0, %v5412
        %5414 = vmatmul.bf16.gmra.mxu0 %v5324
        %v5415 = vpop.f32.mrf.mxu0
        %v5416 = vadd.f32 0.0, %v5415
        %v5417 = vpop.f32.mrf.mxu0
        %v5418 = vadd.f32 0.0, %v5417
        %5419 = vdwg.mxu0
        %v5420 = vadd.f32 %v5194, %v5342
        %v5421 = vadd.f32 %v5195, %v5386
        %v5422 = vadd.f32 %v5196, %v5344
        %v5423 = vadd.f32 %v5197, %v5388
        %v5424 = vadd.f32 %v5198, %v5347
        %v5425 = vadd.f32 %v5199, %v5391
        %v5426 = vadd.f32 %v5200, %v5349
        %v5427 = vadd.f32 %v5201, %v5393
        %v5428 = vadd.f32 %v5202, %v5352
        %v5429 = vadd.f32 %v5203, %v5396
        %v5430 = vadd.f32 %v5204, %v5354
        %v5431 = vadd.f32 %v5205, %v5398
        %v5432 = vadd.f32 %v5206, %v5357
        %v5433 = vadd.f32 %v5207, %v5401
        %v5434 = vadd.f32 %v5208, %v5359
        %v5435 = vadd.f32 %v5209, %v5403
        %v5436 = vadd.f32 %v5210, %v5362
        %v5437 = vadd.f32 %v5211, %v5406
        %v5438 = vadd.f32 %v5212, %v5364
        %v5439 = vadd.f32 %v5213, %v5408
        %v5440 = vadd.f32 %v5214, %v5367
        %v5441 = vadd.f32 %v5215, %v5411
        %v5442 = vadd.f32 %v5216, %v5369
        %v5443 = vadd.f32 %v5217, %v5413
        %v5444 = vadd.f32 %v5218, %v5372
        %v5445 = vadd.f32 %v5219, %v5416
        %v5446 = vadd.f32 %v5220, %v5374
        %v5447 = vadd.f32 %v5221, %v5418
        %v5448 = vld [vmem:[%s7] sm:$0x3]
        %v5450 = vperm.slane %v5448, 0
        %v5451 = vperm.slane %v5448, 1
        %v5454 = vadd.f32 %v5420, %v5450
        %v5455 = vadd.f32 %v5421, %v5451
        %v5456 = vadd.f32 %v5422, %v5450
        %v5457 = vadd.f32 %v5423, %v5451
        %v5458 = vadd.f32 %v5424, %v5450
        %v5459 = vadd.f32 %v5425, %v5451
        %v5460 = vadd.f32 %v5426, %v5450
        %v5461 = vadd.f32 %v5427, %v5451
        %v5462 = vadd.f32 %v5428, %v5450
        %v5463 = vadd.f32 %v5429, %v5451
        %v5464 = vadd.f32 %v5430, %v5450
        %v5465 = vadd.f32 %v5431, %v5451
        %v5466 = vadd.f32 %v5432, %v5450
        %v5467 = vadd.f32 %v5433, %v5451
        %v5468 = vadd.f32 %v5434, %v5450
        %v5469 = vadd.f32 %v5435, %v5451
        %v5470 = vadd.f32 %v5436, %v5450
        %v5471 = vadd.f32 %v5437, %v5451
        %v5472 = vadd.f32 %v5438, %v5450
        %v5473 = vadd.f32 %v5439, %v5451
        %v5474 = vadd.f32 %v5440, %v5450
        %v5475 = vadd.f32 %v5441, %v5451
        %v5476 = vadd.f32 %v5442, %v5450
        %v5477 = vadd.f32 %v5443, %v5451
        %v5478 = vadd.f32 %v5444, %v5450
        %v5479 = vadd.f32 %v5445, %v5451
        %v5480 = vadd.f32 %v5446, %v5450
        %v5481 = vadd.f32 %v5447, %v5451
        %v5482 = vtanh.pop %v5454
        %v5483 = vtanh.pop %v5455
        %v5484 = vtanh.pop %v5456
        %v5485 = vtanh.pop %v5457
        %v5486 = vtanh.pop %v5458
        %v5487 = vtanh.pop %v5459
        %v5488 = vtanh.pop %v5460
        %v5489 = vtanh.pop %v5461
        %v5490 = vtanh.pop %v5462
        %v5491 = vtanh.pop %v5463
        %v5492 = vtanh.pop %v5464
        %v5493 = vtanh.pop %v5465
        %v5494 = vtanh.pop %v5466
        %v5495 = vtanh.pop %v5467
        %v5496 = vtanh.pop %v5468
        %v5497 = vtanh.pop %v5469
        %v5498 = vtanh.pop %v5470
        %v5499 = vtanh.pop %v5471
        %v5500 = vtanh.pop %v5472
        %v5501 = vtanh.pop %v5473
        %v5502 = vtanh.pop %v5474
        %v5503 = vtanh.pop %v5475
        %v5504 = vtanh.pop %v5476
        %v5505 = vtanh.pop %v5477
        %v5506 = vtanh.pop %v5478
        %v5507 = vtanh.pop %v5479
        %v5508 = vtanh.pop %v5480
        %v5509 = vtanh.pop %v5481
        %v5510 = vpack.c.bf16 %v5484, %v5482
        %v5511 = vpack.c.bf16 %v5485, %v5483
        %v5512 = vpack.c.bf16 %v5488, %v5486
        %v5513 = vpack.c.bf16 %v5489, %v5487
        %v5514 = vpack.c.bf16 %v5492, %v5490
        %v5515 = vpack.c.bf16 %v5493, %v5491
        %v5516 = vpack.c.bf16 %v5496, %v5494
        %v5517 = vpack.c.bf16 %v5497, %v5495
        %v5518 = vpack.c.bf16 %v5500, %v5498
        %v5519 = vpack.c.bf16 %v5501, %v5499
        %v5520 = vpack.c.bf16 %v5504, %v5502
        %v5521 = vpack.c.bf16 %v5505, %v5503
        %v5522 = vpack.c.bf16 %v5508, %v5506
        %v5523 = vpack.c.bf16 %v5509, %v5507
        %v5524 = vld [vmem:[%s8] sm:$0xf]
        %v5525 = vld [vmem:[%s8 + $0x4] sm:$0xf]
        %v5526 = vld [vmem:[%s8 + $0x8] sm:$0xf]
        %v5527 = vld [vmem:[%s8 + $0xc] sm:$0xf]
        %v5528 = vld [vmem:[%s8 + $0x10] sm:$0xf]
        %v5529 = vld [vmem:[%s8 + $0x14] sm:$0xf]
        %v5530 = vld [vmem:[%s8 + $0x18] sm:$0xf]
        %v5531 = vld [vmem:[%s8 + $0x1c] sm:$0xf]
        %v5532 = vld [vmem:[%s8 + $0x20] sm:$0xf]
        %v5533 = vld [vmem:[%s8 + $0x24] sm:$0xf]
        %v5534 = vld [vmem:[%s8 + $0x28] sm:$0xf]
        %v5535 = vld [vmem:[%s8 + $0x2c] sm:$0xf]
        %v5536 = vld [vmem:[%s8 + $0x30] sm:$0xf]
        %v5537 = vld [vmem:[%s8 + $0x34] sm:$0xf]
        %v5538 = vld [vmem:[%s8 + $0x38] sm:$0xf]
        %v5539 = vld [vmem:[%s8 + $0x3c] sm:$0xf]
        %v5540 = vld [vmem:[%s8 + $0x40] sm:$0xf]
        %v5541 = vld [vmem:[%s8 + $0x44] sm:$0xf]
        %v5542 = vld [vmem:[%s8 + $0x48] sm:$0xf]
        %v5543 = vld [vmem:[%s8 + $0x4c] sm:$0xf]
        %v5564 = vunpack.c.l.b16 %v5524
        %v5565 = vunpack.c.l.b16 %v5525
        %v5566 = vunpack.c.l.b16 %v5526
        %v5567 = vunpack.c.l.b16 %v5527
        %v5568 = vunpack.c.l.b16 %v5528
        %v5569 = vunpack.c.l.b16 %v5529
        %v5570 = vunpack.c.l.b16 %v5530
        %v5571 = vunpack.c.l.b16 %v5531
        %v5572 = vunpack.c.l.b16 %v5532
        %v5573 = vunpack.c.l.b16 %v5533
        %v5574 = vunpack.c.l.b16 %v5534
        %v5575 = vunpack.c.l.b16 %v5535
        %v5576 = vunpack.c.l.b16 %v5536
        %v5577 = vunpack.c.l.b16 %v5537
        %v5578 = vunpack.c.l.b16 %v5538
        %v5579 = vunpack.c.l.b16 %v5539
        %v5580 = vunpack.c.l.b16 %v5540
        %v5581 = vunpack.c.l.b16 %v5541
        %v5582 = vunpack.c.l.b16 %v5542
        %v5583 = vunpack.c.l.b16 %v5543
        %v5584 = vpack.c.b16 %v5565, %v5564
        %v5585 = vpack.c.b16 %v5567, %v5566
        %v5586 = vpack.c.b16 %v5569, %v5568
        %v5587 = vpack.c.b16 %v5571, %v5570
        %v5588 = vpack.c.b16 %v5573, %v5572
        %v5589 = vpack.c.b16 %v5575, %v5574
        %v5590 = vpack.c.b16 %v5577, %v5576
        %v5591 = vpack.c.b16 %v5579, %v5578
        %v5592 = vpack.c.b16 %v5581, %v5580
        %v5593 = vpack.c.b16 %v5583, %v5582
        %vm5604 = vcmask 261120
        %v5606 = vsel %vm5604, %v5511, 0
        %v5609 = vsel %vm5604, %v5513, 0
        %v5612 = vsel %vm5604, %v5515, 0
        %v5615 = vsel %vm5604, %v5517, 0
        %v5618 = vsel %vm5604, %v5519, 0
        %v5621 = vsel %vm5604, %v5521, 0
        %v5624 = vsel %vm5604, %v5523, 0
        %5626 = vmatpush.bf16.msra.mxu0 %v5591
        %5627 = vmatpush.bf16.msra.mxu0 %v5590
        %5628 = vmatpush.bf16.msra.mxu0 %v5589
        %5629 = vmatpush.bf16.msra.mxu0 %v5588
        %5630 = vmatpush.bf16.msra.mxu0 %v5587
        %5631 = vmatpush.bf16.msra.mxu0 %v5586
        %5632 = vmatpush.bf16.msra.mxu0 %v5585
        %5633 = vmatpush.bf16.msra.mxu0 %v5584
        %5634 = vmatmul.bf16.gmra.mxu0 %v5510
        %v5635 = vpop.f32.mrf.mxu0
        %v5636 = vadd.f32 0.0, %v5635
        %v5637 = vpop.f32.mrf.mxu0
        %v5638 = vadd.f32 0.0, %v5637
        %5639 = vmatmul.bf16.gmra.mxu0 %v5512
        %v5640 = vpop.f32.mrf.mxu0
        %v5641 = vadd.f32 0.0, %v5640
        %v5642 = vpop.f32.mrf.mxu0
        %v5643 = vadd.f32 0.0, %v5642
        %5644 = vmatmul.bf16.gmra.mxu0 %v5514
        %v5645 = vpop.f32.mrf.mxu0
        %v5646 = vadd.f32 0.0, %v5645
        %v5647 = vpop.f32.mrf.mxu0
        %v5648 = vadd.f32 0.0, %v5647
        %5649 = vmatmul.bf16.gmra.mxu0 %v5516
        %v5650 = vpop.f32.mrf.mxu0
        %v5651 = vadd.f32 0.0, %v5650
        %v5652 = vpop.f32.mrf.mxu0
        %v5653 = vadd.f32 0.0, %v5652
        %5654 = vmatmul.bf16.gmra.mxu0 %v5518
        %v5655 = vpop.f32.mrf.mxu0
        %v5656 = vadd.f32 0.0, %v5655
        %v5657 = vpop.f32.mrf.mxu0
        %v5658 = vadd.f32 0.0, %v5657
        %5659 = vmatmul.bf16.gmra.mxu0 %v5520
        %v5660 = vpop.f32.mrf.mxu0
        %v5661 = vadd.f32 0.0, %v5660
        %v5662 = vpop.f32.mrf.mxu0
        %v5663 = vadd.f32 0.0, %v5662
        %5664 = vmatmul.bf16.gmra.mxu0 %v5522
        %v5665 = vpop.f32.mrf.mxu0
        %v5666 = vadd.f32 0.0, %v5665
        %v5667 = vpop.f32.mrf.mxu0
        %v5668 = vadd.f32 0.0, %v5667
        %5669 = vdwg.mxu0
        %5670 = vmatpush.bf16.msra.mxu0 0
        %5671 = vmatpush.bf16.msra.mxu0 0
        %5672 = vmatpush.bf16.msra.mxu0 0
        %5673 = vmatpush.bf16.msra.mxu0 0
        %5674 = vmatpush.bf16.msra.mxu0 0
        %5675 = vmatpush.bf16.msra.mxu0 0
        %5676 = vmatpush.bf16.msra.mxu0 %v5593
        %5677 = vmatpush.bf16.msra.mxu0 %v5592
        %5678 = vmatmul.bf16.gmra.mxu0 %v5606
        %v5679 = vpop.f32.mrf.mxu0
        %v5680 = vadd.f32 %v5636, %v5679
        %v5681 = vpop.f32.mrf.mxu0
        %v5682 = vadd.f32 %v5638, %v5681
        %5683 = vmatmul.bf16.gmra.mxu0 %v5609
        %v5684 = vpop.f32.mrf.mxu0
        %v5685 = vadd.f32 %v5641, %v5684
        %v5686 = vpop.f32.mrf.mxu0
        %v5687 = vadd.f32 %v5643, %v5686
        %5688 = vmatmul.bf16.gmra.mxu0 %v5612
        %v5689 = vpop.f32.mrf.mxu0
        %v5690 = vadd.f32 %v5646, %v5689
        %v5691 = vpop.f32.mrf.mxu0
        %v5692 = vadd.f32 %v5648, %v5691
        %5693 = vmatmul.bf16.gmra.mxu0 %v5615
        %v5694 = vpop.f32.mrf.mxu0
        %v5695 = vadd.f32 %v5651, %v5694
        %v5696 = vpop.f32.mrf.mxu0
        %v5697 = vadd.f32 %v5653, %v5696
        %5698 = vmatmul.bf16.gmra.mxu0 %v5618
        %v5699 = vpop.f32.mrf.mxu0
        %v5700 = vadd.f32 %v5656, %v5699
        %v5701 = vpop.f32.mrf.mxu0
        %v5702 = vadd.f32 %v5658, %v5701
        %5703 = vmatmul.bf16.gmra.mxu0 %v5621
        %v5704 = vpop.f32.mrf.mxu0
        %v5705 = vadd.f32 %v5661, %v5704
        %v5706 = vpop.f32.mrf.mxu0
        %v5707 = vadd.f32 %v5663, %v5706
        %5708 = vmatmul.bf16.gmra.mxu0 %v5624
        %v5709 = vpop.f32.mrf.mxu0
        %v5710 = vadd.f32 %v5666, %v5709
        %v5711 = vpop.f32.mrf.mxu0
        %v5712 = vadd.f32 %v5668, %v5711
        %5713 = vdwg.mxu0
        %v5714 = vld [vmem:[%s9] sm:$0xf]
        %v5715 = vld [vmem:[%s9 + $0x4] sm:$0xf]
        %v5716 = vld [vmem:[%s9 + $0x8] sm:$0xf]
        %v5717 = vld [vmem:[%s9 + $0xc] sm:$0xf]
        %v5718 = vld [vmem:[%s9 + $0x10] sm:$0xf]
        %v5719 = vld [vmem:[%s9 + $0x14] sm:$0xf]
        %v5720 = vld [vmem:[%s9 + $0x18] sm:$0xf]
        %v5721 = vld [vmem:[%s9 + $0x1c] sm:$0xf]
        %v5722 = vld [vmem:[%s9 + $0x20] sm:$0xf]
        %v5723 = vld [vmem:[%s9 + $0x24] sm:$0xf]
        %v5724 = vld [vmem:[%s9 + $0x28] sm:$0xf]
        %v5725 = vld [vmem:[%s9 + $0x2c] sm:$0xf]
        %v5726 = vld [vmem:[%s9 + $0x30] sm:$0xf]
        %v5727 = vld [vmem:[%s9 + $0x34] sm:$0xf]
        %v5728 = vld [vmem:[%s9 + $0x38] sm:$0xf]
        %v5729 = vld [vmem:[%s9 + $0x3c] sm:$0xf]
        %v5730 = vld [vmem:[%s9 + $0x40] sm:$0xf]
        %v5731 = vld [vmem:[%s9 + $0x44] sm:$0xf]
        %v5732 = vld [vmem:[%s9 + $0x48] sm:$0xf]
        %v5733 = vld [vmem:[%s9 + $0x4c] sm:$0xf]
        %v5754 = vunpack.c.l.b16 %v5714
        %v5755 = vunpack.c.l.b16 %v5715
        %v5756 = vunpack.c.l.b16 %v5716
        %v5757 = vunpack.c.l.b16 %v5717
        %v5758 = vunpack.c.l.b16 %v5718
        %v5759 = vunpack.c.l.b16 %v5719
        %v5760 = vunpack.c.l.b16 %v5720
        %v5761 = vunpack.c.l.b16 %v5721
        %v5762 = vunpack.c.l.b16 %v5722
        %v5763 = vunpack.c.l.b16 %v5723
        %v5764 = vunpack.c.l.b16 %v5724
        %v5765 = vunpack.c.l.b16 %v5725
        %v5766 = vunpack.c.l.b16 %v5726
        %v5767 = vunpack.c.l.b16 %v5727
        %v5768 = vunpack.c.l.b16 %v5728
        %v5769 = vunpack.c.l.b16 %v5729
        %v5770 = vunpack.c.l.b16 %v5730
        %v5771 = vunpack.c.l.b16 %v5731
        %v5772 = vunpack.c.l.b16 %v5732
        %v5773 = vunpack.c.l.b16 %v5733
        %v5774 = vpack.c.b16 %v5755, %v5754
        %v5775 = vpack.c.b16 %v5757, %v5756
        %v5776 = vpack.c.b16 %v5759, %v5758
        %v5777 = vpack.c.b16 %v5761, %v5760
        %v5778 = vpack.c.b16 %v5763, %v5762
        %v5779 = vpack.c.b16 %v5765, %v5764
        %v5780 = vpack.c.b16 %v5767, %v5766
        %v5781 = vpack.c.b16 %v5769, %v5768
        %v5782 = vpack.c.b16 %v5771, %v5770
        %v5783 = vpack.c.b16 %v5773, %v5772
        %5794 = vmatpush.bf16.msra.mxu0 %v5781
        %5795 = vmatpush.bf16.msra.mxu0 %v5780
        %5796 = vmatpush.bf16.msra.mxu0 %v5779
        %5797 = vmatpush.bf16.msra.mxu0 %v5778
        %5798 = vmatpush.bf16.msra.mxu0 %v5777
        %5799 = vmatpush.bf16.msra.mxu0 %v5776
        %5800 = vmatpush.bf16.msra.mxu0 %v5775
        %5801 = vmatpush.bf16.msra.mxu0 %v5774
        %5802 = vmatmul.bf16.gmra.mxu0 %v5510
        %v5803 = vpop.f32.mrf.mxu0
        %v5804 = vadd.f32 0.0, %v5803
        %v5805 = vpop.f32.mrf.mxu0
        %v5806 = vadd.f32 0.0, %v5805
        %5807 = vmatmul.bf16.gmra.mxu0 %v5512
        %v5808 = vpop.f32.mrf.mxu0
        %v5809 = vadd.f32 0.0, %v5808
        %v5810 = vpop.f32.mrf.mxu0
        %v5811 = vadd.f32 0.0, %v5810
        %5812 = vmatmul.bf16.gmra.mxu0 %v5514
        %v5813 = vpop.f32.mrf.mxu0
        %v5814 = vadd.f32 0.0, %v5813
        %v5815 = vpop.f32.mrf.mxu0
        %v5816 = vadd.f32 0.0, %v5815
        %5817 = vmatmul.bf16.gmra.mxu0 %v5516
        %v5818 = vpop.f32.mrf.mxu0
        %v5819 = vadd.f32 0.0, %v5818
        %v5820 = vpop.f32.mrf.mxu0
        %v5821 = vadd.f32 0.0, %v5820
        %5822 = vmatmul.bf16.gmra.mxu0 %v5518
        %v5823 = vpop.f32.mrf.mxu0
        %v5824 = vadd.f32 0.0, %v5823
        %v5825 = vpop.f32.mrf.mxu0
        %v5826 = vadd.f32 0.0, %v5825
        %5827 = vmatmul.bf16.gmra.mxu0 %v5520
        %v5828 = vpop.f32.mrf.mxu0
        %v5829 = vadd.f32 0.0, %v5828
        %v5830 = vpop.f32.mrf.mxu0
        %v5831 = vadd.f32 0.0, %v5830
        %5832 = vmatmul.bf16.gmra.mxu0 %v5522
        %v5833 = vpop.f32.mrf.mxu0
        %v5834 = vadd.f32 0.0, %v5833
        %v5835 = vpop.f32.mrf.mxu0
        %v5836 = vadd.f32 0.0, %v5835
        %5837 = vdwg.mxu0
        %5838 = vmatpush.bf16.msra.mxu0 0
        %5839 = vmatpush.bf16.msra.mxu0 0
        %5840 = vmatpush.bf16.msra.mxu0 0
        %5841 = vmatpush.bf16.msra.mxu0 0
        %5842 = vmatpush.bf16.msra.mxu0 0
        %5843 = vmatpush.bf16.msra.mxu0 0
        %5844 = vmatpush.bf16.msra.mxu0 %v5783
        %5845 = vmatpush.bf16.msra.mxu0 %v5782
        %5846 = vmatmul.bf16.gmra.mxu0 %v5606
        %v5847 = vpop.f32.mrf.mxu0
        %v5848 = vadd.f32 %v5804, %v5847
        %v5849 = vpop.f32.mrf.mxu0
        %v5850 = vadd.f32 %v5806, %v5849
        %5851 = vmatmul.bf16.gmra.mxu0 %v5609
        %v5852 = vpop.f32.mrf.mxu0
        %v5853 = vadd.f32 %v5809, %v5852
        %v5854 = vpop.f32.mrf.mxu0
        %v5855 = vadd.f32 %v5811, %v5854
        %5856 = vmatmul.bf16.gmra.mxu0 %v5612
        %v5857 = vpop.f32.mrf.mxu0
        %v5858 = vadd.f32 %v5814, %v5857
        %v5859 = vpop.f32.mrf.mxu0
        %v5860 = vadd.f32 %v5816, %v5859
        %5861 = vmatmul.bf16.gmra.mxu0 %v5615
        %v5862 = vpop.f32.mrf.mxu0
        %v5863 = vadd.f32 %v5819, %v5862
        %v5864 = vpop.f32.mrf.mxu0
        %v5865 = vadd.f32 %v5821, %v5864
        %5866 = vmatmul.bf16.gmra.mxu0 %v5618
        %v5867 = vpop.f32.mrf.mxu0
        %v5868 = vadd.f32 %v5824, %v5867
        %v5869 = vpop.f32.mrf.mxu0
        %v5870 = vadd.f32 %v5826, %v5869
        %5871 = vmatmul.bf16.gmra.mxu0 %v5621
        %v5872 = vpop.f32.mrf.mxu0
        %v5873 = vadd.f32 %v5829, %v5872
        %v5874 = vpop.f32.mrf.mxu0
        %v5875 = vadd.f32 %v5831, %v5874
        %5876 = vmatmul.bf16.gmra.mxu0 %v5624
        %v5877 = vpop.f32.mrf.mxu0
        %v5878 = vadd.f32 %v5834, %v5877
        %v5879 = vpop.f32.mrf.mxu0
        %v5880 = vadd.f32 %v5836, %v5879
        %5881 = vdwg.mxu0
        %v5882 = vmax.f32 %v5680, %v5848
        %v5883 = vmax.f32 %v5682, %v5850
        %v5884 = vmax.f32 %v5685, %v5853
        %v5885 = vmax.f32 %v5687, %v5855
        %v5886 = vmax.f32 %v5690, %v5858
        %v5887 = vmax.f32 %v5692, %v5860
        %v5888 = vmax.f32 %v5695, %v5863
        %v5889 = vmax.f32 %v5697, %v5865
        %v5890 = vmax.f32 %v5700, %v5868
        %v5891 = vmax.f32 %v5702, %v5870
        %v5892 = vmax.f32 %v5705, %v5873
        %v5893 = vmax.f32 %v5707, %v5875
        %v5894 = vmax.f32 %v5710, %v5878
        %v5895 = vmax.f32 %v5712, %v5880
        %v5910 = vrot.slane %v5882, 1
        %v5911 = vrot.slane %v5883, 1
        %v5912 = vsel %vm3962, %v5910, %v5911
        %v5913 = vrot.slane %v5884, 1
        %v5914 = vsel %vm3962, %v5911, %v5913
        %v5915 = vrot.slane %v5885, 1
        %v5916 = vsel %vm3962, %v5913, %v5915
        %v5917 = vrot.slane %v5886, 1
        %v5918 = vsel %vm3962, %v5915, %v5917
        %v5919 = vrot.slane %v5887, 1
        %v5920 = vsel %vm3962, %v5917, %v5919
        %v5921 = vrot.slane %v5888, 1
        %v5922 = vsel %vm3962, %v5919, %v5921
        %v5923 = vrot.slane %v5889, 1
        %v5924 = vsel %vm3962, %v5921, %v5923
        %v5925 = vrot.slane %v5890, 1
        %v5926 = vsel %vm3962, %v5923, %v5925
        %v5927 = vrot.slane %v5891, 1
        %v5928 = vsel %vm3962, %v5925, %v5927
        %v5929 = vrot.slane %v5892, 1
        %v5930 = vsel %vm3962, %v5927, %v5929
        %v5931 = vrot.slane %v5893, 1
        %v5932 = vsel %vm3962, %v5929, %v5931
        %v5933 = vrot.slane %v5894, 1
        %v5934 = vsel %vm3962, %v5931, %v5933
        %v5935 = vrot.slane %v5895, 1
        %v5936 = vsel %vm3962, %v5933, %v5935
        %v5951 = vmax.f32 %v5882, %v5912
        %v5952 = vmax.f32 %v5883, %v5914
        %v5953 = vmax.f32 %v5884, %v5916
        %v5954 = vmax.f32 %v5885, %v5918
        %v5955 = vmax.f32 %v5886, %v5920
        %v5956 = vmax.f32 %v5887, %v5922
        %v5957 = vmax.f32 %v5888, %v5924
        %v5958 = vmax.f32 %v5889, %v5926
        %v5959 = vmax.f32 %v5890, %v5928
        %v5960 = vmax.f32 %v5891, %v5930
        %v5961 = vmax.f32 %v5892, %v5932
        %v5962 = vmax.f32 %v5893, %v5934
        %v5963 = vmax.f32 %v5894, %v5936
        %v5964 = vmax.f32 %v5895, %v5935
        %v5965 = vpack.c.bf16 %v5952, %v5951
        %v5966 = vpack.c.bf16 %v5954, %v5953
        %v5967 = vpack.c.bf16 %v5956, %v5955
        %v5968 = vpack.c.bf16 %v5958, %v5957
        %v5969 = vpack.c.bf16 %v5960, %v5959
        %v5970 = vpack.c.bf16 %v5962, %v5961
        %v5971 = vpack.c.bf16 %v5964, %v5963
        %v5972 = vld [vmem:[%s10] sm:$0xf]
        %v5973 = vld [vmem:[%s10 + $0x4] sm:$0xf]
        %v5974 = vld [vmem:[%s10 + $0x8] sm:$0xf]
        %v5975 = vld [vmem:[%s10 + $0xc] sm:$0xf]
        %v5976 = vld [vmem:[%s10 + $0x10] sm:$0xf]
        %v5977 = vld [vmem:[%s10 + $0x14] sm:$0x3]
        %v5984 = vunpack.c.l.b16 %v5972
        %v5985 = vunpack.c.l.b16 %v5973
        %v5986 = vunpack.c.l.b16 %v5974
        %v5987 = vunpack.c.l.b16 %v5975
        %v5988 = vunpack.c.l.b16 %v5976
        %v5989 = vunpack.c.l.b16 %v5977
        %v5990 = vpack.c.b16 %v5985, %v5984
        %v5991 = vpack.c.b16 %v5987, %v5986
        %v5992 = vpack.c.b16 %v5989, %v5988
        %vm5993 = vcmask 908288
        %v5995 = vsel %vm5993, %v5990, 0
        %v5998 = vsel %vm5993, %v5991, 0
        %v6001 = vsel %vm5993, %v5992, 0
        %v6004 = vand.u32 %v5971, %v4217
        %6006 = vmatpush.bf16.msra.mxu0 0
        %6007 = vmatpush.bf16.msra.mxu0 %v6004
        %6008 = vmatpush.bf16.msra.mxu0 %v5970
        %6009 = vmatpush.bf16.msra.mxu0 %v5969
        %6010 = vmatpush.bf16.msra.mxu0 %v5968
        %6011 = vmatpush.bf16.msra.mxu0 %v5967
        %6012 = vmatpush.bf16.msra.mxu0 %v5966
        %6013 = vmatpush.bf16.msra.mxu0 %v5965
        %6014 = vmatmul.bf16.gmra.mxu0 %v5995
        %v6015 = vpop.f32.mrf.mxu0
        %v6016 = vadd.f32 0.0, %v6015
        %v6017 = vpop.f32.mrf.mxu0
        %v6018 = vadd.f32 0.0, %v6017
        %6019 = vmatmul.bf16.gmra.mxu0 %v5998
        %v6020 = vpop.f32.mrf.mxu0
        %v6021 = vadd.f32 0.0, %v6020
        %v6022 = vpop.f32.mrf.mxu0
        %v6023 = vadd.f32 0.0, %v6022
        %6024 = vmatmul.bf16.gmra.mxu0 %v6001
        %v6025 = vpop.f32.mrf.mxu0
        %v6026 = vadd.f32 0.0, %v6025
        %v6027 = vpop.f32.mrf.mxu0
        %v6028 = vadd.f32 0.0, %v6027
        %6029 = vdwg.mxu0
        %v6030 = vpack.c.bf16 %v6018, %v6016
        %v6031 = vpack.c.bf16 %v6023, %v6021
        %v6032 = vpack.c.bf16 %v6026, %v6026
        %v6033 = vld [vmem:[%s11] sm:$0xf]
        %v6034 = vld [vmem:[%s11 + $0x4] sm:$0xf]
        %v6035 = vld [vmem:[%s11 + $0x8] sm:$0xf]
        %v6036 = vld [vmem:[%s11 + $0xc] sm:$0xf]
        %v6037 = vld [vmem:[%s11 + $0x10] sm:$0xf]
        %v6038 = vld [vmem:[%s11 + $0x14] sm:$0xf]
        %v6039 = vld [vmem:[%s11 + $0x18] sm:$0xf]
        %v6040 = vld [vmem:[%s11 + $0x1c] sm:$0xf]
        %v6041 = vld [vmem:[%s11 + $0x20] sm:$0xf]
        %v6042 = vld [vmem:[%s11 + $0x24] sm:$0xf]
        %v6043 = vpack.c.bf16 %v6028, %v6026
        %s6044 = scalar_lea.vmem %s11, 40
        %v6045 = vld [vmem:[%s6044] sm:$0xf]
        %v6046 = vld [vmem:[%s6044 + $0x4] sm:$0xf]
        %v6047 = vld [vmem:[%s6044 + $0x8] sm:$0xf]
        %v6048 = vld [vmem:[%s6044 + $0xc] sm:$0xf]
        %v6049 = vld [vmem:[%s6044 + $0x10] sm:$0xf]
        %v6050 = vld [vmem:[%s6044 + $0x14] sm:$0xf]
        %v6051 = vld [vmem:[%s6044 + $0x18] sm:$0xf]
        %v6052 = vld [vmem:[%s6044 + $0x1c] sm:$0xf]
        %v6053 = vld [vmem:[%s6044 + $0x20] sm:$0xf]
        %v6054 = vld [vmem:[%s6044 + $0x24] sm:$0xf]
        %v6056 = vshrl.u32 %v6030, 16
        %v6058 = vshll.u32 %v6030, 16
        %v6060 = vrot.slane %v6058, 1
        %v6061 = vor.u32 %v6056, %v6060
        %v6063 = vshll.u32 %v6031, 16
        %v6065 = vrot.slane %v6063, 1
        %v6066 = vsel %vm4348, %v6061, %v6065
        %v6067 = vshrl.u32 %v6031, 16
        %v6069 = vor.u32 %v6067, %v6065
        %v6071 = vshll.u32 %v6043, 16
        %v6073 = vrot.slane %v6071, 1
        %v6074 = vsel %vm4348, %v6069, %v6073
        %v6075 = vshrl.u32 %v6043, 16
        %v6077 = vor.u32 %v6075, %v6073
        %v6088 = vunpack.c.l.b16 %v6045
        %v6089 = vunpack.c.l.b16 %v6046
        %v6090 = vunpack.c.l.b16 %v6047
        %v6091 = vunpack.c.l.b16 %v6048
        %v6092 = vunpack.c.l.b16 %v6049
        %v6093 = vunpack.c.l.b16 %v6050
        %v6094 = vunpack.c.l.b16 %v6051
        %v6095 = vunpack.c.l.b16 %v6052
        %v6096 = vunpack.c.l.b16 %v6053
        %v6097 = vunpack.c.l.b16 %v6054
        %v6098 = vpack.c.b16 %v6089, %v6088
        %v6099 = vpack.c.b16 %v6091, %v6090
        %v6100 = vpack.c.b16 %v6093, %v6092
        %v6101 = vpack.c.b16 %v6095, %v6094
        %v6102 = vpack.c.b16 %v6097, %v6096
        %vm6108 = vcmask 654336
        %v6110 = vsel %vm6108, %v6066, 0
        %v6113 = vsel %vm6108, %v6074, 0
        %v6116 = vsel %vm6108, %v6077, 0
        %6118 = vmatpush.bf16.msra.mxu0 0
        %6119 = vmatpush.bf16.msra.mxu0 0
        %6120 = vmatpush.bf16.msra.mxu0 0
        %6121 = vmatpush.bf16.msra.mxu0 %v6102
        %6122 = vmatpush.bf16.msra.mxu0 %v6101
        %6123 = vmatpush.bf16.msra.mxu0 %v6100
        %6124 = vmatpush.bf16.msra.mxu0 %v6099
        %6125 = vmatpush.bf16.msra.mxu0 %v6098
        %6126 = vmatmul.bf16.gmra.mxu0 %v6110
        %v6127 = vpop.f32.mrf.mxu0
        %v6128 = vadd.f32 0.0, %v6127
        %v6129 = vpop.f32.mrf.mxu0
        %v6130 = vadd.f32 0.0, %v6129
        %6131 = vmatmul.bf16.gmra.mxu0 %v6113
        %v6132 = vpop.f32.mrf.mxu0
        %v6133 = vadd.f32 0.0, %v6132
        %v6134 = vpop.f32.mrf.mxu0
        %v6135 = vadd.f32 0.0, %v6134
        %6136 = vmatmul.bf16.gmra.mxu0 %v6116
        %v6137 = vpop.f32.mrf.mxu0
        %v6138 = vadd.f32 0.0, %v6137
        %v6139 = vpop.f32.mrf.mxu0
        %6140 = vdwg.mxu0
        %v6151 = vunpack.c.l.b16 %v6033
        %v6152 = vunpack.c.l.b16 %v6034
        %v6153 = vunpack.c.l.b16 %v6035
        %v6154 = vunpack.c.l.b16 %v6036
        %v6155 = vunpack.c.l.b16 %v6037
        %v6156 = vunpack.c.l.b16 %v6038
        %v6157 = vunpack.c.l.b16 %v6039
        %v6158 = vunpack.c.l.b16 %v6040
        %v6159 = vunpack.c.l.b16 %v6041
        %v6160 = vunpack.c.l.b16 %v6042
        %v6161 = vpack.c.b16 %v6152, %v6151
        %v6162 = vpack.c.b16 %v6154, %v6153
        %v6163 = vpack.c.b16 %v6156, %v6155
        %v6164 = vpack.c.b16 %v6158, %v6157
        %v6165 = vpack.c.b16 %v6160, %v6159
        %v6171 = vsel %vm6108, %v6030, 0
        %v6173 = vsel %vm6108, %v6031, 0
        %v6176 = vsel %vm6108, %v6032, 0
        %6178 = vmatpush.bf16.msra.mxu0 0
        %6179 = vmatpush.bf16.msra.mxu0 0
        %6180 = vmatpush.bf16.msra.mxu0 0
        %6181 = vmatpush.bf16.msra.mxu0 %v6165
        %6182 = vmatpush.bf16.msra.mxu0 %v6164
        %6183 = vmatpush.bf16.msra.mxu0 %v6163
        %6184 = vmatpush.bf16.msra.mxu0 %v6162
        %6185 = vmatpush.bf16.msra.mxu0 %v6161
        %6186 = vmatmul.bf16.gmra.mxu0 %v6171
        %v6187 = vpop.f32.mrf.mxu0
        %v6188 = vadd.f32 %v6128, %v6187
        %v6189 = vpop.f32.mrf.mxu0
        %v6190 = vadd.f32 %v6130, %v6189
        %6191 = vmatmul.bf16.gmra.mxu0 %v6173
        %v6192 = vpop.f32.mrf.mxu0
        %v6193 = vadd.f32 %v6133, %v6192
        %v6194 = vpop.f32.mrf.mxu0
        %v6195 = vadd.f32 %v6135, %v6194
        %6196 = vmatmul.bf16.gmra.mxu0 %v6176
        %v6197 = vpop.f32.mrf.mxu0
        %v6198 = vadd.f32 %v6138, %v6197
        %v6199 = vpop.f32.mrf.mxu0
        %6200 = vdwg.mxu0
        %s6201 = scalar_lea.vmem %s11, 80
        %v6202 = vld [vmem:[%s6201] sm:$0xf]
        %v6203 = vld [vmem:[%s6201 + $0x4] sm:$0xf]
        %v6204 = vld [vmem:[%s6201 + $0x8] sm:$0xf]
        %v6205 = vld [vmem:[%s6201 + $0xc] sm:$0xf]
        %v6206 = vld [vmem:[%s6201 + $0x10] sm:$0xf]
        %v6207 = vld [vmem:[%s6201 + $0x14] sm:$0xf]
        %v6208 = vld [vmem:[%s6201 + $0x18] sm:$0xf]
        %v6209 = vld [vmem:[%s6201 + $0x1c] sm:$0xf]
        %v6210 = vld [vmem:[%s6201 + $0x20] sm:$0xf]
        %v6211 = vld [vmem:[%s6201 + $0x24] sm:$0xf]
        %v6215 = vrot.slane %v6030, 1
        %v6216 = vrot.slane %v6031, 1
        %v6217 = vsel %vm4764, %v6215, %v6216
        %v6218 = vrot.slane %v6043, 1
        %v6219 = vsel %vm4764, %v6216, %v6218
        %v6230 = vunpack.c.l.b16 %v6202
        %v6231 = vunpack.c.l.b16 %v6203
        %v6232 = vunpack.c.l.b16 %v6204
        %v6233 = vunpack.c.l.b16 %v6205
        %v6234 = vunpack.c.l.b16 %v6206
        %v6235 = vunpack.c.l.b16 %v6207
        %v6236 = vunpack.c.l.b16 %v6208
        %v6237 = vunpack.c.l.b16 %v6209
        %v6238 = vunpack.c.l.b16 %v6210
        %v6239 = vunpack.c.l.b16 %v6211
        %v6240 = vpack.c.b16 %v6231, %v6230
        %v6241 = vpack.c.b16 %v6233, %v6232
        %v6242 = vpack.c.b16 %v6235, %v6234
        %v6243 = vpack.c.b16 %v6237, %v6236
        %v6244 = vpack.c.b16 %v6239, %v6238
        %v6251 = vsel %vm6108, %v6217, 0
        %v6254 = vsel %vm6108, %v6219, 0
        %v6257 = vsel %vm6108, %v6218, 0
        %6259 = vmatpush.bf16.msra.mxu0 0
        %6260 = vmatpush.bf16.msra.mxu0 0
        %6261 = vmatpush.bf16.msra.mxu0 0
        %6262 = vmatpush.bf16.msra.mxu0 %v6244
        %6263 = vmatpush.bf16.msra.mxu0 %v6243
        %6264 = vmatpush.bf16.msra.mxu0 %v6242
        %6265 = vmatpush.bf16.msra.mxu0 %v6241
        %6266 = vmatpush.bf16.msra.mxu0 %v6240
        %6267 = vmatmul.bf16.gmra.mxu0 %v6251
        %v6268 = vpop.f32.mrf.mxu0
        %v6269 = vadd.f32 0.0, %v6268
        %v6270 = vpop.f32.mrf.mxu0
        %v6271 = vadd.f32 0.0, %v6270
        %6272 = vmatmul.bf16.gmra.mxu0 %v6254
        %v6273 = vpop.f32.mrf.mxu0
        %v6274 = vadd.f32 0.0, %v6273
        %v6275 = vpop.f32.mrf.mxu0
        %v6276 = vadd.f32 0.0, %v6275
        %6277 = vmatmul.bf16.gmra.mxu0 %v6257
        %v6278 = vpop.f32.mrf.mxu0
        %v6279 = vadd.f32 0.0, %v6278
        %v6280 = vpop.f32.mrf.mxu0
        %6281 = vdwg.mxu0
        %v6282 = vadd.f32 %v6188, %v6269
        %v6283 = vadd.f32 %v6190, %v6271
        %v6284 = vadd.f32 %v6193, %v6274
        %v6285 = vadd.f32 %v6195, %v6276
        %v6286 = vadd.f32 %v6198, %v6279
        %s6287 = scalar_lea.vmem %s11, 120
        %v6288 = vld [vmem:[%s6287] sm:$0xf]
        %v6289 = vld [vmem:[%s6287 + $0x4] sm:$0xf]
        %v6290 = vld [vmem:[%s6287 + $0x8] sm:$0xf]
        %v6291 = vld [vmem:[%s6287 + $0xc] sm:$0xf]
        %v6292 = vld [vmem:[%s6287 + $0x10] sm:$0xf]
        %v6293 = vld [vmem:[%s6287 + $0x14] sm:$0xf]
        %v6294 = vld [vmem:[%s6287 + $0x18] sm:$0xf]
        %v6295 = vld [vmem:[%s6287 + $0x1c] sm:$0xf]
        %v6296 = vld [vmem:[%s6287 + $0x20] sm:$0xf]
        %v6297 = vld [vmem:[%s6287 + $0x24] sm:$0xf]
        %v6298 = vrot.slane %v6056, 1
        %v6299 = vrot.slane %v6058, 2
        %v6300 = vor.u32 %v6298, %v6299
        %v6301 = vrot.slane %v6067, 1
        %v6302 = vrot.slane %v6063, 2
        %v6303 = vor.u32 %v6301, %v6302
        %v6304 = vsel %vm4990, %v6300, %v6303
        %v6305 = vrot.slane %v6075, 1
        %v6306 = vrot.slane %v6071, 2
        %v6307 = vor.u32 %v6305, %v6306
        %v6308 = vsel %vm4990, %v6303, %v6307
        %v6319 = vunpack.c.l.b16 %v6288
        %v6320 = vunpack.c.l.b16 %v6289
        %v6321 = vunpack.c.l.b16 %v6290
        %v6322 = vunpack.c.l.b16 %v6291
        %v6323 = vunpack.c.l.b16 %v6292
        %v6324 = vunpack.c.l.b16 %v6293
        %v6325 = vunpack.c.l.b16 %v6294
        %v6326 = vunpack.c.l.b16 %v6295
        %v6327 = vunpack.c.l.b16 %v6296
        %v6328 = vunpack.c.l.b16 %v6297
        %v6329 = vpack.c.b16 %v6320, %v6319
        %v6330 = vpack.c.b16 %v6322, %v6321
        %v6331 = vpack.c.b16 %v6324, %v6323
        %v6332 = vpack.c.b16 %v6326, %v6325
        %v6333 = vpack.c.b16 %v6328, %v6327
        %v6340 = vsel %vm6108, %v6304, 0
        %v6343 = vsel %vm6108, %v6308, 0
        %v6346 = vsel %vm6108, %v6307, 0
        %6348 = vmatpush.bf16.msra.mxu0 0
        %6349 = vmatpush.bf16.msra.mxu0 0
        %6350 = vmatpush.bf16.msra.mxu0 0
        %6351 = vmatpush.bf16.msra.mxu0 %v6333
        %6352 = vmatpush.bf16.msra.mxu0 %v6332
        %6353 = vmatpush.bf16.msra.mxu0 %v6331
        %6354 = vmatpush.bf16.msra.mxu0 %v6330
        %6355 = vmatpush.bf16.msra.mxu0 %v6329
        %6356 = vmatmul.bf16.gmra.mxu0 %v6340
        %v6357 = vpop.f32.mrf.mxu0
        %v6358 = vadd.f32 0.0, %v6357
        %v6359 = vpop.f32.mrf.mxu0
        %v6360 = vadd.f32 0.0, %v6359
        %6361 = vmatmul.bf16.gmra.mxu0 %v6343
        %v6362 = vpop.f32.mrf.mxu0
        %v6363 = vadd.f32 0.0, %v6362
        %v6364 = vpop.f32.mrf.mxu0
        %v6365 = vadd.f32 0.0, %v6364
        %6366 = vmatmul.bf16.gmra.mxu0 %v6346
        %v6367 = vpop.f32.mrf.mxu0
        %v6368 = vadd.f32 0.0, %v6367
        %v6369 = vpop.f32.mrf.mxu0
        %6370 = vdwg.mxu0
        %v6371 = vadd.f32 %v6282, %v6358
        %v6372 = vadd.f32 %v6283, %v6360
        %v6373 = vadd.f32 %v6284, %v6363
        %v6374 = vadd.f32 %v6285, %v6365
        %v6375 = vadd.f32 %v6286, %v6368
        %s6376 = scalar_lea.vmem %s11, 160
        %v6377 = vld [vmem:[%s6376] sm:$0xf]
        %v6378 = vld [vmem:[%s6376 + $0x4] sm:$0xf]
        %v6379 = vld [vmem:[%s6376 + $0x8] sm:$0xf]
        %v6380 = vld [vmem:[%s6376 + $0xc] sm:$0xf]
        %v6381 = vld [vmem:[%s6376 + $0x10] sm:$0xf]
        %v6382 = vld [vmem:[%s6376 + $0x14] sm:$0xf]
        %v6383 = vld [vmem:[%s6376 + $0x18] sm:$0xf]
        %v6384 = vld [vmem:[%s6376 + $0x1c] sm:$0xf]
        %v6385 = vld [vmem:[%s6376 + $0x20] sm:$0xf]
        %v6386 = vld [vmem:[%s6376 + $0x24] sm:$0xf]
        %v6387 = vrot.slane %v6030, 2
        %v6388 = vrot.slane %v6031, 2
        %v6389 = vsel %vm5234, %v6387, %v6388
        %v6390 = vrot.slane %v6043, 2
        %v6391 = vsel %vm5234, %v6388, %v6390
        %v6402 = vunpack.c.l.b16 %v6377
        %v6403 = vunpack.c.l.b16 %v6378
        %v6404 = vunpack.c.l.b16 %v6379
        %v6405 = vunpack.c.l.b16 %v6380
        %v6406 = vunpack.c.l.b16 %v6381
        %v6407 = vunpack.c.l.b16 %v6382
        %v6408 = vunpack.c.l.b16 %v6383
        %v6409 = vunpack.c.l.b16 %v6384
        %v6410 = vunpack.c.l.b16 %v6385
        %v6411 = vunpack.c.l.b16 %v6386
        %v6412 = vpack.c.b16 %v6403, %v6402
        %v6413 = vpack.c.b16 %v6405, %v6404
        %v6414 = vpack.c.b16 %v6407, %v6406
        %v6415 = vpack.c.b16 %v6409, %v6408
        %v6416 = vpack.c.b16 %v6411, %v6410
        %v6423 = vsel %vm6108, %v6389, 0
        %v6426 = vsel %vm6108, %v6391, 0
        %v6429 = vsel %vm6108, %v6390, 0
        %6431 = vmatpush.bf16.msra.mxu0 0
        %6432 = vmatpush.bf16.msra.mxu0 0
        %6433 = vmatpush.bf16.msra.mxu0 0
        %6434 = vmatpush.bf16.msra.mxu0 %v6416
        %6435 = vmatpush.bf16.msra.mxu0 %v6415
        %6436 = vmatpush.bf16.msra.mxu0 %v6414
        %6437 = vmatpush.bf16.msra.mxu0 %v6413
        %6438 = vmatpush.bf16.msra.mxu0 %v6412
        %6439 = vmatmul.bf16.gmra.mxu0 %v6423
        %v6440 = vpop.f32.mrf.mxu0
        %v6441 = vadd.f32 0.0, %v6440
        %v6442 = vpop.f32.mrf.mxu0
        %v6443 = vadd.f32 0.0, %v6442
        %6444 = vmatmul.bf16.gmra.mxu0 %v6426
        %v6445 = vpop.f32.mrf.mxu0
        %v6446 = vadd.f32 0.0, %v6445
        %v6447 = vpop.f32.mrf.mxu0
        %v6448 = vadd.f32 0.0, %v6447
        %6449 = vmatmul.bf16.gmra.mxu0 %v6429
        %v6450 = vpop.f32.mrf.mxu0
        %v6451 = vadd.f32 0.0, %v6450
        %v6452 = vpop.f32.mrf.mxu0
        %6453 = vdwg.mxu0
        %v6454 = vadd.f32 %v6371, %v6441
        %v6455 = vadd.f32 %v6372, %v6443
        %v6456 = vadd.f32 %v6373, %v6446
        %v6457 = vadd.f32 %v6374, %v6448
        %v6458 = vadd.f32 %v6375, %v6451
        %v6459 = vld [vmem:[%s12] sm:$0x1]
        %v6461 = vperm.slane %v6459, 0
        %v6463 = vadd.f32 %v6454, %v6461
        %v6464 = vadd.f32 %v6455, %v6461
        %v6465 = vadd.f32 %v6456, %v6461
        %v6466 = vadd.f32 %v6457, %v6461
        %v6467 = vadd.f32 %v6458, %v6461
        %v6468 = vtanh.pop %v6463
        %v6469 = vtanh.pop %v6464
        %v6470 = vtanh.pop %v6465
        %v6471 = vtanh.pop %v6466
        %v6472 = vtanh.pop %v6467
        %v6473 = vpack.c.bf16 %v6469, %v6468
        %v6474 = vpack.c.bf16 %v6471, %v6470
        %v6475 = vpack.c.bf16 %v6472, %v6472
        %v6476 = vld [vmem:[%s13] sm:$0xf]
        %v6478 = vsel %vm869, %v6476, 0
        %v6481 = vsel %vm3451, %v6475, 0
        %6483 = vmatpush.bf16.msra.mxu0 0
        %6484 = vmatpush.bf16.msra.mxu0 0
        %6485 = vmatpush.bf16.msra.mxu0 0
        %6486 = vmatpush.bf16.msra.mxu0 0
        %6487 = vmatpush.bf16.msra.mxu0 0
        %6488 = vmatpush.bf16.msra.mxu0 %v6481
        %6489 = vmatpush.bf16.msra.mxu0 %v6474
        %6490 = vmatpush.bf16.msra.mxu0 %v6473
        %6491 = vmatmul.bf16.gmra.mxu0 %v6478
        %v6492 = vpop.f32.mrf.mxu0
        %v6493 = vadd.f32 0.0, %v6492
        %v6494 = vpop.f32.mrf.mxu0
        %6495 = vdwg.mxu0
        %v6496 = vpack.c.bf16 %v6493, %v6493
        %v6497 = vld [vmem:[%s14] sm:$0xf]
        %v6498 = vld [vmem:[%s14 + $0x4] sm:$0xf]
        %v6499 = vld [vmem:[%s14 + $0x8] sm:$0xf]
        %v6500 = vld [vmem:[%s14 + $0xc] sm:$0xf]
        %v6501 = vld [vmem:[%s14 + $0x10] sm:$0xf]
        %v6502 = vld [vmem:[%s14 + $0x14] sm:$0xf]
        %v6503 = vld [vmem:[%s14 + $0x18] sm:$0xf]
        %v6504 = vld [vmem:[%s14 + $0x1c] sm:$0xf]
        %v6505 = vld [vmem:[%s14 + $0x20] sm:$0xf]
        %v6506 = vld [vmem:[%s14 + $0x24] sm:$0xf]
        %v6507 = vld [vmem:[%s14 + $0x28] sm:$0xf]
        %v6508 = vld [vmem:[%s14 + $0x2c] sm:$0xf]
        %v6509 = vld [vmem:[%s14 + $0x30] sm:$0xf]
        %v6510 = vld [vmem:[%s14 + $0x34] sm:$0xf]
        %v6511 = vld [vmem:[%s14 + $0x38] sm:$0xf]
        %v6512 = vld [vmem:[%s14 + $0x3c] sm:$0xf]
        %v6513 = vld [vmem:[%s15] sm:$0x1]
        %v6515 = vperm.slane %v6513, 0
        %v6533 = vunpack.c.l.b16 %v6497
        %v6534 = vunpack.c.l.b16 %v6498
        %v6535 = vunpack.c.l.b16 %v6499
        %v6536 = vunpack.c.l.b16 %v6500
        %v6537 = vunpack.c.l.b16 %v6501
        %v6538 = vunpack.c.l.b16 %v6502
        %v6539 = vunpack.c.l.b16 %v6503
        %v6540 = vunpack.c.l.b16 %v6504
        %v6541 = vunpack.c.l.b16 %v6505
        %v6542 = vunpack.c.l.b16 %v6506
        %v6543 = vunpack.c.l.b16 %v6507
        %v6544 = vunpack.c.l.b16 %v6508
        %v6545 = vunpack.c.l.b16 %v6509
        %v6546 = vunpack.c.l.b16 %v6510
        %v6547 = vunpack.c.l.b16 %v6511
        %v6548 = vunpack.c.l.b16 %v6512
        %v6549 = vpack.c.b16 %v6534, %v6533
        %v6550 = vpack.c.b16 %v6536, %v6535
        %v6551 = vpack.c.b16 %v6538, %v6537
        %v6552 = vpack.c.b16 %v6540, %v6539
        %v6553 = vpack.c.b16 %v6542, %v6541
        %v6554 = vpack.c.b16 %v6544, %v6543
        %v6555 = vpack.c.b16 %v6546, %v6545
        %v6556 = vpack.c.b16 %v6548, %v6547
        %6565 = vmatpush.bf16.msra.mxu0 %v6556
        %6566 = vmatpush.bf16.msra.mxu0 %v6555
        %6567 = vmatpush.bf16.msra.mxu0 %v6554
        %6568 = vmatpush.bf16.msra.mxu0 %v6553
        %6569 = vmatpush.bf16.msra.mxu0 %v6552
        %6570 = vmatpush.bf16.msra.mxu0 %v6551
        %6571 = vmatpush.bf16.msra.mxu0 %v6550
        %6572 = vmatpush.bf16.msra.mxu0 %v6549
        %6573 = vmatmul.bf16.gmra.mxu0 %v6496
        %v6574 = vpop.f32.mrf.mxu0
        %v6575 = vadd.f32 %v6515, %v6574
        %v6576 = vpop.f32.mrf.mxu0
        %6577 = vdwg.mxu0
        %6578 = vst [vmem:[%s514] sm:$0xff] %v6575
        %s6579 = sand.u32 %s379, 1
        %s6580 = scalar_lea.sflag [#allocation4], %s6579
        %s6581 = sand.u32 %s379, 1
        %s6582 = smul.addr %s6581, 8
        %s6583 = scalar_lea.vmem [#allocation3], %s6582
        // Predicated region
        $region85: #{net_cifar100_forward.1} parent=83 // pred_check
          %p6584 = pneg %p389
        $region86: #{net_cifar100_forward.1} parent=83 // pred_check_branch
          %6586 = sbr.rel (%p6584) target = $region88
        $region87: #{net_cifar100_forward.1} parent=83 // pred_region
          %6588 = vsyncadd %s6580, 0
          %s6589 = smul.addr %s30, 8
          %s6590 = scalar_lea.hbm %s16, %s6589
          %s6592 = sshll.u32 %s6583, 4
          %s6593 = int_to_ptr.vmem [resolvable:$true] %s6592
          %s6594 = sshll.u32 %s6590, 4
          %s6595 = int_to_ptr.hbm [resolvable:$true] %s6594
          %6597 = dma.vmem_to_hbm [thread:$0]  %s6593, 128, %s6595, %s6580
        $region88: #{net_cifar100_forward.1} parent=83 // pred_fallthru
          _
      $region84: #{net_cifar100_forward.1} parent=5 // pred_fallthru
        _
      %p6598 = scmp.le.s32.totalorder 2, %s25
      // Predicated region
      $region89: #{net_cifar100_forward.1} parent=5 // pred_check
        %p6599 = pneg %p6598
      $region90: #{net_cifar100_forward.1} parent=5 // pred_check_branch
        %6601 = sbr.rel (%p6599) target = $region92
      $region91: #{net_cifar100_forward.1} parent=5 // pred_region
        %s6602 = ssub.s32 %s25, 2
        // Predicated region
        $region93: #{net_cifar100_forward.1} parent=91 // pred_check
          %p6603 = pneg %p395
        $region94: #{net_cifar100_forward.1} parent=91 // pred_check_branch
          %6605 = sbr.rel (%p6603) target = $region96
        $region95: #{net_cifar100_forward.1} parent=91 // pred_region
          %s6606 = sand.u32 %s380, 1
          %s6607 = scalar_lea.sflag [#allocation4], %s6606
          %s6608 = sand.u32 %s380, 1
          %s6609 = smul.addr %s6608, 8
          %s6610 = scalar_lea.vmem [#allocation3], %s6609
          %6612 = dma.done %s6607, 128
        $region96: #{net_cifar100_forward.1} parent=91 // pred_fallthru
          _
      $region92: #{net_cifar100_forward.1} parent=5 // pred_fallthru
        _
    $region6: #{net_cifar100_forward.1} parent=1 // loop_footer
      %s29 = sadd.s32 1, %s25
    $region7: #{net_cifar100_forward.1} parent=1 // loop_footer_branch
      %24 = sbr.rel target = $region3
    $region8: #{net_cifar100_forward.1} parent=1 // loop_exit
      _
    %6613 = vsyncpa [#allocation4], 1
    %s6614 = scalar_lea.sflag [#allocation4], 1
    %6615 = vsyncpa %s6614, 1

</llo_original>
